<compile_context>
chip_gen: v7x
topology: tpu7x:2x2x1
jax: 0.10.0
libtpu: 0.0.40
codegen_flags: <defaults>
</compile_context>

<pallas_src>
import numpy as np
import jax
import jax.numpy as jnp
from jax import lax
from jax.experimental import pallas as pl
from jax.experimental.pallas import tpu as pltpu

EXPANSION = 4
BN_EPS = 1e-5
LANE = 128


def _round_up(n, m):
    return ((n + m - 1) // m) * m


# ----------------------------- Pallas kernel ----------------------------------
def _make_kernel(H, W, stride, planes_p, has_downsample, padr):
    """Builds a bottleneck kernel specialized on static shapes / config."""
    Ho, Wo = H // stride, W // stride
    HW, HoWo = H * W, Ho * Wo
    inv_ss = 1.0 / float(stride * stride)

    def _avgpool_from_ref(src_ref, C):
        # (H*W, C) f32 ref -> (Ho*Wo, C) f32 value: mean over stride x stride windows.
        # W direction: strided sublane reads; H direction: leading-dim split + sum (VPU only).
        wp = src_ref[pl.ds(0, H * Wo, stride=stride), :].astype(jnp.float32)
        for si in range(1, stride):
            wp = wp + src_ref[pl.ds(si, H * Wo, stride=stride), :].astype(jnp.float32)
        t = wp.reshape(Ho, stride, Wo, C)
        t = jnp.sum(t, axis=1)                       # pool along H
        return t.reshape(HoWo, C) * inv_ss

    def kernel(x_ref, w1_ref, s1_ref, b1_ref,
               w2_ref, s2_ref, b2_ref, ml_ref, mr_ref,
               w3_ref, s3_ref, b3_ref, *rest):
        if has_downsample:
            wd_ref, sd_ref, bd_ref, o_ref, pad_ref, acc_ref = rest
        else:
            o_ref, pad_ref, acc_ref = rest

        x = x_ref[...]                                               # (HW, Cin_p) f32

        # ---- conv1 (1x1, no bias) + bn1 + relu ----
        h = jnp.dot(x.astype(jnp.bfloat16), w1_ref[...],
                    preferred_element_type=jnp.float32)              # (HW, P) f32
        h = jnp.maximum(h * s1_ref[...] + b1_ref[...], 0.0)

        # ---- conv2 (3x3, pad=1, no bias) + bn2 + relu ----
        # Vertical zero-padding comes from the scratch layout (h stored at row offset `padr`,
        # zero bands above/below); horizontal wrap is killed by the precomputed edge masks.
        zpad = jnp.zeros((padr, planes_p), jnp.float32)
        pad_ref[pl.ds(0, padr), :] = zpad
        pad_ref[pl.ds(padr + HW, padr), :] = zpad
        pad_ref[pl.ds(padr, HW), :] = h

        ml = ml_ref[...]                                             # (HW, 1) f32
        mr = mr_ref[...]
        acc_ref[...] = jnp.zeros_like(acc_ref)
        for ky in range(3):
            for kx in range(3):
                start = padr + (ky - 1) * W + (kx - 1)
                t = pad_ref[pl.ds(start, HW), :]                     # (HW, P) f32
                if kx == 0:
                    t = t * ml
                elif kx == 2:
                    t = t * mr
                acc_ref[...] += jnp.dot(t.astype(jnp.bfloat16),
                                        w2_ref[ky * 3 + kx],
                                        preferred_element_type=jnp.float32)
        # bn2 + relu written back in place so pooling can do strided reads from the ref
        acc_ref[...] = jnp.maximum(acc_ref[...] * s2_ref[...] + b2_ref[...], 0.0)

        # ---- avgpool(stride) (identity when stride == 1 -> skipped) ----
        hp = _avgpool_from_ref(acc_ref, planes_p) if stride > 1 else acc_ref[...]

        # ---- conv3 (1x1, no bias) + bn3 ----
        h3 = jnp.dot(hp.astype(jnp.bfloat16), w3_ref[...],
                     preferred_element_type=jnp.float32)             # (HoWo, Cout_p) f32
        h3 = h3 * s3_ref[...] + b3_ref[...]

        # ---- identity / downsample branch ----
        if has_downsample:
            xp = _avgpool_from_ref(x_ref, x.shape[-1]) if stride > 1 else x
            idn = jnp.dot(xp.astype(jnp.bfloat16), wd_ref[...],
                          preferred_element_type=jnp.float32)
            idn = idn * sd_ref[...] + bd_ref[...]
        else:
            idn = x                                                  # Cin_p == Cout_p, stride == 1

        o_ref[...] = jnp.maximum(h3 + idn, 0.0)

    return kernel


# ----------------------------- parameter helpers -------------------------------
def fold_bn(gamma, beta, mean, var, cpad, eps=BN_EPS):
    scale = gamma / jnp.sqrt(var + eps)
    bias = beta - mean * scale
    c = gamma.shape[0]
    s = jnp.zeros((1, cpad), jnp.float32).at[0, :c].set(scale)
    b = jnp.zeros((1, cpad), jnp.float32).at[0, :c].set(bias)
    return s, b


def _pad_mat(w, rows_p, cols_p, dtype=jnp.bfloat16):
    r, c = w.shape
    return jnp.zeros((rows_p, cols_p), jnp.float32).at[:r, :c].set(w).astype(dtype)


def init_params(key, inplanes, planes):
    ks = jax.random.split(key, 4)
    cout = planes * EXPANSION

    def bn_params(c, k):
        g = 1.0 + 0.05 * jnp.arange(c, dtype=jnp.float32)
        b = 0.01 * jnp.arange(c, dtype=jnp.float32)
        m = 0.1 * jax.random.normal(k, (c,), jnp.float32)
        v = 0.5 + 0.5 * jax.random.uniform(jax.random.fold_in(k, 1), (c,), jnp.float32)
        return g, b, m, v

    return {
        "conv1_w": 0.2 * jax.random.normal(ks[0], (planes, inplanes, 1, 1), jnp.float32),
        "conv2_w": 0.1 * jax.random.normal(ks[1], (planes, planes, 3, 3), jnp.float32),
        "conv3_w": 0.2 * jax.random.normal(ks[2], (cout, planes, 1, 1), jnp.float32),
        "down_w": 0.2 * jax.random.normal(ks[3], (cout, inplanes, 1, 1), jnp.float32),
        "bn1": bn_params(planes, jax.random.fold_in(key, 10)),
        "bn2": bn_params(planes, jax.random.fold_in(key, 11)),
        "bn3": bn_params(cout, jax.random.fold_in(key, 12)),
        "bnd": bn_params(cout, jax.random.fold_in(key, 13)),
    }


# ----------------------------- wrapper ------------------------------------------
def bottleneck_pallas(x_nchw, params, inplanes, planes, stride):
    N, C, H, W = x_nchw.shape
    assert C == inplanes
    assert H % stride == 0 and W % stride == 0
    cout = planes * EXPANSION
    has_downsample = stride > 1 or inplanes != cout
    if not has_downsample:
        assert inplanes == cout and stride == 1
    Ho, Wo = H // stride, W // stride
    HW, HoWo = H * W, Ho * Wo

    cin_p = _round_up(inplanes, LANE)
    planes_p = _round_up(planes, LANE)
    cout_p = _round_up(cout, LANE)
    padr = _round_up(W + 1, 8)                     # zero band above/below the image rows

    # activations: NCHW -> (N, HW, Cin_p) channels-last, lane-padded, f32
    x_flat = jnp.transpose(x_nchw, (0, 2, 3, 1)).reshape(N, HW, inplanes)
    x_p = jnp.zeros((N, HW, cin_p), jnp.float32).at[:, :, :inplanes].set(x_flat)

    # weights as lane-padded bf16 matmul matrices, BN folded to per-channel affine (f32)
    w1 = _pad_mat(params["conv1_w"][:, :, 0, 0].T, cin_p, planes_p)
    w2_raw = jnp.stack([params["conv2_w"][:, :, ky, kx].T
                        for ky in range(3) for kx in range(3)], axis=0)
    w2 = (jnp.zeros((9, planes_p, planes_p), jnp.float32)
          .at[:, :planes, :planes].set(w2_raw).astype(jnp.bfloat16))
    w3 = _pad_mat(params["conv3_w"][:, :, 0, 0].T, planes_p, cout_p)
    s1, b1 = fold_bn(*params["bn1"], planes_p)
    s2, b2 = fold_bn(*params["bn2"], planes_p)
    s3, b3 = fold_bn(*params["bn3"], cout_p)

    # edge masks for the horizontal 3x3 taps (0 at the column that wrapped, else 1)
    col = np.arange(HW, dtype=np.int64) % W
    mask_l = jnp.asarray((col != 0).astype(np.float32).reshape(HW, 1))
    mask_r = jnp.asarray((col != W - 1).astype(np.float32).reshape(HW, 1))

    inputs = [x_p, w1, s1, b1, w2, s2, b2, mask_l, mask_r, w3, s3, b3]

    def _full(arr):
        nd = arr.ndim
        return pl.BlockSpec(arr.shape, lambda n: (0,) * nd)

    in_specs = [pl.BlockSpec((None, HW, cin_p), lambda n: (n, 0, 0))]
    in_specs += [_full(a) for a in inputs[1:]]

    if has_downsample:
        wd = _pad_mat(params["down_w"][:, :, 0, 0].T, cin_p, cout_p)
        sd, bd = fold_bn(*params["bnd"], cout_p)
        inputs += [wd, sd, bd]
        in_specs += [_full(wd), _full(sd), _full(bd)]

    kernel = _make_kernel(H, W, stride, planes_p, has_downsample, padr)

    flops = int(2 * N * (HW * cin_p * planes_p + 9 * HW * planes_p * planes_p
                         + HoWo * planes_p * cout_p
                         + (HoWo * cin_p * cout_p if has_downsample else 0)))
    bytes_accessed = int(x_p.size * 4 + N * HoWo * cout_p * 4
                         + sum(int(np.prod(a.shape)) * a.dtype.itemsize for a in inputs[1:]))

    out_p = pl.pallas_call(
        kernel,
        out_shape=jax.ShapeDtypeStruct((N, HoWo, cout_p), jnp.float32),
        grid=(N,),
        in_specs=in_specs,
        out_specs=pl.BlockSpec((None, HoWo, cout_p), lambda n: (n, 0, 0)),
        scratch_shapes=[
            pltpu.VMEM((2 * padr + HW, planes_p), jnp.float32),   # vertically padded conv2 input
            pltpu.VMEM((HW, planes_p), jnp.float32),              # conv2 f32 accumulator / bn2 out
        ],
        compiler_params=pltpu.CompilerParams(
            dimension_semantics=("parallel",),
            vmem_limit_bytes=64 * 1024 * 1024,
        ),
        cost_estimate=pl.CostEstimate(flops=flops, transcendentals=0,
                                      bytes_accessed=bytes_accessed),
    )(*inputs)

    out = out_p[:, :, :cout].reshape(N, Ho, Wo, cout)
    return jnp.transpose(out, (0, 3, 1, 2))


# ----------------------------- pure-JAX reference (NCHW) ------------------------
def bottleneck_reference(x, params, inplanes, planes, stride):
    dn = ("NCHW", "OIHW", "NCHW")
    hi = lax.Precision.HIGHEST

    def conv(x, w, pad):
        return lax.conv_general_dilated(x, w, (1, 1), pad, dimension_numbers=dn, precision=hi)

    def bn(x, gamma, beta, mean, var):
        s = gamma / jnp.sqrt(var + BN_EPS)
        return x * s[None, :, None, None] + (beta - mean * s)[None, :, None, None]

    def avgpool(x, s):
        if s == 1:
            return x
        y = lax.reduce_window(x, 0.0, lax.add, (1, 1, s, s), (1, 1, s, s), "VALID")
        return y / (s * s)

    cout = planes * EXPANSION
    out = jax.nn.relu(bn(conv(x, params["conv1_w"], "VALID"), *params["bn1"]))
    out = jax.nn.relu(bn(conv(out, params["conv2_w"], ((1, 1), (1, 1))), *params["bn2"]))
    out = avgpool(out, stride)
    out = bn(conv(out, params["conv3_w"], "VALID"), *params["bn3"])
    if stride > 1 or inplanes != cout:
        idn = bn(conv(avgpool(x, stride), params["down_w"], "VALID"), *params["bnd"])
    else:
        idn = x
    return jax.nn.relu(out + idn)


# ----------------------------- main ----------------------------------------------
if __name__ == "__main__":
    key = jax.random.PRNGKey(0)
    configs = [
        # (inplanes, planes, stride, N, H, W)
        (4, 4, 2, 2, 16, 16),    # downsample branch (stride > 1)
        (16, 4, 1, 2, 16, 16),   # identity branch (stride 1, no downsample)
    ]
    for i, (inplanes, planes, stride, N, H, W) in enumerate(configs):
        kx, kp = jax.random.split(jax.random.fold_in(key, i))
        x = jax.random.normal(kx, (N, inplanes, H, W), jnp.float32)
        params = init_params(kp, inplanes, planes)

        out = jax.block_until_ready(bottleneck_pallas(x, params, inplanes, planes, stride))
        ref = bottleneck_reference(x, params, inplanes, planes, stride)

        assert out.shape == ref.shape == (N, planes * EXPANSION, H // stride, W // stride)
        max_err = float(jnp.max(jnp.abs(out - ref)))
        assert jnp.allclose(out, ref, atol=3e-2, rtol=3e-2), max_err   # bf16 matmul tolerance

    print("KERNEL_OK")
</pallas_src>

<mosaic_0001>
module attributes {stable_mosaic.version = 11 : i64} {
  func.func @kernel(%arg0: i32, %arg1: memref<1x256x128xf32, #tpu.memory_space<vmem>>, %arg2: memref<128x128xbf16, #tpu.memory_space<vmem>>, %arg3: memref<1x128xf32, #tpu.memory_space<vmem>>, %arg4: memref<1x128xf32, #tpu.memory_space<vmem>>, %arg5: memref<9x128x128xbf16, #tpu.memory_space<vmem>>, %arg6: memref<1x128xf32, #tpu.memory_space<vmem>>, %arg7: memref<1x128xf32, #tpu.memory_space<vmem>>, %arg8: memref<256x1xf32, #tpu.memory_space<vmem>>, %arg9: memref<256x1xf32, #tpu.memory_space<vmem>>, %arg10: memref<128x128xbf16, #tpu.memory_space<vmem>>, %arg11: memref<1x128xf32, #tpu.memory_space<vmem>>, %arg12: memref<1x128xf32, #tpu.memory_space<vmem>>, %arg13: memref<128x128xbf16, #tpu.memory_space<vmem>>, %arg14: memref<1x128xf32, #tpu.memory_space<vmem>>, %arg15: memref<1x128xf32, #tpu.memory_space<vmem>>, %arg16: memref<1x64x128xf32, #tpu.memory_space<vmem>>, %arg17: memref<304x128xf32, #tpu.memory_space<vmem>>, %arg18: memref<256x128xf32, #tpu.memory_space<vmem>>) attributes {dimension_semantics = [#tpu.dimension_semantics<parallel>], iteration_bounds = array<i64: 2>, scalar_prefetch = 0 : i64, scratch_operands = 2 : i64, tpu.core_type = #tpu.core_type<tc>, window_params = [{transform_indices = @transform_0, window_bounds = array<i64: 1, 256, 128>}, {pipeline_mode = #tpu.pipeline_mode<synchronous>, transform_indices = @transform_1, window_bounds = array<i64: 128, 128>}, {pipeline_mode = #tpu.pipeline_mode<synchronous>, transform_indices = @transform_2, window_bounds = array<i64: 1, 128>}, {pipeline_mode = #tpu.pipeline_mode<synchronous>, transform_indices = @transform_3, window_bounds = array<i64: 1, 128>}, {pipeline_mode = #tpu.pipeline_mode<synchronous>, transform_indices = @transform_4, window_bounds = array<i64: 9, 128, 128>}, {pipeline_mode = #tpu.pipeline_mode<synchronous>, transform_indices = @transform_5, window_bounds = array<i64: 1, 128>}, {pipeline_mode = #tpu.pipeline_mode<synchronous>, transform_indices = @transform_6, window_bounds = array<i64: 1, 128>}, {pipeline_mode = #tpu.pipeline_mode<synchronous>, transform_indices = @transform_7, window_bounds = array<i64: 256, 1>}, {pipeline_mode = #tpu.pipeline_mode<synchronous>, transform_indices = @transform_8, window_bounds = array<i64: 256, 1>}, {pipeline_mode = #tpu.pipeline_mode<synchronous>, transform_indices = @transform_9, window_bounds = array<i64: 128, 128>}, {pipeline_mode = #tpu.pipeline_mode<synchronous>, transform_indices = @transform_10, window_bounds = array<i64: 1, 128>}, {pipeline_mode = #tpu.pipeline_mode<synchronous>, transform_indices = @transform_11, window_bounds = array<i64: 1, 128>}, {pipeline_mode = #tpu.pipeline_mode<synchronous>, transform_indices = @transform_12, window_bounds = array<i64: 128, 128>}, {pipeline_mode = #tpu.pipeline_mode<synchronous>, transform_indices = @transform_13, window_bounds = array<i64: 1, 128>}, {pipeline_mode = #tpu.pipeline_mode<synchronous>, transform_indices = @transform_14, window_bounds = array<i64: 1, 128>}, {transform_indices = @transform_15, window_bounds = array<i64: 1, 64, 128>}]} {
    %c0 = arith.constant 0 : index
    %c0_0 = arith.constant 0 : index
    %c0_1 = arith.constant 0 : index
    %0 = vector.load %arg1[%c0, %c0_0, %c0_1] : memref<1x256x128xf32, #tpu.memory_space<vmem>>, vector<1x256x128xf32>
    %1 = vector.shape_cast %0 : vector<1x256x128xf32> to vector<256x128xf32>
    %2 = arith.truncf %1 : vector<256x128xf32> to vector<256x128xbf16>
    %c0_2 = arith.constant 0 : index
    %c0_3 = arith.constant 0 : index
    %3 = vector.load %arg2[%c0_2, %c0_3] : memref<128x128xbf16, #tpu.memory_space<vmem>>, vector<128x128xbf16>
    %cst = arith.constant dense<0.000000e+00> : vector<256x128xf32>
    %4 = tpu.matmul %2, %3, %cst {dimension_numbers = #tpu.dot_dimension_numbers<[1], [0], [0], [1], [0, 0, 1, 1], [], []>} : vector<256x128xbf16>, vector<128x128xbf16>, vector<256x128xf32> -> vector<256x128xf32>
    %c0_4 = arith.constant 0 : index
    %c0_5 = arith.constant 0 : index
    %5 = vector.load %arg3[%c0_4, %c0_5] : memref<1x128xf32, #tpu.memory_space<vmem>>, vector<1x128xf32>
    %6 = vector.broadcast %5 : vector<1x128xf32> to vector<256x128xf32>
    %7 = arith.mulf %4, %6 : vector<256x128xf32>
    %c0_6 = arith.constant 0 : index
    %c0_7 = arith.constant 0 : index
    %8 = vector.load %arg4[%c0_6, %c0_7] : memref<1x128xf32, #tpu.memory_space<vmem>>, vector<1x128xf32>
    %9 = vector.broadcast %8 : vector<1x128xf32> to vector<256x128xf32>
    %10 = arith.addf %7, %9 : vector<256x128xf32>
    %cst_8 = arith.constant 0.000000e+00 : f32
    %11 = vector.broadcast %cst_8 : f32 to vector<256x128xf32>
    %12 = arith.maximumf %10, %11 : vector<256x128xf32>
    %cst_9 = arith.constant 0.000000e+00 : f32
    %13 = vector.broadcast %cst_9 : f32 to vector<24x128xf32>
    %c0_10 = arith.constant 0 : index
    %c0_11 = arith.constant 0 : index
    %14 = vector.load %arg17[%c0_10, %c0_11] : memref<304x128xf32, #tpu.memory_space<vmem>>, vector<24x128xf32>
    tpu.vector_store %arg17[%c0_10, %c0_11], %13 {strides = array<i32>} : memref<304x128xf32, #tpu.memory_space<vmem>>, vector<24x128xf32>,
    %c280 = arith.constant 280 : index
    %c0_12 = arith.constant 0 : index
    %15 = vector.load %arg17[%c280, %c0_12] : memref<304x128xf32, #tpu.memory_space<vmem>>, vector<24x128xf32>
    tpu.vector_store %arg17[%c280, %c0_12], %13 {strides = array<i32>} : memref<304x128xf32, #tpu.memory_space<vmem>>, vector<24x128xf32>,
    %c24 = arith.constant 24 : index
    %c0_13 = arith.constant 0 : index
    %16 = vector.load %arg17[%c24, %c0_13] : memref<304x128xf32, #tpu.memory_space<vmem>>, vector<256x128xf32>
    tpu.vector_store %arg17[%c24, %c0_13], %12 {strides = array<i32>} : memref<304x128xf32, #tpu.memory_space<vmem>>, vector<256x128xf32>,
    %c0_14 = arith.constant 0 : index
    %c0_15 = arith.constant 0 : index
    %17 = vector.load %arg8[%c0_14, %c0_15] : memref<256x1xf32, #tpu.memory_space<vmem>>, vector<256x1xf32>
    %c0_16 = arith.constant 0 : index
    %c0_17 = arith.constant 0 : index
    %18 = vector.load %arg9[%c0_16, %c0_17] : memref<256x1xf32, #tpu.memory_space<vmem>>, vector<256x1xf32>
    %cst_18 = arith.constant 0.000000e+00 : f32
    %19 = vector.broadcast %cst_18 : f32 to vector<256x128xf32>
    %c0_19 = arith.constant 0 : index
    %c0_20 = arith.constant 0 : index
    %20 = vector.load %arg18[%c0_19, %c0_20] : memref<256x128xf32, #tpu.memory_space<vmem>>, vector<256x128xf32>
    tpu.vector_store %arg18[%c0_19, %c0_20], %19 {strides = array<i32>} : memref<256x128xf32, #tpu.memory_space<vmem>>, vector<256x128xf32>,
    %c7 = arith.constant 7 : index
    %c0_21 = arith.constant 0 : index
    %21 = vector.load %arg17[%c7, %c0_21] : memref<304x128xf32, #tpu.memory_space<vmem>>, vector<256x128xf32>
    %22 = vector.broadcast %17 : vector<256x1xf32> to vector<256x128xf32>
    %23 = arith.mulf %21, %22 : vector<256x128xf32>
    %c0_22 = arith.constant 0 : index
    %c0_23 = arith.constant 0 : index
    %24 = vector.load %arg18[%c0_22, %c0_23] : memref<256x128xf32, #tpu.memory_space<vmem>>, vector<256x128xf32>
    %25 = arith.truncf %23 : vector<256x128xf32> to vector<256x128xbf16>
    %c0_24 = arith.constant 0 : index
    %c0_25 = arith.constant 0 : index
    %c0_26 = arith.constant 0 : index
    %26 = vector.load %arg5[%c0_24, %c0_25, %c0_26] : memref<9x128x128xbf16, #tpu.memory_space<vmem>>, vector<1x128x128xbf16>
    %27 = vector.shape_cast %26 : vector<1x128x128xbf16> to vector<128x128xbf16>
    %cst_27 = arith.constant dense<0.000000e+00> : vector<256x128xf32>
    %28 = tpu.matmul %25, %27, %cst_27 {dimension_numbers = #tpu.dot_dimension_numbers<[1], [0], [0], [1], [0, 0, 1, 1], [], []>} : vector<256x128xbf16>, vector<128x128xbf16>, vector<256x128xf32> -> vector<256x128xf32>
    %29 = arith.addf %24, %28 : vector<256x128xf32>
    %c0_28 = arith.constant 0 : index
    %c0_29 = arith.constant 0 : index
    %30 = vector.load %arg18[%c0_28, %c0_29] : memref<256x128xf32, #tpu.memory_space<vmem>>, vector<256x128xf32>
    tpu.vector_store %arg18[%c0_28, %c0_29], %29 {strides = array<i32>} : memref<256x128xf32, #tpu.memory_space<vmem>>, vector<256x128xf32>,
    %c8 = arith.constant 8 : index
    %c0_30 = arith.constant 0 : index
    %31 = vector.load %arg17[%c8, %c0_30] : memref<304x128xf32, #tpu.memory_space<vmem>>, vector<256x128xf32>
    %c0_31 = arith.constant 0 : index
    %c0_32 = arith.constant 0 : index
    %32 = vector.load %arg18[%c0_31, %c0_32] : memref<256x128xf32, #tpu.memory_space<vmem>>, vector<256x128xf32>
    %33 = arith.truncf %31 : vector<256x128xf32> to vector<256x128xbf16>
    %c1 = arith.constant 1 : index
    %c0_33 = arith.constant 0 : index
    %c0_34 = arith.constant 0 : index
    %34 = vector.load %arg5[%c1, %c0_33, %c0_34] : memref<9x128x128xbf16, #tpu.memory_space<vmem>>, vector<1x128x128xbf16>
    %35 = vector.shape_cast %34 : vector<1x128x128xbf16> to vector<128x128xbf16>
    %cst_35 = arith.constant dense<0.000000e+00> : vector<256x128xf32>
    %36 = tpu.matmul %33, %35, %cst_35 {dimension_numbers = #tpu.dot_dimension_numbers<[1], [0], [0], [1], [0, 0, 1, 1], [], []>} : vector<256x128xbf16>, vector<128x128xbf16>, vector<256x128xf32> -> vector<256x128xf32>
    %37 = arith.addf %32, %36 : vector<256x128xf32>
    %c0_36 = arith.constant 0 : index
    %c0_37 = arith.constant 0 : index
    %38 = vector.load %arg18[%c0_36, %c0_37] : memref<256x128xf32, #tpu.memory_space<vmem>>, vector<256x128xf32>
    tpu.vector_store %arg18[%c0_36, %c0_37], %37 {strides = array<i32>} : memref<256x128xf32, #tpu.memory_space<vmem>>, vector<256x128xf32>,
    %c9 = arith.constant 9 : index
    %c0_38 = arith.constant 0 : index
    %39 = vector.load %arg17[%c9, %c0_38] : memref<304x128xf32, #tpu.memory_space<vmem>>, vector<256x128xf32>
    %40 = vector.broadcast %18 : vector<256x1xf32> to vector<256x128xf32>
    %41 = arith.mulf %39, %40 : vector<256x128xf32>
    %c0_39 = arith.constant 0 : index
    %c0_40 = arith.constant 0 : index
    %42 = vector.load %arg18[%c0_39, %c0_40] : memref<256x128xf32, #tpu.memory_space<vmem>>, vector<256x128xf32>
    %43 = arith.truncf %41 : vector<256x128xf32> to vector<256x128xbf16>
    %c2 = arith.constant 2 : index
    %c0_41 = arith.constant 0 : index
    %c0_42 = arith.constant 0 : index
    %44 = vector.load %arg5[%c2, %c0_41, %c0_42] : memref<9x128x128xbf16, #tpu.memory_space<vmem>>, vector<1x128x128xbf16>
    %45 = vector.shape_cast %44 : vector<1x128x128xbf16> to vector<128x128xbf16>
    %cst_43 = arith.constant dense<0.000000e+00> : vector<256x128xf32>
    %46 = tpu.matmul %43, %45, %cst_43 {dimension_numbers = #tpu.dot_dimension_numbers<[1], [0], [0], [1], [0, 0, 1, 1], [], []>} : vector<256x128xbf16>, vector<128x128xbf16>, vector<256x128xf32> -> vector<256x128xf32>
    %47 = arith.addf %42, %46 : vector<256x128xf32>
    %c0_44 = arith.constant 0 : index
    %c0_45 = arith.constant 0 : index
    %48 = vector.load %arg18[%c0_44, %c0_45] : memref<256x128xf32, #tpu.memory_space<vmem>>, vector<256x128xf32>
    tpu.vector_store %arg18[%c0_44, %c0_45], %47 {strides = array<i32>} : memref<256x128xf32, #tpu.memory_space<vmem>>, vector<256x128xf32>,
    %c23 = arith.constant 23 : index
    %c0_46 = arith.constant 0 : index
    %49 = vector.load %arg17[%c23, %c0_46] : memref<304x128xf32, #tpu.memory_space<vmem>>, vector<256x128xf32>
    %50 = vector.broadcast %17 : vector<256x1xf32> to vector<256x128xf32>
    %51 = arith.mulf %49, %50 : vector<256x128xf32>
    %c0_47 = arith.constant 0 : index
    %c0_48 = arith.constant 0 : index
    %52 = vector.load %arg18[%c0_47, %c0_48] : memref<256x128xf32, #tpu.memory_space<vmem>>, vector<256x128xf32>
    %53 = arith.truncf %51 : vector<256x128xf32> to vector<256x128xbf16>
    %c3 = arith.constant 3 : index
    %c0_49 = arith.constant 0 : index
    %c0_50 = arith.constant 0 : index
    %54 = vector.load %arg5[%c3, %c0_49, %c0_50] : memref<9x128x128xbf16, #tpu.memory_space<vmem>>, vector<1x128x128xbf16>
    %55 = vector.shape_cast %54 : vector<1x128x128xbf16> to vector<128x128xbf16>
    %cst_51 = arith.constant dense<0.000000e+00> : vector<256x128xf32>
    %56 = tpu.matmul %53, %55, %cst_51 {dimension_numbers = #tpu.dot_dimension_numbers<[1], [0], [0], [1], [0, 0, 1, 1], [], []>} : vector<256x128xbf16>, vector<128x128xbf16>, vector<256x128xf32> -> vector<256x128xf32>
    %57 = arith.addf %52, %56 : vector<256x128xf32>
    %c0_52 = arith.constant 0 : index
    %c0_53 = arith.constant 0 : index
    %58 = vector.load %arg18[%c0_52, %c0_53] : memref<256x128xf32, #tpu.memory_space<vmem>>, vector<256x128xf32>
    tpu.vector_store %arg18[%c0_52, %c0_53], %57 {strides = array<i32>} : memref<256x128xf32, #tpu.memory_space<vmem>>, vector<256x128xf32>,
    %c24_54 = arith.constant 24 : index
    %c0_55 = arith.constant 0 : index
    %59 = vector.load %arg17[%c24_54, %c0_55] : memref<304x128xf32, #tpu.memory_space<vmem>>, vector<256x128xf32>
    %c0_56 = arith.constant 0 : index
    %c0_57 = arith.constant 0 : index
    %60 = vector.load %arg18[%c0_56, %c0_57] : memref<256x128xf32, #tpu.memory_space<vmem>>, vector<256x128xf32>
    %61 = arith.truncf %59 : vector<256x128xf32> to vector<256x128xbf16>
    %c4 = arith.constant 4 : index
    %c0_58 = arith.constant 0 : index
    %c0_59 = arith.constant 0 : index
    %62 = vector.load %arg5[%c4, %c0_58, %c0_59] : memref<9x128x128xbf16, #tpu.memory_space<vmem>>, vector<1x128x128xbf16>
    %63 = vector.shape_cast %62 : vector<1x128x128xbf16> to vector<128x128xbf16>
    %cst_60 = arith.constant dense<0.000000e+00> : vector<256x128xf32>
    %64 = tpu.matmul %61, %63, %cst_60 {dimension_numbers = #tpu.dot_dimension_numbers<[1], [0], [0], [1], [0, 0, 1, 1], [], []>} : vector<256x128xbf16>, vector<128x128xbf16>, vector<256x128xf32> -> vector<256x128xf32>
    %65 = arith.addf %60, %64 : vector<256x128xf32>
    %c0_61 = arith.constant 0 : index
    %c0_62 = arith.constant 0 : index
    %66 = vector.load %arg18[%c0_61, %c0_62] : memref<256x128xf32, #tpu.memory_space<vmem>>, vector<256x128xf32>
    tpu.vector_store %arg18[%c0_61, %c0_62], %65 {strides = array<i32>} : memref<256x128xf32, #tpu.memory_space<vmem>>, vector<256x128xf32>,
    %c25 = arith.constant 25 : index
    %c0_63 = arith.constant 0 : index
    %67 = vector.load %arg17[%c25, %c0_63] : memref<304x128xf32, #tpu.memory_space<vmem>>, vector<256x128xf32>
    %68 = vector.broadcast %18 : vector<256x1xf32> to vector<256x128xf32>
    %69 = arith.mulf %67, %68 : vector<256x128xf32>
    %c0_64 = arith.constant 0 : index
    %c0_65 = arith.constant 0 : index
    %70 = vector.load %arg18[%c0_64, %c0_65] : memref<256x128xf32, #tpu.memory_space<vmem>>, vector<256x128xf32>
    %71 = arith.truncf %69 : vector<256x128xf32> to vector<256x128xbf16>
    %c5 = arith.constant 5 : index
    %c0_66 = arith.constant 0 : index
    %c0_67 = arith.constant 0 : index
    %72 = vector.load %arg5[%c5, %c0_66, %c0_67] : memref<9x128x128xbf16, #tpu.memory_space<vmem>>, vector<1x128x128xbf16>
    %73 = vector.shape_cast %72 : vector<1x128x128xbf16> to vector<128x128xbf16>
    %cst_68 = arith.constant dense<0.000000e+00> : vector<256x128xf32>
    %74 = tpu.matmul %71, %73, %cst_68 {dimension_numbers = #tpu.dot_dimension_numbers<[1], [0], [0], [1], [0, 0, 1, 1], [], []>} : vector<256x128xbf16>, vector<128x128xbf16>, vector<256x128xf32> -> vector<256x128xf32>
    %75 = arith.addf %70, %74 : vector<256x128xf32>
    %c0_69 = arith.constant 0 : index
    %c0_70 = arith.constant 0 : index
    %76 = vector.load %arg18[%c0_69, %c0_70] : memref<256x128xf32, #tpu.memory_space<vmem>>, vector<256x128xf32>
    tpu.vector_store %arg18[%c0_69, %c0_70], %75 {strides = array<i32>} : memref<256x128xf32, #tpu.memory_space<vmem>>, vector<256x128xf32>,
    %c39 = arith.constant 39 : index
    %c0_71 = arith.constant 0 : index
    %77 = vector.load %arg17[%c39, %c0_71] : memref<304x128xf32, #tpu.memory_space<vmem>>, vector<256x128xf32>
    %78 = vector.broadcast %17 : vector<256x1xf32> to vector<256x128xf32>
    %79 = arith.mulf %77, %78 : vector<256x128xf32>
    %c0_72 = arith.constant 0 : index
    %c0_73 = arith.constant 0 : index
    %80 = vector.load %arg18[%c0_72, %c0_73] : memref<256x128xf32, #tpu.memory_space<vmem>>, vector<256x128xf32>
    %81 = arith.truncf %79 : vector<256x128xf32> to vector<256x128xbf16>
    %c6 = arith.constant 6 : index
    %c0_74 = arith.constant 0 : index
    %c0_75 = arith.constant 0 : index
    %82 = vector.load %arg5[%c6, %c0_74, %c0_75] : memref<9x128x128xbf16, #tpu.memory_space<vmem>>, vector<1x128x128xbf16>
    %83 = vector.shape_cast %82 : vector<1x128x128xbf16> to vector<128x128xbf16>
    %cst_76 = arith.constant dense<0.000000e+00> : vector<256x128xf32>
    %84 = tpu.matmul %81, %83, %cst_76 {dimension_numbers = #tpu.dot_dimension_numbers<[1], [0], [0], [1], [0, 0, 1, 1], [], []>} : vector<256x128xbf16>, vector<128x128xbf16>, vector<256x128xf32> -> vector<256x128xf32>
    %85 = arith.addf %80, %84 : vector<256x128xf32>
    %c0_77 = arith.constant 0 : index
    %c0_78 = arith.constant 0 : index
    %86 = vector.load %arg18[%c0_77, %c0_78] : memref<256x128xf32, #tpu.memory_space<vmem>>, vector<256x128xf32>
    tpu.vector_store %arg18[%c0_77, %c0_78], %85 {strides = array<i32>} : memref<256x128xf32, #tpu.memory_space<vmem>>, vector<256x128xf32>,
    %c40 = arith.constant 40 : index
    %c0_79 = arith.constant 0 : index
    %87 = vector.load %arg17[%c40, %c0_79] : memref<304x128xf32, #tpu.memory_space<vmem>>, vector<256x128xf32>
    %c0_80 = arith.constant 0 : index
    %c0_81 = arith.constant 0 : index
    %88 = vector.load %arg18[%c0_80, %c0_81] : memref<256x128xf32, #tpu.memory_space<vmem>>, vector<256x128xf32>
    %89 = arith.truncf %87 : vector<256x128xf32> to vector<256x128xbf16>
    %c7_82 = arith.constant 7 : index
    %c0_83 = arith.constant 0 : index
    %c0_84 = arith.constant 0 : index
    %90 = vector.load %arg5[%c7_82, %c0_83, %c0_84] : memref<9x128x128xbf16, #tpu.memory_space<vmem>>, vector<1x128x128xbf16>
    %91 = vector.shape_cast %90 : vector<1x128x128xbf16> to vector<128x128xbf16>
    %cst_85 = arith.constant dense<0.000000e+00> : vector<256x128xf32>
    %92 = tpu.matmul %89, %91, %cst_85 {dimension_numbers = #tpu.dot_dimension_numbers<[1], [0], [0], [1], [0, 0, 1, 1], [], []>} : vector<256x128xbf16>, vector<128x128xbf16>, vector<256x128xf32> -> vector<256x128xf32>
    %93 = arith.addf %88, %92 : vector<256x128xf32>
    %c0_86 = arith.constant 0 : index
    %c0_87 = arith.constant 0 : index
    %94 = vector.load %arg18[%c0_86, %c0_87] : memref<256x128xf32, #tpu.memory_space<vmem>>, vector<256x128xf32>
    tpu.vector_store %arg18[%c0_86, %c0_87], %93 {strides = array<i32>} : memref<256x128xf32, #tpu.memory_space<vmem>>, vector<256x128xf32>,
    %c41 = arith.constant 41 : index
    %c0_88 = arith.constant 0 : index
    %95 = vector.load %arg17[%c41, %c0_88] : memref<304x128xf32, #tpu.memory_space<vmem>>, vector<256x128xf32>
    %96 = vector.broadcast %18 : vector<256x1xf32> to vector<256x128xf32>
    %97 = arith.mulf %95, %96 : vector<256x128xf32>
    %c0_89 = arith.constant 0 : index
    %c0_90 = arith.constant 0 : index
    %98 = vector.load %arg18[%c0_89, %c0_90] : memref<256x128xf32, #tpu.memory_space<vmem>>, vector<256x128xf32>
    %99 = arith.truncf %97 : vector<256x128xf32> to vector<256x128xbf16>
    %c8_91 = arith.constant 8 : index
    %c0_92 = arith.constant 0 : index
    %c0_93 = arith.constant 0 : index
    %100 = vector.load %arg5[%c8_91, %c0_92, %c0_93] : memref<9x128x128xbf16, #tpu.memory_space<vmem>>, vector<1x128x128xbf16>
    %101 = vector.shape_cast %100 : vector<1x128x128xbf16> to vector<128x128xbf16>
    %cst_94 = arith.constant dense<0.000000e+00> : vector<256x128xf32>
    %102 = tpu.matmul %99, %101, %cst_94 {dimension_numbers = #tpu.dot_dimension_numbers<[1], [0], [0], [1], [0, 0, 1, 1], [], []>} : vector<256x128xbf16>, vector<128x128xbf16>, vector<256x128xf32> -> vector<256x128xf32>
    %103 = arith.addf %98, %102 : vector<256x128xf32>
    %c0_95 = arith.constant 0 : index
    %c0_96 = arith.constant 0 : index
    %104 = vector.load %arg18[%c0_95, %c0_96] : memref<256x128xf32, #tpu.memory_space<vmem>>, vector<256x128xf32>
    tpu.vector_store %arg18[%c0_95, %c0_96], %103 {strides = array<i32>} : memref<256x128xf32, #tpu.memory_space<vmem>>, vector<256x128xf32>,
    %c0_97 = arith.constant 0 : index
    %c0_98 = arith.constant 0 : index
    %105 = vector.load %arg18[%c0_97, %c0_98] : memref<256x128xf32, #tpu.memory_space<vmem>>, vector<256x128xf32>
    %c0_99 = arith.constant 0 : index
    %c0_100 = arith.constant 0 : index
    %106 = vector.load %arg6[%c0_99, %c0_100] : memref<1x128xf32, #tpu.memory_space<vmem>>, vector<1x128xf32>
    %107 = vector.broadcast %106 : vector<1x128xf32> to vector<256x128xf32>
    %108 = arith.mulf %105, %107 : vector<256x128xf32>
    %c0_101 = arith.constant 0 : index
    %c0_102 = arith.constant 0 : index
    %109 = vector.load %arg7[%c0_101, %c0_102] : memref<1x128xf32, #tpu.memory_space<vmem>>, vector<1x128xf32>
    %110 = vector.broadcast %109 : vector<1x128xf32> to vector<256x128xf32>
    %111 = arith.addf %108, %110 : vector<256x128xf32>
    %cst_103 = arith.constant 0.000000e+00 : f32
    %112 = vector.broadcast %cst_103 : f32 to vector<256x128xf32>
    %113 = arith.maximumf %111, %112 : vector<256x128xf32>
    %c0_104 = arith.constant 0 : index
    %c0_105 = arith.constant 0 : index
    %114 = vector.load %arg18[%c0_104, %c0_105] : memref<256x128xf32, #tpu.memory_space<vmem>>, vector<256x128xf32>
    tpu.vector_store %arg18[%c0_104, %c0_105], %113 {strides = array<i32>} : memref<256x128xf32, #tpu.memory_space<vmem>>, vector<256x128xf32>,
    %c0_106 = arith.constant 0 : index
    %c0_107 = arith.constant 0 : index
    %115 = tpu.strided_load %arg18[%c0_106, %c0_107] {strides = array<i32: 2, 1>} : memref<256x128xf32, #tpu.memory_space<vmem>>, vector<128x128xf32>
    %c1_108 = arith.constant 1 : index
    %c0_109 = arith.constant 0 : index
    %116 = tpu.strided_load %arg18[%c1_108, %c0_109] {strides = array<i32: 2, 1>} : memref<256x128xf32, #tpu.memory_space<vmem>>, vector<128x128xf32>
    %117 = arith.addf %115, %116 : vector<128x128xf32>
    %118 = vector.shape_cast %117 : vector<128x128xf32> to vector<8x2x8x128xf32>
    %cst_110 = arith.constant dense<0.000000e+00> : vector<8x8x128xf32>
    %119 = vector.multi_reduction <add>, %118, %cst_110 [1] : vector<8x2x8x128xf32> to vector<8x8x128xf32>
    %120 = vector.shape_cast %119 : vector<8x8x128xf32> to vector<64x128xf32>
    %cst_111 = arith.constant 2.500000e-01 : f32
    %121 = vector.broadcast %cst_111 : f32 to vector<64x128xf32>
    %122 = arith.mulf %120, %121 : vector<64x128xf32>
    %123 = arith.truncf %122 : vector<64x128xf32> to vector<64x128xbf16>
    %c0_112 = arith.constant 0 : index
    %c0_113 = arith.constant 0 : index
    %124 = vector.load %arg10[%c0_112, %c0_113] : memref<128x128xbf16, #tpu.memory_space<vmem>>, vector<128x128xbf16>
    %cst_114 = arith.constant dense<0.000000e+00> : vector<64x128xf32>
    %125 = tpu.matmul %123, %124, %cst_114 {dimension_numbers = #tpu.dot_dimension_numbers<[1], [0], [0], [1], [0, 0, 1, 1], [], []>} : vector<64x128xbf16>, vector<128x128xbf16>, vector<64x128xf32> -> vector<64x128xf32>
    %c0_115 = arith.constant 0 : index
    %c0_116 = arith.constant 0 : index
    %126 = vector.load %arg11[%c0_115, %c0_116] : memref<1x128xf32, #tpu.memory_space<vmem>>, vector<1x128xf32>
    %127 = vector.broadcast %126 : vector<1x128xf32> to vector<64x128xf32>
    %128 = arith.mulf %125, %127 : vector<64x128xf32>
    %c0_117 = arith.constant 0 : index
    %c0_118 = arith.constant 0 : index
    %129 = vector.load %arg12[%c0_117, %c0_118] : memref<1x128xf32, #tpu.memory_space<vmem>>, vector<1x128xf32>
    %130 = vector.broadcast %129 : vector<1x128xf32> to vector<64x128xf32>
    %131 = arith.addf %128, %130 : vector<64x128xf32>
    %c0_119 = arith.constant 0 : index
    %c0_120 = arith.constant 0 : index
    %c0_121 = arith.constant 0 : index
    %132 = tpu.strided_load %arg1[%c0_119, %c0_120, %c0_121] {strides = array<i32: 1, 2, 1>} : memref<1x256x128xf32, #tpu.memory_space<vmem>>, vector<1x128x128xf32>
    %133 = vector.shape_cast %132 : vector<1x128x128xf32> to vector<128x128xf32>
    %c0_122 = arith.constant 0 : index
    %c1_123 = arith.constant 1 : index
    %c0_124 = arith.constant 0 : index
    %134 = tpu.strided_load %arg1[%c0_122, %c1_123, %c0_124] {strides = array<i32: 1, 2, 1>} : memref<1x256x128xf32, #tpu.memory_space<vmem>>, vector<1x128x128xf32>
    %135 = vector.shape_cast %134 : vector<1x128x128xf32> to vector<128x128xf32>
    %136 = arith.addf %133, %135 : vector<128x128xf32>
    %137 = vector.shape_cast %136 : vector<128x128xf32> to vector<8x2x8x128xf32>
    %cst_125 = arith.constant dense<0.000000e+00> : vector<8x8x128xf32>
    %138 = vector.multi_reduction <add>, %137, %cst_125 [1] : vector<8x2x8x128xf32> to vector<8x8x128xf32>
    %139 = vector.shape_cast %138 : vector<8x8x128xf32> to vector<64x128xf32>
    %cst_126 = arith.constant 2.500000e-01 : f32
    %140 = vector.broadcast %cst_126 : f32 to vector<64x128xf32>
    %141 = arith.mulf %139, %140 : vector<64x128xf32>
    %142 = arith.truncf %141 : vector<64x128xf32> to vector<64x128xbf16>
    %c0_127 = arith.constant 0 : index
    %c0_128 = arith.constant 0 : index
    %143 = vector.load %arg13[%c0_127, %c0_128] : memref<128x128xbf16, #tpu.memory_space<vmem>>, vector<128x128xbf16>
    %cst_129 = arith.constant dense<0.000000e+00> : vector<64x128xf32>
    %144 = tpu.matmul %142, %143, %cst_129 {dimension_numbers = #tpu.dot_dimension_numbers<[1], [0], [0], [1], [0, 0, 1, 1], [], []>} : vector<64x128xbf16>, vector<128x128xbf16>, vector<64x128xf32> -> vector<64x128xf32>
    %c0_130 = arith.constant 0 : index
    %c0_131 = arith.constant 0 : index
    %145 = vector.load %arg14[%c0_130, %c0_131] : memref<1x128xf32, #tpu.memory_space<vmem>>, vector<1x128xf32>
    %146 = vector.broadcast %145 : vector<1x128xf32> to vector<64x128xf32>
    %147 = arith.mulf %144, %146 : vector<64x128xf32>
    %c0_132 = arith.constant 0 : index
    %c0_133 = arith.constant 0 : index
    %148 = vector.load %arg15[%c0_132, %c0_133] : memref<1x128xf32, #tpu.memory_space<vmem>>, vector<1x128xf32>
    %149 = vector.broadcast %148 : vector<1x128xf32> to vector<64x128xf32>
    %150 = arith.addf %147, %149 : vector<64x128xf32>
    %151 = arith.addf %131, %150 : vector<64x128xf32>
    %cst_134 = arith.constant 0.000000e+00 : f32
    %152 = vector.broadcast %cst_134 : f32 to vector<64x128xf32>
    %153 = arith.maximumf %151, %152 : vector<64x128xf32>
    %c0_135 = arith.constant 0 : index
    %c0_136 = arith.constant 0 : index
    %c0_137 = arith.constant 0 : index
    %154 = vector.load %arg16[%c0_135, %c0_136, %c0_137] : memref<1x64x128xf32, #tpu.memory_space<vmem>>, vector<1x64x128xf32>
    %155 = vector.shape_cast %154 : vector<1x64x128xf32> to vector<64x128xf32>
    %156 = vector.shape_cast %153 : vector<64x128xf32> to vector<1x64x128xf32>
    tpu.vector_store %arg16[%c0_135, %c0_136, %c0_137], %156 {strides = array<i32>} : memref<1x64x128xf32, #tpu.memory_space<vmem>>, vector<1x64x128xf32>,
    return
  }
  func.func @transform_0(%arg0: i32) -> (i32, i32, i32) {
    %c0_i32 = arith.constant 0 : i32
    %c0_i32_0 = arith.constant 0 : i32
    %c0_i32_1 = arith.constant 0 : i32
    return %arg0, %c0_i32, %c0_i32_0 : i32, i32, i32
  }
  func.func @transform_1(%arg0: i32) -> (i32, i32) {
    %c0_i32 = arith.constant 0 : i32
    %c0_i32_0 = arith.constant 0 : i32
    %c0_i32_1 = arith.constant 0 : i32
    return %c0_i32, %c0_i32_0 : i32, i32
  }
  func.func @transform_2(%arg0: i32) -> (i32, i32) {
    %c0_i32 = arith.constant 0 : i32
    %c0_i32_0 = arith.constant 0 : i32
    %c0_i32_1 = arith.constant 0 : i32
    return %c0_i32, %c0_i32_0 : i32, i32
  }
  func.func @transform_3(%arg0: i32) -> (i32, i32) {
    %c0_i32 = arith.constant 0 : i32
    %c0_i32_0 = arith.constant 0 : i32
    %c0_i32_1 = arith.constant 0 : i32
    return %c0_i32, %c0_i32_0 : i32, i32
  }
  func.func @transform_4(%arg0: i32) -> (i32, i32, i32) {
    %c0_i32 = arith.constant 0 : i32
    %c0_i32_0 = arith.constant 0 : i32
    %c0_i32_1 = arith.constant 0 : i32
    %c0_i32_2 = arith.constant 0 : i32
    return %c0_i32, %c0_i32_0, %c0_i32_1 : i32, i32, i32
  }
  func.func @transform_5(%arg0: i32) -> (i32, i32) {
    %c0_i32 = arith.constant 0 : i32
    %c0_i32_0 = arith.constant 0 : i32
    %c0_i32_1 = arith.constant 0 : i32
    return %c0_i32, %c0_i32_0 : i32, i32
  }
  func.func @transform_6(%arg0: i32) -> (i32, i32) {
    %c0_i32 = arith.constant 0 : i32
    %c0_i32_0 = arith.constant 0 : i32
    %c0_i32_1 = arith.constant 0 : i32
    return %c0_i32, %c0_i32_0 : i32, i32
  }
  func.func @transform_7(%arg0: i32) -> (i32, i32) {
    %c0_i32 = arith.constant 0 : i32
    %c0_i32_0 = arith.constant 0 : i32
    %c0_i32_1 = arith.constant 0 : i32
    return %c0_i32, %c0_i32_0 : i32, i32
  }
  func.func @transform_8(%arg0: i32) -> (i32, i32) {
    %c0_i32 = arith.constant 0 : i32
    %c0_i32_0 = arith.constant 0 : i32
    %c0_i32_1 = arith.constant 0 : i32
    return %c0_i32, %c0_i32_0 : i32, i32
  }
  func.func @transform_9(%arg0: i32) -> (i32, i32) {
    %c0_i32 = arith.constant 0 : i32
    %c0_i32_0 = arith.constant 0 : i32
    %c0_i32_1 = arith.constant 0 : i32
    return %c0_i32, %c0_i32_0 : i32, i32
  }
  func.func @transform_10(%arg0: i32) -> (i32, i32) {
    %c0_i32 = arith.constant 0 : i32
    %c0_i32_0 = arith.constant 0 : i32
    %c0_i32_1 = arith.constant 0 : i32
    return %c0_i32, %c0_i32_0 : i32, i32
  }
  func.func @transform_11(%arg0: i32) -> (i32, i32) {
    %c0_i32 = arith.constant 0 : i32
    %c0_i32_0 = arith.constant 0 : i32
    %c0_i32_1 = arith.constant 0 : i32
    return %c0_i32, %c0_i32_0 : i32, i32
  }
  func.func @transform_12(%arg0: i32) -> (i32, i32) {
    %c0_i32 = arith.constant 0 : i32
    %c0_i32_0 = arith.constant 0 : i32
    %c0_i32_1 = arith.constant 0 : i32
    return %c0_i32, %c0_i32_0 : i32, i32
  }
  func.func @transform_13(%arg0: i32) -> (i32, i32) {
    %c0_i32 = arith.constant 0 : i32
    %c0_i32_0 = arith.constant 0 : i32
    %c0_i32_1 = arith.constant 0 : i32
    return %c0_i32, %c0_i32_0 : i32, i32
  }
  func.func @transform_14(%arg0: i32) -> (i32, i32) {
    %c0_i32 = arith.constant 0 : i32
    %c0_i32_0 = arith.constant 0 : i32
    %c0_i32_1 = arith.constant 0 : i32
    return %c0_i32, %c0_i32_0 : i32, i32
  }
  func.func @transform_15(%arg0: i32) -> (i32, i32, i32) {
    %c0_i32 = arith.constant 0 : i32
    %c0_i32_0 = arith.constant 0 : i32
    %c0_i32_1 = arith.constant 0 : i32
    return %arg0, %c0_i32, %c0_i32_0 : i32, i32, i32
  }
}

</mosaic_0001>

<llo_original>
// kernel: tpu_custom_call.1
$region0: #{tpu_custom_call.1}
  #allocation0 [shape = 'u32[]', space=smem, size = 0x4, offset = 0x4, fixed_abs, tag = 'smem constant byte address 0x4 - core index']
  #allocation1 [shape = 'u32[144,128]{1,0:T(1,128)}', space=vmem, size = 0x12000, scoped, tag = 'internal scratch']
  #allocation2 [shape = 'f32[304,128]{1,0:T(8,128)}', space=vmem, size = 0x26000, scoped, tag = 'scratch operand']
  #allocation3 [shape = 'f32[256,128]{1,0:T(8,128)}', space=vmem, size = 0x20000, scoped, tag = 'scratch operand']
  %s0 = inlined_call_operand.hbm [shape: f32[2,256,128], index: 0, kind: input, shape index: {}]
  %s1 = inlined_call_operand.hbm [shape: bf16[128,128], index: 1, kind: input, shape index: {}]
  %s2 = inlined_call_operand.hbm [shape: f32[1,128], index: 2, kind: input, shape index: {}]
  %s3 = inlined_call_operand.hbm [shape: f32[1,128], index: 3, kind: input, shape index: {}]
  %s4 = inlined_call_operand.hbm [shape: bf16[9,128,128], index: 4, kind: input, shape index: {}]
  %s5 = inlined_call_operand.hbm [shape: f32[1,128], index: 5, kind: input, shape index: {}]
  %s6 = inlined_call_operand.hbm [shape: f32[1,128], index: 6, kind: input, shape index: {}]
  %s7 = inlined_call_operand.hbm [shape: f32[256,1], index: 7, kind: input, shape index: {}]
  %s8 = inlined_call_operand.hbm [shape: f32[256,1], index: 8, kind: input, shape index: {}]
  %s9 = inlined_call_operand.hbm [shape: bf16[128,128], index: 9, kind: input, shape index: {}]
  %s10 = inlined_call_operand.hbm [shape: f32[1,128], index: 10, kind: input, shape index: {}]
  %s11 = inlined_call_operand.hbm [shape: f32[1,128], index: 11, kind: input, shape index: {}]
  %s12 = inlined_call_operand.hbm [shape: bf16[128,128], index: 12, kind: input, shape index: {}]
  %s13 = inlined_call_operand.hbm [shape: f32[1,128], index: 13, kind: input, shape index: {}]
  %s14 = inlined_call_operand.hbm [shape: f32[1,128], index: 14, kind: input, shape index: {}]
  %s15 = inlined_call_operand.hbm [shape: f32[2,64,128], index: 15, kind: output, shape index: {}]
  %s16 = sld [smem:[#allocation0]]
  $region153: #{tpu_custom_call.1} parent=0
    _
  %s18 = ssub.s32 1, %s16
  %s19 = scalar_select 0, %s18, %s16
  $region1: #{tpu_custom_call.1} parent=0
    #allocation4 [shape = 'u8[262144]{0}', space=vmem, size = 0x40000, scoped, tag = 'input window, operand 0']
    #allocation5 [shape = 's32[2]{0}', space=sflag, size = 0x8, scoped, tag = 'scoped memory for tpu_custom_call.1']
    #allocation6 [shape = 's32[2]{0}', space=sflag, size = 0x8, scoped, tag = 'scoped memory for tpu_custom_call.1']
    #allocation7 [shape = 'u8[32768]{0}', space=vmem, size = 0x8000, scoped, tag = 'input window, operand 1, single buffered']
    #allocation8 [shape = 's32[1]{0}', space=sflag, size = 0x4, scoped, tag = 'scoped memory for tpu_custom_call.1']
    #allocation9 [shape = 'u8[512]{0}', space=vmem, size = 0x400, scoped, tag = 'input window, operand 2, single buffered']
    #allocation10 [shape = 'u8[512]{0}', space=vmem, size = 0x400, scoped, tag = 'input window, operand 3, single buffered']
    #allocation11 [shape = 's32[1]{0}', space=sflag, size = 0x4, scoped, tag = 'scoped memory for tpu_custom_call.1']
    #allocation12 [shape = 'u8[294912]{0}', space=vmem, size = 0x48000, scoped, tag = 'input window, operand 4, single buffered']
    #allocation13 [shape = 'u8[512]{0}', space=vmem, size = 0x400, scoped, tag = 'input window, operand 5, single buffered']
    #allocation14 [shape = 's32[1]{0}', space=sflag, size = 0x4, scoped, tag = 'scoped memory for tpu_custom_call.1']
    #allocation15 [shape = 'u8[512]{0}', space=vmem, size = 0x400, scoped, tag = 'input window, operand 6, single buffered']
    #allocation16 [shape = 'u8[131072]{0}', space=vmem, size = 0x20000, scoped, tag = 'input window, operand 7, single buffered']
    #allocation17 [shape = 's32[1]{0}', space=sflag, size = 0x4, scoped, tag = 'scoped memory for tpu_custom_call.1']
    #allocation18 [shape = 'u8[131072]{0}', space=vmem, size = 0x20000, scoped, tag = 'input window, operand 8, single buffered']
    #allocation19 [shape = 'u8[32768]{0}', space=vmem, size = 0x8000, scoped, tag = 'input window, operand 9, single buffered']
    #allocation20 [shape = 's32[1]{0}', space=sflag, size = 0x4, scoped, tag = 'scoped memory for tpu_custom_call.1']
    #allocation21 [shape = 'u8[512]{0}', space=vmem, size = 0x400, scoped, tag = 'input window, operand 10, single buffered']
    #allocation22 [shape = 'u8[512]{0}', space=vmem, size = 0x400, scoped, tag = 'input window, operand 11, single buffered']
    #allocation23 [shape = 's32[1]{0}', space=sflag, size = 0x4, scoped, tag = 'scoped memory for tpu_custom_call.1']
    #allocation24 [shape = 'u8[32768]{0}', space=vmem, size = 0x8000, scoped, tag = 'input window, operand 12, single buffered']
    #allocation25 [shape = 'u8[512]{0}', space=vmem, size = 0x400, scoped, tag = 'input window, operand 13, single buffered']
    #allocation26 [shape = 's32[1]{0}', space=sflag, size = 0x4, scoped, tag = 'scoped memory for tpu_custom_call.1']
    #allocation27 [shape = 'u8[512]{0}', space=vmem, size = 0x400, scoped, tag = 'input window, operand 14, single buffered']
    #allocation28 [shape = 'u8[65536]{0}', space=vmem, size = 0x10000, scoped, tag = 'output window, operand 0']
    %20 = vsyncpa [#allocation5], 0
    %s21 = scalar_lea.sflag [#allocation5], 1
    %22 = vsyncpa %s21, 0
    %23 = vsyncpa [#allocation8], 0
    %24 = vsyncpa [#allocation11], 0
    %25 = vsyncpa [#allocation14], 0
    %26 = vsyncpa [#allocation17], 0
    %27 = vsyncpa [#allocation20], 0
    %28 = vsyncpa [#allocation23], 0
    %29 = vsyncpa [#allocation26], 0
    %30 = vsyncpa [#allocation6], 0
    %s31 = scalar_lea.sflag [#allocation6], 1
    %32 = vsyncpa %s31, 0
    loop: start=0, step=1, limit=4
    $region2: #{tpu_custom_call.1} parent=1 // loop_pre_header
      _
    $region3: #{tpu_custom_call.1} parent=1 // loop_header
      %s34 = sphi 0, %s38
      %p35 = scmp.ge.s32.totalorder %s34, 4
      %s44 = sphi 0, %s46
      %s47 = sphi 0, %s44
      %s48 = sphi 0, %s47
      %s64 = sphi 0, %s48
      %s68 = sphi 0, %s68
      %s70 = sphi 0, %s68
      %s71 = sphi 0, %s70
      %s85 = sphi 0, %s71
      %s89 = sphi 0, %s89
      %s91 = sphi 0, %s89
      %s92 = sphi 0, %s91
      %s106 = sphi 0, %s92
      %s110 = sphi 0, %s110
      %s112 = sphi 0, %s110
      %s113 = sphi 0, %s112
      %s127 = sphi 0, %s113
      %s131 = sphi 0, %s131
      %s133 = sphi 0, %s131
      %s134 = sphi 0, %s133
      %s148 = sphi 0, %s134
      %s152 = sphi 0, %s152
      %s154 = sphi 0, %s152
      %s155 = sphi 0, %s154
      %s169 = sphi 0, %s155
      %s173 = sphi 0, %s173
      %s175 = sphi 0, %s173
      %s176 = sphi 0, %s175
      %s190 = sphi 0, %s176
      %s194 = sphi 0, %s194
      %s196 = sphi 0, %s194
      %s197 = sphi 0, %s196
      %s211 = sphi 0, %s197
      %s215 = sphi 0, %s215
      %s217 = sphi 0, %s215
      %s218 = sphi 0, %s217
      %s232 = sphi 0, %s218
      %s236 = sphi 0, %s236
      %s238 = sphi 0, %s236
      %s239 = sphi 0, %s238
      %s253 = sphi 0, %s239
      %s257 = sphi 0, %s257
      %s259 = sphi 0, %s257
      %s260 = sphi 0, %s259
      %s274 = sphi 0, %s260
      %s278 = sphi 0, %s278
      %s280 = sphi 0, %s278
      %s281 = sphi 0, %s280
      %s295 = sphi 0, %s281
      %s299 = sphi 0, %s299
      %s301 = sphi 0, %s299
      %s302 = sphi 0, %s301
      %s316 = sphi 0, %s302
      %s320 = sphi 0, %s320
      %s322 = sphi 0, %s320
      %s323 = sphi 0, %s322
      %s337 = sphi 0, %s323
      %s341 = sphi 0, %s341
      %s343 = sphi 0, %s341
      %s344 = sphi 0, %s343
      %s358 = sphi 0, %s344
      %s364 = sphi 0, %s366
      %s367 = sphi 0, %s364
      %s368 = sphi 0, %s367
      %s384 = sphi 0, %s368
    $region4: #{tpu_custom_call.1} parent=1 // loop_header_branch
      %37 = sbr.rel (%p35) target = $region8
    $region5: #{tpu_custom_call.1} parent=1 // loop_body
      %s39 = ssub.s32 %s34, 1
      %s40 = ssub.s32 %s34, 2
      %s41 = sadd.s32 %s34, 1
      %s42 = ssub.s32 %s34, %s41
      %p43 = scmp.eq.s32.totalorder %s42, 0
      %s45 = sadd.s32 %s44, 1
      %s46 = scalar_select %p43, %s44, %s45
      %p49 = pneg %p43
      %p50 = scmp.eq.s32.totalorder %s34, 1
      %p51 = por %p49, %p50
      %p52 = scmp.ne.s32.totalorder %s44, %s47
      %p53 = scmp.eq.s32.totalorder %s34, 0
      %p54 = por %p52, %p53
      %p55 = scmp.ne.s32.totalorder %s44, %s47
      %p56 = scmp.eq.s32.totalorder %s39, 1
      %p57 = por %p55, %p56
      %p58 = scmp.ne.s32.totalorder %s47, %s48
      %p59 = scmp.eq.s32.totalorder %s39, 0
      %p60 = por %p58, %p59
      %p61 = scmp.ne.s32.totalorder %s47, %s48
      %p62 = scmp.eq.s32.totalorder %s40, 1
      %p63 = por %p61, %p62
      %p65 = scmp.ne.s32.totalorder %s48, %s64
      %p66 = scmp.eq.s32.totalorder %s40, 0
      %p67 = por %p65, %p66
      %s69 = sadd.s32 %s68, 1
      %p72 = scmp.eq.s32.totalorder %s34, 1
      %p73 = scmp.ne.s32.totalorder %s68, %s70
      %p74 = scmp.eq.s32.totalorder %s34, 0
      %p75 = por %p73, %p74
      %p76 = scmp.ne.s32.totalorder %s68, %s70
      %p77 = scmp.eq.s32.totalorder %s39, 1
      %p78 = por %p76, %p77
      %p79 = scmp.ne.s32.totalorder %s70, %s71
      %p80 = scmp.eq.s32.totalorder %s39, 0
      %p81 = por %p79, %p80
      %p82 = scmp.ne.s32.totalorder %s70, %s71
      %p83 = scmp.eq.s32.totalorder %s40, 1
      %p84 = por %p82, %p83
      %p86 = scmp.ne.s32.totalorder %s71, %s85
      %p87 = scmp.eq.s32.totalorder %s40, 0
      %p88 = por %p86, %p87
      %s90 = sadd.s32 %s89, 1
      %p93 = scmp.eq.s32.totalorder %s34, 1
      %p94 = scmp.ne.s32.totalorder %s89, %s91
      %p95 = scmp.eq.s32.totalorder %s34, 0
      %p96 = por %p94, %p95
      %p97 = scmp.ne.s32.totalorder %s89, %s91
      %p98 = scmp.eq.s32.totalorder %s39, 1
      %p99 = por %p97, %p98
      %p100 = scmp.ne.s32.totalorder %s91, %s92
      %p101 = scmp.eq.s32.totalorder %s39, 0
      %p102 = por %p100, %p101
      %p103 = scmp.ne.s32.totalorder %s91, %s92
      %p104 = scmp.eq.s32.totalorder %s40, 1
      %p105 = por %p103, %p104
      %p107 = scmp.ne.s32.totalorder %s92, %s106
      %p108 = scmp.eq.s32.totalorder %s40, 0
      %p109 = por %p107, %p108
      %s111 = sadd.s32 %s110, 1
      %p114 = scmp.eq.s32.totalorder %s34, 1
      %p115 = scmp.ne.s32.totalorder %s110, %s112
      %p116 = scmp.eq.s32.totalorder %s34, 0
      %p117 = por %p115, %p116
      %p118 = scmp.ne.s32.totalorder %s110, %s112
      %p119 = scmp.eq.s32.totalorder %s39, 1
      %p120 = por %p118, %p119
      %p121 = scmp.ne.s32.totalorder %s112, %s113
      %p122 = scmp.eq.s32.totalorder %s39, 0
      %p123 = por %p121, %p122
      %p124 = scmp.ne.s32.totalorder %s112, %s113
      %p125 = scmp.eq.s32.totalorder %s40, 1
      %p126 = por %p124, %p125
      %p128 = scmp.ne.s32.totalorder %s113, %s127
      %p129 = scmp.eq.s32.totalorder %s40, 0
      %p130 = por %p128, %p129
      %s132 = sadd.s32 %s131, 1
      %p135 = scmp.eq.s32.totalorder %s34, 1
      %p136 = scmp.ne.s32.totalorder %s131, %s133
      %p137 = scmp.eq.s32.totalorder %s34, 0
      %p138 = por %p136, %p137
      %p139 = scmp.ne.s32.totalorder %s131, %s133
      %p140 = scmp.eq.s32.totalorder %s39, 1
      %p141 = por %p139, %p140
      %p142 = scmp.ne.s32.totalorder %s133, %s134
      %p143 = scmp.eq.s32.totalorder %s39, 0
      %p144 = por %p142, %p143
      %p145 = scmp.ne.s32.totalorder %s133, %s134
      %p146 = scmp.eq.s32.totalorder %s40, 1
      %p147 = por %p145, %p146
      %p149 = scmp.ne.s32.totalorder %s134, %s148
      %p150 = scmp.eq.s32.totalorder %s40, 0
      %p151 = por %p149, %p150
      %s153 = sadd.s32 %s152, 1
      %p156 = scmp.eq.s32.totalorder %s34, 1
      %p157 = scmp.ne.s32.totalorder %s152, %s154
      %p158 = scmp.eq.s32.totalorder %s34, 0
      %p159 = por %p157, %p158
      %p160 = scmp.ne.s32.totalorder %s152, %s154
      %p161 = scmp.eq.s32.totalorder %s39, 1
      %p162 = por %p160, %p161
      %p163 = scmp.ne.s32.totalorder %s154, %s155
      %p164 = scmp.eq.s32.totalorder %s39, 0
      %p165 = por %p163, %p164
      %p166 = scmp.ne.s32.totalorder %s154, %s155
      %p167 = scmp.eq.s32.totalorder %s40, 1
      %p168 = por %p166, %p167
      %p170 = scmp.ne.s32.totalorder %s155, %s169
      %p171 = scmp.eq.s32.totalorder %s40, 0
      %p172 = por %p170, %p171
      %s174 = sadd.s32 %s173, 1
      %p177 = scmp.eq.s32.totalorder %s34, 1
      %p178 = scmp.ne.s32.totalorder %s173, %s175
      %p179 = scmp.eq.s32.totalorder %s34, 0
      %p180 = por %p178, %p179
      %p181 = scmp.ne.s32.totalorder %s173, %s175
      %p182 = scmp.eq.s32.totalorder %s39, 1
      %p183 = por %p181, %p182
      %p184 = scmp.ne.s32.totalorder %s175, %s176
      %p185 = scmp.eq.s32.totalorder %s39, 0
      %p186 = por %p184, %p185
      %p187 = scmp.ne.s32.totalorder %s175, %s176
      %p188 = scmp.eq.s32.totalorder %s40, 1
      %p189 = por %p187, %p188
      %p191 = scmp.ne.s32.totalorder %s176, %s190
      %p192 = scmp.eq.s32.totalorder %s40, 0
      %p193 = por %p191, %p192
      %s195 = sadd.s32 %s194, 1
      %p198 = scmp.eq.s32.totalorder %s34, 1
      %p199 = scmp.ne.s32.totalorder %s194, %s196
      %p200 = scmp.eq.s32.totalorder %s34, 0
      %p201 = por %p199, %p200
      %p202 = scmp.ne.s32.totalorder %s194, %s196
      %p203 = scmp.eq.s32.totalorder %s39, 1
      %p204 = por %p202, %p203
      %p205 = scmp.ne.s32.totalorder %s196, %s197
      %p206 = scmp.eq.s32.totalorder %s39, 0
      %p207 = por %p205, %p206
      %p208 = scmp.ne.s32.totalorder %s196, %s197
      %p209 = scmp.eq.s32.totalorder %s40, 1
      %p210 = por %p208, %p209
      %p212 = scmp.ne.s32.totalorder %s197, %s211
      %p213 = scmp.eq.s32.totalorder %s40, 0
      %p214 = por %p212, %p213
      %s216 = sadd.s32 %s215, 1
      %p219 = scmp.eq.s32.totalorder %s34, 1
      %p220 = scmp.ne.s32.totalorder %s215, %s217
      %p221 = scmp.eq.s32.totalorder %s34, 0
      %p222 = por %p220, %p221
      %p223 = scmp.ne.s32.totalorder %s215, %s217
      %p224 = scmp.eq.s32.totalorder %s39, 1
      %p225 = por %p223, %p224
      %p226 = scmp.ne.s32.totalorder %s217, %s218
      %p227 = scmp.eq.s32.totalorder %s39, 0
      %p228 = por %p226, %p227
      %p229 = scmp.ne.s32.totalorder %s217, %s218
      %p230 = scmp.eq.s32.totalorder %s40, 1
      %p231 = por %p229, %p230
      %p233 = scmp.ne.s32.totalorder %s218, %s232
      %p234 = scmp.eq.s32.totalorder %s40, 0
      %p235 = por %p233, %p234
      %s237 = sadd.s32 %s236, 1
      %p240 = scmp.eq.s32.totalorder %s34, 1
      %p241 = scmp.ne.s32.totalorder %s236, %s238
      %p242 = scmp.eq.s32.totalorder %s34, 0
      %p243 = por %p241, %p242
      %p244 = scmp.ne.s32.totalorder %s236, %s238
      %p245 = scmp.eq.s32.totalorder %s39, 1
      %p246 = por %p244, %p245
      %p247 = scmp.ne.s32.totalorder %s238, %s239
      %p248 = scmp.eq.s32.totalorder %s39, 0
      %p249 = por %p247, %p248
      %p250 = scmp.ne.s32.totalorder %s238, %s239
      %p251 = scmp.eq.s32.totalorder %s40, 1
      %p252 = por %p250, %p251
      %p254 = scmp.ne.s32.totalorder %s239, %s253
      %p255 = scmp.eq.s32.totalorder %s40, 0
      %p256 = por %p254, %p255
      %s258 = sadd.s32 %s257, 1
      %p261 = scmp.eq.s32.totalorder %s34, 1
      %p262 = scmp.ne.s32.totalorder %s257, %s259
      %p263 = scmp.eq.s32.totalorder %s34, 0
      %p264 = por %p262, %p263
      %p265 = scmp.ne.s32.totalorder %s257, %s259
      %p266 = scmp.eq.s32.totalorder %s39, 1
      %p267 = por %p265, %p266
      %p268 = scmp.ne.s32.totalorder %s259, %s260
      %p269 = scmp.eq.s32.totalorder %s39, 0
      %p270 = por %p268, %p269
      %p271 = scmp.ne.s32.totalorder %s259, %s260
      %p272 = scmp.eq.s32.totalorder %s40, 1
      %p273 = por %p271, %p272
      %p275 = scmp.ne.s32.totalorder %s260, %s274
      %p276 = scmp.eq.s32.totalorder %s40, 0
      %p277 = por %p275, %p276
      %s279 = sadd.s32 %s278, 1
      %p282 = scmp.eq.s32.totalorder %s34, 1
      %p283 = scmp.ne.s32.totalorder %s278, %s280
      %p284 = scmp.eq.s32.totalorder %s34, 0
      %p285 = por %p283, %p284
      %p286 = scmp.ne.s32.totalorder %s278, %s280
      %p287 = scmp.eq.s32.totalorder %s39, 1
      %p288 = por %p286, %p287
      %p289 = scmp.ne.s32.totalorder %s280, %s281
      %p290 = scmp.eq.s32.totalorder %s39, 0
      %p291 = por %p289, %p290
      %p292 = scmp.ne.s32.totalorder %s280, %s281
      %p293 = scmp.eq.s32.totalorder %s40, 1
      %p294 = por %p292, %p293
      %p296 = scmp.ne.s32.totalorder %s281, %s295
      %p297 = scmp.eq.s32.totalorder %s40, 0
      %p298 = por %p296, %p297
      %s300 = sadd.s32 %s299, 1
      %p303 = scmp.eq.s32.totalorder %s34, 1
      %p304 = scmp.ne.s32.totalorder %s299, %s301
      %p305 = scmp.eq.s32.totalorder %s34, 0
      %p306 = por %p304, %p305
      %p307 = scmp.ne.s32.totalorder %s299, %s301
      %p308 = scmp.eq.s32.totalorder %s39, 1
      %p309 = por %p307, %p308
      %p310 = scmp.ne.s32.totalorder %s301, %s302
      %p311 = scmp.eq.s32.totalorder %s39, 0
      %p312 = por %p310, %p311
      %p313 = scmp.ne.s32.totalorder %s301, %s302
      %p314 = scmp.eq.s32.totalorder %s40, 1
      %p315 = por %p313, %p314
      %p317 = scmp.ne.s32.totalorder %s302, %s316
      %p318 = scmp.eq.s32.totalorder %s40, 0
      %p319 = por %p317, %p318
      %s321 = sadd.s32 %s320, 1
      %p324 = scmp.eq.s32.totalorder %s34, 1
      %p325 = scmp.ne.s32.totalorder %s320, %s322
      %p326 = scmp.eq.s32.totalorder %s34, 0
      %p327 = por %p325, %p326
      %p328 = scmp.ne.s32.totalorder %s320, %s322
      %p329 = scmp.eq.s32.totalorder %s39, 1
      %p330 = por %p328, %p329
      %p331 = scmp.ne.s32.totalorder %s322, %s323
      %p332 = scmp.eq.s32.totalorder %s39, 0
      %p333 = por %p331, %p332
      %p334 = scmp.ne.s32.totalorder %s322, %s323
      %p335 = scmp.eq.s32.totalorder %s40, 1
      %p336 = por %p334, %p335
      %p338 = scmp.ne.s32.totalorder %s323, %s337
      %p339 = scmp.eq.s32.totalorder %s40, 0
      %p340 = por %p338, %p339
      %s342 = sadd.s32 %s341, 1
      %p345 = scmp.eq.s32.totalorder %s34, 1
      %p346 = scmp.ne.s32.totalorder %s341, %s343
      %p347 = scmp.eq.s32.totalorder %s34, 0
      %p348 = por %p346, %p347
      %p349 = scmp.ne.s32.totalorder %s341, %s343
      %p350 = scmp.eq.s32.totalorder %s39, 1
      %p351 = por %p349, %p350
      %p352 = scmp.ne.s32.totalorder %s343, %s344
      %p353 = scmp.eq.s32.totalorder %s39, 0
      %p354 = por %p352, %p353
      %p355 = scmp.ne.s32.totalorder %s343, %s344
      %p356 = scmp.eq.s32.totalorder %s40, 1
      %p357 = por %p355, %p356
      %p359 = scmp.ne.s32.totalorder %s344, %s358
      %p360 = scmp.eq.s32.totalorder %s40, 0
      %p361 = por %p359, %p360
      %s362 = ssub.s32 %s34, %s41
      %p363 = scmp.eq.s32.totalorder %s362, 0
      %s365 = sadd.s32 %s364, 1
      %s366 = scalar_select %p363, %s364, %s365
      %p369 = pneg %p363
      %p370 = scmp.eq.s32.totalorder %s34, 1
      %p371 = por %p369, %p370
      %p372 = scmp.ne.s32.totalorder %s364, %s367
      %p373 = scmp.eq.s32.totalorder %s34, 0
      %p374 = por %p372, %p373
      %p375 = scmp.ne.s32.totalorder %s364, %s367
      %p376 = scmp.eq.s32.totalorder %s39, 1
      %p377 = por %p375, %p376
      %p378 = scmp.ne.s32.totalorder %s367, %s368
      %p379 = scmp.eq.s32.totalorder %s39, 0
      %p380 = por %p378, %p379
      %p381 = scmp.ne.s32.totalorder %s367, %s368
      %p382 = scmp.eq.s32.totalorder %s40, 1
      %p383 = por %p381, %p382
      %p385 = scmp.ne.s32.totalorder %s368, %s384
      %p386 = scmp.eq.s32.totalorder %s40, 0
      %p387 = por %p385, %p386
      %p388 = scmp.le.s32.totalorder 1, %s34
      %p389 = scmp.lt.s32.totalorder %s34, 3
      %p390 = pnand %p388, %p389
      %p391 = pneg %p390
      // Predicated region
      $region9: #{tpu_custom_call.1} parent=5 // pred_check
        _
      $region10: #{tpu_custom_call.1} parent=5 // pred_check_branch
        %393 = sbr.rel (%p390) target = $region12
      $region11: #{tpu_custom_call.1} parent=5 // pred_region
        %s394 = ssub.s32 %s34, 1
        // Predicated region
        $region13: #{tpu_custom_call.1} parent=11 // pred_check
          %p395 = pneg %p81
        $region14: #{tpu_custom_call.1} parent=11 // pred_check_branch
          %397 = sbr.rel (%p395) target = $region16
        $region15: #{tpu_custom_call.1} parent=11 // pred_region
          %s399 = ssub.s32 1024, 1024
          %400 = vsyncadd [#allocation8], %s399
          %s401 = sshll.u32 [#allocation7], 4
          %s402 = int_to_ptr.vmem [resolvable:$true] %s401
          %407 = dma.hbm_to_vmem [thread:$0]  %s1, 1024, %s402, [#allocation8], 64, 64, 4
        $region16: #{tpu_custom_call.1} parent=11 // pred_fallthru
          _
        // Predicated region
        $region17: #{tpu_custom_call.1} parent=11 // pred_check
          %p408 = pneg %p102
        $region18: #{tpu_custom_call.1} parent=11 // pred_check_branch
          %410 = sbr.rel (%p408) target = $region20
        $region19: #{tpu_custom_call.1} parent=11 // pred_region
          %s412 = ssub.s32 16, 16
          %413 = vsyncadd [#allocation8], %s412
          %s415 = sshll.u32 [#allocation9], 4
          %s416 = int_to_ptr.vmem [resolvable:$true] %s415
          %418 = dma.hbm_to_vmem [thread:$0]  %s2, 16, %s416, [#allocation8]
        $region20: #{tpu_custom_call.1} parent=11 // pred_fallthru
          _
        // Predicated region
        $region21: #{tpu_custom_call.1} parent=11 // pred_check
          %p419 = pneg %p123
        $region22: #{tpu_custom_call.1} parent=11 // pred_check_branch
          %421 = sbr.rel (%p419) target = $region24
        $region23: #{tpu_custom_call.1} parent=11 // pred_region
          %s423 = ssub.s32 16, 16
          %424 = vsyncadd [#allocation11], %s423
          %s426 = sshll.u32 [#allocation10], 4
          %s427 = int_to_ptr.vmem [resolvable:$true] %s426
          %429 = dma.hbm_to_vmem [thread:$0]  %s3, 16, %s427, [#allocation11]
        $region24: #{tpu_custom_call.1} parent=11 // pred_fallthru
          _
        // Predicated region
        $region25: #{tpu_custom_call.1} parent=11 // pred_check
          %p430 = pneg %p144
        $region26: #{tpu_custom_call.1} parent=11 // pred_check_branch
          %432 = sbr.rel (%p430) target = $region28
        $region27: #{tpu_custom_call.1} parent=11 // pred_region
          %s434 = ssub.s32 9216, 9216
          %435 = vsyncadd [#allocation11], %s434
          %s436 = sshll.u32 [#allocation12], 4
          %s437 = int_to_ptr.vmem [resolvable:$true] %s436
          %442 = dma.hbm_to_vmem [thread:$0]  %s4, 9216, %s437, [#allocation11], 64, 64, 4
        $region28: #{tpu_custom_call.1} parent=11 // pred_fallthru
          _
        // Predicated region
        $region29: #{tpu_custom_call.1} parent=11 // pred_check
          %p443 = pneg %p165
        $region30: #{tpu_custom_call.1} parent=11 // pred_check_branch
          %445 = sbr.rel (%p443) target = $region32
        $region31: #{tpu_custom_call.1} parent=11 // pred_region
          %s447 = ssub.s32 16, 16
          %448 = vsyncadd [#allocation14], %s447
          %s450 = sshll.u32 [#allocation13], 4
          %s451 = int_to_ptr.vmem [resolvable:$true] %s450
          %453 = dma.hbm_to_vmem [thread:$0]  %s5, 16, %s451, [#allocation14]
        $region32: #{tpu_custom_call.1} parent=11 // pred_fallthru
          _
        // Predicated region
        $region33: #{tpu_custom_call.1} parent=11 // pred_check
          %p454 = pneg %p186
        $region34: #{tpu_custom_call.1} parent=11 // pred_check_branch
          %456 = sbr.rel (%p454) target = $region36
        $region35: #{tpu_custom_call.1} parent=11 // pred_region
          %s458 = ssub.s32 16, 16
          %459 = vsyncadd [#allocation14], %s458
          %s461 = sshll.u32 [#allocation15], 4
          %s462 = int_to_ptr.vmem [resolvable:$true] %s461
          %464 = dma.hbm_to_vmem [thread:$0]  %s6, 16, %s462, [#allocation14]
        $region36: #{tpu_custom_call.1} parent=11 // pred_fallthru
          _
        // Predicated region
        $region37: #{tpu_custom_call.1} parent=11 // pred_check
          %p465 = pneg %p207
        $region38: #{tpu_custom_call.1} parent=11 // pred_check_branch
          %467 = sbr.rel (%p465) target = $region40
        $region39: #{tpu_custom_call.1} parent=11 // pred_region
          %s469 = ssub.s32 4096, 4096
          %470 = vsyncadd [#allocation17], %s469
          %s471 = sshll.u32 [#allocation16], 4
          %s472 = int_to_ptr.vmem [resolvable:$true] %s471
          %477 = dma.hbm_to_vmem [thread:$0]  %s7, 4096, %s472, [#allocation17], 128, 128, 8
        $region40: #{tpu_custom_call.1} parent=11 // pred_fallthru
          _
        // Predicated region
        $region41: #{tpu_custom_call.1} parent=11 // pred_check
          %p478 = pneg %p228
        $region42: #{tpu_custom_call.1} parent=11 // pred_check_branch
          %480 = sbr.rel (%p478) target = $region44
        $region43: #{tpu_custom_call.1} parent=11 // pred_region
          %s482 = ssub.s32 4096, 4096
          %483 = vsyncadd [#allocation17], %s482
          %s484 = sshll.u32 [#allocation18], 4
          %s485 = int_to_ptr.vmem [resolvable:$true] %s484
          %490 = dma.hbm_to_vmem [thread:$0]  %s8, 4096, %s485, [#allocation17], 128, 128, 8
        $region44: #{tpu_custom_call.1} parent=11 // pred_fallthru
          _
        // Predicated region
        $region45: #{tpu_custom_call.1} parent=11 // pred_check
          %p491 = pneg %p249
        $region46: #{tpu_custom_call.1} parent=11 // pred_check_branch
          %493 = sbr.rel (%p491) target = $region48
        $region47: #{tpu_custom_call.1} parent=11 // pred_region
          %s495 = ssub.s32 1024, 1024
          %496 = vsyncadd [#allocation20], %s495
          %s497 = sshll.u32 [#allocation19], 4
          %s498 = int_to_ptr.vmem [resolvable:$true] %s497
          %503 = dma.hbm_to_vmem [thread:$0]  %s9, 1024, %s498, [#allocation20], 64, 64, 4
        $region48: #{tpu_custom_call.1} parent=11 // pred_fallthru
          _
        // Predicated region
        $region49: #{tpu_custom_call.1} parent=11 // pred_check
          %p504 = pneg %p270
        $region50: #{tpu_custom_call.1} parent=11 // pred_check_branch
          %506 = sbr.rel (%p504) target = $region52
        $region51: #{tpu_custom_call.1} parent=11 // pred_region
          %s508 = ssub.s32 16, 16
          %509 = vsyncadd [#allocation20], %s508
          %s511 = sshll.u32 [#allocation21], 4
          %s512 = int_to_ptr.vmem [resolvable:$true] %s511
          %514 = dma.hbm_to_vmem [thread:$0]  %s10, 16, %s512, [#allocation20]
        $region52: #{tpu_custom_call.1} parent=11 // pred_fallthru
          _
        // Predicated region
        $region53: #{tpu_custom_call.1} parent=11 // pred_check
          %p515 = pneg %p291
        $region54: #{tpu_custom_call.1} parent=11 // pred_check_branch
          %517 = sbr.rel (%p515) target = $region56
        $region55: #{tpu_custom_call.1} parent=11 // pred_region
          %s519 = ssub.s32 16, 16
          %520 = vsyncadd [#allocation23], %s519
          %s522 = sshll.u32 [#allocation22], 4
          %s523 = int_to_ptr.vmem [resolvable:$true] %s522
          %525 = dma.hbm_to_vmem [thread:$0]  %s11, 16, %s523, [#allocation23]
        $region56: #{tpu_custom_call.1} parent=11 // pred_fallthru
          _
        // Predicated region
        $region57: #{tpu_custom_call.1} parent=11 // pred_check
          %p526 = pneg %p312
        $region58: #{tpu_custom_call.1} parent=11 // pred_check_branch
          %528 = sbr.rel (%p526) target = $region60
        $region59: #{tpu_custom_call.1} parent=11 // pred_region
          %s530 = ssub.s32 1024, 1024
          %531 = vsyncadd [#allocation23], %s530
          %s532 = sshll.u32 [#allocation24], 4
          %s533 = int_to_ptr.vmem [resolvable:$true] %s532
          %538 = dma.hbm_to_vmem [thread:$0]  %s12, 1024, %s533, [#allocation23], 64, 64, 4
        $region60: #{tpu_custom_call.1} parent=11 // pred_fallthru
          _
        // Predicated region
        $region61: #{tpu_custom_call.1} parent=11 // pred_check
          %p539 = pneg %p333
        $region62: #{tpu_custom_call.1} parent=11 // pred_check_branch
          %541 = sbr.rel (%p539) target = $region64
        $region63: #{tpu_custom_call.1} parent=11 // pred_region
          %s543 = ssub.s32 16, 16
          %544 = vsyncadd [#allocation26], %s543
          %s546 = sshll.u32 [#allocation25], 4
          %s547 = int_to_ptr.vmem [resolvable:$true] %s546
          %549 = dma.hbm_to_vmem [thread:$0]  %s13, 16, %s547, [#allocation26]
        $region64: #{tpu_custom_call.1} parent=11 // pred_fallthru
          _
        // Predicated region
        $region65: #{tpu_custom_call.1} parent=11 // pred_check
          %p550 = pneg %p354
        $region66: #{tpu_custom_call.1} parent=11 // pred_check_branch
          %552 = sbr.rel (%p550) target = $region68
        $region67: #{tpu_custom_call.1} parent=11 // pred_region
          %s554 = ssub.s32 16, 16
          %555 = vsyncadd [#allocation26], %s554
          %s557 = sshll.u32 [#allocation27], 4
          %s558 = int_to_ptr.vmem [resolvable:$true] %s557
          %560 = dma.hbm_to_vmem [thread:$0]  %s14, 16, %s558, [#allocation26]
        $region68: #{tpu_custom_call.1} parent=11 // pred_fallthru
          _
      $region12: #{tpu_custom_call.1} parent=5 // pred_fallthru
        _
      %p561 = scmp.lt.s32.totalorder %s34, 2
      // Predicated region
      $region69: #{tpu_custom_call.1} parent=5 // pred_check
        %p562 = pneg %p561
      $region70: #{tpu_custom_call.1} parent=5 // pred_check_branch
        %564 = sbr.rel (%p562) target = $region72
      $region71: #{tpu_custom_call.1} parent=5 // pred_region
        // Predicated region
        $region73: #{tpu_custom_call.1} parent=71 // pred_check
          %p565 = pneg %p54
        $region74: #{tpu_custom_call.1} parent=71 // pred_check_branch
          %567 = sbr.rel (%p565) target = $region76
        $region75: #{tpu_custom_call.1} parent=71 // pred_region
          %s568 = sand.u32 %s44, 1
          %s569 = scalar_lea.sflag [#allocation5], %s568
          %s570 = sand.u32 %s44, 1
          %s571 = smul.addr %s570, 256
          %s572 = scalar_lea.vmem [#allocation4], %s571
          %s574 = ssub.s32 4096, 4096
          %575 = vsyncadd %s569, %s574
          %s576 = smul.addr %s34, 32
          %s577 = smul.addr %s576, 128
          %s578 = scalar_lea.hbm %s0, %s577
          %s579 = sshll.u32 %s572, 4
          %s580 = int_to_ptr.vmem [resolvable:$true] %s579
          %585 = dma.hbm_to_vmem [thread:$0]  %s578, 4096, %s580, %s569, 128, 128, 8
        $region76: #{tpu_custom_call.1} parent=71 // pred_fallthru
          _
      $region72: #{tpu_custom_call.1} parent=5 // pred_fallthru
        _
      %p586 = scmp.le.s32.totalorder 1, %s34
      %p587 = scmp.lt.s32.totalorder %s34, 3
      %p588 = pnand %p586, %p587
      %p589 = pneg %p588
      // Predicated region
      $region77: #{tpu_custom_call.1} parent=5 // pred_check
        _
      $region78: #{tpu_custom_call.1} parent=5 // pred_check_branch
        %591 = sbr.rel (%p588) target = $region80
      $region79: #{tpu_custom_call.1} parent=5 // pred_region
        %s592 = ssub.s32 %s34, 1
        %s593 = sand.u32 %s47, 1
        %s594 = scalar_lea.sflag [#allocation5], %s593
        %s595 = sand.u32 %s47, 1
        %s596 = smul.addr %s595, 256
        %s597 = scalar_lea.vmem [#allocation4], %s596
        // Predicated region
        $region81: #{tpu_custom_call.1} parent=79 // pred_check
          %p598 = pneg %p60
        $region82: #{tpu_custom_call.1} parent=79 // pred_check_branch
          %600 = sbr.rel (%p598) target = $region84
        $region83: #{tpu_custom_call.1} parent=79 // pred_region
          %601 = dma.done %s594, 4096
        $region84: #{tpu_custom_call.1} parent=79 // pred_fallthru
          _
        // Predicated region
        $region85: #{tpu_custom_call.1} parent=79 // pred_check
          %p602 = pneg %p81
        $region86: #{tpu_custom_call.1} parent=79 // pred_check_branch
          %604 = sbr.rel (%p602) target = $region88
        $region87: #{tpu_custom_call.1} parent=79 // pred_region
          %605 = dma.done [#allocation8], 1024
        $region88: #{tpu_custom_call.1} parent=79 // pred_fallthru
          _
        // Predicated region
        $region89: #{tpu_custom_call.1} parent=79 // pred_check
          %p606 = pneg %p102
        $region90: #{tpu_custom_call.1} parent=79 // pred_check_branch
          %608 = sbr.rel (%p606) target = $region92
        $region91: #{tpu_custom_call.1} parent=79 // pred_region
          %609 = dma.done [#allocation8], 16
        $region92: #{tpu_custom_call.1} parent=79 // pred_fallthru
          _
        // Predicated region
        $region93: #{tpu_custom_call.1} parent=79 // pred_check
          %p610 = pneg %p123
        $region94: #{tpu_custom_call.1} parent=79 // pred_check_branch
          %612 = sbr.rel (%p610) target = $region96
        $region95: #{tpu_custom_call.1} parent=79 // pred_region
          %613 = dma.done [#allocation11], 16
        $region96: #{tpu_custom_call.1} parent=79 // pred_fallthru
          _
        // Predicated region
        $region97: #{tpu_custom_call.1} parent=79 // pred_check
          %p614 = pneg %p144
        $region98: #{tpu_custom_call.1} parent=79 // pred_check_branch
          %616 = sbr.rel (%p614) target = $region100
        $region99: #{tpu_custom_call.1} parent=79 // pred_region
          %617 = dma.done [#allocation11], 9216
        $region100: #{tpu_custom_call.1} parent=79 // pred_fallthru
          _
        // Predicated region
        $region101: #{tpu_custom_call.1} parent=79 // pred_check
          %p618 = pneg %p165
        $region102: #{tpu_custom_call.1} parent=79 // pred_check_branch
          %620 = sbr.rel (%p618) target = $region104
        $region103: #{tpu_custom_call.1} parent=79 // pred_region
          %621 = dma.done [#allocation14], 16
        $region104: #{tpu_custom_call.1} parent=79 // pred_fallthru
          _
        // Predicated region
        $region105: #{tpu_custom_call.1} parent=79 // pred_check
          %p622 = pneg %p186
        $region106: #{tpu_custom_call.1} parent=79 // pred_check_branch
          %624 = sbr.rel (%p622) target = $region108
        $region107: #{tpu_custom_call.1} parent=79 // pred_region
          %625 = dma.done [#allocation14], 16
        $region108: #{tpu_custom_call.1} parent=79 // pred_fallthru
          _
        // Predicated region
        $region109: #{tpu_custom_call.1} parent=79 // pred_check
          %p626 = pneg %p207
        $region110: #{tpu_custom_call.1} parent=79 // pred_check_branch
          %628 = sbr.rel (%p626) target = $region112
        $region111: #{tpu_custom_call.1} parent=79 // pred_region
          %629 = dma.done [#allocation17], 4096
        $region112: #{tpu_custom_call.1} parent=79 // pred_fallthru
          _
        // Predicated region
        $region113: #{tpu_custom_call.1} parent=79 // pred_check
          %p630 = pneg %p228
        $region114: #{tpu_custom_call.1} parent=79 // pred_check_branch
          %632 = sbr.rel (%p630) target = $region116
        $region115: #{tpu_custom_call.1} parent=79 // pred_region
          %633 = dma.done [#allocation17], 4096
        $region116: #{tpu_custom_call.1} parent=79 // pred_fallthru
          _
        // Predicated region
        $region117: #{tpu_custom_call.1} parent=79 // pred_check
          %p634 = pneg %p249
        $region118: #{tpu_custom_call.1} parent=79 // pred_check_branch
          %636 = sbr.rel (%p634) target = $region120
        $region119: #{tpu_custom_call.1} parent=79 // pred_region
          %637 = dma.done [#allocation20], 1024
        $region120: #{tpu_custom_call.1} parent=79 // pred_fallthru
          _
        // Predicated region
        $region121: #{tpu_custom_call.1} parent=79 // pred_check
          %p638 = pneg %p270
        $region122: #{tpu_custom_call.1} parent=79 // pred_check_branch
          %640 = sbr.rel (%p638) target = $region124
        $region123: #{tpu_custom_call.1} parent=79 // pred_region
          %641 = dma.done [#allocation20], 16
        $region124: #{tpu_custom_call.1} parent=79 // pred_fallthru
          _
        // Predicated region
        $region125: #{tpu_custom_call.1} parent=79 // pred_check
          %p642 = pneg %p291
        $region126: #{tpu_custom_call.1} parent=79 // pred_check_branch
          %644 = sbr.rel (%p642) target = $region128
        $region127: #{tpu_custom_call.1} parent=79 // pred_region
          %645 = dma.done [#allocation23], 16
        $region128: #{tpu_custom_call.1} parent=79 // pred_fallthru
          _
        // Predicated region
        $region129: #{tpu_custom_call.1} parent=79 // pred_check
          %p646 = pneg %p312
        $region130: #{tpu_custom_call.1} parent=79 // pred_check_branch
          %648 = sbr.rel (%p646) target = $region132
        $region131: #{tpu_custom_call.1} parent=79 // pred_region
          %649 = dma.done [#allocation23], 1024
        $region132: #{tpu_custom_call.1} parent=79 // pred_fallthru
          _
        // Predicated region
        $region133: #{tpu_custom_call.1} parent=79 // pred_check
          %p650 = pneg %p333
        $region134: #{tpu_custom_call.1} parent=79 // pred_check_branch
          %652 = sbr.rel (%p650) target = $region136
        $region135: #{tpu_custom_call.1} parent=79 // pred_region
          %653 = dma.done [#allocation26], 16
        $region136: #{tpu_custom_call.1} parent=79 // pred_fallthru
          _
        // Predicated region
        $region137: #{tpu_custom_call.1} parent=79 // pred_check
          %p654 = pneg %p354
        $region138: #{tpu_custom_call.1} parent=79 // pred_check_branch
          %656 = sbr.rel (%p654) target = $region140
        $region139: #{tpu_custom_call.1} parent=79 // pred_region
          %657 = dma.done [#allocation26], 16
        $region140: #{tpu_custom_call.1} parent=79 // pred_fallthru
          _
        %s658 = sand.u32 %s47, 1
        %s659 = scalar_lea.sflag [#allocation5], %s658
        %s660 = sand.u32 %s47, 1
        %s661 = smul.addr %s660, 256
        %s662 = scalar_lea.vmem [#allocation4], %s661
        %p663 = pneg %p60
        %p664 = pneg %p57
        %p665 = pneg %p81
        %p666 = pneg %p78
        %p667 = pneg %p102
        %p668 = pneg %p99
        %p669 = pneg %p123
        %p670 = pneg %p120
        %p671 = pneg %p144
        %p672 = pneg %p141
        %p673 = pneg %p165
        %p674 = pneg %p162
        %p675 = pneg %p186
        %p676 = pneg %p183
        %p677 = pneg %p207
        %p678 = pneg %p204
        %p679 = pneg %p228
        %p680 = pneg %p225
        %p681 = pneg %p249
        %p682 = pneg %p246
        %p683 = pneg %p270
        %p684 = pneg %p267
        %p685 = pneg %p291
        %p686 = pneg %p288
        %p687 = pneg %p312
        %p688 = pneg %p309
        %p689 = pneg %p333
        %p690 = pneg %p330
        %p691 = pneg %p354
        %p692 = pneg %p351
        %p693 = pneg %p380
        %p694 = pneg %p377
        %s695 = sand.u32 %s367, 1
        %s696 = scalar_lea.sflag [#allocation6], %s695
        %s697 = sand.u32 %s367, 1
        %s698 = smul.addr %s697, 64
        %s699 = scalar_lea.vmem [#allocation28], %s698
        %v701 = vld [vmem:[%s597] sm:$0xff]
        %v702 = vld [vmem:[%s597 + $0x8] sm:$0xff]
        %v703 = vld [vmem:[%s597 + $0x10] sm:$0xff]
        %v704 = vld [vmem:[%s597 + $0x18] sm:$0xff]
        %v705 = vld [vmem:[%s597 + $0x20] sm:$0xff]
        %v706 = vld [vmem:[%s597 + $0x28] sm:$0xff]
        %v707 = vld [vmem:[%s597 + $0x30] sm:$0xff]
        %v708 = vld [vmem:[%s597 + $0x38] sm:$0xff]
        %v709 = vld [vmem:[%s597 + $0x40] sm:$0xff]
        %v710 = vld [vmem:[%s597 + $0x48] sm:$0xff]
        %v711 = vld [vmem:[%s597 + $0x50] sm:$0xff]
        %v712 = vld [vmem:[%s597 + $0x58] sm:$0xff]
        %v713 = vld [vmem:[%s597 + $0x60] sm:$0xff]
        %v714 = vld [vmem:[%s597 + $0x68] sm:$0xff]
        %v715 = vld [vmem:[%s597 + $0x70] sm:$0xff]
        %v716 = vld [vmem:[%s597 + $0x78] sm:$0xff]
        %v717 = vld [vmem:[%s597 + $0x80] sm:$0xff]
        %v718 = vld [vmem:[%s597 + $0x88] sm:$0xff]
        %v719 = vld [vmem:[%s597 + $0x90] sm:$0xff]
        %v720 = vld [vmem:[%s597 + $0x98] sm:$0xff]
        %v721 = vld [vmem:[%s597 + $0xa0] sm:$0xff]
        %v722 = vld [vmem:[%s597 + $0xa8] sm:$0xff]
        %v723 = vld [vmem:[%s597 + $0xb0] sm:$0xff]
        %v724 = vld [vmem:[%s597 + $0xb8] sm:$0xff]
        %v725 = vld [vmem:[%s597 + $0xc0] sm:$0xff]
        %v726 = vld [vmem:[%s597 + $0xc8] sm:$0xff]
        %v727 = vld [vmem:[%s597 + $0xd0] sm:$0xff]
        %v728 = vld [vmem:[%s597 + $0xd8] sm:$0xff]
        %v729 = vld [vmem:[%s597 + $0xe0] sm:$0xff]
        %v730 = vld [vmem:[%s597 + $0xe8] sm:$0xff]
        %v731 = vld [vmem:[%s597 + $0xf0] sm:$0xff]
        %v732 = vld [vmem:[%s597 + $0xf8] sm:$0xff]
        %v733 = vpack.c.bf16 %v702, %v701
        %v734 = vpack.c.bf16 %v704, %v703
        %v735 = vpack.c.bf16 %v706, %v705
        %v736 = vpack.c.bf16 %v708, %v707
        %v737 = vpack.c.bf16 %v710, %v709
        %v738 = vpack.c.bf16 %v712, %v711
        %v739 = vpack.c.bf16 %v714, %v713
        %v740 = vpack.c.bf16 %v716, %v715
        %v741 = vpack.c.bf16 %v718, %v717
        %v742 = vpack.c.bf16 %v720, %v719
        %v743 = vpack.c.bf16 %v722, %v721
        %v744 = vpack.c.bf16 %v724, %v723
        %v745 = vpack.c.bf16 %v726, %v725
        %v746 = vpack.c.bf16 %v728, %v727
        %v747 = vpack.c.bf16 %v730, %v729
        %v748 = vpack.c.bf16 %v732, %v731
        %v749 = vld [vmem:[#allocation7] sm:$0xf]
        %v750 = vld [vmem:[#allocation7 + $0x4] sm:$0xf]
        %v751 = vld [vmem:[#allocation7 + $0x8] sm:$0xf]
        %v752 = vld [vmem:[#allocation7 + $0xc] sm:$0xf]
        %v753 = vld [vmem:[#allocation7 + $0x10] sm:$0xf]
        %v754 = vld [vmem:[#allocation7 + $0x14] sm:$0xf]
        %v755 = vld [vmem:[#allocation7 + $0x18] sm:$0xf]
        %v756 = vld [vmem:[#allocation7 + $0x1c] sm:$0xf]
        %v757 = vld [vmem:[#allocation7 + $0x20] sm:$0xf]
        %v758 = vld [vmem:[#allocation7 + $0x24] sm:$0xf]
        %v759 = vld [vmem:[#allocation7 + $0x28] sm:$0xf]
        %v760 = vld [vmem:[#allocation7 + $0x2c] sm:$0xf]
        %v761 = vld [vmem:[#allocation7 + $0x30] sm:$0xf]
        %v762 = vld [vmem:[#allocation7 + $0x34] sm:$0xf]
        %v763 = vld [vmem:[#allocation7 + $0x38] sm:$0xf]
        %v764 = vld [vmem:[#allocation7 + $0x3c] sm:$0xf]
        %v781 = vunpack.c.l.b16 %v749
        %v782 = vunpack.c.l.b16 %v750
        %v783 = vunpack.c.l.b16 %v751
        %v784 = vunpack.c.l.b16 %v752
        %v785 = vunpack.c.l.b16 %v753
        %v786 = vunpack.c.l.b16 %v754
        %v787 = vunpack.c.l.b16 %v755
        %v788 = vunpack.c.l.b16 %v756
        %v789 = vunpack.c.l.b16 %v757
        %v790 = vunpack.c.l.b16 %v758
        %v791 = vunpack.c.l.b16 %v759
        %v792 = vunpack.c.l.b16 %v760
        %v793 = vunpack.c.l.b16 %v761
        %v794 = vunpack.c.l.b16 %v762
        %v795 = vunpack.c.l.b16 %v763
        %v796 = vunpack.c.l.b16 %v764
        %v797 = vpack.c.b16 %v782, %v781
        %v798 = vpack.c.b16 %v784, %v783
        %v799 = vpack.c.b16 %v786, %v785
        %v800 = vpack.c.b16 %v788, %v787
        %v801 = vpack.c.b16 %v790, %v789
        %v802 = vpack.c.b16 %v792, %v791
        %v803 = vpack.c.b16 %v794, %v793
        %v804 = vpack.c.b16 %v796, %v795
        %813 = vmatprep.subr.bf16.mxu0 0
        %814 = vmatpush1.bf16.msra.mxu0 %v797
        %815 = vmatprep.subr.bf16.mxu0 0
        %816 = vmatpush1.bf16.msra.mxu0 %v798
        %817 = vmatprep.subr.bf16.mxu0 0
        %818 = vmatpush1.bf16.msra.mxu0 %v799
        %819 = vmatprep.subr.bf16.mxu0 0
        %820 = vmatpush1.bf16.msra.mxu0 %v800
        %821 = vmatprep.subr.bf16.mxu0 0
        %822 = vmatpush1.bf16.msra.mxu0 %v801
        %823 = vmatprep.subr.bf16.mxu0 0
        %824 = vmatpush1.bf16.msra.mxu0 %v802
        %825 = vmatprep.subr.bf16.mxu0 0
        %826 = vmatpush1.bf16.msra.mxu0 %v803
        %827 = vmatprep.subr.bf16.mxu0 0
        %828 = vmatpush1.bf16.msra.mxu0 %v804
        %829 = vmatprep.subr.bf16.mxu0 0
        %830 = vmatpush1.bf16.msra.mxu0 0
        %831 = vmatprep.subr.bf16.mxu0 0
        %832 = vmatpush1.bf16.msra.mxu0 0
        %833 = vmatprep.subr.bf16.mxu0 0
        %834 = vmatpush1.bf16.msra.mxu0 0
        %835 = vmatprep.subr.bf16.mxu0 0
        %836 = vmatpush1.bf16.msra.mxu0 0
        %837 = vmatprep.subr.bf16.mxu0 0
        %838 = vmatpush1.bf16.msra.mxu0 0
        %839 = vmatprep.subr.bf16.mxu0 0
        %840 = vmatpush1.bf16.msra.mxu0 0
        %841 = vmatprep.subr.bf16.mxu0 0
        %842 = vmatpush1.bf16.msra.mxu0 0
        %843 = vmatprep.subr.bf16.mxu0 0
        %844 = vmatpush1.bf16.msra.mxu0 0
        %845 = vmatprep.mubr.bf16.mxu0 0
        %846 = vmatmul.mubr.bf16.gmra.mrb[0].mxu0 %v733
        %v847 = vpop.f32.mrb[0].mxu0
        %v848 = vadd.f32 0.0, %v847
        %v849 = vpop.f32.mrb[0].mxu0
        %v850 = vpop.f32.mrb[0].mxu0
        %v851 = vadd.f32 0.0, %v850
        %v852 = vpop.f32.mrb[0].mxu0
        %853 = vmatprep.mubr.bf16.mxu0 0
        %854 = vmatmul.mubr.bf16.gmra.mrb[0].mxu0 %v734
        %v855 = vpop.f32.mrb[0].mxu0
        %v856 = vadd.f32 0.0, %v855
        %v857 = vpop.f32.mrb[0].mxu0
        %v858 = vpop.f32.mrb[0].mxu0
        %v859 = vadd.f32 0.0, %v858
        %v860 = vpop.f32.mrb[0].mxu0
        %861 = vmatprep.mubr.bf16.mxu0 0
        %862 = vmatmul.mubr.bf16.gmra.mrb[0].mxu0 %v735
        %v863 = vpop.f32.mrb[0].mxu0
        %v864 = vadd.f32 0.0, %v863
        %v865 = vpop.f32.mrb[0].mxu0
        %v866 = vpop.f32.mrb[0].mxu0
        %v867 = vadd.f32 0.0, %v866
        %v868 = vpop.f32.mrb[0].mxu0
        %869 = vmatprep.mubr.bf16.mxu0 0
        %870 = vmatmul.mubr.bf16.gmra.mrb[0].mxu0 %v736
        %v871 = vpop.f32.mrb[0].mxu0
        %v872 = vadd.f32 0.0, %v871
        %v873 = vpop.f32.mrb[0].mxu0
        %v874 = vpop.f32.mrb[0].mxu0
        %v875 = vadd.f32 0.0, %v874
        %v876 = vpop.f32.mrb[0].mxu0
        %877 = vmatprep.mubr.bf16.mxu0 0
        %878 = vmatmul.mubr.bf16.gmra.mrb[0].mxu0 %v737
        %v879 = vpop.f32.mrb[0].mxu0
        %v880 = vadd.f32 0.0, %v879
        %v881 = vpop.f32.mrb[0].mxu0
        %v882 = vpop.f32.mrb[0].mxu0
        %v883 = vadd.f32 0.0, %v882
        %v884 = vpop.f32.mrb[0].mxu0
        %885 = vmatprep.mubr.bf16.mxu0 0
        %886 = vmatmul.mubr.bf16.gmra.mrb[0].mxu0 %v738
        %v887 = vpop.f32.mrb[0].mxu0
        %v888 = vadd.f32 0.0, %v887
        %v889 = vpop.f32.mrb[0].mxu0
        %v890 = vpop.f32.mrb[0].mxu0
        %v891 = vadd.f32 0.0, %v890
        %v892 = vpop.f32.mrb[0].mxu0
        %893 = vmatprep.mubr.bf16.mxu0 0
        %894 = vmatmul.mubr.bf16.gmra.mrb[0].mxu0 %v739
        %v895 = vpop.f32.mrb[0].mxu0
        %v896 = vadd.f32 0.0, %v895
        %v897 = vpop.f32.mrb[0].mxu0
        %v898 = vpop.f32.mrb[0].mxu0
        %v899 = vadd.f32 0.0, %v898
        %v900 = vpop.f32.mrb[0].mxu0
        %901 = vmatprep.mubr.bf16.mxu0 0
        %902 = vmatmul.mubr.bf16.gmra.mrb[0].mxu0 %v740
        %v903 = vpop.f32.mrb[0].mxu0
        %v904 = vadd.f32 0.0, %v903
        %v905 = vpop.f32.mrb[0].mxu0
        %v906 = vpop.f32.mrb[0].mxu0
        %v907 = vadd.f32 0.0, %v906
        %v908 = vpop.f32.mrb[0].mxu0
        %909 = vmatprep.mubr.bf16.mxu0 0
        %910 = vmatmul.mubr.bf16.gmra.mrb[0].mxu0 %v741
        %v911 = vpop.f32.mrb[0].mxu0
        %v912 = vadd.f32 0.0, %v911
        %v913 = vpop.f32.mrb[0].mxu0
        %v914 = vpop.f32.mrb[0].mxu0
        %v915 = vadd.f32 0.0, %v914
        %v916 = vpop.f32.mrb[0].mxu0
        %917 = vmatprep.mubr.bf16.mxu0 0
        %918 = vmatmul.mubr.bf16.gmra.mrb[0].mxu0 %v742
        %v919 = vpop.f32.mrb[0].mxu0
        %v920 = vadd.f32 0.0, %v919
        %v921 = vpop.f32.mrb[0].mxu0
        %v922 = vpop.f32.mrb[0].mxu0
        %v923 = vadd.f32 0.0, %v922
        %v924 = vpop.f32.mrb[0].mxu0
        %925 = vmatprep.mubr.bf16.mxu0 0
        %926 = vmatmul.mubr.bf16.gmra.mrb[0].mxu0 %v743
        %v927 = vpop.f32.mrb[0].mxu0
        %v928 = vadd.f32 0.0, %v927
        %v929 = vpop.f32.mrb[0].mxu0
        %v930 = vpop.f32.mrb[0].mxu0
        %v931 = vadd.f32 0.0, %v930
        %v932 = vpop.f32.mrb[0].mxu0
        %933 = vmatprep.mubr.bf16.mxu0 0
        %934 = vmatmul.mubr.bf16.gmra.mrb[0].mxu0 %v744
        %v935 = vpop.f32.mrb[0].mxu0
        %v936 = vadd.f32 0.0, %v935
        %v937 = vpop.f32.mrb[0].mxu0
        %v938 = vpop.f32.mrb[0].mxu0
        %v939 = vadd.f32 0.0, %v938
        %v940 = vpop.f32.mrb[0].mxu0
        %941 = vmatprep.mubr.bf16.mxu0 0
        %942 = vmatmul.mubr.bf16.gmra.mrb[0].mxu0 %v745
        %v943 = vpop.f32.mrb[0].mxu0
        %v944 = vadd.f32 0.0, %v943
        %v945 = vpop.f32.mrb[0].mxu0
        %v946 = vpop.f32.mrb[0].mxu0
        %v947 = vadd.f32 0.0, %v946
        %v948 = vpop.f32.mrb[0].mxu0
        %949 = vmatprep.mubr.bf16.mxu0 0
        %950 = vmatmul.mubr.bf16.gmra.mrb[0].mxu0 %v746
        %v951 = vpop.f32.mrb[0].mxu0
        %v952 = vadd.f32 0.0, %v951
        %v953 = vpop.f32.mrb[0].mxu0
        %v954 = vpop.f32.mrb[0].mxu0
        %v955 = vadd.f32 0.0, %v954
        %v956 = vpop.f32.mrb[0].mxu0
        %957 = vmatprep.mubr.bf16.mxu0 0
        %958 = vmatmul.mubr.bf16.gmra.mrb[0].mxu0 %v747
        %v959 = vpop.f32.mrb[0].mxu0
        %v960 = vadd.f32 0.0, %v959
        %v961 = vpop.f32.mrb[0].mxu0
        %v962 = vpop.f32.mrb[0].mxu0
        %v963 = vadd.f32 0.0, %v962
        %v964 = vpop.f32.mrb[0].mxu0
        %965 = vmatprep.mubr.bf16.mxu0 0
        %966 = vmatmul.mubr.bf16.gmra.mrb[0].mxu0 %v748
        %v967 = vpop.f32.mrb[0].mxu0
        %v968 = vadd.f32 0.0, %v967
        %v969 = vpop.f32.mrb[0].mxu0
        %v970 = vpop.f32.mrb[0].mxu0
        %v971 = vadd.f32 0.0, %v970
        %v972 = vpop.f32.mrb[0].mxu0
        %973 = vdwg.mxu0
        %v974 = vld [vmem:[#allocation9] sm:$0x1]
        %v976 = vlaneseq
        %v977 = vshrl.u32 %v976, 7
        %v978 = vsub.s32 0, %v977
        %v979 = vrot.slane %v974, %v978
        %v981 = vmul.f32 %v848, %v979
        %v982 = vmul.f32 %v851, %v979
        %v983 = vmul.f32 %v856, %v979
        %v984 = vmul.f32 %v859, %v979
        %v985 = vmul.f32 %v864, %v979
        %v986 = vmul.f32 %v867, %v979
        %v987 = vmul.f32 %v872, %v979
        %v988 = vmul.f32 %v875, %v979
        %v989 = vmul.f32 %v880, %v979
        %v990 = vmul.f32 %v883, %v979
        %v991 = vmul.f32 %v888, %v979
        %v992 = vmul.f32 %v891, %v979
        %v993 = vmul.f32 %v896, %v979
        %v994 = vmul.f32 %v899, %v979
        %v995 = vmul.f32 %v904, %v979
        %v996 = vmul.f32 %v907, %v979
        %v997 = vmul.f32 %v912, %v979
        %v998 = vmul.f32 %v915, %v979
        %v999 = vmul.f32 %v920, %v979
        %v1000 = vmul.f32 %v923, %v979
        %v1001 = vmul.f32 %v928, %v979
        %v1002 = vmul.f32 %v931, %v979
        %v1003 = vmul.f32 %v936, %v979
        %v1004 = vmul.f32 %v939, %v979
        %v1005 = vmul.f32 %v944, %v979
        %v1006 = vmul.f32 %v947, %v979
        %v1007 = vmul.f32 %v952, %v979
        %v1008 = vmul.f32 %v955, %v979
        %v1009 = vmul.f32 %v960, %v979
        %v1010 = vmul.f32 %v963, %v979
        %v1011 = vmul.f32 %v968, %v979
        %v1012 = vmul.f32 %v971, %v979
        %v1013 = vld [vmem:[#allocation10] sm:$0x1]
        %v1015 = vlaneseq
        %v1016 = vshrl.u32 %v1015, 7
        %v1017 = vsub.s32 0, %v1016
        %v1018 = vrot.slane %v1013, %v1017
        %v1020 = vadd.f32 %v981, %v1018
        %v1021 = vadd.f32 %v982, %v1018
        %v1022 = vadd.f32 %v983, %v1018
        %v1023 = vadd.f32 %v984, %v1018
        %v1024 = vadd.f32 %v985, %v1018
        %v1025 = vadd.f32 %v986, %v1018
        %v1026 = vadd.f32 %v987, %v1018
        %v1027 = vadd.f32 %v988, %v1018
        %v1028 = vadd.f32 %v989, %v1018
        %v1029 = vadd.f32 %v990, %v1018
        %v1030 = vadd.f32 %v991, %v1018
        %v1031 = vadd.f32 %v992, %v1018
        %v1032 = vadd.f32 %v993, %v1018
        %v1033 = vadd.f32 %v994, %v1018
        %v1034 = vadd.f32 %v995, %v1018
        %v1035 = vadd.f32 %v996, %v1018
        %v1036 = vadd.f32 %v997, %v1018
        %v1037 = vadd.f32 %v998, %v1018
        %v1038 = vadd.f32 %v999, %v1018
        %v1039 = vadd.f32 %v1000, %v1018
        %v1040 = vadd.f32 %v1001, %v1018
        %v1041 = vadd.f32 %v1002, %v1018
        %v1042 = vadd.f32 %v1003, %v1018
        %v1043 = vadd.f32 %v1004, %v1018
        %v1044 = vadd.f32 %v1005, %v1018
        %v1045 = vadd.f32 %v1006, %v1018
        %v1046 = vadd.f32 %v1007, %v1018
        %v1047 = vadd.f32 %v1008, %v1018
        %v1048 = vadd.f32 %v1009, %v1018
        %v1049 = vadd.f32 %v1010, %v1018
        %v1050 = vadd.f32 %v1011, %v1018
        %v1051 = vadd.f32 %v1012, %v1018
        %v1052 = vmax.f32 %v1020, 0.0
        %v1053 = vmax.f32 %v1021, 0.0
        %v1054 = vmax.f32 %v1022, 0.0
        %v1055 = vmax.f32 %v1023, 0.0
        %v1056 = vmax.f32 %v1024, 0.0
        %v1057 = vmax.f32 %v1025, 0.0
        %v1058 = vmax.f32 %v1026, 0.0
        %v1059 = vmax.f32 %v1027, 0.0
        %v1060 = vmax.f32 %v1028, 0.0
        %v1061 = vmax.f32 %v1029, 0.0
        %v1062 = vmax.f32 %v1030, 0.0
        %v1063 = vmax.f32 %v1031, 0.0
        %v1064 = vmax.f32 %v1032, 0.0
        %v1065 = vmax.f32 %v1033, 0.0
        %v1066 = vmax.f32 %v1034, 0.0
        %v1067 = vmax.f32 %v1035, 0.0
        %v1068 = vmax.f32 %v1036, 0.0
        %v1069 = vmax.f32 %v1037, 0.0
        %v1070 = vmax.f32 %v1038, 0.0
        %v1071 = vmax.f32 %v1039, 0.0
        %v1072 = vmax.f32 %v1040, 0.0
        %v1073 = vmax.f32 %v1041, 0.0
        %v1074 = vmax.f32 %v1042, 0.0
        %v1075 = vmax.f32 %v1043, 0.0
        %v1076 = vmax.f32 %v1044, 0.0
        %v1077 = vmax.f32 %v1045, 0.0
        %v1078 = vmax.f32 %v1046, 0.0
        %v1079 = vmax.f32 %v1047, 0.0
        %v1080 = vmax.f32 %v1048, 0.0
        %v1081 = vmax.f32 %v1049, 0.0
        %v1082 = vmax.f32 %v1050, 0.0
        %v1083 = vmax.f32 %v1051, 0.0
        %1084 = vst [vmem:[#allocation2] sm:$0xff] 0.0
        %1085 = vst [vmem:[#allocation2 + $0x8] sm:$0xff] 0.0
        %1086 = vst [vmem:[#allocation2 + $0x10] sm:$0xff] 0.0
        %1087 = vst [vmem:[#allocation2 + $0x118] sm:$0xff] 0.0
        %1088 = vst [vmem:[#allocation2 + $0x120] sm:$0xff] 0.0
        %1089 = vst [vmem:[#allocation2 + $0x128] sm:$0xff] 0.0
        %1090 = vst [vmem:[#allocation2 + $0x18] sm:$0xff] %v1052
        %1091 = vst [vmem:[#allocation2 + $0x20] sm:$0xff] %v1053
        %1092 = vst [vmem:[#allocation2 + $0x28] sm:$0xff] %v1054
        %1093 = vst [vmem:[#allocation2 + $0x30] sm:$0xff] %v1055
        %1094 = vst [vmem:[#allocation2 + $0x38] sm:$0xff] %v1056
        %1095 = vst [vmem:[#allocation2 + $0x40] sm:$0xff] %v1057
        %1096 = vst [vmem:[#allocation2 + $0x48] sm:$0xff] %v1058
        %1097 = vst [vmem:[#allocation2 + $0x50] sm:$0xff] %v1059
        %1098 = vst [vmem:[#allocation2 + $0x58] sm:$0xff] %v1060
        %1099 = vst [vmem:[#allocation2 + $0x60] sm:$0xff] %v1061
        %1100 = vst [vmem:[#allocation2 + $0x68] sm:$0xff] %v1062
        %1101 = vst [vmem:[#allocation2 + $0x70] sm:$0xff] %v1063
        %1102 = vst [vmem:[#allocation2 + $0x78] sm:$0xff] %v1064
        %1103 = vst [vmem:[#allocation2 + $0x80] sm:$0xff] %v1065
        %1104 = vst [vmem:[#allocation2 + $0x88] sm:$0xff] %v1066
        %1105 = vst [vmem:[#allocation2 + $0x90] sm:$0xff] %v1067
        %1106 = vst [vmem:[#allocation2 + $0x98] sm:$0xff] %v1068
        %1107 = vst [vmem:[#allocation2 + $0xa0] sm:$0xff] %v1069
        %1108 = vst [vmem:[#allocation2 + $0xa8] sm:$0xff] %v1070
        %1109 = vst [vmem:[#allocation2 + $0xb0] sm:$0xff] %v1071
        %1110 = vst [vmem:[#allocation2 + $0xb8] sm:$0xff] %v1072
        %1111 = vst [vmem:[#allocation2 + $0xc0] sm:$0xff] %v1073
        %1112 = vst [vmem:[#allocation2 + $0xc8] sm:$0xff] %v1074
        %1113 = vst [vmem:[#allocation2 + $0xd0] sm:$0xff] %v1075
        %1114 = vst [vmem:[#allocation2 + $0xd8] sm:$0xff] %v1076
        %1115 = vst [vmem:[#allocation2 + $0xe0] sm:$0xff] %v1077
        %1116 = vst [vmem:[#allocation2 + $0xe8] sm:$0xff] %v1078
        %1117 = vst [vmem:[#allocation2 + $0xf0] sm:$0xff] %v1079
        %1118 = vst [vmem:[#allocation2 + $0xf8] sm:$0xff] %v1080
        %1119 = vst [vmem:[#allocation2 + $0x100] sm:$0xff] %v1081
        %1120 = vst [vmem:[#allocation2 + $0x108] sm:$0xff] %v1082
        %1121 = vst [vmem:[#allocation2 + $0x110] sm:$0xff] %v1083
        %v1122 = vld [vmem:[#allocation16] sm:$0xff]
        %v1123 = vld [vmem:[#allocation16 + $0x8] sm:$0xff]
        %v1124 = vld [vmem:[#allocation16 + $0x10] sm:$0xff]
        %v1125 = vld [vmem:[#allocation16 + $0x18] sm:$0xff]
        %v1126 = vld [vmem:[#allocation16 + $0x20] sm:$0xff]
        %v1127 = vld [vmem:[#allocation16 + $0x28] sm:$0xff]
        %v1128 = vld [vmem:[#allocation16 + $0x30] sm:$0xff]
        %v1129 = vld [vmem:[#allocation16 + $0x38] sm:$0xff]
        %v1130 = vld [vmem:[#allocation16 + $0x40] sm:$0xff]
        %v1131 = vld [vmem:[#allocation16 + $0x48] sm:$0xff]
        %v1132 = vld [vmem:[#allocation16 + $0x50] sm:$0xff]
        %v1133 = vld [vmem:[#allocation16 + $0x58] sm:$0xff]
        %v1134 = vld [vmem:[#allocation16 + $0x60] sm:$0xff]
        %v1135 = vld [vmem:[#allocation16 + $0x68] sm:$0xff]
        %v1136 = vld [vmem:[#allocation16 + $0x70] sm:$0xff]
        %v1137 = vld [vmem:[#allocation16 + $0x78] sm:$0xff]
        %v1138 = vld [vmem:[#allocation16 + $0x80] sm:$0xff]
        %v1139 = vld [vmem:[#allocation16 + $0x88] sm:$0xff]
        %v1140 = vld [vmem:[#allocation16 + $0x90] sm:$0xff]
        %v1141 = vld [vmem:[#allocation16 + $0x98] sm:$0xff]
        %v1142 = vld [vmem:[#allocation16 + $0xa0] sm:$0xff]
        %v1143 = vld [vmem:[#allocation16 + $0xa8] sm:$0xff]
        %v1144 = vld [vmem:[#allocation16 + $0xb0] sm:$0xff]
        %v1145 = vld [vmem:[#allocation16 + $0xb8] sm:$0xff]
        %v1146 = vld [vmem:[#allocation16 + $0xc0] sm:$0xff]
        %v1147 = vld [vmem:[#allocation16 + $0xc8] sm:$0xff]
        %v1148 = vld [vmem:[#allocation16 + $0xd0] sm:$0xff]
        %v1149 = vld [vmem:[#allocation16 + $0xd8] sm:$0xff]
        %v1150 = vld [vmem:[#allocation16 + $0xe0] sm:$0xff]
        %v1151 = vld [vmem:[#allocation16 + $0xe8] sm:$0xff]
        %v1152 = vld [vmem:[#allocation16 + $0xf0] sm:$0xff]
        %v1153 = vld [vmem:[#allocation16 + $0xf8] sm:$0xff]
        %v1154 = vld [vmem:[#allocation18] sm:$0xff]
        %v1155 = vld [vmem:[#allocation18 + $0x8] sm:$0xff]
        %v1156 = vld [vmem:[#allocation18 + $0x10] sm:$0xff]
        %v1157 = vld [vmem:[#allocation18 + $0x18] sm:$0xff]
        %v1158 = vld [vmem:[#allocation18 + $0x20] sm:$0xff]
        %v1159 = vld [vmem:[#allocation18 + $0x28] sm:$0xff]
        %v1160 = vld [vmem:[#allocation18 + $0x30] sm:$0xff]
        %v1161 = vld [vmem:[#allocation18 + $0x38] sm:$0xff]
        %v1162 = vld [vmem:[#allocation18 + $0x40] sm:$0xff]
        %v1163 = vld [vmem:[#allocation18 + $0x48] sm:$0xff]
        %v1164 = vld [vmem:[#allocation18 + $0x50] sm:$0xff]
        %v1165 = vld [vmem:[#allocation18 + $0x58] sm:$0xff]
        %v1166 = vld [vmem:[#allocation18 + $0x60] sm:$0xff]
        %v1167 = vld [vmem:[#allocation18 + $0x68] sm:$0xff]
        %v1168 = vld [vmem:[#allocation18 + $0x70] sm:$0xff]
        %v1169 = vld [vmem:[#allocation18 + $0x78] sm:$0xff]
        %v1170 = vld [vmem:[#allocation18 + $0x80] sm:$0xff]
        %v1171 = vld [vmem:[#allocation18 + $0x88] sm:$0xff]
        %v1172 = vld [vmem:[#allocation18 + $0x90] sm:$0xff]
        %v1173 = vld [vmem:[#allocation18 + $0x98] sm:$0xff]
        %v1174 = vld [vmem:[#allocation18 + $0xa0] sm:$0xff]
        %v1175 = vld [vmem:[#allocation18 + $0xa8] sm:$0xff]
        %v1176 = vld [vmem:[#allocation18 + $0xb0] sm:$0xff]
        %v1177 = vld [vmem:[#allocation18 + $0xb8] sm:$0xff]
        %v1178 = vld [vmem:[#allocation18 + $0xc0] sm:$0xff]
        %v1179 = vld [vmem:[#allocation18 + $0xc8] sm:$0xff]
        %v1180 = vld [vmem:[#allocation18 + $0xd0] sm:$0xff]
        %v1181 = vld [vmem:[#allocation18 + $0xd8] sm:$0xff]
        %v1182 = vld [vmem:[#allocation18 + $0xe0] sm:$0xff]
        %v1183 = vld [vmem:[#allocation18 + $0xe8] sm:$0xff]
        %v1184 = vld [vmem:[#allocation18 + $0xf0] sm:$0xff]
        %v1185 = vld [vmem:[#allocation18 + $0xf8] sm:$0xff]
        %1186 = vst [vmem:[#allocation3] sm:$0xff] 0.0
        %1187 = vst [vmem:[#allocation3 + $0x8] sm:$0xff] 0.0
        %1188 = vst [vmem:[#allocation3 + $0x10] sm:$0xff] 0.0
        %1189 = vst [vmem:[#allocation3 + $0x18] sm:$0xff] 0.0
        %1190 = vst [vmem:[#allocation3 + $0x20] sm:$0xff] 0.0
        %1191 = vst [vmem:[#allocation3 + $0x28] sm:$0xff] 0.0
        %1192 = vst [vmem:[#allocation3 + $0x30] sm:$0xff] 0.0
        %1193 = vst [vmem:[#allocation3 + $0x38] sm:$0xff] 0.0
        %1194 = vst [vmem:[#allocation3 + $0x40] sm:$0xff] 0.0
        %1195 = vst [vmem:[#allocation3 + $0x48] sm:$0xff] 0.0
        %1196 = vst [vmem:[#allocation3 + $0x50] sm:$0xff] 0.0
        %1197 = vst [vmem:[#allocation3 + $0x58] sm:$0xff] 0.0
        %1198 = vst [vmem:[#allocation3 + $0x60] sm:$0xff] 0.0
        %1199 = vst [vmem:[#allocation3 + $0x68] sm:$0xff] 0.0
        %1200 = vst [vmem:[#allocation3 + $0x70] sm:$0xff] 0.0
        %1201 = vst [vmem:[#allocation3 + $0x78] sm:$0xff] 0.0
        %1202 = vst [vmem:[#allocation3 + $0x80] sm:$0xff] 0.0
        %1203 = vst [vmem:[#allocation3 + $0x88] sm:$0xff] 0.0
        %1204 = vst [vmem:[#allocation3 + $0x90] sm:$0xff] 0.0
        %1205 = vst [vmem:[#allocation3 + $0x98] sm:$0xff] 0.0
        %1206 = vst [vmem:[#allocation3 + $0xa0] sm:$0xff] 0.0
        %1207 = vst [vmem:[#allocation3 + $0xa8] sm:$0xff] 0.0
        %1208 = vst [vmem:[#allocation3 + $0xb0] sm:$0xff] 0.0
        %1209 = vst [vmem:[#allocation3 + $0xb8] sm:$0xff] 0.0
        %1210 = vst [vmem:[#allocation3 + $0xc0] sm:$0xff] 0.0
        %1211 = vst [vmem:[#allocation3 + $0xc8] sm:$0xff] 0.0
        %1212 = vst [vmem:[#allocation3 + $0xd0] sm:$0xff] 0.0
        %1213 = vst [vmem:[#allocation3 + $0xd8] sm:$0xff] 0.0
        %1214 = vst [vmem:[#allocation3 + $0xe0] sm:$0xff] 0.0
        %1215 = vst [vmem:[#allocation3 + $0xe8] sm:$0xff] 0.0
        %1216 = vst [vmem:[#allocation3 + $0xf0] sm:$0xff] 0.0
        %1217 = vst [vmem:[#allocation3 + $0xf8] sm:$0xff] 0.0
        %v1218 = vld [vmem:[#allocation2 + $0x7] sm:$0xff]
        %v1219 = vld [vmem:[#allocation2 + $0xf] sm:$0xff]
        %v1220 = vld [vmem:[#allocation2 + $0x17] sm:$0xff]
        %v1221 = vld [vmem:[#allocation2 + $0x1f] sm:$0xff]
        %v1222 = vld [vmem:[#allocation2 + $0x27] sm:$0xff]
        %v1223 = vld [vmem:[#allocation2 + $0x2f] sm:$0xff]
        %v1224 = vld [vmem:[#allocation2 + $0x37] sm:$0xff]
        %v1225 = vld [vmem:[#allocation2 + $0x3f] sm:$0xff]
        %v1226 = vld [vmem:[#allocation2 + $0x47] sm:$0xff]
        %v1227 = vld [vmem:[#allocation2 + $0x4f] sm:$0xff]
        %v1228 = vld [vmem:[#allocation2 + $0x57] sm:$0xff]
        %v1229 = vld [vmem:[#allocation2 + $0x5f] sm:$0xff]
        %v1230 = vld [vmem:[#allocation2 + $0x67] sm:$0xff]
        %v1231 = vld [vmem:[#allocation2 + $0x6f] sm:$0xff]
        %v1232 = vld [vmem:[#allocation2 + $0x77] sm:$0xff]
        %v1233 = vld [vmem:[#allocation2 + $0x7f] sm:$0xff]
        %v1234 = vld [vmem:[#allocation2 + $0x87] sm:$0xff]
        %v1235 = vld [vmem:[#allocation2 + $0x8f] sm:$0xff]
        %v1236 = vld [vmem:[#allocation2 + $0x97] sm:$0xff]
        %v1237 = vld [vmem:[#allocation2 + $0x9f] sm:$0xff]
        %v1238 = vld [vmem:[#allocation2 + $0xa7] sm:$0xff]
        %v1239 = vld [vmem:[#allocation2 + $0xaf] sm:$0xff]
        %v1240 = vld [vmem:[#allocation2 + $0xb7] sm:$0xff]
        %v1241 = vld [vmem:[#allocation2 + $0xbf] sm:$0xff]
        %v1242 = vld [vmem:[#allocation2 + $0xc7] sm:$0xff]
        %v1243 = vld [vmem:[#allocation2 + $0xcf] sm:$0xff]
        %v1244 = vld [vmem:[#allocation2 + $0xd7] sm:$0xff]
        %v1245 = vld [vmem:[#allocation2 + $0xdf] sm:$0xff]
        %v1246 = vld [vmem:[#allocation2 + $0xe7] sm:$0xff]
        %v1247 = vld [vmem:[#allocation2 + $0xef] sm:$0xff]
        %v1248 = vld [vmem:[#allocation2 + $0xf7] sm:$0xff]
        %v1249 = vld [vmem:[#allocation2 + $0xff] sm:$0xff]
        %1251 = vset.pattern.permute.xlu0 0
        %1252 = vperm.xlu0 %1251, %v1122
        %v1253 = vpop.permute.xlu0 %1252
        %1256 = vset.pattern.permute.xlu0 0
        %1257 = vperm.xlu0 %1256, %v1123
        %v1258 = vpop.permute.xlu0 %1257
        %1261 = vset.pattern.permute.xlu0 0
        %1262 = vperm.xlu0 %1261, %v1124
        %v1263 = vpop.permute.xlu0 %1262
        %1266 = vset.pattern.permute.xlu0 0
        %1267 = vperm.xlu0 %1266, %v1125
        %v1268 = vpop.permute.xlu0 %1267
        %1271 = vset.pattern.permute.xlu0 0
        %1272 = vperm.xlu0 %1271, %v1126
        %v1273 = vpop.permute.xlu0 %1272
        %1276 = vset.pattern.permute.xlu0 0
        %1277 = vperm.xlu0 %1276, %v1127
        %v1278 = vpop.permute.xlu0 %1277
        %1281 = vset.pattern.permute.xlu0 0
        %1282 = vperm.xlu0 %1281, %v1128
        %v1283 = vpop.permute.xlu0 %1282
        %1286 = vset.pattern.permute.xlu0 0
        %1287 = vperm.xlu0 %1286, %v1129
        %v1288 = vpop.permute.xlu0 %1287
        %1291 = vset.pattern.permute.xlu0 0
        %1292 = vperm.xlu0 %1291, %v1130
        %v1293 = vpop.permute.xlu0 %1292
        %1296 = vset.pattern.permute.xlu0 0
        %1297 = vperm.xlu0 %1296, %v1131
        %v1298 = vpop.permute.xlu0 %1297
        %1301 = vset.pattern.permute.xlu0 0
        %1302 = vperm.xlu0 %1301, %v1132
        %v1303 = vpop.permute.xlu0 %1302
        %1306 = vset.pattern.permute.xlu0 0
        %1307 = vperm.xlu0 %1306, %v1133
        %v1308 = vpop.permute.xlu0 %1307
        %1311 = vset.pattern.permute.xlu0 0
        %1312 = vperm.xlu0 %1311, %v1134
        %v1313 = vpop.permute.xlu0 %1312
        %1316 = vset.pattern.permute.xlu0 0
        %1317 = vperm.xlu0 %1316, %v1135
        %v1318 = vpop.permute.xlu0 %1317
        %1321 = vset.pattern.permute.xlu0 0
        %1322 = vperm.xlu0 %1321, %v1136
        %v1323 = vpop.permute.xlu0 %1322
        %1326 = vset.pattern.permute.xlu0 0
        %1327 = vperm.xlu0 %1326, %v1137
        %v1328 = vpop.permute.xlu0 %1327
        %1331 = vset.pattern.permute.xlu0 0
        %1332 = vperm.xlu0 %1331, %v1138
        %v1333 = vpop.permute.xlu0 %1332
        %1336 = vset.pattern.permute.xlu0 0
        %1337 = vperm.xlu0 %1336, %v1139
        %v1338 = vpop.permute.xlu0 %1337
        %1341 = vset.pattern.permute.xlu0 0
        %1342 = vperm.xlu0 %1341, %v1140
        %v1343 = vpop.permute.xlu0 %1342
        %1346 = vset.pattern.permute.xlu0 0
        %1347 = vperm.xlu0 %1346, %v1141
        %v1348 = vpop.permute.xlu0 %1347
        %1351 = vset.pattern.permute.xlu0 0
        %1352 = vperm.xlu0 %1351, %v1142
        %v1353 = vpop.permute.xlu0 %1352
        %1356 = vset.pattern.permute.xlu0 0
        %1357 = vperm.xlu0 %1356, %v1143
        %v1358 = vpop.permute.xlu0 %1357
        %1361 = vset.pattern.permute.xlu0 0
        %1362 = vperm.xlu0 %1361, %v1144
        %v1363 = vpop.permute.xlu0 %1362
        %1366 = vset.pattern.permute.xlu0 0
        %1367 = vperm.xlu0 %1366, %v1145
        %v1368 = vpop.permute.xlu0 %1367
        %1371 = vset.pattern.permute.xlu0 0
        %1372 = vperm.xlu0 %1371, %v1146
        %v1373 = vpop.permute.xlu0 %1372
        %1376 = vset.pattern.permute.xlu0 0
        %1377 = vperm.xlu0 %1376, %v1147
        %v1378 = vpop.permute.xlu0 %1377
        %1381 = vset.pattern.permute.xlu0 0
        %1382 = vperm.xlu0 %1381, %v1148
        %v1383 = vpop.permute.xlu0 %1382
        %1386 = vset.pattern.permute.xlu0 0
        %1387 = vperm.xlu0 %1386, %v1149
        %v1388 = vpop.permute.xlu0 %1387
        %1391 = vset.pattern.permute.xlu0 0
        %1392 = vperm.xlu0 %1391, %v1150
        %v1393 = vpop.permute.xlu0 %1392
        %1396 = vset.pattern.permute.xlu0 0
        %1397 = vperm.xlu0 %1396, %v1151
        %v1398 = vpop.permute.xlu0 %1397
        %1401 = vset.pattern.permute.xlu0 0
        %1402 = vperm.xlu0 %1401, %v1152
        %v1403 = vpop.permute.xlu0 %1402
        %1406 = vset.pattern.permute.xlu0 0
        %1407 = vperm.xlu0 %1406, %v1153
        %v1408 = vpop.permute.xlu0 %1407
        %v1410 = vmul.f32 %v1218, %v1253
        %v1411 = vmul.f32 %v1219, %v1258
        %v1412 = vmul.f32 %v1220, %v1263
        %v1413 = vmul.f32 %v1221, %v1268
        %v1414 = vmul.f32 %v1222, %v1273
        %v1415 = vmul.f32 %v1223, %v1278
        %v1416 = vmul.f32 %v1224, %v1283
        %v1417 = vmul.f32 %v1225, %v1288
        %v1418 = vmul.f32 %v1226, %v1293
        %v1419 = vmul.f32 %v1227, %v1298
        %v1420 = vmul.f32 %v1228, %v1303
        %v1421 = vmul.f32 %v1229, %v1308
        %v1422 = vmul.f32 %v1230, %v1313
        %v1423 = vmul.f32 %v1231, %v1318
        %v1424 = vmul.f32 %v1232, %v1323
        %v1425 = vmul.f32 %v1233, %v1328
        %v1426 = vmul.f32 %v1234, %v1333
        %v1427 = vmul.f32 %v1235, %v1338
        %v1428 = vmul.f32 %v1236, %v1343
        %v1429 = vmul.f32 %v1237, %v1348
        %v1430 = vmul.f32 %v1238, %v1353
        %v1431 = vmul.f32 %v1239, %v1358
        %v1432 = vmul.f32 %v1240, %v1363
        %v1433 = vmul.f32 %v1241, %v1368
        %v1434 = vmul.f32 %v1242, %v1373
        %v1435 = vmul.f32 %v1243, %v1378
        %v1436 = vmul.f32 %v1244, %v1383
        %v1437 = vmul.f32 %v1245, %v1388
        %v1438 = vmul.f32 %v1246, %v1393
        %v1439 = vmul.f32 %v1247, %v1398
        %v1440 = vmul.f32 %v1248, %v1403
        %v1441 = vmul.f32 %v1249, %v1408
        %v1442 = vld [vmem:[#allocation3] sm:$0xff]
        %v1443 = vld [vmem:[#allocation3 + $0x8] sm:$0xff]
        %v1444 = vld [vmem:[#allocation3 + $0x10] sm:$0xff]
        %v1445 = vld [vmem:[#allocation3 + $0x18] sm:$0xff]
        %v1446 = vld [vmem:[#allocation3 + $0x20] sm:$0xff]
        %v1447 = vld [vmem:[#allocation3 + $0x28] sm:$0xff]
        %v1448 = vld [vmem:[#allocation3 + $0x30] sm:$0xff]
        %v1449 = vld [vmem:[#allocation3 + $0x38] sm:$0xff]
        %v1450 = vld [vmem:[#allocation3 + $0x40] sm:$0xff]
        %v1451 = vld [vmem:[#allocation3 + $0x48] sm:$0xff]
        %v1452 = vld [vmem:[#allocation3 + $0x50] sm:$0xff]
        %v1453 = vld [vmem:[#allocation3 + $0x58] sm:$0xff]
        %v1454 = vld [vmem:[#allocation3 + $0x60] sm:$0xff]
        %v1455 = vld [vmem:[#allocation3 + $0x68] sm:$0xff]
        %v1456 = vld [vmem:[#allocation3 + $0x70] sm:$0xff]
        %v1457 = vld [vmem:[#allocation3 + $0x78] sm:$0xff]
        %v1458 = vld [vmem:[#allocation3 + $0x80] sm:$0xff]
        %v1459 = vld [vmem:[#allocation3 + $0x88] sm:$0xff]
        %v1460 = vld [vmem:[#allocation3 + $0x90] sm:$0xff]
        %v1461 = vld [vmem:[#allocation3 + $0x98] sm:$0xff]
        %v1462 = vld [vmem:[#allocation3 + $0xa0] sm:$0xff]
        %v1463 = vld [vmem:[#allocation3 + $0xa8] sm:$0xff]
        %v1464 = vld [vmem:[#allocation3 + $0xb0] sm:$0xff]
        %v1465 = vld [vmem:[#allocation3 + $0xb8] sm:$0xff]
        %v1466 = vld [vmem:[#allocation3 + $0xc0] sm:$0xff]
        %v1467 = vld [vmem:[#allocation3 + $0xc8] sm:$0xff]
        %v1468 = vld [vmem:[#allocation3 + $0xd0] sm:$0xff]
        %v1469 = vld [vmem:[#allocation3 + $0xd8] sm:$0xff]
        %v1470 = vld [vmem:[#allocation3 + $0xe0] sm:$0xff]
        %v1471 = vld [vmem:[#allocation3 + $0xe8] sm:$0xff]
        %v1472 = vld [vmem:[#allocation3 + $0xf0] sm:$0xff]
        %v1473 = vld [vmem:[#allocation3 + $0xf8] sm:$0xff]
        %v1474 = vpack.c.bf16 %v1411, %v1410
        %v1475 = vpack.c.bf16 %v1413, %v1412
        %v1476 = vpack.c.bf16 %v1415, %v1414
        %v1477 = vpack.c.bf16 %v1417, %v1416
        %v1478 = vpack.c.bf16 %v1419, %v1418
        %v1479 = vpack.c.bf16 %v1421, %v1420
        %v1480 = vpack.c.bf16 %v1423, %v1422
        %v1481 = vpack.c.bf16 %v1425, %v1424
        %v1482 = vpack.c.bf16 %v1427, %v1426
        %v1483 = vpack.c.bf16 %v1429, %v1428
        %v1484 = vpack.c.bf16 %v1431, %v1430
        %v1485 = vpack.c.bf16 %v1433, %v1432
        %v1486 = vpack.c.bf16 %v1435, %v1434
        %v1487 = vpack.c.bf16 %v1437, %v1436
        %v1488 = vpack.c.bf16 %v1439, %v1438
        %v1489 = vpack.c.bf16 %v1441, %v1440
        %v1490 = vld [vmem:[#allocation12] sm:$0xf]
        %v1491 = vld [vmem:[#allocation12 + $0x4] sm:$0xf]
        %v1492 = vld [vmem:[#allocation12 + $0x8] sm:$0xf]
        %v1493 = vld [vmem:[#allocation12 + $0xc] sm:$0xf]
        %v1494 = vld [vmem:[#allocation12 + $0x10] sm:$0xf]
        %v1495 = vld [vmem:[#allocation12 + $0x14] sm:$0xf]
        %v1496 = vld [vmem:[#allocation12 + $0x18] sm:$0xf]
        %v1497 = vld [vmem:[#allocation12 + $0x1c] sm:$0xf]
        %v1498 = vld [vmem:[#allocation12 + $0x20] sm:$0xf]
        %v1499 = vld [vmem:[#allocation12 + $0x24] sm:$0xf]
        %v1500 = vld [vmem:[#allocation12 + $0x28] sm:$0xf]
        %v1501 = vld [vmem:[#allocation12 + $0x2c] sm:$0xf]
        %v1502 = vld [vmem:[#allocation12 + $0x30] sm:$0xf]
        %v1503 = vld [vmem:[#allocation12 + $0x34] sm:$0xf]
        %v1504 = vld [vmem:[#allocation12 + $0x38] sm:$0xf]
        %v1505 = vld [vmem:[#allocation12 + $0x3c] sm:$0xf]
        %v1522 = vunpack.c.l.b16 %v1490
        %v1523 = vunpack.c.l.b16 %v1491
        %v1524 = vunpack.c.l.b16 %v1492
        %v1525 = vunpack.c.l.b16 %v1493
        %v1526 = vunpack.c.l.b16 %v1494
        %v1527 = vunpack.c.l.b16 %v1495
        %v1528 = vunpack.c.l.b16 %v1496
        %v1529 = vunpack.c.l.b16 %v1497
        %v1530 = vunpack.c.l.b16 %v1498
        %v1531 = vunpack.c.l.b16 %v1499
        %v1532 = vunpack.c.l.b16 %v1500
        %v1533 = vunpack.c.l.b16 %v1501
        %v1534 = vunpack.c.l.b16 %v1502
        %v1535 = vunpack.c.l.b16 %v1503
        %v1536 = vunpack.c.l.b16 %v1504
        %v1537 = vunpack.c.l.b16 %v1505
        %v1538 = vpack.c.b16 %v1523, %v1522
        %v1539 = vpack.c.b16 %v1525, %v1524
        %v1540 = vpack.c.b16 %v1527, %v1526
        %v1541 = vpack.c.b16 %v1529, %v1528
        %v1542 = vpack.c.b16 %v1531, %v1530
        %v1543 = vpack.c.b16 %v1533, %v1532
        %v1544 = vpack.c.b16 %v1535, %v1534
        %v1545 = vpack.c.b16 %v1537, %v1536
        %1554 = vmatprep.subr.bf16.mxu0 0
        %1555 = vmatpush1.bf16.msra.mxu0 %v1538
        %1556 = vmatprep.subr.bf16.mxu0 0
        %1557 = vmatpush1.bf16.msra.mxu0 %v1539
        %1558 = vmatprep.subr.bf16.mxu0 0
        %1559 = vmatpush1.bf16.msra.mxu0 %v1540
        %1560 = vmatprep.subr.bf16.mxu0 0
        %1561 = vmatpush1.bf16.msra.mxu0 %v1541
        %1562 = vmatprep.subr.bf16.mxu0 0
        %1563 = vmatpush1.bf16.msra.mxu0 %v1542
        %1564 = vmatprep.subr.bf16.mxu0 0
        %1565 = vmatpush1.bf16.msra.mxu0 %v1543
        %1566 = vmatprep.subr.bf16.mxu0 0
        %1567 = vmatpush1.bf16.msra.mxu0 %v1544
        %1568 = vmatprep.subr.bf16.mxu0 0
        %1569 = vmatpush1.bf16.msra.mxu0 %v1545
        %1570 = vmatprep.subr.bf16.mxu0 0
        %1571 = vmatpush1.bf16.msra.mxu0 0
        %1572 = vmatprep.subr.bf16.mxu0 0
        %1573 = vmatpush1.bf16.msra.mxu0 0
        %1574 = vmatprep.subr.bf16.mxu0 0
        %1575 = vmatpush1.bf16.msra.mxu0 0
        %1576 = vmatprep.subr.bf16.mxu0 0
        %1577 = vmatpush1.bf16.msra.mxu0 0
        %1578 = vmatprep.subr.bf16.mxu0 0
        %1579 = vmatpush1.bf16.msra.mxu0 0
        %1580 = vmatprep.subr.bf16.mxu0 0
        %1581 = vmatpush1.bf16.msra.mxu0 0
        %1582 = vmatprep.subr.bf16.mxu0 0
        %1583 = vmatpush1.bf16.msra.mxu0 0
        %1584 = vmatprep.subr.bf16.mxu0 0
        %1585 = vmatpush1.bf16.msra.mxu0 0
        %1586 = vmatprep.mubr.bf16.mxu0 0
        %1587 = vmatmul.mubr.bf16.gmra.mrb[0].mxu0 %v1474
        %v1588 = vpop.f32.mrb[0].mxu0
        %v1589 = vadd.f32 0.0, %v1588
        %v1590 = vpop.f32.mrb[0].mxu0
        %v1591 = vpop.f32.mrb[0].mxu0
        %v1592 = vadd.f32 0.0, %v1591
        %v1593 = vpop.f32.mrb[0].mxu0
        %1594 = vmatprep.mubr.bf16.mxu0 0
        %1595 = vmatmul.mubr.bf16.gmra.mrb[0].mxu0 %v1475
        %v1596 = vpop.f32.mrb[0].mxu0
        %v1597 = vadd.f32 0.0, %v1596
        %v1598 = vpop.f32.mrb[0].mxu0
        %v1599 = vpop.f32.mrb[0].mxu0
        %v1600 = vadd.f32 0.0, %v1599
        %v1601 = vpop.f32.mrb[0].mxu0
        %1602 = vmatprep.mubr.bf16.mxu0 0
        %1603 = vmatmul.mubr.bf16.gmra.mrb[0].mxu0 %v1476
        %v1604 = vpop.f32.mrb[0].mxu0
        %v1605 = vadd.f32 0.0, %v1604
        %v1606 = vpop.f32.mrb[0].mxu0
        %v1607 = vpop.f32.mrb[0].mxu0
        %v1608 = vadd.f32 0.0, %v1607
        %v1609 = vpop.f32.mrb[0].mxu0
        %1610 = vmatprep.mubr.bf16.mxu0 0
        %1611 = vmatmul.mubr.bf16.gmra.mrb[0].mxu0 %v1477
        %v1612 = vpop.f32.mrb[0].mxu0
        %v1613 = vadd.f32 0.0, %v1612
        %v1614 = vpop.f32.mrb[0].mxu0
        %v1615 = vpop.f32.mrb[0].mxu0
        %v1616 = vadd.f32 0.0, %v1615
        %v1617 = vpop.f32.mrb[0].mxu0
        %1618 = vmatprep.mubr.bf16.mxu0 0
        %1619 = vmatmul.mubr.bf16.gmra.mrb[0].mxu0 %v1478
        %v1620 = vpop.f32.mrb[0].mxu0
        %v1621 = vadd.f32 0.0, %v1620
        %v1622 = vpop.f32.mrb[0].mxu0
        %v1623 = vpop.f32.mrb[0].mxu0
        %v1624 = vadd.f32 0.0, %v1623
        %v1625 = vpop.f32.mrb[0].mxu0
        %1626 = vmatprep.mubr.bf16.mxu0 0
        %1627 = vmatmul.mubr.bf16.gmra.mrb[0].mxu0 %v1479
        %v1628 = vpop.f32.mrb[0].mxu0
        %v1629 = vadd.f32 0.0, %v1628
        %v1630 = vpop.f32.mrb[0].mxu0
        %v1631 = vpop.f32.mrb[0].mxu0
        %v1632 = vadd.f32 0.0, %v1631
        %v1633 = vpop.f32.mrb[0].mxu0
        %1634 = vmatprep.mubr.bf16.mxu0 0
        %1635 = vmatmul.mubr.bf16.gmra.mrb[0].mxu0 %v1480
        %v1636 = vpop.f32.mrb[0].mxu0
        %v1637 = vadd.f32 0.0, %v1636
        %v1638 = vpop.f32.mrb[0].mxu0
        %v1639 = vpop.f32.mrb[0].mxu0
        %v1640 = vadd.f32 0.0, %v1639
        %v1641 = vpop.f32.mrb[0].mxu0
        %1642 = vmatprep.mubr.bf16.mxu0 0
        %1643 = vmatmul.mubr.bf16.gmra.mrb[0].mxu0 %v1481
        %v1644 = vpop.f32.mrb[0].mxu0
        %v1645 = vadd.f32 0.0, %v1644
        %v1646 = vpop.f32.mrb[0].mxu0
        %v1647 = vpop.f32.mrb[0].mxu0
        %v1648 = vadd.f32 0.0, %v1647
        %v1649 = vpop.f32.mrb[0].mxu0
        %1650 = vmatprep.mubr.bf16.mxu0 0
        %1651 = vmatmul.mubr.bf16.gmra.mrb[0].mxu0 %v1482
        %v1652 = vpop.f32.mrb[0].mxu0
        %v1653 = vadd.f32 0.0, %v1652
        %v1654 = vpop.f32.mrb[0].mxu0
        %v1655 = vpop.f32.mrb[0].mxu0
        %v1656 = vadd.f32 0.0, %v1655
        %v1657 = vpop.f32.mrb[0].mxu0
        %1658 = vmatprep.mubr.bf16.mxu0 0
        %1659 = vmatmul.mubr.bf16.gmra.mrb[0].mxu0 %v1483
        %v1660 = vpop.f32.mrb[0].mxu0
        %v1661 = vadd.f32 0.0, %v1660
        %v1662 = vpop.f32.mrb[0].mxu0
        %v1663 = vpop.f32.mrb[0].mxu0
        %v1664 = vadd.f32 0.0, %v1663
        %v1665 = vpop.f32.mrb[0].mxu0
        %1666 = vmatprep.mubr.bf16.mxu0 0
        %1667 = vmatmul.mubr.bf16.gmra.mrb[0].mxu0 %v1484
        %v1668 = vpop.f32.mrb[0].mxu0
        %v1669 = vadd.f32 0.0, %v1668
        %v1670 = vpop.f32.mrb[0].mxu0
        %v1671 = vpop.f32.mrb[0].mxu0
        %v1672 = vadd.f32 0.0, %v1671
        %v1673 = vpop.f32.mrb[0].mxu0
        %1674 = vmatprep.mubr.bf16.mxu0 0
        %1675 = vmatmul.mubr.bf16.gmra.mrb[0].mxu0 %v1485
        %v1676 = vpop.f32.mrb[0].mxu0
        %v1677 = vadd.f32 0.0, %v1676
        %v1678 = vpop.f32.mrb[0].mxu0
        %v1679 = vpop.f32.mrb[0].mxu0
        %v1680 = vadd.f32 0.0, %v1679
        %v1681 = vpop.f32.mrb[0].mxu0
        %1682 = vmatprep.mubr.bf16.mxu0 0
        %1683 = vmatmul.mubr.bf16.gmra.mrb[0].mxu0 %v1486
        %v1684 = vpop.f32.mrb[0].mxu0
        %v1685 = vadd.f32 0.0, %v1684
        %v1686 = vpop.f32.mrb[0].mxu0
        %v1687 = vpop.f32.mrb[0].mxu0
        %v1688 = vadd.f32 0.0, %v1687
        %v1689 = vpop.f32.mrb[0].mxu0
        %1690 = vmatprep.mubr.bf16.mxu0 0
        %1691 = vmatmul.mubr.bf16.gmra.mrb[0].mxu0 %v1487
        %v1692 = vpop.f32.mrb[0].mxu0
        %v1693 = vadd.f32 0.0, %v1692
        %v1694 = vpop.f32.mrb[0].mxu0
        %v1695 = vpop.f32.mrb[0].mxu0
        %v1696 = vadd.f32 0.0, %v1695
        %v1697 = vpop.f32.mrb[0].mxu0
        %1698 = vmatprep.mubr.bf16.mxu0 0
        %1699 = vmatmul.mubr.bf16.gmra.mrb[0].mxu0 %v1488
        %v1700 = vpop.f32.mrb[0].mxu0
        %v1701 = vadd.f32 0.0, %v1700
        %v1702 = vpop.f32.mrb[0].mxu0
        %v1703 = vpop.f32.mrb[0].mxu0
        %v1704 = vadd.f32 0.0, %v1703
        %v1705 = vpop.f32.mrb[0].mxu0
        %1706 = vmatprep.mubr.bf16.mxu0 0
        %1707 = vmatmul.mubr.bf16.gmra.mrb[0].mxu0 %v1489
        %v1708 = vpop.f32.mrb[0].mxu0
        %v1709 = vadd.f32 0.0, %v1708
        %v1710 = vpop.f32.mrb[0].mxu0
        %v1711 = vpop.f32.mrb[0].mxu0
        %v1712 = vadd.f32 0.0, %v1711
        %v1713 = vpop.f32.mrb[0].mxu0
        %1714 = vdwg.mxu0
        %v1715 = vadd.f32 %v1442, %v1589
        %v1716 = vadd.f32 %v1443, %v1592
        %v1717 = vadd.f32 %v1444, %v1597
        %v1718 = vadd.f32 %v1445, %v1600
        %v1719 = vadd.f32 %v1446, %v1605
        %v1720 = vadd.f32 %v1447, %v1608
        %v1721 = vadd.f32 %v1448, %v1613
        %v1722 = vadd.f32 %v1449, %v1616
        %v1723 = vadd.f32 %v1450, %v1621
        %v1724 = vadd.f32 %v1451, %v1624
        %v1725 = vadd.f32 %v1452, %v1629
        %v1726 = vadd.f32 %v1453, %v1632
        %v1727 = vadd.f32 %v1454, %v1637
        %v1728 = vadd.f32 %v1455, %v1640
        %v1729 = vadd.f32 %v1456, %v1645
        %v1730 = vadd.f32 %v1457, %v1648
        %v1731 = vadd.f32 %v1458, %v1653
        %v1732 = vadd.f32 %v1459, %v1656
        %v1733 = vadd.f32 %v1460, %v1661
        %v1734 = vadd.f32 %v1461, %v1664
        %v1735 = vadd.f32 %v1462, %v1669
        %v1736 = vadd.f32 %v1463, %v1672
        %v1737 = vadd.f32 %v1464, %v1677
        %v1738 = vadd.f32 %v1465, %v1680
        %v1739 = vadd.f32 %v1466, %v1685
        %v1740 = vadd.f32 %v1467, %v1688
        %v1741 = vadd.f32 %v1468, %v1693
        %v1742 = vadd.f32 %v1469, %v1696
        %v1743 = vadd.f32 %v1470, %v1701
        %v1744 = vadd.f32 %v1471, %v1704
        %v1745 = vadd.f32 %v1472, %v1709
        %v1746 = vadd.f32 %v1473, %v1712
        %1747 = vst [vmem:[#allocation3] sm:$0xff] %v1715
        %1748 = vst [vmem:[#allocation3 + $0x8] sm:$0xff] %v1716
        %1749 = vst [vmem:[#allocation3 + $0x10] sm:$0xff] %v1717
        %1750 = vst [vmem:[#allocation3 + $0x18] sm:$0xff] %v1718
        %1751 = vst [vmem:[#allocation3 + $0x20] sm:$0xff] %v1719
        %1752 = vst [vmem:[#allocation3 + $0x28] sm:$0xff] %v1720
        %1753 = vst [vmem:[#allocation3 + $0x30] sm:$0xff] %v1721
        %1754 = vst [vmem:[#allocation3 + $0x38] sm:$0xff] %v1722
        %1755 = vst [vmem:[#allocation3 + $0x40] sm:$0xff] %v1723
        %1756 = vst [vmem:[#allocation3 + $0x48] sm:$0xff] %v1724
        %1757 = vst [vmem:[#allocation3 + $0x50] sm:$0xff] %v1725
        %1758 = vst [vmem:[#allocation3 + $0x58] sm:$0xff] %v1726
        %1759 = vst [vmem:[#allocation3 + $0x60] sm:$0xff] %v1727
        %1760 = vst [vmem:[#allocation3 + $0x68] sm:$0xff] %v1728
        %1761 = vst [vmem:[#allocation3 + $0x70] sm:$0xff] %v1729
        %1762 = vst [vmem:[#allocation3 + $0x78] sm:$0xff] %v1730
        %1763 = vst [vmem:[#allocation3 + $0x80] sm:$0xff] %v1731
        %1764 = vst [vmem:[#allocation3 + $0x88] sm:$0xff] %v1732
        %1765 = vst [vmem:[#allocation3 + $0x90] sm:$0xff] %v1733
        %1766 = vst [vmem:[#allocation3 + $0x98] sm:$0xff] %v1734
        %1767 = vst [vmem:[#allocation3 + $0xa0] sm:$0xff] %v1735
        %1768 = vst [vmem:[#allocation3 + $0xa8] sm:$0xff] %v1736
        %1769 = vst [vmem:[#allocation3 + $0xb0] sm:$0xff] %v1737
        %1770 = vst [vmem:[#allocation3 + $0xb8] sm:$0xff] %v1738
        %1771 = vst [vmem:[#allocation3 + $0xc0] sm:$0xff] %v1739
        %1772 = vst [vmem:[#allocation3 + $0xc8] sm:$0xff] %v1740
        %1773 = vst [vmem:[#allocation3 + $0xd0] sm:$0xff] %v1741
        %1774 = vst [vmem:[#allocation3 + $0xd8] sm:$0xff] %v1742
        %1775 = vst [vmem:[#allocation3 + $0xe0] sm:$0xff] %v1743
        %1776 = vst [vmem:[#allocation3 + $0xe8] sm:$0xff] %v1744
        %1777 = vst [vmem:[#allocation3 + $0xf0] sm:$0xff] %v1745
        %1778 = vst [vmem:[#allocation3 + $0xf8] sm:$0xff] %v1746
        %v1779 = vld [vmem:[#allocation2 + $0x8] sm:$0xff]
        %v1780 = vld [vmem:[#allocation2 + $0x10] sm:$0xff]
        %v1781 = vld [vmem:[#allocation2 + $0x18] sm:$0xff]
        %v1782 = vld [vmem:[#allocation2 + $0x20] sm:$0xff]
        %v1783 = vld [vmem:[#allocation2 + $0x28] sm:$0xff]
        %v1784 = vld [vmem:[#allocation2 + $0x30] sm:$0xff]
        %v1785 = vld [vmem:[#allocation2 + $0x38] sm:$0xff]
        %v1786 = vld [vmem:[#allocation2 + $0x40] sm:$0xff]
        %v1787 = vld [vmem:[#allocation2 + $0x48] sm:$0xff]
        %v1788 = vld [vmem:[#allocation2 + $0x50] sm:$0xff]
        %v1789 = vld [vmem:[#allocation2 + $0x58] sm:$0xff]
        %v1790 = vld [vmem:[#allocation2 + $0x60] sm:$0xff]
        %v1791 = vld [vmem:[#allocation2 + $0x68] sm:$0xff]
        %v1792 = vld [vmem:[#allocation2 + $0x70] sm:$0xff]
        %v1793 = vld [vmem:[#allocation2 + $0x78] sm:$0xff]
        %v1794 = vld [vmem:[#allocation2 + $0x80] sm:$0xff]
        %v1795 = vld [vmem:[#allocation2 + $0x88] sm:$0xff]
        %v1796 = vld [vmem:[#allocation2 + $0x90] sm:$0xff]
        %v1797 = vld [vmem:[#allocation2 + $0x98] sm:$0xff]
        %v1798 = vld [vmem:[#allocation2 + $0xa0] sm:$0xff]
        %v1799 = vld [vmem:[#allocation2 + $0xa8] sm:$0xff]
        %v1800 = vld [vmem:[#allocation2 + $0xb0] sm:$0xff]
        %v1801 = vld [vmem:[#allocation2 + $0xb8] sm:$0xff]
        %v1802 = vld [vmem:[#allocation2 + $0xc0] sm:$0xff]
        %v1803 = vld [vmem:[#allocation2 + $0xc8] sm:$0xff]
        %v1804 = vld [vmem:[#allocation2 + $0xd0] sm:$0xff]
        %v1805 = vld [vmem:[#allocation2 + $0xd8] sm:$0xff]
        %v1806 = vld [vmem:[#allocation2 + $0xe0] sm:$0xff]
        %v1807 = vld [vmem:[#allocation2 + $0xe8] sm:$0xff]
        %v1808 = vld [vmem:[#allocation2 + $0xf0] sm:$0xff]
        %v1809 = vld [vmem:[#allocation2 + $0xf8] sm:$0xff]
        %v1810 = vld [vmem:[#allocation2 + $0x100] sm:$0xff]
        %v1811 = vld [vmem:[#allocation3] sm:$0xff]
        %v1812 = vld [vmem:[#allocation3 + $0x8] sm:$0xff]
        %v1813 = vld [vmem:[#allocation3 + $0x10] sm:$0xff]
        %v1814 = vld [vmem:[#allocation3 + $0x18] sm:$0xff]
        %v1815 = vld [vmem:[#allocation3 + $0x20] sm:$0xff]
        %v1816 = vld [vmem:[#allocation3 + $0x28] sm:$0xff]
        %v1817 = vld [vmem:[#allocation3 + $0x30] sm:$0xff]
        %v1818 = vld [vmem:[#allocation3 + $0x38] sm:$0xff]
        %v1819 = vld [vmem:[#allocation3 + $0x40] sm:$0xff]
        %v1820 = vld [vmem:[#allocation3 + $0x48] sm:$0xff]
        %v1821 = vld [vmem:[#allocation3 + $0x50] sm:$0xff]
        %v1822 = vld [vmem:[#allocation3 + $0x58] sm:$0xff]
        %v1823 = vld [vmem:[#allocation3 + $0x60] sm:$0xff]
        %v1824 = vld [vmem:[#allocation3 + $0x68] sm:$0xff]
        %v1825 = vld [vmem:[#allocation3 + $0x70] sm:$0xff]
        %v1826 = vld [vmem:[#allocation3 + $0x78] sm:$0xff]
        %v1827 = vld [vmem:[#allocation3 + $0x80] sm:$0xff]
        %v1828 = vld [vmem:[#allocation3 + $0x88] sm:$0xff]
        %v1829 = vld [vmem:[#allocation3 + $0x90] sm:$0xff]
        %v1830 = vld [vmem:[#allocation3 + $0x98] sm:$0xff]
        %v1831 = vld [vmem:[#allocation3 + $0xa0] sm:$0xff]
        %v1832 = vld [vmem:[#allocation3 + $0xa8] sm:$0xff]
        %v1833 = vld [vmem:[#allocation3 + $0xb0] sm:$0xff]
        %v1834 = vld [vmem:[#allocation3 + $0xb8] sm:$0xff]
        %v1835 = vld [vmem:[#allocation3 + $0xc0] sm:$0xff]
        %v1836 = vld [vmem:[#allocation3 + $0xc8] sm:$0xff]
        %v1837 = vld [vmem:[#allocation3 + $0xd0] sm:$0xff]
        %v1838 = vld [vmem:[#allocation3 + $0xd8] sm:$0xff]
        %v1839 = vld [vmem:[#allocation3 + $0xe0] sm:$0xff]
        %v1840 = vld [vmem:[#allocation3 + $0xe8] sm:$0xff]
        %v1841 = vld [vmem:[#allocation3 + $0xf0] sm:$0xff]
        %v1842 = vld [vmem:[#allocation3 + $0xf8] sm:$0xff]
        %v1843 = vpack.c.bf16 %v1780, %v1779
        %v1844 = vpack.c.bf16 %v1782, %v1781
        %v1845 = vpack.c.bf16 %v1784, %v1783
        %v1846 = vpack.c.bf16 %v1786, %v1785
        %v1847 = vpack.c.bf16 %v1788, %v1787
        %v1848 = vpack.c.bf16 %v1790, %v1789
        %v1849 = vpack.c.bf16 %v1792, %v1791
        %v1850 = vpack.c.bf16 %v1794, %v1793
        %v1851 = vpack.c.bf16 %v1796, %v1795
        %v1852 = vpack.c.bf16 %v1798, %v1797
        %v1853 = vpack.c.bf16 %v1800, %v1799
        %v1854 = vpack.c.bf16 %v1802, %v1801
        %v1855 = vpack.c.bf16 %v1804, %v1803
        %v1856 = vpack.c.bf16 %v1806, %v1805
        %v1857 = vpack.c.bf16 %v1808, %v1807
        %v1858 = vpack.c.bf16 %v1810, %v1809
        %s1859 = scalar_lea.vmem [#allocation12], 64
        %v1860 = vld [vmem:[%s1859] sm:$0xf]
        %v1861 = vld [vmem:[%s1859 + $0x4] sm:$0xf]
        %v1862 = vld [vmem:[%s1859 + $0x8] sm:$0xf]
        %v1863 = vld [vmem:[%s1859 + $0xc] sm:$0xf]
        %v1864 = vld [vmem:[%s1859 + $0x10] sm:$0xf]
        %v1865 = vld [vmem:[%s1859 + $0x14] sm:$0xf]
        %v1866 = vld [vmem:[%s1859 + $0x18] sm:$0xf]
        %v1867 = vld [vmem:[%s1859 + $0x1c] sm:$0xf]
        %v1868 = vld [vmem:[%s1859 + $0x20] sm:$0xf]
        %v1869 = vld [vmem:[%s1859 + $0x24] sm:$0xf]
        %v1870 = vld [vmem:[%s1859 + $0x28] sm:$0xf]
        %v1871 = vld [vmem:[%s1859 + $0x2c] sm:$0xf]
        %v1872 = vld [vmem:[%s1859 + $0x30] sm:$0xf]
        %v1873 = vld [vmem:[%s1859 + $0x34] sm:$0xf]
        %v1874 = vld [vmem:[%s1859 + $0x38] sm:$0xf]
        %v1875 = vld [vmem:[%s1859 + $0x3c] sm:$0xf]
        %v1892 = vunpack.c.l.b16 %v1860
        %v1893 = vunpack.c.l.b16 %v1861
        %v1894 = vunpack.c.l.b16 %v1862
        %v1895 = vunpack.c.l.b16 %v1863
        %v1896 = vunpack.c.l.b16 %v1864
        %v1897 = vunpack.c.l.b16 %v1865
        %v1898 = vunpack.c.l.b16 %v1866
        %v1899 = vunpack.c.l.b16 %v1867
        %v1900 = vunpack.c.l.b16 %v1868
        %v1901 = vunpack.c.l.b16 %v1869
        %v1902 = vunpack.c.l.b16 %v1870
        %v1903 = vunpack.c.l.b16 %v1871
        %v1904 = vunpack.c.l.b16 %v1872
        %v1905 = vunpack.c.l.b16 %v1873
        %v1906 = vunpack.c.l.b16 %v1874
        %v1907 = vunpack.c.l.b16 %v1875
        %v1908 = vpack.c.b16 %v1893, %v1892
        %v1909 = vpack.c.b16 %v1895, %v1894
        %v1910 = vpack.c.b16 %v1897, %v1896
        %v1911 = vpack.c.b16 %v1899, %v1898
        %v1912 = vpack.c.b16 %v1901, %v1900
        %v1913 = vpack.c.b16 %v1903, %v1902
        %v1914 = vpack.c.b16 %v1905, %v1904
        %v1915 = vpack.c.b16 %v1907, %v1906
        %1924 = vmatprep.subr.bf16.mxu0 0
        %1925 = vmatpush1.bf16.msra.mxu0 %v1908
        %1926 = vmatprep.subr.bf16.mxu0 0
        %1927 = vmatpush1.bf16.msra.mxu0 %v1909
        %1928 = vmatprep.subr.bf16.mxu0 0
        %1929 = vmatpush1.bf16.msra.mxu0 %v1910
        %1930 = vmatprep.subr.bf16.mxu0 0
        %1931 = vmatpush1.bf16.msra.mxu0 %v1911
        %1932 = vmatprep.subr.bf16.mxu0 0
        %1933 = vmatpush1.bf16.msra.mxu0 %v1912
        %1934 = vmatprep.subr.bf16.mxu0 0
        %1935 = vmatpush1.bf16.msra.mxu0 %v1913
        %1936 = vmatprep.subr.bf16.mxu0 0
        %1937 = vmatpush1.bf16.msra.mxu0 %v1914
        %1938 = vmatprep.subr.bf16.mxu0 0
        %1939 = vmatpush1.bf16.msra.mxu0 %v1915
        %1940 = vmatprep.subr.bf16.mxu0 0
        %1941 = vmatpush1.bf16.msra.mxu0 0
        %1942 = vmatprep.subr.bf16.mxu0 0
        %1943 = vmatpush1.bf16.msra.mxu0 0
        %1944 = vmatprep.subr.bf16.mxu0 0
        %1945 = vmatpush1.bf16.msra.mxu0 0
        %1946 = vmatprep.subr.bf16.mxu0 0
        %1947 = vmatpush1.bf16.msra.mxu0 0
        %1948 = vmatprep.subr.bf16.mxu0 0
        %1949 = vmatpush1.bf16.msra.mxu0 0
        %1950 = vmatprep.subr.bf16.mxu0 0
        %1951 = vmatpush1.bf16.msra.mxu0 0
        %1952 = vmatprep.subr.bf16.mxu0 0
        %1953 = vmatpush1.bf16.msra.mxu0 0
        %1954 = vmatprep.subr.bf16.mxu0 0
        %1955 = vmatpush1.bf16.msra.mxu0 0
        %1956 = vmatprep.mubr.bf16.mxu0 0
        %1957 = vmatmul.mubr.bf16.gmra.mrb[0].mxu0 %v1843
        %v1958 = vpop.f32.mrb[0].mxu0
        %v1959 = vadd.f32 0.0, %v1958
        %v1960 = vpop.f32.mrb[0].mxu0
        %v1961 = vpop.f32.mrb[0].mxu0
        %v1962 = vadd.f32 0.0, %v1961
        %v1963 = vpop.f32.mrb[0].mxu0
        %1964 = vmatprep.mubr.bf16.mxu0 0
        %1965 = vmatmul.mubr.bf16.gmra.mrb[0].mxu0 %v1844
        %v1966 = vpop.f32.mrb[0].mxu0
        %v1967 = vadd.f32 0.0, %v1966
        %v1968 = vpop.f32.mrb[0].mxu0
        %v1969 = vpop.f32.mrb[0].mxu0
        %v1970 = vadd.f32 0.0, %v1969
        %v1971 = vpop.f32.mrb[0].mxu0
        %1972 = vmatprep.mubr.bf16.mxu0 0
        %1973 = vmatmul.mubr.bf16.gmra.mrb[0].mxu0 %v1845
        %v1974 = vpop.f32.mrb[0].mxu0
        %v1975 = vadd.f32 0.0, %v1974
        %v1976 = vpop.f32.mrb[0].mxu0
        %v1977 = vpop.f32.mrb[0].mxu0
        %v1978 = vadd.f32 0.0, %v1977
        %v1979 = vpop.f32.mrb[0].mxu0
        %1980 = vmatprep.mubr.bf16.mxu0 0
        %1981 = vmatmul.mubr.bf16.gmra.mrb[0].mxu0 %v1846
        %v1982 = vpop.f32.mrb[0].mxu0
        %v1983 = vadd.f32 0.0, %v1982
        %v1984 = vpop.f32.mrb[0].mxu0
        %v1985 = vpop.f32.mrb[0].mxu0
        %v1986 = vadd.f32 0.0, %v1985
        %v1987 = vpop.f32.mrb[0].mxu0
        %1988 = vmatprep.mubr.bf16.mxu0 0
        %1989 = vmatmul.mubr.bf16.gmra.mrb[0].mxu0 %v1847
        %v1990 = vpop.f32.mrb[0].mxu0
        %v1991 = vadd.f32 0.0, %v1990
        %v1992 = vpop.f32.mrb[0].mxu0
        %v1993 = vpop.f32.mrb[0].mxu0
        %v1994 = vadd.f32 0.0, %v1993
        %v1995 = vpop.f32.mrb[0].mxu0
        %1996 = vmatprep.mubr.bf16.mxu0 0
        %1997 = vmatmul.mubr.bf16.gmra.mrb[0].mxu0 %v1848
        %v1998 = vpop.f32.mrb[0].mxu0
        %v1999 = vadd.f32 0.0, %v1998
        %v2000 = vpop.f32.mrb[0].mxu0
        %v2001 = vpop.f32.mrb[0].mxu0
        %v2002 = vadd.f32 0.0, %v2001
        %v2003 = vpop.f32.mrb[0].mxu0
        %2004 = vmatprep.mubr.bf16.mxu0 0
        %2005 = vmatmul.mubr.bf16.gmra.mrb[0].mxu0 %v1849
        %v2006 = vpop.f32.mrb[0].mxu0
        %v2007 = vadd.f32 0.0, %v2006
        %v2008 = vpop.f32.mrb[0].mxu0
        %v2009 = vpop.f32.mrb[0].mxu0
        %v2010 = vadd.f32 0.0, %v2009
        %v2011 = vpop.f32.mrb[0].mxu0
        %2012 = vmatprep.mubr.bf16.mxu0 0
        %2013 = vmatmul.mubr.bf16.gmra.mrb[0].mxu0 %v1850
        %v2014 = vpop.f32.mrb[0].mxu0
        %v2015 = vadd.f32 0.0, %v2014
        %v2016 = vpop.f32.mrb[0].mxu0
        %v2017 = vpop.f32.mrb[0].mxu0
        %v2018 = vadd.f32 0.0, %v2017
        %v2019 = vpop.f32.mrb[0].mxu0
        %2020 = vmatprep.mubr.bf16.mxu0 0
        %2021 = vmatmul.mubr.bf16.gmra.mrb[0].mxu0 %v1851
        %v2022 = vpop.f32.mrb[0].mxu0
        %v2023 = vadd.f32 0.0, %v2022
        %v2024 = vpop.f32.mrb[0].mxu0
        %v2025 = vpop.f32.mrb[0].mxu0
        %v2026 = vadd.f32 0.0, %v2025
        %v2027 = vpop.f32.mrb[0].mxu0
        %2028 = vmatprep.mubr.bf16.mxu0 0
        %2029 = vmatmul.mubr.bf16.gmra.mrb[0].mxu0 %v1852
        %v2030 = vpop.f32.mrb[0].mxu0
        %v2031 = vadd.f32 0.0, %v2030
        %v2032 = vpop.f32.mrb[0].mxu0
        %v2033 = vpop.f32.mrb[0].mxu0
        %v2034 = vadd.f32 0.0, %v2033
        %v2035 = vpop.f32.mrb[0].mxu0
        %2036 = vmatprep.mubr.bf16.mxu0 0
        %2037 = vmatmul.mubr.bf16.gmra.mrb[0].mxu0 %v1853
        %v2038 = vpop.f32.mrb[0].mxu0
        %v2039 = vadd.f32 0.0, %v2038
        %v2040 = vpop.f32.mrb[0].mxu0
        %v2041 = vpop.f32.mrb[0].mxu0
        %v2042 = vadd.f32 0.0, %v2041
        %v2043 = vpop.f32.mrb[0].mxu0
        %2044 = vmatprep.mubr.bf16.mxu0 0
        %2045 = vmatmul.mubr.bf16.gmra.mrb[0].mxu0 %v1854
        %v2046 = vpop.f32.mrb[0].mxu0
        %v2047 = vadd.f32 0.0, %v2046
        %v2048 = vpop.f32.mrb[0].mxu0
        %v2049 = vpop.f32.mrb[0].mxu0
        %v2050 = vadd.f32 0.0, %v2049
        %v2051 = vpop.f32.mrb[0].mxu0
        %2052 = vmatprep.mubr.bf16.mxu0 0
        %2053 = vmatmul.mubr.bf16.gmra.mrb[0].mxu0 %v1855
        %v2054 = vpop.f32.mrb[0].mxu0
        %v2055 = vadd.f32 0.0, %v2054
        %v2056 = vpop.f32.mrb[0].mxu0
        %v2057 = vpop.f32.mrb[0].mxu0
        %v2058 = vadd.f32 0.0, %v2057
        %v2059 = vpop.f32.mrb[0].mxu0
        %2060 = vmatprep.mubr.bf16.mxu0 0
        %2061 = vmatmul.mubr.bf16.gmra.mrb[0].mxu0 %v1856
        %v2062 = vpop.f32.mrb[0].mxu0
        %v2063 = vadd.f32 0.0, %v2062
        %v2064 = vpop.f32.mrb[0].mxu0
        %v2065 = vpop.f32.mrb[0].mxu0
        %v2066 = vadd.f32 0.0, %v2065
        %v2067 = vpop.f32.mrb[0].mxu0
        %2068 = vmatprep.mubr.bf16.mxu0 0
        %2069 = vmatmul.mubr.bf16.gmra.mrb[0].mxu0 %v1857
        %v2070 = vpop.f32.mrb[0].mxu0
        %v2071 = vadd.f32 0.0, %v2070
        %v2072 = vpop.f32.mrb[0].mxu0
        %v2073 = vpop.f32.mrb[0].mxu0
        %v2074 = vadd.f32 0.0, %v2073
        %v2075 = vpop.f32.mrb[0].mxu0
        %2076 = vmatprep.mubr.bf16.mxu0 0
        %2077 = vmatmul.mubr.bf16.gmra.mrb[0].mxu0 %v1858
        %v2078 = vpop.f32.mrb[0].mxu0
        %v2079 = vadd.f32 0.0, %v2078
        %v2080 = vpop.f32.mrb[0].mxu0
        %v2081 = vpop.f32.mrb[0].mxu0
        %v2082 = vadd.f32 0.0, %v2081
        %v2083 = vpop.f32.mrb[0].mxu0
        %2084 = vdwg.mxu0
        %v2085 = vadd.f32 %v1811, %v1959
        %v2086 = vadd.f32 %v1812, %v1962
        %v2087 = vadd.f32 %v1813, %v1967
        %v2088 = vadd.f32 %v1814, %v1970
        %v2089 = vadd.f32 %v1815, %v1975
        %v2090 = vadd.f32 %v1816, %v1978
        %v2091 = vadd.f32 %v1817, %v1983
        %v2092 = vadd.f32 %v1818, %v1986
        %v2093 = vadd.f32 %v1819, %v1991
        %v2094 = vadd.f32 %v1820, %v1994
        %v2095 = vadd.f32 %v1821, %v1999
        %v2096 = vadd.f32 %v1822, %v2002
        %v2097 = vadd.f32 %v1823, %v2007
        %v2098 = vadd.f32 %v1824, %v2010
        %v2099 = vadd.f32 %v1825, %v2015
        %v2100 = vadd.f32 %v1826, %v2018
        %v2101 = vadd.f32 %v1827, %v2023
        %v2102 = vadd.f32 %v1828, %v2026
        %v2103 = vadd.f32 %v1829, %v2031
        %v2104 = vadd.f32 %v1830, %v2034
        %v2105 = vadd.f32 %v1831, %v2039
        %v2106 = vadd.f32 %v1832, %v2042
        %v2107 = vadd.f32 %v1833, %v2047
        %v2108 = vadd.f32 %v1834, %v2050
        %v2109 = vadd.f32 %v1835, %v2055
        %v2110 = vadd.f32 %v1836, %v2058
        %v2111 = vadd.f32 %v1837, %v2063
        %v2112 = vadd.f32 %v1838, %v2066
        %v2113 = vadd.f32 %v1839, %v2071
        %v2114 = vadd.f32 %v1840, %v2074
        %v2115 = vadd.f32 %v1841, %v2079
        %v2116 = vadd.f32 %v1842, %v2082
        %2117 = vst [vmem:[#allocation3] sm:$0xff] %v2085
        %2118 = vst [vmem:[#allocation3 + $0x8] sm:$0xff] %v2086
        %2119 = vst [vmem:[#allocation3 + $0x10] sm:$0xff] %v2087
        %2120 = vst [vmem:[#allocation3 + $0x18] sm:$0xff] %v2088
        %2121 = vst [vmem:[#allocation3 + $0x20] sm:$0xff] %v2089
        %2122 = vst [vmem:[#allocation3 + $0x28] sm:$0xff] %v2090
        %2123 = vst [vmem:[#allocation3 + $0x30] sm:$0xff] %v2091
        %2124 = vst [vmem:[#allocation3 + $0x38] sm:$0xff] %v2092
        %2125 = vst [vmem:[#allocation3 + $0x40] sm:$0xff] %v2093
        %2126 = vst [vmem:[#allocation3 + $0x48] sm:$0xff] %v2094
        %2127 = vst [vmem:[#allocation3 + $0x50] sm:$0xff] %v2095
        %2128 = vst [vmem:[#allocation3 + $0x58] sm:$0xff] %v2096
        %2129 = vst [vmem:[#allocation3 + $0x60] sm:$0xff] %v2097
        %2130 = vst [vmem:[#allocation3 + $0x68] sm:$0xff] %v2098
        %2131 = vst [vmem:[#allocation3 + $0x70] sm:$0xff] %v2099
        %2132 = vst [vmem:[#allocation3 + $0x78] sm:$0xff] %v2100
        %2133 = vst [vmem:[#allocation3 + $0x80] sm:$0xff] %v2101
        %2134 = vst [vmem:[#allocation3 + $0x88] sm:$0xff] %v2102
        %2135 = vst [vmem:[#allocation3 + $0x90] sm:$0xff] %v2103
        %2136 = vst [vmem:[#allocation3 + $0x98] sm:$0xff] %v2104
        %2137 = vst [vmem:[#allocation3 + $0xa0] sm:$0xff] %v2105
        %2138 = vst [vmem:[#allocation3 + $0xa8] sm:$0xff] %v2106
        %2139 = vst [vmem:[#allocation3 + $0xb0] sm:$0xff] %v2107
        %2140 = vst [vmem:[#allocation3 + $0xb8] sm:$0xff] %v2108
        %2141 = vst [vmem:[#allocation3 + $0xc0] sm:$0xff] %v2109
        %2142 = vst [vmem:[#allocation3 + $0xc8] sm:$0xff] %v2110
        %2143 = vst [vmem:[#allocation3 + $0xd0] sm:$0xff] %v2111
        %2144 = vst [vmem:[#allocation3 + $0xd8] sm:$0xff] %v2112
        %2145 = vst [vmem:[#allocation3 + $0xe0] sm:$0xff] %v2113
        %2146 = vst [vmem:[#allocation3 + $0xe8] sm:$0xff] %v2114
        %2147 = vst [vmem:[#allocation3 + $0xf0] sm:$0xff] %v2115
        %2148 = vst [vmem:[#allocation3 + $0xf8] sm:$0xff] %v2116
        %v2149 = vld [vmem:[#allocation2 + $0x9] sm:$0xff]
        %v2150 = vld [vmem:[#allocation2 + $0x11] sm:$0xff]
        %v2151 = vld [vmem:[#allocation2 + $0x19] sm:$0xff]
        %v2152 = vld [vmem:[#allocation2 + $0x21] sm:$0xff]
        %v2153 = vld [vmem:[#allocation2 + $0x29] sm:$0xff]
        %v2154 = vld [vmem:[#allocation2 + $0x31] sm:$0xff]
        %v2155 = vld [vmem:[#allocation2 + $0x39] sm:$0xff]
        %v2156 = vld [vmem:[#allocation2 + $0x41] sm:$0xff]
        %v2157 = vld [vmem:[#allocation2 + $0x49] sm:$0xff]
        %v2158 = vld [vmem:[#allocation2 + $0x51] sm:$0xff]
        %v2159 = vld [vmem:[#allocation2 + $0x59] sm:$0xff]
        %v2160 = vld [vmem:[#allocation2 + $0x61] sm:$0xff]
        %v2161 = vld [vmem:[#allocation2 + $0x69] sm:$0xff]
        %v2162 = vld [vmem:[#allocation2 + $0x71] sm:$0xff]
        %v2163 = vld [vmem:[#allocation2 + $0x79] sm:$0xff]
        %v2164 = vld [vmem:[#allocation2 + $0x81] sm:$0xff]
        %v2165 = vld [vmem:[#allocation2 + $0x89] sm:$0xff]
        %v2166 = vld [vmem:[#allocation2 + $0x91] sm:$0xff]
        %v2167 = vld [vmem:[#allocation2 + $0x99] sm:$0xff]
        %v2168 = vld [vmem:[#allocation2 + $0xa1] sm:$0xff]
        %v2169 = vld [vmem:[#allocation2 + $0xa9] sm:$0xff]
        %v2170 = vld [vmem:[#allocation2 + $0xb1] sm:$0xff]
        %v2171 = vld [vmem:[#allocation2 + $0xb9] sm:$0xff]
        %v2172 = vld [vmem:[#allocation2 + $0xc1] sm:$0xff]
        %v2173 = vld [vmem:[#allocation2 + $0xc9] sm:$0xff]
        %v2174 = vld [vmem:[#allocation2 + $0xd1] sm:$0xff]
        %v2175 = vld [vmem:[#allocation2 + $0xd9] sm:$0xff]
        %v2176 = vld [vmem:[#allocation2 + $0xe1] sm:$0xff]
        %v2177 = vld [vmem:[#allocation2 + $0xe9] sm:$0xff]
        %v2178 = vld [vmem:[#allocation2 + $0xf1] sm:$0xff]
        %v2179 = vld [vmem:[#allocation2 + $0xf9] sm:$0xff]
        %v2180 = vld [vmem:[#allocation2 + $0x101] sm:$0xff]
        %2182 = vset.pattern.permute.xlu0 0
        %2183 = vperm.xlu0 %2182, %v1154
        %v2184 = vpop.permute.xlu0 %2183
        %2187 = vset.pattern.permute.xlu0 0
        %2188 = vperm.xlu0 %2187, %v1155
        %v2189 = vpop.permute.xlu0 %2188
        %2192 = vset.pattern.permute.xlu0 0
        %2193 = vperm.xlu0 %2192, %v1156
        %v2194 = vpop.permute.xlu0 %2193
        %2197 = vset.pattern.permute.xlu0 0
        %2198 = vperm.xlu0 %2197, %v1157
        %v2199 = vpop.permute.xlu0 %2198
        %2202 = vset.pattern.permute.xlu0 0
        %2203 = vperm.xlu0 %2202, %v1158
        %v2204 = vpop.permute.xlu0 %2203
        %2207 = vset.pattern.permute.xlu0 0
        %2208 = vperm.xlu0 %2207, %v1159
        %v2209 = vpop.permute.xlu0 %2208
        %2212 = vset.pattern.permute.xlu0 0
        %2213 = vperm.xlu0 %2212, %v1160
        %v2214 = vpop.permute.xlu0 %2213
        %2217 = vset.pattern.permute.xlu0 0
        %2218 = vperm.xlu0 %2217, %v1161
        %v2219 = vpop.permute.xlu0 %2218
        %2222 = vset.pattern.permute.xlu0 0
        %2223 = vperm.xlu0 %2222, %v1162
        %v2224 = vpop.permute.xlu0 %2223
        %2227 = vset.pattern.permute.xlu0 0
        %2228 = vperm.xlu0 %2227, %v1163
        %v2229 = vpop.permute.xlu0 %2228
        %2232 = vset.pattern.permute.xlu0 0
        %2233 = vperm.xlu0 %2232, %v1164
        %v2234 = vpop.permute.xlu0 %2233
        %2237 = vset.pattern.permute.xlu0 0
        %2238 = vperm.xlu0 %2237, %v1165
        %v2239 = vpop.permute.xlu0 %2238
        %2242 = vset.pattern.permute.xlu0 0
        %2243 = vperm.xlu0 %2242, %v1166
        %v2244 = vpop.permute.xlu0 %2243
        %2247 = vset.pattern.permute.xlu0 0
        %2248 = vperm.xlu0 %2247, %v1167
        %v2249 = vpop.permute.xlu0 %2248
        %2252 = vset.pattern.permute.xlu0 0
        %2253 = vperm.xlu0 %2252, %v1168
        %v2254 = vpop.permute.xlu0 %2253
        %2257 = vset.pattern.permute.xlu0 0
        %2258 = vperm.xlu0 %2257, %v1169
        %v2259 = vpop.permute.xlu0 %2258
        %2262 = vset.pattern.permute.xlu0 0
        %2263 = vperm.xlu0 %2262, %v1170
        %v2264 = vpop.permute.xlu0 %2263
        %2267 = vset.pattern.permute.xlu0 0
        %2268 = vperm.xlu0 %2267, %v1171
        %v2269 = vpop.permute.xlu0 %2268
        %2272 = vset.pattern.permute.xlu0 0
        %2273 = vperm.xlu0 %2272, %v1172
        %v2274 = vpop.permute.xlu0 %2273
        %2277 = vset.pattern.permute.xlu0 0
        %2278 = vperm.xlu0 %2277, %v1173
        %v2279 = vpop.permute.xlu0 %2278
        %2282 = vset.pattern.permute.xlu0 0
        %2283 = vperm.xlu0 %2282, %v1174
        %v2284 = vpop.permute.xlu0 %2283
        %2287 = vset.pattern.permute.xlu0 0
        %2288 = vperm.xlu0 %2287, %v1175
        %v2289 = vpop.permute.xlu0 %2288
        %2292 = vset.pattern.permute.xlu0 0
        %2293 = vperm.xlu0 %2292, %v1176
        %v2294 = vpop.permute.xlu0 %2293
        %2297 = vset.pattern.permute.xlu0 0
        %2298 = vperm.xlu0 %2297, %v1177
        %v2299 = vpop.permute.xlu0 %2298
        %2302 = vset.pattern.permute.xlu0 0
        %2303 = vperm.xlu0 %2302, %v1178
        %v2304 = vpop.permute.xlu0 %2303
        %2307 = vset.pattern.permute.xlu0 0
        %2308 = vperm.xlu0 %2307, %v1179
        %v2309 = vpop.permute.xlu0 %2308
        %2312 = vset.pattern.permute.xlu0 0
        %2313 = vperm.xlu0 %2312, %v1180
        %v2314 = vpop.permute.xlu0 %2313
        %2317 = vset.pattern.permute.xlu0 0
        %2318 = vperm.xlu0 %2317, %v1181
        %v2319 = vpop.permute.xlu0 %2318
        %2322 = vset.pattern.permute.xlu0 0
        %2323 = vperm.xlu0 %2322, %v1182
        %v2324 = vpop.permute.xlu0 %2323
        %2327 = vset.pattern.permute.xlu0 0
        %2328 = vperm.xlu0 %2327, %v1183
        %v2329 = vpop.permute.xlu0 %2328
        %2332 = vset.pattern.permute.xlu0 0
        %2333 = vperm.xlu0 %2332, %v1184
        %v2334 = vpop.permute.xlu0 %2333
        %2337 = vset.pattern.permute.xlu0 0
        %2338 = vperm.xlu0 %2337, %v1185
        %v2339 = vpop.permute.xlu0 %2338
        %v2341 = vmul.f32 %v2149, %v2184
        %v2342 = vmul.f32 %v2150, %v2189
        %v2343 = vmul.f32 %v2151, %v2194
        %v2344 = vmul.f32 %v2152, %v2199
        %v2345 = vmul.f32 %v2153, %v2204
        %v2346 = vmul.f32 %v2154, %v2209
        %v2347 = vmul.f32 %v2155, %v2214
        %v2348 = vmul.f32 %v2156, %v2219
        %v2349 = vmul.f32 %v2157, %v2224
        %v2350 = vmul.f32 %v2158, %v2229
        %v2351 = vmul.f32 %v2159, %v2234
        %v2352 = vmul.f32 %v2160, %v2239
        %v2353 = vmul.f32 %v2161, %v2244
        %v2354 = vmul.f32 %v2162, %v2249
        %v2355 = vmul.f32 %v2163, %v2254
        %v2356 = vmul.f32 %v2164, %v2259
        %v2357 = vmul.f32 %v2165, %v2264
        %v2358 = vmul.f32 %v2166, %v2269
        %v2359 = vmul.f32 %v2167, %v2274
        %v2360 = vmul.f32 %v2168, %v2279
        %v2361 = vmul.f32 %v2169, %v2284
        %v2362 = vmul.f32 %v2170, %v2289
        %v2363 = vmul.f32 %v2171, %v2294
        %v2364 = vmul.f32 %v2172, %v2299
        %v2365 = vmul.f32 %v2173, %v2304
        %v2366 = vmul.f32 %v2174, %v2309
        %v2367 = vmul.f32 %v2175, %v2314
        %v2368 = vmul.f32 %v2176, %v2319
        %v2369 = vmul.f32 %v2177, %v2324
        %v2370 = vmul.f32 %v2178, %v2329
        %v2371 = vmul.f32 %v2179, %v2334
        %v2372 = vmul.f32 %v2180, %v2339
        %v2373 = vld [vmem:[#allocation3] sm:$0xff]
        %v2374 = vld [vmem:[#allocation3 + $0x8] sm:$0xff]
        %v2375 = vld [vmem:[#allocation3 + $0x10] sm:$0xff]
        %v2376 = vld [vmem:[#allocation3 + $0x18] sm:$0xff]
        %v2377 = vld [vmem:[#allocation3 + $0x20] sm:$0xff]
        %v2378 = vld [vmem:[#allocation3 + $0x28] sm:$0xff]
        %v2379 = vld [vmem:[#allocation3 + $0x30] sm:$0xff]
        %v2380 = vld [vmem:[#allocation3 + $0x38] sm:$0xff]
        %v2381 = vld [vmem:[#allocation3 + $0x40] sm:$0xff]
        %v2382 = vld [vmem:[#allocation3 + $0x48] sm:$0xff]
        %v2383 = vld [vmem:[#allocation3 + $0x50] sm:$0xff]
        %v2384 = vld [vmem:[#allocation3 + $0x58] sm:$0xff]
        %v2385 = vld [vmem:[#allocation3 + $0x60] sm:$0xff]
        %v2386 = vld [vmem:[#allocation3 + $0x68] sm:$0xff]
        %v2387 = vld [vmem:[#allocation3 + $0x70] sm:$0xff]
        %v2388 = vld [vmem:[#allocation3 + $0x78] sm:$0xff]
        %v2389 = vld [vmem:[#allocation3 + $0x80] sm:$0xff]
        %v2390 = vld [vmem:[#allocation3 + $0x88] sm:$0xff]
        %v2391 = vld [vmem:[#allocation3 + $0x90] sm:$0xff]
        %v2392 = vld [vmem:[#allocation3 + $0x98] sm:$0xff]
        %v2393 = vld [vmem:[#allocation3 + $0xa0] sm:$0xff]
        %v2394 = vld [vmem:[#allocation3 + $0xa8] sm:$0xff]
        %v2395 = vld [vmem:[#allocation3 + $0xb0] sm:$0xff]
        %v2396 = vld [vmem:[#allocation3 + $0xb8] sm:$0xff]
        %v2397 = vld [vmem:[#allocation3 + $0xc0] sm:$0xff]
        %v2398 = vld [vmem:[#allocation3 + $0xc8] sm:$0xff]
        %v2399 = vld [vmem:[#allocation3 + $0xd0] sm:$0xff]
        %v2400 = vld [vmem:[#allocation3 + $0xd8] sm:$0xff]
        %v2401 = vld [vmem:[#allocation3 + $0xe0] sm:$0xff]
        %v2402 = vld [vmem:[#allocation3 + $0xe8] sm:$0xff]
        %v2403 = vld [vmem:[#allocation3 + $0xf0] sm:$0xff]
        %v2404 = vld [vmem:[#allocation3 + $0xf8] sm:$0xff]
        %v2405 = vpack.c.bf16 %v2342, %v2341
        %v2406 = vpack.c.bf16 %v2344, %v2343
        %v2407 = vpack.c.bf16 %v2346, %v2345
        %v2408 = vpack.c.bf16 %v2348, %v2347
        %v2409 = vpack.c.bf16 %v2350, %v2349
        %v2410 = vpack.c.bf16 %v2352, %v2351
        %v2411 = vpack.c.bf16 %v2354, %v2353
        %v2412 = vpack.c.bf16 %v2356, %v2355
        %v2413 = vpack.c.bf16 %v2358, %v2357
        %v2414 = vpack.c.bf16 %v2360, %v2359
        %v2415 = vpack.c.bf16 %v2362, %v2361
        %v2416 = vpack.c.bf16 %v2364, %v2363
        %v2417 = vpack.c.bf16 %v2366, %v2365
        %v2418 = vpack.c.bf16 %v2368, %v2367
        %v2419 = vpack.c.bf16 %v2370, %v2369
        %v2420 = vpack.c.bf16 %v2372, %v2371
        %s2421 = scalar_lea.vmem [#allocation12], 128
        %v2422 = vld [vmem:[%s2421] sm:$0xf]
        %v2423 = vld [vmem:[%s2421 + $0x4] sm:$0xf]
        %v2424 = vld [vmem:[%s2421 + $0x8] sm:$0xf]
        %v2425 = vld [vmem:[%s2421 + $0xc] sm:$0xf]
        %v2426 = vld [vmem:[%s2421 + $0x10] sm:$0xf]
        %v2427 = vld [vmem:[%s2421 + $0x14] sm:$0xf]
        %v2428 = vld [vmem:[%s2421 + $0x18] sm:$0xf]
        %v2429 = vld [vmem:[%s2421 + $0x1c] sm:$0xf]
        %v2430 = vld [vmem:[%s2421 + $0x20] sm:$0xf]
        %v2431 = vld [vmem:[%s2421 + $0x24] sm:$0xf]
        %v2432 = vld [vmem:[%s2421 + $0x28] sm:$0xf]
        %v2433 = vld [vmem:[%s2421 + $0x2c] sm:$0xf]
        %v2434 = vld [vmem:[%s2421 + $0x30] sm:$0xf]
        %v2435 = vld [vmem:[%s2421 + $0x34] sm:$0xf]
        %v2436 = vld [vmem:[%s2421 + $0x38] sm:$0xf]
        %v2437 = vld [vmem:[%s2421 + $0x3c] sm:$0xf]
        %v2454 = vunpack.c.l.b16 %v2422
        %v2455 = vunpack.c.l.b16 %v2423
        %v2456 = vunpack.c.l.b16 %v2424
        %v2457 = vunpack.c.l.b16 %v2425
        %v2458 = vunpack.c.l.b16 %v2426
        %v2459 = vunpack.c.l.b16 %v2427
        %v2460 = vunpack.c.l.b16 %v2428
        %v2461 = vunpack.c.l.b16 %v2429
        %v2462 = vunpack.c.l.b16 %v2430
        %v2463 = vunpack.c.l.b16 %v2431
        %v2464 = vunpack.c.l.b16 %v2432
        %v2465 = vunpack.c.l.b16 %v2433
        %v2466 = vunpack.c.l.b16 %v2434
        %v2467 = vunpack.c.l.b16 %v2435
        %v2468 = vunpack.c.l.b16 %v2436
        %v2469 = vunpack.c.l.b16 %v2437
        %v2470 = vpack.c.b16 %v2455, %v2454
        %v2471 = vpack.c.b16 %v2457, %v2456
        %v2472 = vpack.c.b16 %v2459, %v2458
        %v2473 = vpack.c.b16 %v2461, %v2460
        %v2474 = vpack.c.b16 %v2463, %v2462
        %v2475 = vpack.c.b16 %v2465, %v2464
        %v2476 = vpack.c.b16 %v2467, %v2466
        %v2477 = vpack.c.b16 %v2469, %v2468
        %2486 = vmatprep.subr.bf16.mxu0 0
        %2487 = vmatpush1.bf16.msra.mxu0 %v2470
        %2488 = vmatprep.subr.bf16.mxu0 0
        %2489 = vmatpush1.bf16.msra.mxu0 %v2471
        %2490 = vmatprep.subr.bf16.mxu0 0
        %2491 = vmatpush1.bf16.msra.mxu0 %v2472
        %2492 = vmatprep.subr.bf16.mxu0 0
        %2493 = vmatpush1.bf16.msra.mxu0 %v2473
        %2494 = vmatprep.subr.bf16.mxu0 0
        %2495 = vmatpush1.bf16.msra.mxu0 %v2474
        %2496 = vmatprep.subr.bf16.mxu0 0
        %2497 = vmatpush1.bf16.msra.mxu0 %v2475
        %2498 = vmatprep.subr.bf16.mxu0 0
        %2499 = vmatpush1.bf16.msra.mxu0 %v2476
        %2500 = vmatprep.subr.bf16.mxu0 0
        %2501 = vmatpush1.bf16.msra.mxu0 %v2477
        %2502 = vmatprep.subr.bf16.mxu0 0
        %2503 = vmatpush1.bf16.msra.mxu0 0
        %2504 = vmatprep.subr.bf16.mxu0 0
        %2505 = vmatpush1.bf16.msra.mxu0 0
        %2506 = vmatprep.subr.bf16.mxu0 0
        %2507 = vmatpush1.bf16.msra.mxu0 0
        %2508 = vmatprep.subr.bf16.mxu0 0
        %2509 = vmatpush1.bf16.msra.mxu0 0
        %2510 = vmatprep.subr.bf16.mxu0 0
        %2511 = vmatpush1.bf16.msra.mxu0 0
        %2512 = vmatprep.subr.bf16.mxu0 0
        %2513 = vmatpush1.bf16.msra.mxu0 0
        %2514 = vmatprep.subr.bf16.mxu0 0
        %2515 = vmatpush1.bf16.msra.mxu0 0
        %2516 = vmatprep.subr.bf16.mxu0 0
        %2517 = vmatpush1.bf16.msra.mxu0 0
        %2518 = vmatprep.mubr.bf16.mxu0 0
        %2519 = vmatmul.mubr.bf16.gmra.mrb[0].mxu0 %v2405
        %v2520 = vpop.f32.mrb[0].mxu0
        %v2521 = vadd.f32 0.0, %v2520
        %v2522 = vpop.f32.mrb[0].mxu0
        %v2523 = vpop.f32.mrb[0].mxu0
        %v2524 = vadd.f32 0.0, %v2523
        %v2525 = vpop.f32.mrb[0].mxu0
        %2526 = vmatprep.mubr.bf16.mxu0 0
        %2527 = vmatmul.mubr.bf16.gmra.mrb[0].mxu0 %v2406
        %v2528 = vpop.f32.mrb[0].mxu0
        %v2529 = vadd.f32 0.0, %v2528
        %v2530 = vpop.f32.mrb[0].mxu0
        %v2531 = vpop.f32.mrb[0].mxu0
        %v2532 = vadd.f32 0.0, %v2531
        %v2533 = vpop.f32.mrb[0].mxu0
        %2534 = vmatprep.mubr.bf16.mxu0 0
        %2535 = vmatmul.mubr.bf16.gmra.mrb[0].mxu0 %v2407
        %v2536 = vpop.f32.mrb[0].mxu0
        %v2537 = vadd.f32 0.0, %v2536
        %v2538 = vpop.f32.mrb[0].mxu0
        %v2539 = vpop.f32.mrb[0].mxu0
        %v2540 = vadd.f32 0.0, %v2539
        %v2541 = vpop.f32.mrb[0].mxu0
        %2542 = vmatprep.mubr.bf16.mxu0 0
        %2543 = vmatmul.mubr.bf16.gmra.mrb[0].mxu0 %v2408
        %v2544 = vpop.f32.mrb[0].mxu0
        %v2545 = vadd.f32 0.0, %v2544
        %v2546 = vpop.f32.mrb[0].mxu0
        %v2547 = vpop.f32.mrb[0].mxu0
        %v2548 = vadd.f32 0.0, %v2547
        %v2549 = vpop.f32.mrb[0].mxu0
        %2550 = vmatprep.mubr.bf16.mxu0 0
        %2551 = vmatmul.mubr.bf16.gmra.mrb[0].mxu0 %v2409
        %v2552 = vpop.f32.mrb[0].mxu0
        %v2553 = vadd.f32 0.0, %v2552
        %v2554 = vpop.f32.mrb[0].mxu0
        %v2555 = vpop.f32.mrb[0].mxu0
        %v2556 = vadd.f32 0.0, %v2555
        %v2557 = vpop.f32.mrb[0].mxu0
        %2558 = vmatprep.mubr.bf16.mxu0 0
        %2559 = vmatmul.mubr.bf16.gmra.mrb[0].mxu0 %v2410
        %v2560 = vpop.f32.mrb[0].mxu0
        %v2561 = vadd.f32 0.0, %v2560
        %v2562 = vpop.f32.mrb[0].mxu0
        %v2563 = vpop.f32.mrb[0].mxu0
        %v2564 = vadd.f32 0.0, %v2563
        %v2565 = vpop.f32.mrb[0].mxu0
        %2566 = vmatprep.mubr.bf16.mxu0 0
        %2567 = vmatmul.mubr.bf16.gmra.mrb[0].mxu0 %v2411
        %v2568 = vpop.f32.mrb[0].mxu0
        %v2569 = vadd.f32 0.0, %v2568
        %v2570 = vpop.f32.mrb[0].mxu0
        %v2571 = vpop.f32.mrb[0].mxu0
        %v2572 = vadd.f32 0.0, %v2571
        %v2573 = vpop.f32.mrb[0].mxu0
        %2574 = vmatprep.mubr.bf16.mxu0 0
        %2575 = vmatmul.mubr.bf16.gmra.mrb[0].mxu0 %v2412
        %v2576 = vpop.f32.mrb[0].mxu0
        %v2577 = vadd.f32 0.0, %v2576
        %v2578 = vpop.f32.mrb[0].mxu0
        %v2579 = vpop.f32.mrb[0].mxu0
        %v2580 = vadd.f32 0.0, %v2579
        %v2581 = vpop.f32.mrb[0].mxu0
        %2582 = vmatprep.mubr.bf16.mxu0 0
        %2583 = vmatmul.mubr.bf16.gmra.mrb[0].mxu0 %v2413
        %v2584 = vpop.f32.mrb[0].mxu0
        %v2585 = vadd.f32 0.0, %v2584
        %v2586 = vpop.f32.mrb[0].mxu0
        %v2587 = vpop.f32.mrb[0].mxu0
        %v2588 = vadd.f32 0.0, %v2587
        %v2589 = vpop.f32.mrb[0].mxu0
        %2590 = vmatprep.mubr.bf16.mxu0 0
        %2591 = vmatmul.mubr.bf16.gmra.mrb[0].mxu0 %v2414
        %v2592 = vpop.f32.mrb[0].mxu0
        %v2593 = vadd.f32 0.0, %v2592
        %v2594 = vpop.f32.mrb[0].mxu0
        %v2595 = vpop.f32.mrb[0].mxu0
        %v2596 = vadd.f32 0.0, %v2595
        %v2597 = vpop.f32.mrb[0].mxu0
        %2598 = vmatprep.mubr.bf16.mxu0 0
        %2599 = vmatmul.mubr.bf16.gmra.mrb[0].mxu0 %v2415
        %v2600 = vpop.f32.mrb[0].mxu0
        %v2601 = vadd.f32 0.0, %v2600
        %v2602 = vpop.f32.mrb[0].mxu0
        %v2603 = vpop.f32.mrb[0].mxu0
        %v2604 = vadd.f32 0.0, %v2603
        %v2605 = vpop.f32.mrb[0].mxu0
        %2606 = vmatprep.mubr.bf16.mxu0 0
        %2607 = vmatmul.mubr.bf16.gmra.mrb[0].mxu0 %v2416
        %v2608 = vpop.f32.mrb[0].mxu0
        %v2609 = vadd.f32 0.0, %v2608
        %v2610 = vpop.f32.mrb[0].mxu0
        %v2611 = vpop.f32.mrb[0].mxu0
        %v2612 = vadd.f32 0.0, %v2611
        %v2613 = vpop.f32.mrb[0].mxu0
        %2614 = vmatprep.mubr.bf16.mxu0 0
        %2615 = vmatmul.mubr.bf16.gmra.mrb[0].mxu0 %v2417
        %v2616 = vpop.f32.mrb[0].mxu0
        %v2617 = vadd.f32 0.0, %v2616
        %v2618 = vpop.f32.mrb[0].mxu0
        %v2619 = vpop.f32.mrb[0].mxu0
        %v2620 = vadd.f32 0.0, %v2619
        %v2621 = vpop.f32.mrb[0].mxu0
        %2622 = vmatprep.mubr.bf16.mxu0 0
        %2623 = vmatmul.mubr.bf16.gmra.mrb[0].mxu0 %v2418
        %v2624 = vpop.f32.mrb[0].mxu0
        %v2625 = vadd.f32 0.0, %v2624
        %v2626 = vpop.f32.mrb[0].mxu0
        %v2627 = vpop.f32.mrb[0].mxu0
        %v2628 = vadd.f32 0.0, %v2627
        %v2629 = vpop.f32.mrb[0].mxu0
        %2630 = vmatprep.mubr.bf16.mxu0 0
        %2631 = vmatmul.mubr.bf16.gmra.mrb[0].mxu0 %v2419
        %v2632 = vpop.f32.mrb[0].mxu0
        %v2633 = vadd.f32 0.0, %v2632
        %v2634 = vpop.f32.mrb[0].mxu0
        %v2635 = vpop.f32.mrb[0].mxu0
        %v2636 = vadd.f32 0.0, %v2635
        %v2637 = vpop.f32.mrb[0].mxu0
        %2638 = vmatprep.mubr.bf16.mxu0 0
        %2639 = vmatmul.mubr.bf16.gmra.mrb[0].mxu0 %v2420
        %v2640 = vpop.f32.mrb[0].mxu0
        %v2641 = vadd.f32 0.0, %v2640
        %v2642 = vpop.f32.mrb[0].mxu0
        %v2643 = vpop.f32.mrb[0].mxu0
        %v2644 = vadd.f32 0.0, %v2643
        %v2645 = vpop.f32.mrb[0].mxu0
        %2646 = vdwg.mxu0
        %v2647 = vadd.f32 %v2373, %v2521
        %v2648 = vadd.f32 %v2374, %v2524
        %v2649 = vadd.f32 %v2375, %v2529
        %v2650 = vadd.f32 %v2376, %v2532
        %v2651 = vadd.f32 %v2377, %v2537
        %v2652 = vadd.f32 %v2378, %v2540
        %v2653 = vadd.f32 %v2379, %v2545
        %v2654 = vadd.f32 %v2380, %v2548
        %v2655 = vadd.f32 %v2381, %v2553
        %v2656 = vadd.f32 %v2382, %v2556
        %v2657 = vadd.f32 %v2383, %v2561
        %v2658 = vadd.f32 %v2384, %v2564
        %v2659 = vadd.f32 %v2385, %v2569
        %v2660 = vadd.f32 %v2386, %v2572
        %v2661 = vadd.f32 %v2387, %v2577
        %v2662 = vadd.f32 %v2388, %v2580
        %v2663 = vadd.f32 %v2389, %v2585
        %v2664 = vadd.f32 %v2390, %v2588
        %v2665 = vadd.f32 %v2391, %v2593
        %v2666 = vadd.f32 %v2392, %v2596
        %v2667 = vadd.f32 %v2393, %v2601
        %v2668 = vadd.f32 %v2394, %v2604
        %v2669 = vadd.f32 %v2395, %v2609
        %v2670 = vadd.f32 %v2396, %v2612
        %v2671 = vadd.f32 %v2397, %v2617
        %v2672 = vadd.f32 %v2398, %v2620
        %v2673 = vadd.f32 %v2399, %v2625
        %v2674 = vadd.f32 %v2400, %v2628
        %v2675 = vadd.f32 %v2401, %v2633
        %v2676 = vadd.f32 %v2402, %v2636
        %v2677 = vadd.f32 %v2403, %v2641
        %v2678 = vadd.f32 %v2404, %v2644
        %2679 = vst [vmem:[#allocation3] sm:$0xff] %v2647
        %2680 = vst [vmem:[#allocation3 + $0x8] sm:$0xff] %v2648
        %2681 = vst [vmem:[#allocation3 + $0x10] sm:$0xff] %v2649
        %2682 = vst [vmem:[#allocation3 + $0x18] sm:$0xff] %v2650
        %2683 = vst [vmem:[#allocation3 + $0x20] sm:$0xff] %v2651
        %2684 = vst [vmem:[#allocation3 + $0x28] sm:$0xff] %v2652
        %2685 = vst [vmem:[#allocation3 + $0x30] sm:$0xff] %v2653
        %2686 = vst [vmem:[#allocation3 + $0x38] sm:$0xff] %v2654
        %2687 = vst [vmem:[#allocation3 + $0x40] sm:$0xff] %v2655
        %2688 = vst [vmem:[#allocation3 + $0x48] sm:$0xff] %v2656
        %2689 = vst [vmem:[#allocation3 + $0x50] sm:$0xff] %v2657
        %2690 = vst [vmem:[#allocation3 + $0x58] sm:$0xff] %v2658
        %2691 = vst [vmem:[#allocation3 + $0x60] sm:$0xff] %v2659
        %2692 = vst [vmem:[#allocation3 + $0x68] sm:$0xff] %v2660
        %2693 = vst [vmem:[#allocation3 + $0x70] sm:$0xff] %v2661
        %2694 = vst [vmem:[#allocation3 + $0x78] sm:$0xff] %v2662
        %2695 = vst [vmem:[#allocation3 + $0x80] sm:$0xff] %v2663
        %2696 = vst [vmem:[#allocation3 + $0x88] sm:$0xff] %v2664
        %2697 = vst [vmem:[#allocation3 + $0x90] sm:$0xff] %v2665
        %2698 = vst [vmem:[#allocation3 + $0x98] sm:$0xff] %v2666
        %2699 = vst [vmem:[#allocation3 + $0xa0] sm:$0xff] %v2667
        %2700 = vst [vmem:[#allocation3 + $0xa8] sm:$0xff] %v2668
        %2701 = vst [vmem:[#allocation3 + $0xb0] sm:$0xff] %v2669
        %2702 = vst [vmem:[#allocation3 + $0xb8] sm:$0xff] %v2670
        %2703 = vst [vmem:[#allocation3 + $0xc0] sm:$0xff] %v2671
        %2704 = vst [vmem:[#allocation3 + $0xc8] sm:$0xff] %v2672
        %2705 = vst [vmem:[#allocation3 + $0xd0] sm:$0xff] %v2673
        %2706 = vst [vmem:[#allocation3 + $0xd8] sm:$0xff] %v2674
        %2707 = vst [vmem:[#allocation3 + $0xe0] sm:$0xff] %v2675
        %2708 = vst [vmem:[#allocation3 + $0xe8] sm:$0xff] %v2676
        %2709 = vst [vmem:[#allocation3 + $0xf0] sm:$0xff] %v2677
        %2710 = vst [vmem:[#allocation3 + $0xf8] sm:$0xff] %v2678
        %v2711 = vld [vmem:[#allocation2 + $0x17] sm:$0xff]
        %v2712 = vld [vmem:[#allocation2 + $0x1f] sm:$0xff]
        %v2713 = vld [vmem:[#allocation2 + $0x27] sm:$0xff]
        %v2714 = vld [vmem:[#allocation2 + $0x2f] sm:$0xff]
        %v2715 = vld [vmem:[#allocation2 + $0x37] sm:$0xff]
        %v2716 = vld [vmem:[#allocation2 + $0x3f] sm:$0xff]
        %v2717 = vld [vmem:[#allocation2 + $0x47] sm:$0xff]
        %v2718 = vld [vmem:[#allocation2 + $0x4f] sm:$0xff]
        %v2719 = vld [vmem:[#allocation2 + $0x57] sm:$0xff]
        %v2720 = vld [vmem:[#allocation2 + $0x5f] sm:$0xff]
        %v2721 = vld [vmem:[#allocation2 + $0x67] sm:$0xff]
        %v2722 = vld [vmem:[#allocation2 + $0x6f] sm:$0xff]
        %v2723 = vld [vmem:[#allocation2 + $0x77] sm:$0xff]
        %v2724 = vld [vmem:[#allocation2 + $0x7f] sm:$0xff]
        %v2725 = vld [vmem:[#allocation2 + $0x87] sm:$0xff]
        %v2726 = vld [vmem:[#allocation2 + $0x8f] sm:$0xff]
        %v2727 = vld [vmem:[#allocation2 + $0x97] sm:$0xff]
        %v2728 = vld [vmem:[#allocation2 + $0x9f] sm:$0xff]
        %v2729 = vld [vmem:[#allocation2 + $0xa7] sm:$0xff]
        %v2730 = vld [vmem:[#allocation2 + $0xaf] sm:$0xff]
        %v2731 = vld [vmem:[#allocation2 + $0xb7] sm:$0xff]
        %v2732 = vld [vmem:[#allocation2 + $0xbf] sm:$0xff]
        %v2733 = vld [vmem:[#allocation2 + $0xc7] sm:$0xff]
        %v2734 = vld [vmem:[#allocation2 + $0xcf] sm:$0xff]
        %v2735 = vld [vmem:[#allocation2 + $0xd7] sm:$0xff]
        %v2736 = vld [vmem:[#allocation2 + $0xdf] sm:$0xff]
        %v2737 = vld [vmem:[#allocation2 + $0xe7] sm:$0xff]
        %v2738 = vld [vmem:[#allocation2 + $0xef] sm:$0xff]
        %v2739 = vld [vmem:[#allocation2 + $0xf7] sm:$0xff]
        %v2740 = vld [vmem:[#allocation2 + $0xff] sm:$0xff]
        %v2741 = vld [vmem:[#allocation2 + $0x107] sm:$0xff]
        %v2742 = vld [vmem:[#allocation2 + $0x10f] sm:$0xff]
        %v2743 = vmul.f32 %v2711, %v1253
        %v2744 = vmul.f32 %v2712, %v1258
        %v2745 = vmul.f32 %v2713, %v1263
        %v2746 = vmul.f32 %v2714, %v1268
        %v2747 = vmul.f32 %v2715, %v1273
        %v2748 = vmul.f32 %v2716, %v1278
        %v2749 = vmul.f32 %v2717, %v1283
        %v2750 = vmul.f32 %v2718, %v1288
        %v2751 = vmul.f32 %v2719, %v1293
        %v2752 = vmul.f32 %v2720, %v1298
        %v2753 = vmul.f32 %v2721, %v1303
        %v2754 = vmul.f32 %v2722, %v1308
        %v2755 = vmul.f32 %v2723, %v1313
        %v2756 = vmul.f32 %v2724, %v1318
        %v2757 = vmul.f32 %v2725, %v1323
        %v2758 = vmul.f32 %v2726, %v1328
        %v2759 = vmul.f32 %v2727, %v1333
        %v2760 = vmul.f32 %v2728, %v1338
        %v2761 = vmul.f32 %v2729, %v1343
        %v2762 = vmul.f32 %v2730, %v1348
        %v2763 = vmul.f32 %v2731, %v1353
        %v2764 = vmul.f32 %v2732, %v1358
        %v2765 = vmul.f32 %v2733, %v1363
        %v2766 = vmul.f32 %v2734, %v1368
        %v2767 = vmul.f32 %v2735, %v1373
        %v2768 = vmul.f32 %v2736, %v1378
        %v2769 = vmul.f32 %v2737, %v1383
        %v2770 = vmul.f32 %v2738, %v1388
        %v2771 = vmul.f32 %v2739, %v1393
        %v2772 = vmul.f32 %v2740, %v1398
        %v2773 = vmul.f32 %v2741, %v1403
        %v2774 = vmul.f32 %v2742, %v1408
        %v2775 = vld [vmem:[#allocation3] sm:$0xff]
        %v2776 = vld [vmem:[#allocation3 + $0x8] sm:$0xff]
        %v2777 = vld [vmem:[#allocation3 + $0x10] sm:$0xff]
        %v2778 = vld [vmem:[#allocation3 + $0x18] sm:$0xff]
        %v2779 = vld [vmem:[#allocation3 + $0x20] sm:$0xff]
        %v2780 = vld [vmem:[#allocation3 + $0x28] sm:$0xff]
        %v2781 = vld [vmem:[#allocation3 + $0x30] sm:$0xff]
        %v2782 = vld [vmem:[#allocation3 + $0x38] sm:$0xff]
        %v2783 = vld [vmem:[#allocation3 + $0x40] sm:$0xff]
        %v2784 = vld [vmem:[#allocation3 + $0x48] sm:$0xff]
        %v2785 = vld [vmem:[#allocation3 + $0x50] sm:$0xff]
        %v2786 = vld [vmem:[#allocation3 + $0x58] sm:$0xff]
        %v2787 = vld [vmem:[#allocation3 + $0x60] sm:$0xff]
        %v2788 = vld [vmem:[#allocation3 + $0x68] sm:$0xff]
        %v2789 = vld [vmem:[#allocation3 + $0x70] sm:$0xff]
        %v2790 = vld [vmem:[#allocation3 + $0x78] sm:$0xff]
        %v2791 = vld [vmem:[#allocation3 + $0x80] sm:$0xff]
        %v2792 = vld [vmem:[#allocation3 + $0x88] sm:$0xff]
        %v2793 = vld [vmem:[#allocation3 + $0x90] sm:$0xff]
        %v2794 = vld [vmem:[#allocation3 + $0x98] sm:$0xff]
        %v2795 = vld [vmem:[#allocation3 + $0xa0] sm:$0xff]
        %v2796 = vld [vmem:[#allocation3 + $0xa8] sm:$0xff]
        %v2797 = vld [vmem:[#allocation3 + $0xb0] sm:$0xff]
        %v2798 = vld [vmem:[#allocation3 + $0xb8] sm:$0xff]
        %v2799 = vld [vmem:[#allocation3 + $0xc0] sm:$0xff]
        %v2800 = vld [vmem:[#allocation3 + $0xc8] sm:$0xff]
        %v2801 = vld [vmem:[#allocation3 + $0xd0] sm:$0xff]
        %v2802 = vld [vmem:[#allocation3 + $0xd8] sm:$0xff]
        %v2803 = vld [vmem:[#allocation3 + $0xe0] sm:$0xff]
        %v2804 = vld [vmem:[#allocation3 + $0xe8] sm:$0xff]
        %v2805 = vld [vmem:[#allocation3 + $0xf0] sm:$0xff]
        %v2806 = vld [vmem:[#allocation3 + $0xf8] sm:$0xff]
        %v2807 = vpack.c.bf16 %v2744, %v2743
        %v2808 = vpack.c.bf16 %v2746, %v2745
        %v2809 = vpack.c.bf16 %v2748, %v2747
        %v2810 = vpack.c.bf16 %v2750, %v2749
        %v2811 = vpack.c.bf16 %v2752, %v2751
        %v2812 = vpack.c.bf16 %v2754, %v2753
        %v2813 = vpack.c.bf16 %v2756, %v2755
        %v2814 = vpack.c.bf16 %v2758, %v2757
        %v2815 = vpack.c.bf16 %v2760, %v2759
        %v2816 = vpack.c.bf16 %v2762, %v2761
        %v2817 = vpack.c.bf16 %v2764, %v2763
        %v2818 = vpack.c.bf16 %v2766, %v2765
        %v2819 = vpack.c.bf16 %v2768, %v2767
        %v2820 = vpack.c.bf16 %v2770, %v2769
        %v2821 = vpack.c.bf16 %v2772, %v2771
        %v2822 = vpack.c.bf16 %v2774, %v2773
        %s2823 = scalar_lea.vmem [#allocation12], 192
        %v2824 = vld [vmem:[%s2823] sm:$0xf]
        %v2825 = vld [vmem:[%s2823 + $0x4] sm:$0xf]
        %v2826 = vld [vmem:[%s2823 + $0x8] sm:$0xf]
        %v2827 = vld [vmem:[%s2823 + $0xc] sm:$0xf]
        %v2828 = vld [vmem:[%s2823 + $0x10] sm:$0xf]
        %v2829 = vld [vmem:[%s2823 + $0x14] sm:$0xf]
        %v2830 = vld [vmem:[%s2823 + $0x18] sm:$0xf]
        %v2831 = vld [vmem:[%s2823 + $0x1c] sm:$0xf]
        %v2832 = vld [vmem:[%s2823 + $0x20] sm:$0xf]
        %v2833 = vld [vmem:[%s2823 + $0x24] sm:$0xf]
        %v2834 = vld [vmem:[%s2823 + $0x28] sm:$0xf]
        %v2835 = vld [vmem:[%s2823 + $0x2c] sm:$0xf]
        %v2836 = vld [vmem:[%s2823 + $0x30] sm:$0xf]
        %v2837 = vld [vmem:[%s2823 + $0x34] sm:$0xf]
        %v2838 = vld [vmem:[%s2823 + $0x38] sm:$0xf]
        %v2839 = vld [vmem:[%s2823 + $0x3c] sm:$0xf]
        %v2856 = vunpack.c.l.b16 %v2824
        %v2857 = vunpack.c.l.b16 %v2825
        %v2858 = vunpack.c.l.b16 %v2826
        %v2859 = vunpack.c.l.b16 %v2827
        %v2860 = vunpack.c.l.b16 %v2828
        %v2861 = vunpack.c.l.b16 %v2829
        %v2862 = vunpack.c.l.b16 %v2830
        %v2863 = vunpack.c.l.b16 %v2831
        %v2864 = vunpack.c.l.b16 %v2832
        %v2865 = vunpack.c.l.b16 %v2833
        %v2866 = vunpack.c.l.b16 %v2834
        %v2867 = vunpack.c.l.b16 %v2835
        %v2868 = vunpack.c.l.b16 %v2836
        %v2869 = vunpack.c.l.b16 %v2837
        %v2870 = vunpack.c.l.b16 %v2838
        %v2871 = vunpack.c.l.b16 %v2839
        %v2872 = vpack.c.b16 %v2857, %v2856
        %v2873 = vpack.c.b16 %v2859, %v2858
        %v2874 = vpack.c.b16 %v2861, %v2860
        %v2875 = vpack.c.b16 %v2863, %v2862
        %v2876 = vpack.c.b16 %v2865, %v2864
        %v2877 = vpack.c.b16 %v2867, %v2866
        %v2878 = vpack.c.b16 %v2869, %v2868
        %v2879 = vpack.c.b16 %v2871, %v2870
        %2888 = vmatprep.subr.bf16.mxu0 0
        %2889 = vmatpush1.bf16.msra.mxu0 %v2872
        %2890 = vmatprep.subr.bf16.mxu0 0
        %2891 = vmatpush1.bf16.msra.mxu0 %v2873
        %2892 = vmatprep.subr.bf16.mxu0 0
        %2893 = vmatpush1.bf16.msra.mxu0 %v2874
        %2894 = vmatprep.subr.bf16.mxu0 0
        %2895 = vmatpush1.bf16.msra.mxu0 %v2875
        %2896 = vmatprep.subr.bf16.mxu0 0
        %2897 = vmatpush1.bf16.msra.mxu0 %v2876
        %2898 = vmatprep.subr.bf16.mxu0 0
        %2899 = vmatpush1.bf16.msra.mxu0 %v2877
        %2900 = vmatprep.subr.bf16.mxu0 0
        %2901 = vmatpush1.bf16.msra.mxu0 %v2878
        %2902 = vmatprep.subr.bf16.mxu0 0
        %2903 = vmatpush1.bf16.msra.mxu0 %v2879
        %2904 = vmatprep.subr.bf16.mxu0 0
        %2905 = vmatpush1.bf16.msra.mxu0 0
        %2906 = vmatprep.subr.bf16.mxu0 0
        %2907 = vmatpush1.bf16.msra.mxu0 0
        %2908 = vmatprep.subr.bf16.mxu0 0
        %2909 = vmatpush1.bf16.msra.mxu0 0
        %2910 = vmatprep.subr.bf16.mxu0 0
        %2911 = vmatpush1.bf16.msra.mxu0 0
        %2912 = vmatprep.subr.bf16.mxu0 0
        %2913 = vmatpush1.bf16.msra.mxu0 0
        %2914 = vmatprep.subr.bf16.mxu0 0
        %2915 = vmatpush1.bf16.msra.mxu0 0
        %2916 = vmatprep.subr.bf16.mxu0 0
        %2917 = vmatpush1.bf16.msra.mxu0 0
        %2918 = vmatprep.subr.bf16.mxu0 0
        %2919 = vmatpush1.bf16.msra.mxu0 0
        %2920 = vmatprep.mubr.bf16.mxu0 0
        %2921 = vmatmul.mubr.bf16.gmra.mrb[0].mxu0 %v2807
        %v2922 = vpop.f32.mrb[0].mxu0
        %v2923 = vadd.f32 0.0, %v2922
        %v2924 = vpop.f32.mrb[0].mxu0
        %v2925 = vpop.f32.mrb[0].mxu0
        %v2926 = vadd.f32 0.0, %v2925
        %v2927 = vpop.f32.mrb[0].mxu0
        %2928 = vmatprep.mubr.bf16.mxu0 0
        %2929 = vmatmul.mubr.bf16.gmra.mrb[0].mxu0 %v2808
        %v2930 = vpop.f32.mrb[0].mxu0
        %v2931 = vadd.f32 0.0, %v2930
        %v2932 = vpop.f32.mrb[0].mxu0
        %v2933 = vpop.f32.mrb[0].mxu0
        %v2934 = vadd.f32 0.0, %v2933
        %v2935 = vpop.f32.mrb[0].mxu0
        %2936 = vmatprep.mubr.bf16.mxu0 0
        %2937 = vmatmul.mubr.bf16.gmra.mrb[0].mxu0 %v2809
        %v2938 = vpop.f32.mrb[0].mxu0
        %v2939 = vadd.f32 0.0, %v2938
        %v2940 = vpop.f32.mrb[0].mxu0
        %v2941 = vpop.f32.mrb[0].mxu0
        %v2942 = vadd.f32 0.0, %v2941
        %v2943 = vpop.f32.mrb[0].mxu0
        %2944 = vmatprep.mubr.bf16.mxu0 0
        %2945 = vmatmul.mubr.bf16.gmra.mrb[0].mxu0 %v2810
        %v2946 = vpop.f32.mrb[0].mxu0
        %v2947 = vadd.f32 0.0, %v2946
        %v2948 = vpop.f32.mrb[0].mxu0
        %v2949 = vpop.f32.mrb[0].mxu0
        %v2950 = vadd.f32 0.0, %v2949
        %v2951 = vpop.f32.mrb[0].mxu0
        %2952 = vmatprep.mubr.bf16.mxu0 0
        %2953 = vmatmul.mubr.bf16.gmra.mrb[0].mxu0 %v2811
        %v2954 = vpop.f32.mrb[0].mxu0
        %v2955 = vadd.f32 0.0, %v2954
        %v2956 = vpop.f32.mrb[0].mxu0
        %v2957 = vpop.f32.mrb[0].mxu0
        %v2958 = vadd.f32 0.0, %v2957
        %v2959 = vpop.f32.mrb[0].mxu0
        %2960 = vmatprep.mubr.bf16.mxu0 0
        %2961 = vmatmul.mubr.bf16.gmra.mrb[0].mxu0 %v2812
        %v2962 = vpop.f32.mrb[0].mxu0
        %v2963 = vadd.f32 0.0, %v2962
        %v2964 = vpop.f32.mrb[0].mxu0
        %v2965 = vpop.f32.mrb[0].mxu0
        %v2966 = vadd.f32 0.0, %v2965
        %v2967 = vpop.f32.mrb[0].mxu0
        %2968 = vmatprep.mubr.bf16.mxu0 0
        %2969 = vmatmul.mubr.bf16.gmra.mrb[0].mxu0 %v2813
        %v2970 = vpop.f32.mrb[0].mxu0
        %v2971 = vadd.f32 0.0, %v2970
        %v2972 = vpop.f32.mrb[0].mxu0
        %v2973 = vpop.f32.mrb[0].mxu0
        %v2974 = vadd.f32 0.0, %v2973
        %v2975 = vpop.f32.mrb[0].mxu0
        %2976 = vmatprep.mubr.bf16.mxu0 0
        %2977 = vmatmul.mubr.bf16.gmra.mrb[0].mxu0 %v2814
        %v2978 = vpop.f32.mrb[0].mxu0
        %v2979 = vadd.f32 0.0, %v2978
        %v2980 = vpop.f32.mrb[0].mxu0
        %v2981 = vpop.f32.mrb[0].mxu0
        %v2982 = vadd.f32 0.0, %v2981
        %v2983 = vpop.f32.mrb[0].mxu0
        %2984 = vmatprep.mubr.bf16.mxu0 0
        %2985 = vmatmul.mubr.bf16.gmra.mrb[0].mxu0 %v2815
        %v2986 = vpop.f32.mrb[0].mxu0
        %v2987 = vadd.f32 0.0, %v2986
        %v2988 = vpop.f32.mrb[0].mxu0
        %v2989 = vpop.f32.mrb[0].mxu0
        %v2990 = vadd.f32 0.0, %v2989
        %v2991 = vpop.f32.mrb[0].mxu0
        %2992 = vmatprep.mubr.bf16.mxu0 0
        %2993 = vmatmul.mubr.bf16.gmra.mrb[0].mxu0 %v2816
        %v2994 = vpop.f32.mrb[0].mxu0
        %v2995 = vadd.f32 0.0, %v2994
        %v2996 = vpop.f32.mrb[0].mxu0
        %v2997 = vpop.f32.mrb[0].mxu0
        %v2998 = vadd.f32 0.0, %v2997
        %v2999 = vpop.f32.mrb[0].mxu0
        %3000 = vmatprep.mubr.bf16.mxu0 0
        %3001 = vmatmul.mubr.bf16.gmra.mrb[0].mxu0 %v2817
        %v3002 = vpop.f32.mrb[0].mxu0
        %v3003 = vadd.f32 0.0, %v3002
        %v3004 = vpop.f32.mrb[0].mxu0
        %v3005 = vpop.f32.mrb[0].mxu0
        %v3006 = vadd.f32 0.0, %v3005
        %v3007 = vpop.f32.mrb[0].mxu0
        %3008 = vmatprep.mubr.bf16.mxu0 0
        %3009 = vmatmul.mubr.bf16.gmra.mrb[0].mxu0 %v2818
        %v3010 = vpop.f32.mrb[0].mxu0
        %v3011 = vadd.f32 0.0, %v3010
        %v3012 = vpop.f32.mrb[0].mxu0
        %v3013 = vpop.f32.mrb[0].mxu0
        %v3014 = vadd.f32 0.0, %v3013
        %v3015 = vpop.f32.mrb[0].mxu0
        %3016 = vmatprep.mubr.bf16.mxu0 0
        %3017 = vmatmul.mubr.bf16.gmra.mrb[0].mxu0 %v2819
        %v3018 = vpop.f32.mrb[0].mxu0
        %v3019 = vadd.f32 0.0, %v3018
        %v3020 = vpop.f32.mrb[0].mxu0
        %v3021 = vpop.f32.mrb[0].mxu0
        %v3022 = vadd.f32 0.0, %v3021
        %v3023 = vpop.f32.mrb[0].mxu0
        %3024 = vmatprep.mubr.bf16.mxu0 0
        %3025 = vmatmul.mubr.bf16.gmra.mrb[0].mxu0 %v2820
        %v3026 = vpop.f32.mrb[0].mxu0
        %v3027 = vadd.f32 0.0, %v3026
        %v3028 = vpop.f32.mrb[0].mxu0
        %v3029 = vpop.f32.mrb[0].mxu0
        %v3030 = vadd.f32 0.0, %v3029
        %v3031 = vpop.f32.mrb[0].mxu0
        %3032 = vmatprep.mubr.bf16.mxu0 0
        %3033 = vmatmul.mubr.bf16.gmra.mrb[0].mxu0 %v2821
        %v3034 = vpop.f32.mrb[0].mxu0
        %v3035 = vadd.f32 0.0, %v3034
        %v3036 = vpop.f32.mrb[0].mxu0
        %v3037 = vpop.f32.mrb[0].mxu0
        %v3038 = vadd.f32 0.0, %v3037
        %v3039 = vpop.f32.mrb[0].mxu0
        %3040 = vmatprep.mubr.bf16.mxu0 0
        %3041 = vmatmul.mubr.bf16.gmra.mrb[0].mxu0 %v2822
        %v3042 = vpop.f32.mrb[0].mxu0
        %v3043 = vadd.f32 0.0, %v3042
        %v3044 = vpop.f32.mrb[0].mxu0
        %v3045 = vpop.f32.mrb[0].mxu0
        %v3046 = vadd.f32 0.0, %v3045
        %v3047 = vpop.f32.mrb[0].mxu0
        %3048 = vdwg.mxu0
        %v3049 = vadd.f32 %v2775, %v2923
        %v3050 = vadd.f32 %v2776, %v2926
        %v3051 = vadd.f32 %v2777, %v2931
        %v3052 = vadd.f32 %v2778, %v2934
        %v3053 = vadd.f32 %v2779, %v2939
        %v3054 = vadd.f32 %v2780, %v2942
        %v3055 = vadd.f32 %v2781, %v2947
        %v3056 = vadd.f32 %v2782, %v2950
        %v3057 = vadd.f32 %v2783, %v2955
        %v3058 = vadd.f32 %v2784, %v2958
        %v3059 = vadd.f32 %v2785, %v2963
        %v3060 = vadd.f32 %v2786, %v2966
        %v3061 = vadd.f32 %v2787, %v2971
        %v3062 = vadd.f32 %v2788, %v2974
        %v3063 = vadd.f32 %v2789, %v2979
        %v3064 = vadd.f32 %v2790, %v2982
        %v3065 = vadd.f32 %v2791, %v2987
        %v3066 = vadd.f32 %v2792, %v2990
        %v3067 = vadd.f32 %v2793, %v2995
        %v3068 = vadd.f32 %v2794, %v2998
        %v3069 = vadd.f32 %v2795, %v3003
        %v3070 = vadd.f32 %v2796, %v3006
        %v3071 = vadd.f32 %v2797, %v3011
        %v3072 = vadd.f32 %v2798, %v3014
        %v3073 = vadd.f32 %v2799, %v3019
        %v3074 = vadd.f32 %v2800, %v3022
        %v3075 = vadd.f32 %v2801, %v3027
        %v3076 = vadd.f32 %v2802, %v3030
        %v3077 = vadd.f32 %v2803, %v3035
        %v3078 = vadd.f32 %v2804, %v3038
        %v3079 = vadd.f32 %v2805, %v3043
        %v3080 = vadd.f32 %v2806, %v3046
        %3081 = vst [vmem:[#allocation3] sm:$0xff] %v3049
        %3082 = vst [vmem:[#allocation3 + $0x8] sm:$0xff] %v3050
        %3083 = vst [vmem:[#allocation3 + $0x10] sm:$0xff] %v3051
        %3084 = vst [vmem:[#allocation3 + $0x18] sm:$0xff] %v3052
        %3085 = vst [vmem:[#allocation3 + $0x20] sm:$0xff] %v3053
        %3086 = vst [vmem:[#allocation3 + $0x28] sm:$0xff] %v3054
        %3087 = vst [vmem:[#allocation3 + $0x30] sm:$0xff] %v3055
        %3088 = vst [vmem:[#allocation3 + $0x38] sm:$0xff] %v3056
        %3089 = vst [vmem:[#allocation3 + $0x40] sm:$0xff] %v3057
        %3090 = vst [vmem:[#allocation3 + $0x48] sm:$0xff] %v3058
        %3091 = vst [vmem:[#allocation3 + $0x50] sm:$0xff] %v3059
        %3092 = vst [vmem:[#allocation3 + $0x58] sm:$0xff] %v3060
        %3093 = vst [vmem:[#allocation3 + $0x60] sm:$0xff] %v3061
        %3094 = vst [vmem:[#allocation3 + $0x68] sm:$0xff] %v3062
        %3095 = vst [vmem:[#allocation3 + $0x70] sm:$0xff] %v3063
        %3096 = vst [vmem:[#allocation3 + $0x78] sm:$0xff] %v3064
        %3097 = vst [vmem:[#allocation3 + $0x80] sm:$0xff] %v3065
        %3098 = vst [vmem:[#allocation3 + $0x88] sm:$0xff] %v3066
        %3099 = vst [vmem:[#allocation3 + $0x90] sm:$0xff] %v3067
        %3100 = vst [vmem:[#allocation3 + $0x98] sm:$0xff] %v3068
        %3101 = vst [vmem:[#allocation3 + $0xa0] sm:$0xff] %v3069
        %3102 = vst [vmem:[#allocation3 + $0xa8] sm:$0xff] %v3070
        %3103 = vst [vmem:[#allocation3 + $0xb0] sm:$0xff] %v3071
        %3104 = vst [vmem:[#allocation3 + $0xb8] sm:$0xff] %v3072
        %3105 = vst [vmem:[#allocation3 + $0xc0] sm:$0xff] %v3073
        %3106 = vst [vmem:[#allocation3 + $0xc8] sm:$0xff] %v3074
        %3107 = vst [vmem:[#allocation3 + $0xd0] sm:$0xff] %v3075
        %3108 = vst [vmem:[#allocation3 + $0xd8] sm:$0xff] %v3076
        %3109 = vst [vmem:[#allocation3 + $0xe0] sm:$0xff] %v3077
        %3110 = vst [vmem:[#allocation3 + $0xe8] sm:$0xff] %v3078
        %3111 = vst [vmem:[#allocation3 + $0xf0] sm:$0xff] %v3079
        %3112 = vst [vmem:[#allocation3 + $0xf8] sm:$0xff] %v3080
        %v3113 = vld [vmem:[#allocation2 + $0x18] sm:$0xff]
        %v3114 = vld [vmem:[#allocation2 + $0x20] sm:$0xff]
        %v3115 = vld [vmem:[#allocation2 + $0x28] sm:$0xff]
        %v3116 = vld [vmem:[#allocation2 + $0x30] sm:$0xff]
        %v3117 = vld [vmem:[#allocation2 + $0x38] sm:$0xff]
        %v3118 = vld [vmem:[#allocation2 + $0x40] sm:$0xff]
        %v3119 = vld [vmem:[#allocation2 + $0x48] sm:$0xff]
        %v3120 = vld [vmem:[#allocation2 + $0x50] sm:$0xff]
        %v3121 = vld [vmem:[#allocation2 + $0x58] sm:$0xff]
        %v3122 = vld [vmem:[#allocation2 + $0x60] sm:$0xff]
        %v3123 = vld [vmem:[#allocation2 + $0x68] sm:$0xff]
        %v3124 = vld [vmem:[#allocation2 + $0x70] sm:$0xff]
        %v3125 = vld [vmem:[#allocation2 + $0x78] sm:$0xff]
        %v3126 = vld [vmem:[#allocation2 + $0x80] sm:$0xff]
        %v3127 = vld [vmem:[#allocation2 + $0x88] sm:$0xff]
        %v3128 = vld [vmem:[#allocation2 + $0x90] sm:$0xff]
        %v3129 = vld [vmem:[#allocation2 + $0x98] sm:$0xff]
        %v3130 = vld [vmem:[#allocation2 + $0xa0] sm:$0xff]
        %v3131 = vld [vmem:[#allocation2 + $0xa8] sm:$0xff]
        %v3132 = vld [vmem:[#allocation2 + $0xb0] sm:$0xff]
        %v3133 = vld [vmem:[#allocation2 + $0xb8] sm:$0xff]
        %v3134 = vld [vmem:[#allocation2 + $0xc0] sm:$0xff]
        %v3135 = vld [vmem:[#allocation2 + $0xc8] sm:$0xff]
        %v3136 = vld [vmem:[#allocation2 + $0xd0] sm:$0xff]
        %v3137 = vld [vmem:[#allocation2 + $0xd8] sm:$0xff]
        %v3138 = vld [vmem:[#allocation2 + $0xe0] sm:$0xff]
        %v3139 = vld [vmem:[#allocation2 + $0xe8] sm:$0xff]
        %v3140 = vld [vmem:[#allocation2 + $0xf0] sm:$0xff]
        %v3141 = vld [vmem:[#allocation2 + $0xf8] sm:$0xff]
        %v3142 = vld [vmem:[#allocation2 + $0x100] sm:$0xff]
        %v3143 = vld [vmem:[#allocation2 + $0x108] sm:$0xff]
        %v3144 = vld [vmem:[#allocation2 + $0x110] sm:$0xff]
        %v3145 = vld [vmem:[#allocation3] sm:$0xff]
        %v3146 = vld [vmem:[#allocation3 + $0x8] sm:$0xff]
        %v3147 = vld [vmem:[#allocation3 + $0x10] sm:$0xff]
        %v3148 = vld [vmem:[#allocation3 + $0x18] sm:$0xff]
        %v3149 = vld [vmem:[#allocation3 + $0x20] sm:$0xff]
        %v3150 = vld [vmem:[#allocation3 + $0x28] sm:$0xff]
        %v3151 = vld [vmem:[#allocation3 + $0x30] sm:$0xff]
        %v3152 = vld [vmem:[#allocation3 + $0x38] sm:$0xff]
        %v3153 = vld [vmem:[#allocation3 + $0x40] sm:$0xff]
        %v3154 = vld [vmem:[#allocation3 + $0x48] sm:$0xff]
        %v3155 = vld [vmem:[#allocation3 + $0x50] sm:$0xff]
        %v3156 = vld [vmem:[#allocation3 + $0x58] sm:$0xff]
        %v3157 = vld [vmem:[#allocation3 + $0x60] sm:$0xff]
        %v3158 = vld [vmem:[#allocation3 + $0x68] sm:$0xff]
        %v3159 = vld [vmem:[#allocation3 + $0x70] sm:$0xff]
        %v3160 = vld [vmem:[#allocation3 + $0x78] sm:$0xff]
        %v3161 = vld [vmem:[#allocation3 + $0x80] sm:$0xff]
        %v3162 = vld [vmem:[#allocation3 + $0x88] sm:$0xff]
        %v3163 = vld [vmem:[#allocation3 + $0x90] sm:$0xff]
        %v3164 = vld [vmem:[#allocation3 + $0x98] sm:$0xff]
        %v3165 = vld [vmem:[#allocation3 + $0xa0] sm:$0xff]
        %v3166 = vld [vmem:[#allocation3 + $0xa8] sm:$0xff]
        %v3167 = vld [vmem:[#allocation3 + $0xb0] sm:$0xff]
        %v3168 = vld [vmem:[#allocation3 + $0xb8] sm:$0xff]
        %v3169 = vld [vmem:[#allocation3 + $0xc0] sm:$0xff]
        %v3170 = vld [vmem:[#allocation3 + $0xc8] sm:$0xff]
        %v3171 = vld [vmem:[#allocation3 + $0xd0] sm:$0xff]
        %v3172 = vld [vmem:[#allocation3 + $0xd8] sm:$0xff]
        %v3173 = vld [vmem:[#allocation3 + $0xe0] sm:$0xff]
        %v3174 = vld [vmem:[#allocation3 + $0xe8] sm:$0xff]
        %v3175 = vld [vmem:[#allocation3 + $0xf0] sm:$0xff]
        %v3176 = vld [vmem:[#allocation3 + $0xf8] sm:$0xff]
        %v3177 = vpack.c.bf16 %v3114, %v3113
        %v3178 = vpack.c.bf16 %v3116, %v3115
        %v3179 = vpack.c.bf16 %v3118, %v3117
        %v3180 = vpack.c.bf16 %v3120, %v3119
        %v3181 = vpack.c.bf16 %v3122, %v3121
        %v3182 = vpack.c.bf16 %v3124, %v3123
        %v3183 = vpack.c.bf16 %v3126, %v3125
        %v3184 = vpack.c.bf16 %v3128, %v3127
        %v3185 = vpack.c.bf16 %v3130, %v3129
        %v3186 = vpack.c.bf16 %v3132, %v3131
        %v3187 = vpack.c.bf16 %v3134, %v3133
        %v3188 = vpack.c.bf16 %v3136, %v3135
        %v3189 = vpack.c.bf16 %v3138, %v3137
        %v3190 = vpack.c.bf16 %v3140, %v3139
        %v3191 = vpack.c.bf16 %v3142, %v3141
        %v3192 = vpack.c.bf16 %v3144, %v3143
        %s3193 = scalar_lea.vmem [#allocation12], 256
        %v3194 = vld [vmem:[%s3193] sm:$0xf]
        %v3195 = vld [vmem:[%s3193 + $0x4] sm:$0xf]
        %v3196 = vld [vmem:[%s3193 + $0x8] sm:$0xf]
        %v3197 = vld [vmem:[%s3193 + $0xc] sm:$0xf]
        %v3198 = vld [vmem:[%s3193 + $0x10] sm:$0xf]
        %v3199 = vld [vmem:[%s3193 + $0x14] sm:$0xf]
        %v3200 = vld [vmem:[%s3193 + $0x18] sm:$0xf]
        %v3201 = vld [vmem:[%s3193 + $0x1c] sm:$0xf]
        %v3202 = vld [vmem:[%s3193 + $0x20] sm:$0xf]
        %v3203 = vld [vmem:[%s3193 + $0x24] sm:$0xf]
        %v3204 = vld [vmem:[%s3193 + $0x28] sm:$0xf]
        %v3205 = vld [vmem:[%s3193 + $0x2c] sm:$0xf]
        %v3206 = vld [vmem:[%s3193 + $0x30] sm:$0xf]
        %v3207 = vld [vmem:[%s3193 + $0x34] sm:$0xf]
        %v3208 = vld [vmem:[%s3193 + $0x38] sm:$0xf]
        %v3209 = vld [vmem:[%s3193 + $0x3c] sm:$0xf]
        %v3226 = vunpack.c.l.b16 %v3194
        %v3227 = vunpack.c.l.b16 %v3195
        %v3228 = vunpack.c.l.b16 %v3196
        %v3229 = vunpack.c.l.b16 %v3197
        %v3230 = vunpack.c.l.b16 %v3198
        %v3231 = vunpack.c.l.b16 %v3199
        %v3232 = vunpack.c.l.b16 %v3200
        %v3233 = vunpack.c.l.b16 %v3201
        %v3234 = vunpack.c.l.b16 %v3202
        %v3235 = vunpack.c.l.b16 %v3203
        %v3236 = vunpack.c.l.b16 %v3204
        %v3237 = vunpack.c.l.b16 %v3205
        %v3238 = vunpack.c.l.b16 %v3206
        %v3239 = vunpack.c.l.b16 %v3207
        %v3240 = vunpack.c.l.b16 %v3208
        %v3241 = vunpack.c.l.b16 %v3209
        %v3242 = vpack.c.b16 %v3227, %v3226
        %v3243 = vpack.c.b16 %v3229, %v3228
        %v3244 = vpack.c.b16 %v3231, %v3230
        %v3245 = vpack.c.b16 %v3233, %v3232
        %v3246 = vpack.c.b16 %v3235, %v3234
        %v3247 = vpack.c.b16 %v3237, %v3236
        %v3248 = vpack.c.b16 %v3239, %v3238
        %v3249 = vpack.c.b16 %v3241, %v3240
        %3258 = vmatprep.subr.bf16.mxu0 0
        %3259 = vmatpush1.bf16.msra.mxu0 %v3242
        %3260 = vmatprep.subr.bf16.mxu0 0
        %3261 = vmatpush1.bf16.msra.mxu0 %v3243
        %3262 = vmatprep.subr.bf16.mxu0 0
        %3263 = vmatpush1.bf16.msra.mxu0 %v3244
        %3264 = vmatprep.subr.bf16.mxu0 0
        %3265 = vmatpush1.bf16.msra.mxu0 %v3245
        %3266 = vmatprep.subr.bf16.mxu0 0
        %3267 = vmatpush1.bf16.msra.mxu0 %v3246
        %3268 = vmatprep.subr.bf16.mxu0 0
        %3269 = vmatpush1.bf16.msra.mxu0 %v3247
        %3270 = vmatprep.subr.bf16.mxu0 0
        %3271 = vmatpush1.bf16.msra.mxu0 %v3248
        %3272 = vmatprep.subr.bf16.mxu0 0
        %3273 = vmatpush1.bf16.msra.mxu0 %v3249
        %3274 = vmatprep.subr.bf16.mxu0 0
        %3275 = vmatpush1.bf16.msra.mxu0 0
        %3276 = vmatprep.subr.bf16.mxu0 0
        %3277 = vmatpush1.bf16.msra.mxu0 0
        %3278 = vmatprep.subr.bf16.mxu0 0
        %3279 = vmatpush1.bf16.msra.mxu0 0
        %3280 = vmatprep.subr.bf16.mxu0 0
        %3281 = vmatpush1.bf16.msra.mxu0 0
        %3282 = vmatprep.subr.bf16.mxu0 0
        %3283 = vmatpush1.bf16.msra.mxu0 0
        %3284 = vmatprep.subr.bf16.mxu0 0
        %3285 = vmatpush1.bf16.msra.mxu0 0
        %3286 = vmatprep.subr.bf16.mxu0 0
        %3287 = vmatpush1.bf16.msra.mxu0 0
        %3288 = vmatprep.subr.bf16.mxu0 0
        %3289 = vmatpush1.bf16.msra.mxu0 0
        %3290 = vmatprep.mubr.bf16.mxu0 0
        %3291 = vmatmul.mubr.bf16.gmra.mrb[0].mxu0 %v3177
        %v3292 = vpop.f32.mrb[0].mxu0
        %v3293 = vadd.f32 0.0, %v3292
        %v3294 = vpop.f32.mrb[0].mxu0
        %v3295 = vpop.f32.mrb[0].mxu0
        %v3296 = vadd.f32 0.0, %v3295
        %v3297 = vpop.f32.mrb[0].mxu0
        %3298 = vmatprep.mubr.bf16.mxu0 0
        %3299 = vmatmul.mubr.bf16.gmra.mrb[0].mxu0 %v3178
        %v3300 = vpop.f32.mrb[0].mxu0
        %v3301 = vadd.f32 0.0, %v3300
        %v3302 = vpop.f32.mrb[0].mxu0
        %v3303 = vpop.f32.mrb[0].mxu0
        %v3304 = vadd.f32 0.0, %v3303
        %v3305 = vpop.f32.mrb[0].mxu0
        %3306 = vmatprep.mubr.bf16.mxu0 0
        %3307 = vmatmul.mubr.bf16.gmra.mrb[0].mxu0 %v3179
        %v3308 = vpop.f32.mrb[0].mxu0
        %v3309 = vadd.f32 0.0, %v3308
        %v3310 = vpop.f32.mrb[0].mxu0
        %v3311 = vpop.f32.mrb[0].mxu0
        %v3312 = vadd.f32 0.0, %v3311
        %v3313 = vpop.f32.mrb[0].mxu0
        %3314 = vmatprep.mubr.bf16.mxu0 0
        %3315 = vmatmul.mubr.bf16.gmra.mrb[0].mxu0 %v3180
        %v3316 = vpop.f32.mrb[0].mxu0
        %v3317 = vadd.f32 0.0, %v3316
        %v3318 = vpop.f32.mrb[0].mxu0
        %v3319 = vpop.f32.mrb[0].mxu0
        %v3320 = vadd.f32 0.0, %v3319
        %v3321 = vpop.f32.mrb[0].mxu0
        %3322 = vmatprep.mubr.bf16.mxu0 0
        %3323 = vmatmul.mubr.bf16.gmra.mrb[0].mxu0 %v3181
        %v3324 = vpop.f32.mrb[0].mxu0
        %v3325 = vadd.f32 0.0, %v3324
        %v3326 = vpop.f32.mrb[0].mxu0
        %v3327 = vpop.f32.mrb[0].mxu0
        %v3328 = vadd.f32 0.0, %v3327
        %v3329 = vpop.f32.mrb[0].mxu0
        %3330 = vmatprep.mubr.bf16.mxu0 0
        %3331 = vmatmul.mubr.bf16.gmra.mrb[0].mxu0 %v3182
        %v3332 = vpop.f32.mrb[0].mxu0
        %v3333 = vadd.f32 0.0, %v3332
        %v3334 = vpop.f32.mrb[0].mxu0
        %v3335 = vpop.f32.mrb[0].mxu0
        %v3336 = vadd.f32 0.0, %v3335
        %v3337 = vpop.f32.mrb[0].mxu0
        %3338 = vmatprep.mubr.bf16.mxu0 0
        %3339 = vmatmul.mubr.bf16.gmra.mrb[0].mxu0 %v3183
        %v3340 = vpop.f32.mrb[0].mxu0
        %v3341 = vadd.f32 0.0, %v3340
        %v3342 = vpop.f32.mrb[0].mxu0
        %v3343 = vpop.f32.mrb[0].mxu0
        %v3344 = vadd.f32 0.0, %v3343
        %v3345 = vpop.f32.mrb[0].mxu0
        %3346 = vmatprep.mubr.bf16.mxu0 0
        %3347 = vmatmul.mubr.bf16.gmra.mrb[0].mxu0 %v3184
        %v3348 = vpop.f32.mrb[0].mxu0
        %v3349 = vadd.f32 0.0, %v3348
        %v3350 = vpop.f32.mrb[0].mxu0
        %v3351 = vpop.f32.mrb[0].mxu0
        %v3352 = vadd.f32 0.0, %v3351
        %v3353 = vpop.f32.mrb[0].mxu0
        %3354 = vmatprep.mubr.bf16.mxu0 0
        %3355 = vmatmul.mubr.bf16.gmra.mrb[0].mxu0 %v3185
        %v3356 = vpop.f32.mrb[0].mxu0
        %v3357 = vadd.f32 0.0, %v3356
        %v3358 = vpop.f32.mrb[0].mxu0
        %v3359 = vpop.f32.mrb[0].mxu0
        %v3360 = vadd.f32 0.0, %v3359
        %v3361 = vpop.f32.mrb[0].mxu0
        %3362 = vmatprep.mubr.bf16.mxu0 0
        %3363 = vmatmul.mubr.bf16.gmra.mrb[0].mxu0 %v3186
        %v3364 = vpop.f32.mrb[0].mxu0
        %v3365 = vadd.f32 0.0, %v3364
        %v3366 = vpop.f32.mrb[0].mxu0
        %v3367 = vpop.f32.mrb[0].mxu0
        %v3368 = vadd.f32 0.0, %v3367
        %v3369 = vpop.f32.mrb[0].mxu0
        %3370 = vmatprep.mubr.bf16.mxu0 0
        %3371 = vmatmul.mubr.bf16.gmra.mrb[0].mxu0 %v3187
        %v3372 = vpop.f32.mrb[0].mxu0
        %v3373 = vadd.f32 0.0, %v3372
        %v3374 = vpop.f32.mrb[0].mxu0
        %v3375 = vpop.f32.mrb[0].mxu0
        %v3376 = vadd.f32 0.0, %v3375
        %v3377 = vpop.f32.mrb[0].mxu0
        %3378 = vmatprep.mubr.bf16.mxu0 0
        %3379 = vmatmul.mubr.bf16.gmra.mrb[0].mxu0 %v3188
        %v3380 = vpop.f32.mrb[0].mxu0
        %v3381 = vadd.f32 0.0, %v3380
        %v3382 = vpop.f32.mrb[0].mxu0
        %v3383 = vpop.f32.mrb[0].mxu0
        %v3384 = vadd.f32 0.0, %v3383
        %v3385 = vpop.f32.mrb[0].mxu0
        %3386 = vmatprep.mubr.bf16.mxu0 0
        %3387 = vmatmul.mubr.bf16.gmra.mrb[0].mxu0 %v3189
        %v3388 = vpop.f32.mrb[0].mxu0
        %v3389 = vadd.f32 0.0, %v3388
        %v3390 = vpop.f32.mrb[0].mxu0
        %v3391 = vpop.f32.mrb[0].mxu0
        %v3392 = vadd.f32 0.0, %v3391
        %v3393 = vpop.f32.mrb[0].mxu0
        %3394 = vmatprep.mubr.bf16.mxu0 0
        %3395 = vmatmul.mubr.bf16.gmra.mrb[0].mxu0 %v3190
        %v3396 = vpop.f32.mrb[0].mxu0
        %v3397 = vadd.f32 0.0, %v3396
        %v3398 = vpop.f32.mrb[0].mxu0
        %v3399 = vpop.f32.mrb[0].mxu0
        %v3400 = vadd.f32 0.0, %v3399
        %v3401 = vpop.f32.mrb[0].mxu0
        %3402 = vmatprep.mubr.bf16.mxu0 0
        %3403 = vmatmul.mubr.bf16.gmra.mrb[0].mxu0 %v3191
        %v3404 = vpop.f32.mrb[0].mxu0
        %v3405 = vadd.f32 0.0, %v3404
        %v3406 = vpop.f32.mrb[0].mxu0
        %v3407 = vpop.f32.mrb[0].mxu0
        %v3408 = vadd.f32 0.0, %v3407
        %v3409 = vpop.f32.mrb[0].mxu0
        %3410 = vmatprep.mubr.bf16.mxu0 0
        %3411 = vmatmul.mubr.bf16.gmra.mrb[0].mxu0 %v3192
        %v3412 = vpop.f32.mrb[0].mxu0
        %v3413 = vadd.f32 0.0, %v3412
        %v3414 = vpop.f32.mrb[0].mxu0
        %v3415 = vpop.f32.mrb[0].mxu0
        %v3416 = vadd.f32 0.0, %v3415
        %v3417 = vpop.f32.mrb[0].mxu0
        %3418 = vdwg.mxu0
        %v3419 = vadd.f32 %v3145, %v3293
        %v3420 = vadd.f32 %v3146, %v3296
        %v3421 = vadd.f32 %v3147, %v3301
        %v3422 = vadd.f32 %v3148, %v3304
        %v3423 = vadd.f32 %v3149, %v3309
        %v3424 = vadd.f32 %v3150, %v3312
        %v3425 = vadd.f32 %v3151, %v3317
        %v3426 = vadd.f32 %v3152, %v3320
        %v3427 = vadd.f32 %v3153, %v3325
        %v3428 = vadd.f32 %v3154, %v3328
        %v3429 = vadd.f32 %v3155, %v3333
        %v3430 = vadd.f32 %v3156, %v3336
        %v3431 = vadd.f32 %v3157, %v3341
        %v3432 = vadd.f32 %v3158, %v3344
        %v3433 = vadd.f32 %v3159, %v3349
        %v3434 = vadd.f32 %v3160, %v3352
        %v3435 = vadd.f32 %v3161, %v3357
        %v3436 = vadd.f32 %v3162, %v3360
        %v3437 = vadd.f32 %v3163, %v3365
        %v3438 = vadd.f32 %v3164, %v3368
        %v3439 = vadd.f32 %v3165, %v3373
        %v3440 = vadd.f32 %v3166, %v3376
        %v3441 = vadd.f32 %v3167, %v3381
        %v3442 = vadd.f32 %v3168, %v3384
        %v3443 = vadd.f32 %v3169, %v3389
        %v3444 = vadd.f32 %v3170, %v3392
        %v3445 = vadd.f32 %v3171, %v3397
        %v3446 = vadd.f32 %v3172, %v3400
        %v3447 = vadd.f32 %v3173, %v3405
        %v3448 = vadd.f32 %v3174, %v3408
        %v3449 = vadd.f32 %v3175, %v3413
        %v3450 = vadd.f32 %v3176, %v3416
        %3451 = vst [vmem:[#allocation3] sm:$0xff] %v3419
        %3452 = vst [vmem:[#allocation3 + $0x8] sm:$0xff] %v3420
        %3453 = vst [vmem:[#allocation3 + $0x10] sm:$0xff] %v3421
        %3454 = vst [vmem:[#allocation3 + $0x18] sm:$0xff] %v3422
        %3455 = vst [vmem:[#allocation3 + $0x20] sm:$0xff] %v3423
        %3456 = vst [vmem:[#allocation3 + $0x28] sm:$0xff] %v3424
        %3457 = vst [vmem:[#allocation3 + $0x30] sm:$0xff] %v3425
        %3458 = vst [vmem:[#allocation3 + $0x38] sm:$0xff] %v3426
        %3459 = vst [vmem:[#allocation3 + $0x40] sm:$0xff] %v3427
        %3460 = vst [vmem:[#allocation3 + $0x48] sm:$0xff] %v3428
        %3461 = vst [vmem:[#allocation3 + $0x50] sm:$0xff] %v3429
        %3462 = vst [vmem:[#allocation3 + $0x58] sm:$0xff] %v3430
        %3463 = vst [vmem:[#allocation3 + $0x60] sm:$0xff] %v3431
        %3464 = vst [vmem:[#allocation3 + $0x68] sm:$0xff] %v3432
        %3465 = vst [vmem:[#allocation3 + $0x70] sm:$0xff] %v3433
        %3466 = vst [vmem:[#allocation3 + $0x78] sm:$0xff] %v3434
        %3467 = vst [vmem:[#allocation3 + $0x80] sm:$0xff] %v3435
        %3468 = vst [vmem:[#allocation3 + $0x88] sm:$0xff] %v3436
        %3469 = vst [vmem:[#allocation3 + $0x90] sm:$0xff] %v3437
        %3470 = vst [vmem:[#allocation3 + $0x98] sm:$0xff] %v3438
        %3471 = vst [vmem:[#allocation3 + $0xa0] sm:$0xff] %v3439
        %3472 = vst [vmem:[#allocation3 + $0xa8] sm:$0xff] %v3440
        %3473 = vst [vmem:[#allocation3 + $0xb0] sm:$0xff] %v3441
        %3474 = vst [vmem:[#allocation3 + $0xb8] sm:$0xff] %v3442
        %3475 = vst [vmem:[#allocation3 + $0xc0] sm:$0xff] %v3443
        %3476 = vst [vmem:[#allocation3 + $0xc8] sm:$0xff] %v3444
        %3477 = vst [vmem:[#allocation3 + $0xd0] sm:$0xff] %v3445
        %3478 = vst [vmem:[#allocation3 + $0xd8] sm:$0xff] %v3446
        %3479 = vst [vmem:[#allocation3 + $0xe0] sm:$0xff] %v3447
        %3480 = vst [vmem:[#allocation3 + $0xe8] sm:$0xff] %v3448
        %3481 = vst [vmem:[#allocation3 + $0xf0] sm:$0xff] %v3449
        %3482 = vst [vmem:[#allocation3 + $0xf8] sm:$0xff] %v3450
        %v3483 = vld [vmem:[#allocation2 + $0x19] sm:$0xff]
        %v3484 = vld [vmem:[#allocation2 + $0x21] sm:$0xff]
        %v3485 = vld [vmem:[#allocation2 + $0x29] sm:$0xff]
        %v3486 = vld [vmem:[#allocation2 + $0x31] sm:$0xff]
        %v3487 = vld [vmem:[#allocation2 + $0x39] sm:$0xff]
        %v3488 = vld [vmem:[#allocation2 + $0x41] sm:$0xff]
        %v3489 = vld [vmem:[#allocation2 + $0x49] sm:$0xff]
        %v3490 = vld [vmem:[#allocation2 + $0x51] sm:$0xff]
        %v3491 = vld [vmem:[#allocation2 + $0x59] sm:$0xff]
        %v3492 = vld [vmem:[#allocation2 + $0x61] sm:$0xff]
        %v3493 = vld [vmem:[#allocation2 + $0x69] sm:$0xff]
        %v3494 = vld [vmem:[#allocation2 + $0x71] sm:$0xff]
        %v3495 = vld [vmem:[#allocation2 + $0x79] sm:$0xff]
        %v3496 = vld [vmem:[#allocation2 + $0x81] sm:$0xff]
        %v3497 = vld [vmem:[#allocation2 + $0x89] sm:$0xff]
        %v3498 = vld [vmem:[#allocation2 + $0x91] sm:$0xff]
        %v3499 = vld [vmem:[#allocation2 + $0x99] sm:$0xff]
        %v3500 = vld [vmem:[#allocation2 + $0xa1] sm:$0xff]
        %v3501 = vld [vmem:[#allocation2 + $0xa9] sm:$0xff]
        %v3502 = vld [vmem:[#allocation2 + $0xb1] sm:$0xff]
        %v3503 = vld [vmem:[#allocation2 + $0xb9] sm:$0xff]
        %v3504 = vld [vmem:[#allocation2 + $0xc1] sm:$0xff]
        %v3505 = vld [vmem:[#allocation2 + $0xc9] sm:$0xff]
        %v3506 = vld [vmem:[#allocation2 + $0xd1] sm:$0xff]
        %v3507 = vld [vmem:[#allocation2 + $0xd9] sm:$0xff]
        %v3508 = vld [vmem:[#allocation2 + $0xe1] sm:$0xff]
        %v3509 = vld [vmem:[#allocation2 + $0xe9] sm:$0xff]
        %v3510 = vld [vmem:[#allocation2 + $0xf1] sm:$0xff]
        %v3511 = vld [vmem:[#allocation2 + $0xf9] sm:$0xff]
        %v3512 = vld [vmem:[#allocation2 + $0x101] sm:$0xff]
        %v3513 = vld [vmem:[#allocation2 + $0x109] sm:$0xff]
        %v3514 = vld [vmem:[#allocation2 + $0x111] sm:$0xff]
        %v3515 = vmul.f32 %v3483, %v2184
        %v3516 = vmul.f32 %v3484, %v2189
        %v3517 = vmul.f32 %v3485, %v2194
        %v3518 = vmul.f32 %v3486, %v2199
        %v3519 = vmul.f32 %v3487, %v2204
        %v3520 = vmul.f32 %v3488, %v2209
        %v3521 = vmul.f32 %v3489, %v2214
        %v3522 = vmul.f32 %v3490, %v2219
        %v3523 = vmul.f32 %v3491, %v2224
        %v3524 = vmul.f32 %v3492, %v2229
        %v3525 = vmul.f32 %v3493, %v2234
        %v3526 = vmul.f32 %v3494, %v2239
        %v3527 = vmul.f32 %v3495, %v2244
        %v3528 = vmul.f32 %v3496, %v2249
        %v3529 = vmul.f32 %v3497, %v2254
        %v3530 = vmul.f32 %v3498, %v2259
        %v3531 = vmul.f32 %v3499, %v2264
        %v3532 = vmul.f32 %v3500, %v2269
        %v3533 = vmul.f32 %v3501, %v2274
        %v3534 = vmul.f32 %v3502, %v2279
        %v3535 = vmul.f32 %v3503, %v2284
        %v3536 = vmul.f32 %v3504, %v2289
        %v3537 = vmul.f32 %v3505, %v2294
        %v3538 = vmul.f32 %v3506, %v2299
        %v3539 = vmul.f32 %v3507, %v2304
        %v3540 = vmul.f32 %v3508, %v2309
        %v3541 = vmul.f32 %v3509, %v2314
        %v3542 = vmul.f32 %v3510, %v2319
        %v3543 = vmul.f32 %v3511, %v2324
        %v3544 = vmul.f32 %v3512, %v2329
        %v3545 = vmul.f32 %v3513, %v2334
        %v3546 = vmul.f32 %v3514, %v2339
        %v3547 = vld [vmem:[#allocation3] sm:$0xff]
        %v3548 = vld [vmem:[#allocation3 + $0x8] sm:$0xff]
        %v3549 = vld [vmem:[#allocation3 + $0x10] sm:$0xff]
        %v3550 = vld [vmem:[#allocation3 + $0x18] sm:$0xff]
        %v3551 = vld [vmem:[#allocation3 + $0x20] sm:$0xff]
        %v3552 = vld [vmem:[#allocation3 + $0x28] sm:$0xff]
        %v3553 = vld [vmem:[#allocation3 + $0x30] sm:$0xff]
        %v3554 = vld [vmem:[#allocation3 + $0x38] sm:$0xff]
        %v3555 = vld [vmem:[#allocation3 + $0x40] sm:$0xff]
        %v3556 = vld [vmem:[#allocation3 + $0x48] sm:$0xff]
        %v3557 = vld [vmem:[#allocation3 + $0x50] sm:$0xff]
        %v3558 = vld [vmem:[#allocation3 + $0x58] sm:$0xff]
        %v3559 = vld [vmem:[#allocation3 + $0x60] sm:$0xff]
        %v3560 = vld [vmem:[#allocation3 + $0x68] sm:$0xff]
        %v3561 = vld [vmem:[#allocation3 + $0x70] sm:$0xff]
        %v3562 = vld [vmem:[#allocation3 + $0x78] sm:$0xff]
        %v3563 = vld [vmem:[#allocation3 + $0x80] sm:$0xff]
        %v3564 = vld [vmem:[#allocation3 + $0x88] sm:$0xff]
        %v3565 = vld [vmem:[#allocation3 + $0x90] sm:$0xff]
        %v3566 = vld [vmem:[#allocation3 + $0x98] sm:$0xff]
        %v3567 = vld [vmem:[#allocation3 + $0xa0] sm:$0xff]
        %v3568 = vld [vmem:[#allocation3 + $0xa8] sm:$0xff]
        %v3569 = vld [vmem:[#allocation3 + $0xb0] sm:$0xff]
        %v3570 = vld [vmem:[#allocation3 + $0xb8] sm:$0xff]
        %v3571 = vld [vmem:[#allocation3 + $0xc0] sm:$0xff]
        %v3572 = vld [vmem:[#allocation3 + $0xc8] sm:$0xff]
        %v3573 = vld [vmem:[#allocation3 + $0xd0] sm:$0xff]
        %v3574 = vld [vmem:[#allocation3 + $0xd8] sm:$0xff]
        %v3575 = vld [vmem:[#allocation3 + $0xe0] sm:$0xff]
        %v3576 = vld [vmem:[#allocation3 + $0xe8] sm:$0xff]
        %v3577 = vld [vmem:[#allocation3 + $0xf0] sm:$0xff]
        %v3578 = vld [vmem:[#allocation3 + $0xf8] sm:$0xff]
        %v3579 = vpack.c.bf16 %v3516, %v3515
        %v3580 = vpack.c.bf16 %v3518, %v3517
        %v3581 = vpack.c.bf16 %v3520, %v3519
        %v3582 = vpack.c.bf16 %v3522, %v3521
        %v3583 = vpack.c.bf16 %v3524, %v3523
        %v3584 = vpack.c.bf16 %v3526, %v3525
        %v3585 = vpack.c.bf16 %v3528, %v3527
        %v3586 = vpack.c.bf16 %v3530, %v3529
        %v3587 = vpack.c.bf16 %v3532, %v3531
        %v3588 = vpack.c.bf16 %v3534, %v3533
        %v3589 = vpack.c.bf16 %v3536, %v3535
        %v3590 = vpack.c.bf16 %v3538, %v3537
        %v3591 = vpack.c.bf16 %v3540, %v3539
        %v3592 = vpack.c.bf16 %v3542, %v3541
        %v3593 = vpack.c.bf16 %v3544, %v3543
        %v3594 = vpack.c.bf16 %v3546, %v3545
        %s3595 = scalar_lea.vmem [#allocation12], 320
        %v3596 = vld [vmem:[%s3595] sm:$0xf]
        %v3597 = vld [vmem:[%s3595 + $0x4] sm:$0xf]
        %v3598 = vld [vmem:[%s3595 + $0x8] sm:$0xf]
        %v3599 = vld [vmem:[%s3595 + $0xc] sm:$0xf]
        %v3600 = vld [vmem:[%s3595 + $0x10] sm:$0xf]
        %v3601 = vld [vmem:[%s3595 + $0x14] sm:$0xf]
        %v3602 = vld [vmem:[%s3595 + $0x18] sm:$0xf]
        %v3603 = vld [vmem:[%s3595 + $0x1c] sm:$0xf]
        %v3604 = vld [vmem:[%s3595 + $0x20] sm:$0xf]
        %v3605 = vld [vmem:[%s3595 + $0x24] sm:$0xf]
        %v3606 = vld [vmem:[%s3595 + $0x28] sm:$0xf]
        %v3607 = vld [vmem:[%s3595 + $0x2c] sm:$0xf]
        %v3608 = vld [vmem:[%s3595 + $0x30] sm:$0xf]
        %v3609 = vld [vmem:[%s3595 + $0x34] sm:$0xf]
        %v3610 = vld [vmem:[%s3595 + $0x38] sm:$0xf]
        %v3611 = vld [vmem:[%s3595 + $0x3c] sm:$0xf]
        %v3628 = vunpack.c.l.b16 %v3596
        %v3629 = vunpack.c.l.b16 %v3597
        %v3630 = vunpack.c.l.b16 %v3598
        %v3631 = vunpack.c.l.b16 %v3599
        %v3632 = vunpack.c.l.b16 %v3600
        %v3633 = vunpack.c.l.b16 %v3601
        %v3634 = vunpack.c.l.b16 %v3602
        %v3635 = vunpack.c.l.b16 %v3603
        %v3636 = vunpack.c.l.b16 %v3604
        %v3637 = vunpack.c.l.b16 %v3605
        %v3638 = vunpack.c.l.b16 %v3606
        %v3639 = vunpack.c.l.b16 %v3607
        %v3640 = vunpack.c.l.b16 %v3608
        %v3641 = vunpack.c.l.b16 %v3609
        %v3642 = vunpack.c.l.b16 %v3610
        %v3643 = vunpack.c.l.b16 %v3611
        %v3644 = vpack.c.b16 %v3629, %v3628
        %v3645 = vpack.c.b16 %v3631, %v3630
        %v3646 = vpack.c.b16 %v3633, %v3632
        %v3647 = vpack.c.b16 %v3635, %v3634
        %v3648 = vpack.c.b16 %v3637, %v3636
        %v3649 = vpack.c.b16 %v3639, %v3638
        %v3650 = vpack.c.b16 %v3641, %v3640
        %v3651 = vpack.c.b16 %v3643, %v3642
        %3660 = vmatprep.subr.bf16.mxu0 0
        %3661 = vmatpush1.bf16.msra.mxu0 %v3644
        %3662 = vmatprep.subr.bf16.mxu0 0
        %3663 = vmatpush1.bf16.msra.mxu0 %v3645
        %3664 = vmatprep.subr.bf16.mxu0 0
        %3665 = vmatpush1.bf16.msra.mxu0 %v3646
        %3666 = vmatprep.subr.bf16.mxu0 0
        %3667 = vmatpush1.bf16.msra.mxu0 %v3647
        %3668 = vmatprep.subr.bf16.mxu0 0
        %3669 = vmatpush1.bf16.msra.mxu0 %v3648
        %3670 = vmatprep.subr.bf16.mxu0 0
        %3671 = vmatpush1.bf16.msra.mxu0 %v3649
        %3672 = vmatprep.subr.bf16.mxu0 0
        %3673 = vmatpush1.bf16.msra.mxu0 %v3650
        %3674 = vmatprep.subr.bf16.mxu0 0
        %3675 = vmatpush1.bf16.msra.mxu0 %v3651
        %3676 = vmatprep.subr.bf16.mxu0 0
        %3677 = vmatpush1.bf16.msra.mxu0 0
        %3678 = vmatprep.subr.bf16.mxu0 0
        %3679 = vmatpush1.bf16.msra.mxu0 0
        %3680 = vmatprep.subr.bf16.mxu0 0
        %3681 = vmatpush1.bf16.msra.mxu0 0
        %3682 = vmatprep.subr.bf16.mxu0 0
        %3683 = vmatpush1.bf16.msra.mxu0 0
        %3684 = vmatprep.subr.bf16.mxu0 0
        %3685 = vmatpush1.bf16.msra.mxu0 0
        %3686 = vmatprep.subr.bf16.mxu0 0
        %3687 = vmatpush1.bf16.msra.mxu0 0
        %3688 = vmatprep.subr.bf16.mxu0 0
        %3689 = vmatpush1.bf16.msra.mxu0 0
        %3690 = vmatprep.subr.bf16.mxu0 0
        %3691 = vmatpush1.bf16.msra.mxu0 0
        %3692 = vmatprep.mubr.bf16.mxu0 0
        %3693 = vmatmul.mubr.bf16.gmra.mrb[0].mxu0 %v3579
        %v3694 = vpop.f32.mrb[0].mxu0
        %v3695 = vadd.f32 0.0, %v3694
        %v3696 = vpop.f32.mrb[0].mxu0
        %v3697 = vpop.f32.mrb[0].mxu0
        %v3698 = vadd.f32 0.0, %v3697
        %v3699 = vpop.f32.mrb[0].mxu0
        %3700 = vmatprep.mubr.bf16.mxu0 0
        %3701 = vmatmul.mubr.bf16.gmra.mrb[0].mxu0 %v3580
        %v3702 = vpop.f32.mrb[0].mxu0
        %v3703 = vadd.f32 0.0, %v3702
        %v3704 = vpop.f32.mrb[0].mxu0
        %v3705 = vpop.f32.mrb[0].mxu0
        %v3706 = vadd.f32 0.0, %v3705
        %v3707 = vpop.f32.mrb[0].mxu0
        %3708 = vmatprep.mubr.bf16.mxu0 0
        %3709 = vmatmul.mubr.bf16.gmra.mrb[0].mxu0 %v3581
        %v3710 = vpop.f32.mrb[0].mxu0
        %v3711 = vadd.f32 0.0, %v3710
        %v3712 = vpop.f32.mrb[0].mxu0
        %v3713 = vpop.f32.mrb[0].mxu0
        %v3714 = vadd.f32 0.0, %v3713
        %v3715 = vpop.f32.mrb[0].mxu0
        %3716 = vmatprep.mubr.bf16.mxu0 0
        %3717 = vmatmul.mubr.bf16.gmra.mrb[0].mxu0 %v3582
        %v3718 = vpop.f32.mrb[0].mxu0
        %v3719 = vadd.f32 0.0, %v3718
        %v3720 = vpop.f32.mrb[0].mxu0
        %v3721 = vpop.f32.mrb[0].mxu0
        %v3722 = vadd.f32 0.0, %v3721
        %v3723 = vpop.f32.mrb[0].mxu0
        %3724 = vmatprep.mubr.bf16.mxu0 0
        %3725 = vmatmul.mubr.bf16.gmra.mrb[0].mxu0 %v3583
        %v3726 = vpop.f32.mrb[0].mxu0
        %v3727 = vadd.f32 0.0, %v3726
        %v3728 = vpop.f32.mrb[0].mxu0
        %v3729 = vpop.f32.mrb[0].mxu0
        %v3730 = vadd.f32 0.0, %v3729
        %v3731 = vpop.f32.mrb[0].mxu0
        %3732 = vmatprep.mubr.bf16.mxu0 0
        %3733 = vmatmul.mubr.bf16.gmra.mrb[0].mxu0 %v3584
        %v3734 = vpop.f32.mrb[0].mxu0
        %v3735 = vadd.f32 0.0, %v3734
        %v3736 = vpop.f32.mrb[0].mxu0
        %v3737 = vpop.f32.mrb[0].mxu0
        %v3738 = vadd.f32 0.0, %v3737
        %v3739 = vpop.f32.mrb[0].mxu0
        %3740 = vmatprep.mubr.bf16.mxu0 0
        %3741 = vmatmul.mubr.bf16.gmra.mrb[0].mxu0 %v3585
        %v3742 = vpop.f32.mrb[0].mxu0
        %v3743 = vadd.f32 0.0, %v3742
        %v3744 = vpop.f32.mrb[0].mxu0
        %v3745 = vpop.f32.mrb[0].mxu0
        %v3746 = vadd.f32 0.0, %v3745
        %v3747 = vpop.f32.mrb[0].mxu0
        %3748 = vmatprep.mubr.bf16.mxu0 0
        %3749 = vmatmul.mubr.bf16.gmra.mrb[0].mxu0 %v3586
        %v3750 = vpop.f32.mrb[0].mxu0
        %v3751 = vadd.f32 0.0, %v3750
        %v3752 = vpop.f32.mrb[0].mxu0
        %v3753 = vpop.f32.mrb[0].mxu0
        %v3754 = vadd.f32 0.0, %v3753
        %v3755 = vpop.f32.mrb[0].mxu0
        %3756 = vmatprep.mubr.bf16.mxu0 0
        %3757 = vmatmul.mubr.bf16.gmra.mrb[0].mxu0 %v3587
        %v3758 = vpop.f32.mrb[0].mxu0
        %v3759 = vadd.f32 0.0, %v3758
        %v3760 = vpop.f32.mrb[0].mxu0
        %v3761 = vpop.f32.mrb[0].mxu0
        %v3762 = vadd.f32 0.0, %v3761
        %v3763 = vpop.f32.mrb[0].mxu0
        %3764 = vmatprep.mubr.bf16.mxu0 0
        %3765 = vmatmul.mubr.bf16.gmra.mrb[0].mxu0 %v3588
        %v3766 = vpop.f32.mrb[0].mxu0
        %v3767 = vadd.f32 0.0, %v3766
        %v3768 = vpop.f32.mrb[0].mxu0
        %v3769 = vpop.f32.mrb[0].mxu0
        %v3770 = vadd.f32 0.0, %v3769
        %v3771 = vpop.f32.mrb[0].mxu0
        %3772 = vmatprep.mubr.bf16.mxu0 0
        %3773 = vmatmul.mubr.bf16.gmra.mrb[0].mxu0 %v3589
        %v3774 = vpop.f32.mrb[0].mxu0
        %v3775 = vadd.f32 0.0, %v3774
        %v3776 = vpop.f32.mrb[0].mxu0
        %v3777 = vpop.f32.mrb[0].mxu0
        %v3778 = vadd.f32 0.0, %v3777
        %v3779 = vpop.f32.mrb[0].mxu0
        %3780 = vmatprep.mubr.bf16.mxu0 0
        %3781 = vmatmul.mubr.bf16.gmra.mrb[0].mxu0 %v3590
        %v3782 = vpop.f32.mrb[0].mxu0
        %v3783 = vadd.f32 0.0, %v3782
        %v3784 = vpop.f32.mrb[0].mxu0
        %v3785 = vpop.f32.mrb[0].mxu0
        %v3786 = vadd.f32 0.0, %v3785
        %v3787 = vpop.f32.mrb[0].mxu0
        %3788 = vmatprep.mubr.bf16.mxu0 0
        %3789 = vmatmul.mubr.bf16.gmra.mrb[0].mxu0 %v3591
        %v3790 = vpop.f32.mrb[0].mxu0
        %v3791 = vadd.f32 0.0, %v3790
        %v3792 = vpop.f32.mrb[0].mxu0
        %v3793 = vpop.f32.mrb[0].mxu0
        %v3794 = vadd.f32 0.0, %v3793
        %v3795 = vpop.f32.mrb[0].mxu0
        %3796 = vmatprep.mubr.bf16.mxu0 0
        %3797 = vmatmul.mubr.bf16.gmra.mrb[0].mxu0 %v3592
        %v3798 = vpop.f32.mrb[0].mxu0
        %v3799 = vadd.f32 0.0, %v3798
        %v3800 = vpop.f32.mrb[0].mxu0
        %v3801 = vpop.f32.mrb[0].mxu0
        %v3802 = vadd.f32 0.0, %v3801
        %v3803 = vpop.f32.mrb[0].mxu0
        %3804 = vmatprep.mubr.bf16.mxu0 0
        %3805 = vmatmul.mubr.bf16.gmra.mrb[0].mxu0 %v3593
        %v3806 = vpop.f32.mrb[0].mxu0
        %v3807 = vadd.f32 0.0, %v3806
        %v3808 = vpop.f32.mrb[0].mxu0
        %v3809 = vpop.f32.mrb[0].mxu0
        %v3810 = vadd.f32 0.0, %v3809
        %v3811 = vpop.f32.mrb[0].mxu0
        %3812 = vmatprep.mubr.bf16.mxu0 0
        %3813 = vmatmul.mubr.bf16.gmra.mrb[0].mxu0 %v3594
        %v3814 = vpop.f32.mrb[0].mxu0
        %v3815 = vadd.f32 0.0, %v3814
        %v3816 = vpop.f32.mrb[0].mxu0
        %v3817 = vpop.f32.mrb[0].mxu0
        %v3818 = vadd.f32 0.0, %v3817
        %v3819 = vpop.f32.mrb[0].mxu0
        %3820 = vdwg.mxu0
        %v3821 = vadd.f32 %v3547, %v3695
        %v3822 = vadd.f32 %v3548, %v3698
        %v3823 = vadd.f32 %v3549, %v3703
        %v3824 = vadd.f32 %v3550, %v3706
        %v3825 = vadd.f32 %v3551, %v3711
        %v3826 = vadd.f32 %v3552, %v3714
        %v3827 = vadd.f32 %v3553, %v3719
        %v3828 = vadd.f32 %v3554, %v3722
        %v3829 = vadd.f32 %v3555, %v3727
        %v3830 = vadd.f32 %v3556, %v3730
        %v3831 = vadd.f32 %v3557, %v3735
        %v3832 = vadd.f32 %v3558, %v3738
        %v3833 = vadd.f32 %v3559, %v3743
        %v3834 = vadd.f32 %v3560, %v3746
        %v3835 = vadd.f32 %v3561, %v3751
        %v3836 = vadd.f32 %v3562, %v3754
        %v3837 = vadd.f32 %v3563, %v3759
        %v3838 = vadd.f32 %v3564, %v3762
        %v3839 = vadd.f32 %v3565, %v3767
        %v3840 = vadd.f32 %v3566, %v3770
        %v3841 = vadd.f32 %v3567, %v3775
        %v3842 = vadd.f32 %v3568, %v3778
        %v3843 = vadd.f32 %v3569, %v3783
        %v3844 = vadd.f32 %v3570, %v3786
        %v3845 = vadd.f32 %v3571, %v3791
        %v3846 = vadd.f32 %v3572, %v3794
        %v3847 = vadd.f32 %v3573, %v3799
        %v3848 = vadd.f32 %v3574, %v3802
        %v3849 = vadd.f32 %v3575, %v3807
        %v3850 = vadd.f32 %v3576, %v3810
        %v3851 = vadd.f32 %v3577, %v3815
        %v3852 = vadd.f32 %v3578, %v3818
        %3853 = vst [vmem:[#allocation3] sm:$0xff] %v3821
        %3854 = vst [vmem:[#allocation3 + $0x8] sm:$0xff] %v3822
        %3855 = vst [vmem:[#allocation3 + $0x10] sm:$0xff] %v3823
        %3856 = vst [vmem:[#allocation3 + $0x18] sm:$0xff] %v3824
        %3857 = vst [vmem:[#allocation3 + $0x20] sm:$0xff] %v3825
        %3858 = vst [vmem:[#allocation3 + $0x28] sm:$0xff] %v3826
        %3859 = vst [vmem:[#allocation3 + $0x30] sm:$0xff] %v3827
        %3860 = vst [vmem:[#allocation3 + $0x38] sm:$0xff] %v3828
        %3861 = vst [vmem:[#allocation3 + $0x40] sm:$0xff] %v3829
        %3862 = vst [vmem:[#allocation3 + $0x48] sm:$0xff] %v3830
        %3863 = vst [vmem:[#allocation3 + $0x50] sm:$0xff] %v3831
        %3864 = vst [vmem:[#allocation3 + $0x58] sm:$0xff] %v3832
        %3865 = vst [vmem:[#allocation3 + $0x60] sm:$0xff] %v3833
        %3866 = vst [vmem:[#allocation3 + $0x68] sm:$0xff] %v3834
        %3867 = vst [vmem:[#allocation3 + $0x70] sm:$0xff] %v3835
        %3868 = vst [vmem:[#allocation3 + $0x78] sm:$0xff] %v3836
        %3869 = vst [vmem:[#allocation3 + $0x80] sm:$0xff] %v3837
        %3870 = vst [vmem:[#allocation3 + $0x88] sm:$0xff] %v3838
        %3871 = vst [vmem:[#allocation3 + $0x90] sm:$0xff] %v3839
        %3872 = vst [vmem:[#allocation3 + $0x98] sm:$0xff] %v3840
        %3873 = vst [vmem:[#allocation3 + $0xa0] sm:$0xff] %v3841
        %3874 = vst [vmem:[#allocation3 + $0xa8] sm:$0xff] %v3842
        %3875 = vst [vmem:[#allocation3 + $0xb0] sm:$0xff] %v3843
        %3876 = vst [vmem:[#allocation3 + $0xb8] sm:$0xff] %v3844
        %3877 = vst [vmem:[#allocation3 + $0xc0] sm:$0xff] %v3845
        %3878 = vst [vmem:[#allocation3 + $0xc8] sm:$0xff] %v3846
        %3879 = vst [vmem:[#allocation3 + $0xd0] sm:$0xff] %v3847
        %3880 = vst [vmem:[#allocation3 + $0xd8] sm:$0xff] %v3848
        %3881 = vst [vmem:[#allocation3 + $0xe0] sm:$0xff] %v3849
        %3882 = vst [vmem:[#allocation3 + $0xe8] sm:$0xff] %v3850
        %3883 = vst [vmem:[#allocation3 + $0xf0] sm:$0xff] %v3851
        %3884 = vst [vmem:[#allocation3 + $0xf8] sm:$0xff] %v3852
        %v3885 = vld [vmem:[#allocation2 + $0x27] sm:$0xff]
        %v3886 = vld [vmem:[#allocation2 + $0x2f] sm:$0xff]
        %v3887 = vld [vmem:[#allocation2 + $0x37] sm:$0xff]
        %v3888 = vld [vmem:[#allocation2 + $0x3f] sm:$0xff]
        %v3889 = vld [vmem:[#allocation2 + $0x47] sm:$0xff]
        %v3890 = vld [vmem:[#allocation2 + $0x4f] sm:$0xff]
        %v3891 = vld [vmem:[#allocation2 + $0x57] sm:$0xff]
        %v3892 = vld [vmem:[#allocation2 + $0x5f] sm:$0xff]
        %v3893 = vld [vmem:[#allocation2 + $0x67] sm:$0xff]
        %v3894 = vld [vmem:[#allocation2 + $0x6f] sm:$0xff]
        %v3895 = vld [vmem:[#allocation2 + $0x77] sm:$0xff]
        %v3896 = vld [vmem:[#allocation2 + $0x7f] sm:$0xff]
        %v3897 = vld [vmem:[#allocation2 + $0x87] sm:$0xff]
        %v3898 = vld [vmem:[#allocation2 + $0x8f] sm:$0xff]
        %v3899 = vld [vmem:[#allocation2 + $0x97] sm:$0xff]
        %v3900 = vld [vmem:[#allocation2 + $0x9f] sm:$0xff]
        %v3901 = vld [vmem:[#allocation2 + $0xa7] sm:$0xff]
        %v3902 = vld [vmem:[#allocation2 + $0xaf] sm:$0xff]
        %v3903 = vld [vmem:[#allocation2 + $0xb7] sm:$0xff]
        %v3904 = vld [vmem:[#allocation2 + $0xbf] sm:$0xff]
        %v3905 = vld [vmem:[#allocation2 + $0xc7] sm:$0xff]
        %v3906 = vld [vmem:[#allocation2 + $0xcf] sm:$0xff]
        %v3907 = vld [vmem:[#allocation2 + $0xd7] sm:$0xff]
        %v3908 = vld [vmem:[#allocation2 + $0xdf] sm:$0xff]
        %v3909 = vld [vmem:[#allocation2 + $0xe7] sm:$0xff]
        %v3910 = vld [vmem:[#allocation2 + $0xef] sm:$0xff]
        %v3911 = vld [vmem:[#allocation2 + $0xf7] sm:$0xff]
        %v3912 = vld [vmem:[#allocation2 + $0xff] sm:$0xff]
        %v3913 = vld [vmem:[#allocation2 + $0x107] sm:$0xff]
        %v3914 = vld [vmem:[#allocation2 + $0x10f] sm:$0xff]
        %v3915 = vld [vmem:[#allocation2 + $0x117] sm:$0xff]
        %v3916 = vld [vmem:[#allocation2 + $0x11f] sm:$0xff]
        %v3917 = vmul.f32 %v3885, %v1253
        %v3918 = vmul.f32 %v3886, %v1258
        %v3919 = vmul.f32 %v3887, %v1263
        %v3920 = vmul.f32 %v3888, %v1268
        %v3921 = vmul.f32 %v3889, %v1273
        %v3922 = vmul.f32 %v3890, %v1278
        %v3923 = vmul.f32 %v3891, %v1283
        %v3924 = vmul.f32 %v3892, %v1288
        %v3925 = vmul.f32 %v3893, %v1293
        %v3926 = vmul.f32 %v3894, %v1298
        %v3927 = vmul.f32 %v3895, %v1303
        %v3928 = vmul.f32 %v3896, %v1308
        %v3929 = vmul.f32 %v3897, %v1313
        %v3930 = vmul.f32 %v3898, %v1318
        %v3931 = vmul.f32 %v3899, %v1323
        %v3932 = vmul.f32 %v3900, %v1328
        %v3933 = vmul.f32 %v3901, %v1333
        %v3934 = vmul.f32 %v3902, %v1338
        %v3935 = vmul.f32 %v3903, %v1343
        %v3936 = vmul.f32 %v3904, %v1348
        %v3937 = vmul.f32 %v3905, %v1353
        %v3938 = vmul.f32 %v3906, %v1358
        %v3939 = vmul.f32 %v3907, %v1363
        %v3940 = vmul.f32 %v3908, %v1368
        %v3941 = vmul.f32 %v3909, %v1373
        %v3942 = vmul.f32 %v3910, %v1378
        %v3943 = vmul.f32 %v3911, %v1383
        %v3944 = vmul.f32 %v3912, %v1388
        %v3945 = vmul.f32 %v3913, %v1393
        %v3946 = vmul.f32 %v3914, %v1398
        %v3947 = vmul.f32 %v3915, %v1403
        %v3948 = vmul.f32 %v3916, %v1408
        %v3949 = vld [vmem:[#allocation3] sm:$0xff]
        %v3950 = vld [vmem:[#allocation3 + $0x8] sm:$0xff]
        %v3951 = vld [vmem:[#allocation3 + $0x10] sm:$0xff]
        %v3952 = vld [vmem:[#allocation3 + $0x18] sm:$0xff]
        %v3953 = vld [vmem:[#allocation3 + $0x20] sm:$0xff]
        %v3954 = vld [vmem:[#allocation3 + $0x28] sm:$0xff]
        %v3955 = vld [vmem:[#allocation3 + $0x30] sm:$0xff]
        %v3956 = vld [vmem:[#allocation3 + $0x38] sm:$0xff]
        %v3957 = vld [vmem:[#allocation3 + $0x40] sm:$0xff]
        %v3958 = vld [vmem:[#allocation3 + $0x48] sm:$0xff]
        %v3959 = vld [vmem:[#allocation3 + $0x50] sm:$0xff]
        %v3960 = vld [vmem:[#allocation3 + $0x58] sm:$0xff]
        %v3961 = vld [vmem:[#allocation3 + $0x60] sm:$0xff]
        %v3962 = vld [vmem:[#allocation3 + $0x68] sm:$0xff]
        %v3963 = vld [vmem:[#allocation3 + $0x70] sm:$0xff]
        %v3964 = vld [vmem:[#allocation3 + $0x78] sm:$0xff]
        %v3965 = vld [vmem:[#allocation3 + $0x80] sm:$0xff]
        %v3966 = vld [vmem:[#allocation3 + $0x88] sm:$0xff]
        %v3967 = vld [vmem:[#allocation3 + $0x90] sm:$0xff]
        %v3968 = vld [vmem:[#allocation3 + $0x98] sm:$0xff]
        %v3969 = vld [vmem:[#allocation3 + $0xa0] sm:$0xff]
        %v3970 = vld [vmem:[#allocation3 + $0xa8] sm:$0xff]
        %v3971 = vld [vmem:[#allocation3 + $0xb0] sm:$0xff]
        %v3972 = vld [vmem:[#allocation3 + $0xb8] sm:$0xff]
        %v3973 = vld [vmem:[#allocation3 + $0xc0] sm:$0xff]
        %v3974 = vld [vmem:[#allocation3 + $0xc8] sm:$0xff]
        %v3975 = vld [vmem:[#allocation3 + $0xd0] sm:$0xff]
        %v3976 = vld [vmem:[#allocation3 + $0xd8] sm:$0xff]
        %v3977 = vld [vmem:[#allocation3 + $0xe0] sm:$0xff]
        %v3978 = vld [vmem:[#allocation3 + $0xe8] sm:$0xff]
        %v3979 = vld [vmem:[#allocation3 + $0xf0] sm:$0xff]
        %v3980 = vld [vmem:[#allocation3 + $0xf8] sm:$0xff]
        %v3981 = vpack.c.bf16 %v3918, %v3917
        %v3982 = vpack.c.bf16 %v3920, %v3919
        %v3983 = vpack.c.bf16 %v3922, %v3921
        %v3984 = vpack.c.bf16 %v3924, %v3923
        %v3985 = vpack.c.bf16 %v3926, %v3925
        %v3986 = vpack.c.bf16 %v3928, %v3927
        %v3987 = vpack.c.bf16 %v3930, %v3929
        %v3988 = vpack.c.bf16 %v3932, %v3931
        %v3989 = vpack.c.bf16 %v3934, %v3933
        %v3990 = vpack.c.bf16 %v3936, %v3935
        %v3991 = vpack.c.bf16 %v3938, %v3937
        %v3992 = vpack.c.bf16 %v3940, %v3939
        %v3993 = vpack.c.bf16 %v3942, %v3941
        %v3994 = vpack.c.bf16 %v3944, %v3943
        %v3995 = vpack.c.bf16 %v3946, %v3945
        %v3996 = vpack.c.bf16 %v3948, %v3947
        %s3997 = scalar_lea.vmem [#allocation12], 384
        %v3998 = vld [vmem:[%s3997] sm:$0xf]
        %v3999 = vld [vmem:[%s3997 + $0x4] sm:$0xf]
        %v4000 = vld [vmem:[%s3997 + $0x8] sm:$0xf]
        %v4001 = vld [vmem:[%s3997 + $0xc] sm:$0xf]
        %v4002 = vld [vmem:[%s3997 + $0x10] sm:$0xf]
        %v4003 = vld [vmem:[%s3997 + $0x14] sm:$0xf]
        %v4004 = vld [vmem:[%s3997 + $0x18] sm:$0xf]
        %v4005 = vld [vmem:[%s3997 + $0x1c] sm:$0xf]
        %v4006 = vld [vmem:[%s3997 + $0x20] sm:$0xf]
        %v4007 = vld [vmem:[%s3997 + $0x24] sm:$0xf]
        %v4008 = vld [vmem:[%s3997 + $0x28] sm:$0xf]
        %v4009 = vld [vmem:[%s3997 + $0x2c] sm:$0xf]
        %v4010 = vld [vmem:[%s3997 + $0x30] sm:$0xf]
        %v4011 = vld [vmem:[%s3997 + $0x34] sm:$0xf]
        %v4012 = vld [vmem:[%s3997 + $0x38] sm:$0xf]
        %v4013 = vld [vmem:[%s3997 + $0x3c] sm:$0xf]
        %v4030 = vunpack.c.l.b16 %v3998
        %v4031 = vunpack.c.l.b16 %v3999
        %v4032 = vunpack.c.l.b16 %v4000
        %v4033 = vunpack.c.l.b16 %v4001
        %v4034 = vunpack.c.l.b16 %v4002
        %v4035 = vunpack.c.l.b16 %v4003
        %v4036 = vunpack.c.l.b16 %v4004
        %v4037 = vunpack.c.l.b16 %v4005
        %v4038 = vunpack.c.l.b16 %v4006
        %v4039 = vunpack.c.l.b16 %v4007
        %v4040 = vunpack.c.l.b16 %v4008
        %v4041 = vunpack.c.l.b16 %v4009
        %v4042 = vunpack.c.l.b16 %v4010
        %v4043 = vunpack.c.l.b16 %v4011
        %v4044 = vunpack.c.l.b16 %v4012
        %v4045 = vunpack.c.l.b16 %v4013
        %v4046 = vpack.c.b16 %v4031, %v4030
        %v4047 = vpack.c.b16 %v4033, %v4032
        %v4048 = vpack.c.b16 %v4035, %v4034
        %v4049 = vpack.c.b16 %v4037, %v4036
        %v4050 = vpack.c.b16 %v4039, %v4038
        %v4051 = vpack.c.b16 %v4041, %v4040
        %v4052 = vpack.c.b16 %v4043, %v4042
        %v4053 = vpack.c.b16 %v4045, %v4044
        %4062 = vmatprep.subr.bf16.mxu0 0
        %4063 = vmatpush1.bf16.msra.mxu0 %v4046
        %4064 = vmatprep.subr.bf16.mxu0 0
        %4065 = vmatpush1.bf16.msra.mxu0 %v4047
        %4066 = vmatprep.subr.bf16.mxu0 0
        %4067 = vmatpush1.bf16.msra.mxu0 %v4048
        %4068 = vmatprep.subr.bf16.mxu0 0
        %4069 = vmatpush1.bf16.msra.mxu0 %v4049
        %4070 = vmatprep.subr.bf16.mxu0 0
        %4071 = vmatpush1.bf16.msra.mxu0 %v4050
        %4072 = vmatprep.subr.bf16.mxu0 0
        %4073 = vmatpush1.bf16.msra.mxu0 %v4051
        %4074 = vmatprep.subr.bf16.mxu0 0
        %4075 = vmatpush1.bf16.msra.mxu0 %v4052
        %4076 = vmatprep.subr.bf16.mxu0 0
        %4077 = vmatpush1.bf16.msra.mxu0 %v4053
        %4078 = vmatprep.subr.bf16.mxu0 0
        %4079 = vmatpush1.bf16.msra.mxu0 0
        %4080 = vmatprep.subr.bf16.mxu0 0
        %4081 = vmatpush1.bf16.msra.mxu0 0
        %4082 = vmatprep.subr.bf16.mxu0 0
        %4083 = vmatpush1.bf16.msra.mxu0 0
        %4084 = vmatprep.subr.bf16.mxu0 0
        %4085 = vmatpush1.bf16.msra.mxu0 0
        %4086 = vmatprep.subr.bf16.mxu0 0
        %4087 = vmatpush1.bf16.msra.mxu0 0
        %4088 = vmatprep.subr.bf16.mxu0 0
        %4089 = vmatpush1.bf16.msra.mxu0 0
        %4090 = vmatprep.subr.bf16.mxu0 0
        %4091 = vmatpush1.bf16.msra.mxu0 0
        %4092 = vmatprep.subr.bf16.mxu0 0
        %4093 = vmatpush1.bf16.msra.mxu0 0
        %4094 = vmatprep.mubr.bf16.mxu0 0
        %4095 = vmatmul.mubr.bf16.gmra.mrb[0].mxu0 %v3981
        %v4096 = vpop.f32.mrb[0].mxu0
        %v4097 = vadd.f32 0.0, %v4096
        %v4098 = vpop.f32.mrb[0].mxu0
        %v4099 = vpop.f32.mrb[0].mxu0
        %v4100 = vadd.f32 0.0, %v4099
        %v4101 = vpop.f32.mrb[0].mxu0
        %4102 = vmatprep.mubr.bf16.mxu0 0
        %4103 = vmatmul.mubr.bf16.gmra.mrb[0].mxu0 %v3982
        %v4104 = vpop.f32.mrb[0].mxu0
        %v4105 = vadd.f32 0.0, %v4104
        %v4106 = vpop.f32.mrb[0].mxu0
        %v4107 = vpop.f32.mrb[0].mxu0
        %v4108 = vadd.f32 0.0, %v4107
        %v4109 = vpop.f32.mrb[0].mxu0
        %4110 = vmatprep.mubr.bf16.mxu0 0
        %4111 = vmatmul.mubr.bf16.gmra.mrb[0].mxu0 %v3983
        %v4112 = vpop.f32.mrb[0].mxu0
        %v4113 = vadd.f32 0.0, %v4112
        %v4114 = vpop.f32.mrb[0].mxu0
        %v4115 = vpop.f32.mrb[0].mxu0
        %v4116 = vadd.f32 0.0, %v4115
        %v4117 = vpop.f32.mrb[0].mxu0
        %4118 = vmatprep.mubr.bf16.mxu0 0
        %4119 = vmatmul.mubr.bf16.gmra.mrb[0].mxu0 %v3984
        %v4120 = vpop.f32.mrb[0].mxu0
        %v4121 = vadd.f32 0.0, %v4120
        %v4122 = vpop.f32.mrb[0].mxu0
        %v4123 = vpop.f32.mrb[0].mxu0
        %v4124 = vadd.f32 0.0, %v4123
        %v4125 = vpop.f32.mrb[0].mxu0
        %4126 = vmatprep.mubr.bf16.mxu0 0
        %4127 = vmatmul.mubr.bf16.gmra.mrb[0].mxu0 %v3985
        %v4128 = vpop.f32.mrb[0].mxu0
        %v4129 = vadd.f32 0.0, %v4128
        %v4130 = vpop.f32.mrb[0].mxu0
        %v4131 = vpop.f32.mrb[0].mxu0
        %v4132 = vadd.f32 0.0, %v4131
        %v4133 = vpop.f32.mrb[0].mxu0
        %4134 = vmatprep.mubr.bf16.mxu0 0
        %4135 = vmatmul.mubr.bf16.gmra.mrb[0].mxu0 %v3986
        %v4136 = vpop.f32.mrb[0].mxu0
        %v4137 = vadd.f32 0.0, %v4136
        %v4138 = vpop.f32.mrb[0].mxu0
        %v4139 = vpop.f32.mrb[0].mxu0
        %v4140 = vadd.f32 0.0, %v4139
        %v4141 = vpop.f32.mrb[0].mxu0
        %4142 = vmatprep.mubr.bf16.mxu0 0
        %4143 = vmatmul.mubr.bf16.gmra.mrb[0].mxu0 %v3987
        %v4144 = vpop.f32.mrb[0].mxu0
        %v4145 = vadd.f32 0.0, %v4144
        %v4146 = vpop.f32.mrb[0].mxu0
        %v4147 = vpop.f32.mrb[0].mxu0
        %v4148 = vadd.f32 0.0, %v4147
        %v4149 = vpop.f32.mrb[0].mxu0
        %4150 = vmatprep.mubr.bf16.mxu0 0
        %4151 = vmatmul.mubr.bf16.gmra.mrb[0].mxu0 %v3988
        %v4152 = vpop.f32.mrb[0].mxu0
        %v4153 = vadd.f32 0.0, %v4152
        %v4154 = vpop.f32.mrb[0].mxu0
        %v4155 = vpop.f32.mrb[0].mxu0
        %v4156 = vadd.f32 0.0, %v4155
        %v4157 = vpop.f32.mrb[0].mxu0
        %4158 = vmatprep.mubr.bf16.mxu0 0
        %4159 = vmatmul.mubr.bf16.gmra.mrb[0].mxu0 %v3989
        %v4160 = vpop.f32.mrb[0].mxu0
        %v4161 = vadd.f32 0.0, %v4160
        %v4162 = vpop.f32.mrb[0].mxu0
        %v4163 = vpop.f32.mrb[0].mxu0
        %v4164 = vadd.f32 0.0, %v4163
        %v4165 = vpop.f32.mrb[0].mxu0
        %4166 = vmatprep.mubr.bf16.mxu0 0
        %4167 = vmatmul.mubr.bf16.gmra.mrb[0].mxu0 %v3990
        %v4168 = vpop.f32.mrb[0].mxu0
        %v4169 = vadd.f32 0.0, %v4168
        %v4170 = vpop.f32.mrb[0].mxu0
        %v4171 = vpop.f32.mrb[0].mxu0
        %v4172 = vadd.f32 0.0, %v4171
        %v4173 = vpop.f32.mrb[0].mxu0
        %4174 = vmatprep.mubr.bf16.mxu0 0
        %4175 = vmatmul.mubr.bf16.gmra.mrb[0].mxu0 %v3991
        %v4176 = vpop.f32.mrb[0].mxu0
        %v4177 = vadd.f32 0.0, %v4176
        %v4178 = vpop.f32.mrb[0].mxu0
        %v4179 = vpop.f32.mrb[0].mxu0
        %v4180 = vadd.f32 0.0, %v4179
        %v4181 = vpop.f32.mrb[0].mxu0
        %4182 = vmatprep.mubr.bf16.mxu0 0
        %4183 = vmatmul.mubr.bf16.gmra.mrb[0].mxu0 %v3992
        %v4184 = vpop.f32.mrb[0].mxu0
        %v4185 = vadd.f32 0.0, %v4184
        %v4186 = vpop.f32.mrb[0].mxu0
        %v4187 = vpop.f32.mrb[0].mxu0
        %v4188 = vadd.f32 0.0, %v4187
        %v4189 = vpop.f32.mrb[0].mxu0
        %4190 = vmatprep.mubr.bf16.mxu0 0
        %4191 = vmatmul.mubr.bf16.gmra.mrb[0].mxu0 %v3993
        %v4192 = vpop.f32.mrb[0].mxu0
        %v4193 = vadd.f32 0.0, %v4192
        %v4194 = vpop.f32.mrb[0].mxu0
        %v4195 = vpop.f32.mrb[0].mxu0
        %v4196 = vadd.f32 0.0, %v4195
        %v4197 = vpop.f32.mrb[0].mxu0
        %4198 = vmatprep.mubr.bf16.mxu0 0
        %4199 = vmatmul.mubr.bf16.gmra.mrb[0].mxu0 %v3994
        %v4200 = vpop.f32.mrb[0].mxu0
        %v4201 = vadd.f32 0.0, %v4200
        %v4202 = vpop.f32.mrb[0].mxu0
        %v4203 = vpop.f32.mrb[0].mxu0
        %v4204 = vadd.f32 0.0, %v4203
        %v4205 = vpop.f32.mrb[0].mxu0
        %4206 = vmatprep.mubr.bf16.mxu0 0
        %4207 = vmatmul.mubr.bf16.gmra.mrb[0].mxu0 %v3995
        %v4208 = vpop.f32.mrb[0].mxu0
        %v4209 = vadd.f32 0.0, %v4208
        %v4210 = vpop.f32.mrb[0].mxu0
        %v4211 = vpop.f32.mrb[0].mxu0
        %v4212 = vadd.f32 0.0, %v4211
        %v4213 = vpop.f32.mrb[0].mxu0
        %4214 = vmatprep.mubr.bf16.mxu0 0
        %4215 = vmatmul.mubr.bf16.gmra.mrb[0].mxu0 %v3996
        %v4216 = vpop.f32.mrb[0].mxu0
        %v4217 = vadd.f32 0.0, %v4216
        %v4218 = vpop.f32.mrb[0].mxu0
        %v4219 = vpop.f32.mrb[0].mxu0
        %v4220 = vadd.f32 0.0, %v4219
        %v4221 = vpop.f32.mrb[0].mxu0
        %4222 = vdwg.mxu0
        %v4223 = vadd.f32 %v3949, %v4097
        %v4224 = vadd.f32 %v3950, %v4100
        %v4225 = vadd.f32 %v3951, %v4105
        %v4226 = vadd.f32 %v3952, %v4108
        %v4227 = vadd.f32 %v3953, %v4113
        %v4228 = vadd.f32 %v3954, %v4116
        %v4229 = vadd.f32 %v3955, %v4121
        %v4230 = vadd.f32 %v3956, %v4124
        %v4231 = vadd.f32 %v3957, %v4129
        %v4232 = vadd.f32 %v3958, %v4132
        %v4233 = vadd.f32 %v3959, %v4137
        %v4234 = vadd.f32 %v3960, %v4140
        %v4235 = vadd.f32 %v3961, %v4145
        %v4236 = vadd.f32 %v3962, %v4148
        %v4237 = vadd.f32 %v3963, %v4153
        %v4238 = vadd.f32 %v3964, %v4156
        %v4239 = vadd.f32 %v3965, %v4161
        %v4240 = vadd.f32 %v3966, %v4164
        %v4241 = vadd.f32 %v3967, %v4169
        %v4242 = vadd.f32 %v3968, %v4172
        %v4243 = vadd.f32 %v3969, %v4177
        %v4244 = vadd.f32 %v3970, %v4180
        %v4245 = vadd.f32 %v3971, %v4185
        %v4246 = vadd.f32 %v3972, %v4188
        %v4247 = vadd.f32 %v3973, %v4193
        %v4248 = vadd.f32 %v3974, %v4196
        %v4249 = vadd.f32 %v3975, %v4201
        %v4250 = vadd.f32 %v3976, %v4204
        %v4251 = vadd.f32 %v3977, %v4209
        %v4252 = vadd.f32 %v3978, %v4212
        %v4253 = vadd.f32 %v3979, %v4217
        %v4254 = vadd.f32 %v3980, %v4220
        %4255 = vst [vmem:[#allocation3] sm:$0xff] %v4223
        %4256 = vst [vmem:[#allocation3 + $0x8] sm:$0xff] %v4224
        %4257 = vst [vmem:[#allocation3 + $0x10] sm:$0xff] %v4225
        %4258 = vst [vmem:[#allocation3 + $0x18] sm:$0xff] %v4226
        %4259 = vst [vmem:[#allocation3 + $0x20] sm:$0xff] %v4227
        %4260 = vst [vmem:[#allocation3 + $0x28] sm:$0xff] %v4228
        %4261 = vst [vmem:[#allocation3 + $0x30] sm:$0xff] %v4229
        %4262 = vst [vmem:[#allocation3 + $0x38] sm:$0xff] %v4230
        %4263 = vst [vmem:[#allocation3 + $0x40] sm:$0xff] %v4231
        %4264 = vst [vmem:[#allocation3 + $0x48] sm:$0xff] %v4232
        %4265 = vst [vmem:[#allocation3 + $0x50] sm:$0xff] %v4233
        %4266 = vst [vmem:[#allocation3 + $0x58] sm:$0xff] %v4234
        %4267 = vst [vmem:[#allocation3 + $0x60] sm:$0xff] %v4235
        %4268 = vst [vmem:[#allocation3 + $0x68] sm:$0xff] %v4236
        %4269 = vst [vmem:[#allocation3 + $0x70] sm:$0xff] %v4237
        %4270 = vst [vmem:[#allocation3 + $0x78] sm:$0xff] %v4238
        %4271 = vst [vmem:[#allocation3 + $0x80] sm:$0xff] %v4239
        %4272 = vst [vmem:[#allocation3 + $0x88] sm:$0xff] %v4240
        %4273 = vst [vmem:[#allocation3 + $0x90] sm:$0xff] %v4241
        %4274 = vst [vmem:[#allocation3 + $0x98] sm:$0xff] %v4242
        %4275 = vst [vmem:[#allocation3 + $0xa0] sm:$0xff] %v4243
        %4276 = vst [vmem:[#allocation3 + $0xa8] sm:$0xff] %v4244
        %4277 = vst [vmem:[#allocation3 + $0xb0] sm:$0xff] %v4245
        %4278 = vst [vmem:[#allocation3 + $0xb8] sm:$0xff] %v4246
        %4279 = vst [vmem:[#allocation3 + $0xc0] sm:$0xff] %v4247
        %4280 = vst [vmem:[#allocation3 + $0xc8] sm:$0xff] %v4248
        %4281 = vst [vmem:[#allocation3 + $0xd0] sm:$0xff] %v4249
        %4282 = vst [vmem:[#allocation3 + $0xd8] sm:$0xff] %v4250
        %4283 = vst [vmem:[#allocation3 + $0xe0] sm:$0xff] %v4251
        %4284 = vst [vmem:[#allocation3 + $0xe8] sm:$0xff] %v4252
        %4285 = vst [vmem:[#allocation3 + $0xf0] sm:$0xff] %v4253
        %4286 = vst [vmem:[#allocation3 + $0xf8] sm:$0xff] %v4254
        %v4287 = vld [vmem:[#allocation2 + $0x28] sm:$0xff]
        %v4288 = vld [vmem:[#allocation2 + $0x30] sm:$0xff]
        %v4289 = vld [vmem:[#allocation2 + $0x38] sm:$0xff]
        %v4290 = vld [vmem:[#allocation2 + $0x40] sm:$0xff]
        %v4291 = vld [vmem:[#allocation2 + $0x48] sm:$0xff]
        %v4292 = vld [vmem:[#allocation2 + $0x50] sm:$0xff]
        %v4293 = vld [vmem:[#allocation2 + $0x58] sm:$0xff]
        %v4294 = vld [vmem:[#allocation2 + $0x60] sm:$0xff]
        %v4295 = vld [vmem:[#allocation2 + $0x68] sm:$0xff]
        %v4296 = vld [vmem:[#allocation2 + $0x70] sm:$0xff]
        %v4297 = vld [vmem:[#allocation2 + $0x78] sm:$0xff]
        %v4298 = vld [vmem:[#allocation2 + $0x80] sm:$0xff]
        %v4299 = vld [vmem:[#allocation2 + $0x88] sm:$0xff]
        %v4300 = vld [vmem:[#allocation2 + $0x90] sm:$0xff]
        %v4301 = vld [vmem:[#allocation2 + $0x98] sm:$0xff]
        %v4302 = vld [vmem:[#allocation2 + $0xa0] sm:$0xff]
        %v4303 = vld [vmem:[#allocation2 + $0xa8] sm:$0xff]
        %v4304 = vld [vmem:[#allocation2 + $0xb0] sm:$0xff]
        %v4305 = vld [vmem:[#allocation2 + $0xb8] sm:$0xff]
        %v4306 = vld [vmem:[#allocation2 + $0xc0] sm:$0xff]
        %v4307 = vld [vmem:[#allocation2 + $0xc8] sm:$0xff]
        %v4308 = vld [vmem:[#allocation2 + $0xd0] sm:$0xff]
        %v4309 = vld [vmem:[#allocation2 + $0xd8] sm:$0xff]
        %v4310 = vld [vmem:[#allocation2 + $0xe0] sm:$0xff]
        %v4311 = vld [vmem:[#allocation2 + $0xe8] sm:$0xff]
        %v4312 = vld [vmem:[#allocation2 + $0xf0] sm:$0xff]
        %v4313 = vld [vmem:[#allocation2 + $0xf8] sm:$0xff]
        %v4314 = vld [vmem:[#allocation2 + $0x100] sm:$0xff]
        %v4315 = vld [vmem:[#allocation2 + $0x108] sm:$0xff]
        %v4316 = vld [vmem:[#allocation2 + $0x110] sm:$0xff]
        %v4317 = vld [vmem:[#allocation2 + $0x118] sm:$0xff]
        %v4318 = vld [vmem:[#allocation2 + $0x120] sm:$0xff]
        %v4319 = vld [vmem:[#allocation3] sm:$0xff]
        %v4320 = vld [vmem:[#allocation3 + $0x8] sm:$0xff]
        %v4321 = vld [vmem:[#allocation3 + $0x10] sm:$0xff]
        %v4322 = vld [vmem:[#allocation3 + $0x18] sm:$0xff]
        %v4323 = vld [vmem:[#allocation3 + $0x20] sm:$0xff]
        %v4324 = vld [vmem:[#allocation3 + $0x28] sm:$0xff]
        %v4325 = vld [vmem:[#allocation3 + $0x30] sm:$0xff]
        %v4326 = vld [vmem:[#allocation3 + $0x38] sm:$0xff]
        %v4327 = vld [vmem:[#allocation3 + $0x40] sm:$0xff]
        %v4328 = vld [vmem:[#allocation3 + $0x48] sm:$0xff]
        %v4329 = vld [vmem:[#allocation3 + $0x50] sm:$0xff]
        %v4330 = vld [vmem:[#allocation3 + $0x58] sm:$0xff]
        %v4331 = vld [vmem:[#allocation3 + $0x60] sm:$0xff]
        %v4332 = vld [vmem:[#allocation3 + $0x68] sm:$0xff]
        %v4333 = vld [vmem:[#allocation3 + $0x70] sm:$0xff]
        %v4334 = vld [vmem:[#allocation3 + $0x78] sm:$0xff]
        %v4335 = vld [vmem:[#allocation3 + $0x80] sm:$0xff]
        %v4336 = vld [vmem:[#allocation3 + $0x88] sm:$0xff]
        %v4337 = vld [vmem:[#allocation3 + $0x90] sm:$0xff]
        %v4338 = vld [vmem:[#allocation3 + $0x98] sm:$0xff]
        %v4339 = vld [vmem:[#allocation3 + $0xa0] sm:$0xff]
        %v4340 = vld [vmem:[#allocation3 + $0xa8] sm:$0xff]
        %v4341 = vld [vmem:[#allocation3 + $0xb0] sm:$0xff]
        %v4342 = vld [vmem:[#allocation3 + $0xb8] sm:$0xff]
        %v4343 = vld [vmem:[#allocation3 + $0xc0] sm:$0xff]
        %v4344 = vld [vmem:[#allocation3 + $0xc8] sm:$0xff]
        %v4345 = vld [vmem:[#allocation3 + $0xd0] sm:$0xff]
        %v4346 = vld [vmem:[#allocation3 + $0xd8] sm:$0xff]
        %v4347 = vld [vmem:[#allocation3 + $0xe0] sm:$0xff]
        %v4348 = vld [vmem:[#allocation3 + $0xe8] sm:$0xff]
        %v4349 = vld [vmem:[#allocation3 + $0xf0] sm:$0xff]
        %v4350 = vld [vmem:[#allocation3 + $0xf8] sm:$0xff]
        %v4351 = vpack.c.bf16 %v4288, %v4287
        %v4352 = vpack.c.bf16 %v4290, %v4289
        %v4353 = vpack.c.bf16 %v4292, %v4291
        %v4354 = vpack.c.bf16 %v4294, %v4293
        %v4355 = vpack.c.bf16 %v4296, %v4295
        %v4356 = vpack.c.bf16 %v4298, %v4297
        %v4357 = vpack.c.bf16 %v4300, %v4299
        %v4358 = vpack.c.bf16 %v4302, %v4301
        %v4359 = vpack.c.bf16 %v4304, %v4303
        %v4360 = vpack.c.bf16 %v4306, %v4305
        %v4361 = vpack.c.bf16 %v4308, %v4307
        %v4362 = vpack.c.bf16 %v4310, %v4309
        %v4363 = vpack.c.bf16 %v4312, %v4311
        %v4364 = vpack.c.bf16 %v4314, %v4313
        %v4365 = vpack.c.bf16 %v4316, %v4315
        %v4366 = vpack.c.bf16 %v4318, %v4317
        %s4367 = scalar_lea.vmem [#allocation12], 448
        %v4368 = vld [vmem:[%s4367] sm:$0xf]
        %v4369 = vld [vmem:[%s4367 + $0x4] sm:$0xf]
        %v4370 = vld [vmem:[%s4367 + $0x8] sm:$0xf]
        %v4371 = vld [vmem:[%s4367 + $0xc] sm:$0xf]
        %v4372 = vld [vmem:[%s4367 + $0x10] sm:$0xf]
        %v4373 = vld [vmem:[%s4367 + $0x14] sm:$0xf]
        %v4374 = vld [vmem:[%s4367 + $0x18] sm:$0xf]
        %v4375 = vld [vmem:[%s4367 + $0x1c] sm:$0xf]
        %v4376 = vld [vmem:[%s4367 + $0x20] sm:$0xf]
        %v4377 = vld [vmem:[%s4367 + $0x24] sm:$0xf]
        %v4378 = vld [vmem:[%s4367 + $0x28] sm:$0xf]
        %v4379 = vld [vmem:[%s4367 + $0x2c] sm:$0xf]
        %v4380 = vld [vmem:[%s4367 + $0x30] sm:$0xf]
        %v4381 = vld [vmem:[%s4367 + $0x34] sm:$0xf]
        %v4382 = vld [vmem:[%s4367 + $0x38] sm:$0xf]
        %v4383 = vld [vmem:[%s4367 + $0x3c] sm:$0xf]
        %v4400 = vunpack.c.l.b16 %v4368
        %v4401 = vunpack.c.l.b16 %v4369
        %v4402 = vunpack.c.l.b16 %v4370
        %v4403 = vunpack.c.l.b16 %v4371
        %v4404 = vunpack.c.l.b16 %v4372
        %v4405 = vunpack.c.l.b16 %v4373
        %v4406 = vunpack.c.l.b16 %v4374
        %v4407 = vunpack.c.l.b16 %v4375
        %v4408 = vunpack.c.l.b16 %v4376
        %v4409 = vunpack.c.l.b16 %v4377
        %v4410 = vunpack.c.l.b16 %v4378
        %v4411 = vunpack.c.l.b16 %v4379
        %v4412 = vunpack.c.l.b16 %v4380
        %v4413 = vunpack.c.l.b16 %v4381
        %v4414 = vunpack.c.l.b16 %v4382
        %v4415 = vunpack.c.l.b16 %v4383
        %v4416 = vpack.c.b16 %v4401, %v4400
        %v4417 = vpack.c.b16 %v4403, %v4402
        %v4418 = vpack.c.b16 %v4405, %v4404
        %v4419 = vpack.c.b16 %v4407, %v4406
        %v4420 = vpack.c.b16 %v4409, %v4408
        %v4421 = vpack.c.b16 %v4411, %v4410
        %v4422 = vpack.c.b16 %v4413, %v4412
        %v4423 = vpack.c.b16 %v4415, %v4414
        %4432 = vmatprep.subr.bf16.mxu0 0
        %4433 = vmatpush1.bf16.msra.mxu0 %v4416
        %4434 = vmatprep.subr.bf16.mxu0 0
        %4435 = vmatpush1.bf16.msra.mxu0 %v4417
        %4436 = vmatprep.subr.bf16.mxu0 0
        %4437 = vmatpush1.bf16.msra.mxu0 %v4418
        %4438 = vmatprep.subr.bf16.mxu0 0
        %4439 = vmatpush1.bf16.msra.mxu0 %v4419
        %4440 = vmatprep.subr.bf16.mxu0 0
        %4441 = vmatpush1.bf16.msra.mxu0 %v4420
        %4442 = vmatprep.subr.bf16.mxu0 0
        %4443 = vmatpush1.bf16.msra.mxu0 %v4421
        %4444 = vmatprep.subr.bf16.mxu0 0
        %4445 = vmatpush1.bf16.msra.mxu0 %v4422
        %4446 = vmatprep.subr.bf16.mxu0 0
        %4447 = vmatpush1.bf16.msra.mxu0 %v4423
        %4448 = vmatprep.subr.bf16.mxu0 0
        %4449 = vmatpush1.bf16.msra.mxu0 0
        %4450 = vmatprep.subr.bf16.mxu0 0
        %4451 = vmatpush1.bf16.msra.mxu0 0
        %4452 = vmatprep.subr.bf16.mxu0 0
        %4453 = vmatpush1.bf16.msra.mxu0 0
        %4454 = vmatprep.subr.bf16.mxu0 0
        %4455 = vmatpush1.bf16.msra.mxu0 0
        %4456 = vmatprep.subr.bf16.mxu0 0
        %4457 = vmatpush1.bf16.msra.mxu0 0
        %4458 = vmatprep.subr.bf16.mxu0 0
        %4459 = vmatpush1.bf16.msra.mxu0 0
        %4460 = vmatprep.subr.bf16.mxu0 0
        %4461 = vmatpush1.bf16.msra.mxu0 0
        %4462 = vmatprep.subr.bf16.mxu0 0
        %4463 = vmatpush1.bf16.msra.mxu0 0
        %4464 = vmatprep.mubr.bf16.mxu0 0
        %4465 = vmatmul.mubr.bf16.gmra.mrb[0].mxu0 %v4351
        %v4466 = vpop.f32.mrb[0].mxu0
        %v4467 = vadd.f32 0.0, %v4466
        %v4468 = vpop.f32.mrb[0].mxu0
        %v4469 = vpop.f32.mrb[0].mxu0
        %v4470 = vadd.f32 0.0, %v4469
        %v4471 = vpop.f32.mrb[0].mxu0
        %4472 = vmatprep.mubr.bf16.mxu0 0
        %4473 = vmatmul.mubr.bf16.gmra.mrb[0].mxu0 %v4352
        %v4474 = vpop.f32.mrb[0].mxu0
        %v4475 = vadd.f32 0.0, %v4474
        %v4476 = vpop.f32.mrb[0].mxu0
        %v4477 = vpop.f32.mrb[0].mxu0
        %v4478 = vadd.f32 0.0, %v4477
        %v4479 = vpop.f32.mrb[0].mxu0
        %4480 = vmatprep.mubr.bf16.mxu0 0
        %4481 = vmatmul.mubr.bf16.gmra.mrb[0].mxu0 %v4353
        %v4482 = vpop.f32.mrb[0].mxu0
        %v4483 = vadd.f32 0.0, %v4482
        %v4484 = vpop.f32.mrb[0].mxu0
        %v4485 = vpop.f32.mrb[0].mxu0
        %v4486 = vadd.f32 0.0, %v4485
        %v4487 = vpop.f32.mrb[0].mxu0
        %4488 = vmatprep.mubr.bf16.mxu0 0
        %4489 = vmatmul.mubr.bf16.gmra.mrb[0].mxu0 %v4354
        %v4490 = vpop.f32.mrb[0].mxu0
        %v4491 = vadd.f32 0.0, %v4490
        %v4492 = vpop.f32.mrb[0].mxu0
        %v4493 = vpop.f32.mrb[0].mxu0
        %v4494 = vadd.f32 0.0, %v4493
        %v4495 = vpop.f32.mrb[0].mxu0
        %4496 = vmatprep.mubr.bf16.mxu0 0
        %4497 = vmatmul.mubr.bf16.gmra.mrb[0].mxu0 %v4355
        %v4498 = vpop.f32.mrb[0].mxu0
        %v4499 = vadd.f32 0.0, %v4498
        %v4500 = vpop.f32.mrb[0].mxu0
        %v4501 = vpop.f32.mrb[0].mxu0
        %v4502 = vadd.f32 0.0, %v4501
        %v4503 = vpop.f32.mrb[0].mxu0
        %4504 = vmatprep.mubr.bf16.mxu0 0
        %4505 = vmatmul.mubr.bf16.gmra.mrb[0].mxu0 %v4356
        %v4506 = vpop.f32.mrb[0].mxu0
        %v4507 = vadd.f32 0.0, %v4506
        %v4508 = vpop.f32.mrb[0].mxu0
        %v4509 = vpop.f32.mrb[0].mxu0
        %v4510 = vadd.f32 0.0, %v4509
        %v4511 = vpop.f32.mrb[0].mxu0
        %4512 = vmatprep.mubr.bf16.mxu0 0
        %4513 = vmatmul.mubr.bf16.gmra.mrb[0].mxu0 %v4357
        %v4514 = vpop.f32.mrb[0].mxu0
        %v4515 = vadd.f32 0.0, %v4514
        %v4516 = vpop.f32.mrb[0].mxu0
        %v4517 = vpop.f32.mrb[0].mxu0
        %v4518 = vadd.f32 0.0, %v4517
        %v4519 = vpop.f32.mrb[0].mxu0
        %4520 = vmatprep.mubr.bf16.mxu0 0
        %4521 = vmatmul.mubr.bf16.gmra.mrb[0].mxu0 %v4358
        %v4522 = vpop.f32.mrb[0].mxu0
        %v4523 = vadd.f32 0.0, %v4522
        %v4524 = vpop.f32.mrb[0].mxu0
        %v4525 = vpop.f32.mrb[0].mxu0
        %v4526 = vadd.f32 0.0, %v4525
        %v4527 = vpop.f32.mrb[0].mxu0
        %4528 = vmatprep.mubr.bf16.mxu0 0
        %4529 = vmatmul.mubr.bf16.gmra.mrb[0].mxu0 %v4359
        %v4530 = vpop.f32.mrb[0].mxu0
        %v4531 = vadd.f32 0.0, %v4530
        %v4532 = vpop.f32.mrb[0].mxu0
        %v4533 = vpop.f32.mrb[0].mxu0
        %v4534 = vadd.f32 0.0, %v4533
        %v4535 = vpop.f32.mrb[0].mxu0
        %4536 = vmatprep.mubr.bf16.mxu0 0
        %4537 = vmatmul.mubr.bf16.gmra.mrb[0].mxu0 %v4360
        %v4538 = vpop.f32.mrb[0].mxu0
        %v4539 = vadd.f32 0.0, %v4538
        %v4540 = vpop.f32.mrb[0].mxu0
        %v4541 = vpop.f32.mrb[0].mxu0
        %v4542 = vadd.f32 0.0, %v4541
        %v4543 = vpop.f32.mrb[0].mxu0
        %4544 = vmatprep.mubr.bf16.mxu0 0
        %4545 = vmatmul.mubr.bf16.gmra.mrb[0].mxu0 %v4361
        %v4546 = vpop.f32.mrb[0].mxu0
        %v4547 = vadd.f32 0.0, %v4546
        %v4548 = vpop.f32.mrb[0].mxu0
        %v4549 = vpop.f32.mrb[0].mxu0
        %v4550 = vadd.f32 0.0, %v4549
        %v4551 = vpop.f32.mrb[0].mxu0
        %4552 = vmatprep.mubr.bf16.mxu0 0
        %4553 = vmatmul.mubr.bf16.gmra.mrb[0].mxu0 %v4362
        %v4554 = vpop.f32.mrb[0].mxu0
        %v4555 = vadd.f32 0.0, %v4554
        %v4556 = vpop.f32.mrb[0].mxu0
        %v4557 = vpop.f32.mrb[0].mxu0
        %v4558 = vadd.f32 0.0, %v4557
        %v4559 = vpop.f32.mrb[0].mxu0
        %4560 = vmatprep.mubr.bf16.mxu0 0
        %4561 = vmatmul.mubr.bf16.gmra.mrb[0].mxu0 %v4363
        %v4562 = vpop.f32.mrb[0].mxu0
        %v4563 = vadd.f32 0.0, %v4562
        %v4564 = vpop.f32.mrb[0].mxu0
        %v4565 = vpop.f32.mrb[0].mxu0
        %v4566 = vadd.f32 0.0, %v4565
        %v4567 = vpop.f32.mrb[0].mxu0
        %4568 = vmatprep.mubr.bf16.mxu0 0
        %4569 = vmatmul.mubr.bf16.gmra.mrb[0].mxu0 %v4364
        %v4570 = vpop.f32.mrb[0].mxu0
        %v4571 = vadd.f32 0.0, %v4570
        %v4572 = vpop.f32.mrb[0].mxu0
        %v4573 = vpop.f32.mrb[0].mxu0
        %v4574 = vadd.f32 0.0, %v4573
        %v4575 = vpop.f32.mrb[0].mxu0
        %4576 = vmatprep.mubr.bf16.mxu0 0
        %4577 = vmatmul.mubr.bf16.gmra.mrb[0].mxu0 %v4365
        %v4578 = vpop.f32.mrb[0].mxu0
        %v4579 = vadd.f32 0.0, %v4578
        %v4580 = vpop.f32.mrb[0].mxu0
        %v4581 = vpop.f32.mrb[0].mxu0
        %v4582 = vadd.f32 0.0, %v4581
        %v4583 = vpop.f32.mrb[0].mxu0
        %4584 = vmatprep.mubr.bf16.mxu0 0
        %4585 = vmatmul.mubr.bf16.gmra.mrb[0].mxu0 %v4366
        %v4586 = vpop.f32.mrb[0].mxu0
        %v4587 = vadd.f32 0.0, %v4586
        %v4588 = vpop.f32.mrb[0].mxu0
        %v4589 = vpop.f32.mrb[0].mxu0
        %v4590 = vadd.f32 0.0, %v4589
        %v4591 = vpop.f32.mrb[0].mxu0
        %4592 = vdwg.mxu0
        %v4593 = vadd.f32 %v4319, %v4467
        %v4594 = vadd.f32 %v4320, %v4470
        %v4595 = vadd.f32 %v4321, %v4475
        %v4596 = vadd.f32 %v4322, %v4478
        %v4597 = vadd.f32 %v4323, %v4483
        %v4598 = vadd.f32 %v4324, %v4486
        %v4599 = vadd.f32 %v4325, %v4491
        %v4600 = vadd.f32 %v4326, %v4494
        %v4601 = vadd.f32 %v4327, %v4499
        %v4602 = vadd.f32 %v4328, %v4502
        %v4603 = vadd.f32 %v4329, %v4507
        %v4604 = vadd.f32 %v4330, %v4510
        %v4605 = vadd.f32 %v4331, %v4515
        %v4606 = vadd.f32 %v4332, %v4518
        %v4607 = vadd.f32 %v4333, %v4523
        %v4608 = vadd.f32 %v4334, %v4526
        %v4609 = vadd.f32 %v4335, %v4531
        %v4610 = vadd.f32 %v4336, %v4534
        %v4611 = vadd.f32 %v4337, %v4539
        %v4612 = vadd.f32 %v4338, %v4542
        %v4613 = vadd.f32 %v4339, %v4547
        %v4614 = vadd.f32 %v4340, %v4550
        %v4615 = vadd.f32 %v4341, %v4555
        %v4616 = vadd.f32 %v4342, %v4558
        %v4617 = vadd.f32 %v4343, %v4563
        %v4618 = vadd.f32 %v4344, %v4566
        %v4619 = vadd.f32 %v4345, %v4571
        %v4620 = vadd.f32 %v4346, %v4574
        %v4621 = vadd.f32 %v4347, %v4579
        %v4622 = vadd.f32 %v4348, %v4582
        %v4623 = vadd.f32 %v4349, %v4587
        %v4624 = vadd.f32 %v4350, %v4590
        %4625 = vst [vmem:[#allocation3] sm:$0xff] %v4593
        %4626 = vst [vmem:[#allocation3 + $0x8] sm:$0xff] %v4594
        %4627 = vst [vmem:[#allocation3 + $0x10] sm:$0xff] %v4595
        %4628 = vst [vmem:[#allocation3 + $0x18] sm:$0xff] %v4596
        %4629 = vst [vmem:[#allocation3 + $0x20] sm:$0xff] %v4597
        %4630 = vst [vmem:[#allocation3 + $0x28] sm:$0xff] %v4598
        %4631 = vst [vmem:[#allocation3 + $0x30] sm:$0xff] %v4599
        %4632 = vst [vmem:[#allocation3 + $0x38] sm:$0xff] %v4600
        %4633 = vst [vmem:[#allocation3 + $0x40] sm:$0xff] %v4601
        %4634 = vst [vmem:[#allocation3 + $0x48] sm:$0xff] %v4602
        %4635 = vst [vmem:[#allocation3 + $0x50] sm:$0xff] %v4603
        %4636 = vst [vmem:[#allocation3 + $0x58] sm:$0xff] %v4604
        %4637 = vst [vmem:[#allocation3 + $0x60] sm:$0xff] %v4605
        %4638 = vst [vmem:[#allocation3 + $0x68] sm:$0xff] %v4606
        %4639 = vst [vmem:[#allocation3 + $0x70] sm:$0xff] %v4607
        %4640 = vst [vmem:[#allocation3 + $0x78] sm:$0xff] %v4608
        %4641 = vst [vmem:[#allocation3 + $0x80] sm:$0xff] %v4609
        %4642 = vst [vmem:[#allocation3 + $0x88] sm:$0xff] %v4610
        %4643 = vst [vmem:[#allocation3 + $0x90] sm:$0xff] %v4611
        %4644 = vst [vmem:[#allocation3 + $0x98] sm:$0xff] %v4612
        %4645 = vst [vmem:[#allocation3 + $0xa0] sm:$0xff] %v4613
        %4646 = vst [vmem:[#allocation3 + $0xa8] sm:$0xff] %v4614
        %4647 = vst [vmem:[#allocation3 + $0xb0] sm:$0xff] %v4615
        %4648 = vst [vmem:[#allocation3 + $0xb8] sm:$0xff] %v4616
        %4649 = vst [vmem:[#allocation3 + $0xc0] sm:$0xff] %v4617
        %4650 = vst [vmem:[#allocation3 + $0xc8] sm:$0xff] %v4618
        %4651 = vst [vmem:[#allocation3 + $0xd0] sm:$0xff] %v4619
        %4652 = vst [vmem:[#allocation3 + $0xd8] sm:$0xff] %v4620
        %4653 = vst [vmem:[#allocation3 + $0xe0] sm:$0xff] %v4621
        %4654 = vst [vmem:[#allocation3 + $0xe8] sm:$0xff] %v4622
        %4655 = vst [vmem:[#allocation3 + $0xf0] sm:$0xff] %v4623
        %4656 = vst [vmem:[#allocation3 + $0xf8] sm:$0xff] %v4624
        %v4657 = vld [vmem:[#allocation2 + $0x29] sm:$0xff]
        %v4658 = vld [vmem:[#allocation2 + $0x31] sm:$0xff]
        %v4659 = vld [vmem:[#allocation2 + $0x39] sm:$0xff]
        %v4660 = vld [vmem:[#allocation2 + $0x41] sm:$0xff]
        %v4661 = vld [vmem:[#allocation2 + $0x49] sm:$0xff]
        %v4662 = vld [vmem:[#allocation2 + $0x51] sm:$0xff]
        %v4663 = vld [vmem:[#allocation2 + $0x59] sm:$0xff]
        %v4664 = vld [vmem:[#allocation2 + $0x61] sm:$0xff]
        %v4665 = vld [vmem:[#allocation2 + $0x69] sm:$0xff]
        %v4666 = vld [vmem:[#allocation2 + $0x71] sm:$0xff]
        %v4667 = vld [vmem:[#allocation2 + $0x79] sm:$0xff]
        %v4668 = vld [vmem:[#allocation2 + $0x81] sm:$0xff]
        %v4669 = vld [vmem:[#allocation2 + $0x89] sm:$0xff]
        %v4670 = vld [vmem:[#allocation2 + $0x91] sm:$0xff]
        %v4671 = vld [vmem:[#allocation2 + $0x99] sm:$0xff]
        %v4672 = vld [vmem:[#allocation2 + $0xa1] sm:$0xff]
        %v4673 = vld [vmem:[#allocation2 + $0xa9] sm:$0xff]
        %v4674 = vld [vmem:[#allocation2 + $0xb1] sm:$0xff]
        %v4675 = vld [vmem:[#allocation2 + $0xb9] sm:$0xff]
        %v4676 = vld [vmem:[#allocation2 + $0xc1] sm:$0xff]
        %v4677 = vld [vmem:[#allocation2 + $0xc9] sm:$0xff]
        %v4678 = vld [vmem:[#allocation2 + $0xd1] sm:$0xff]
        %v4679 = vld [vmem:[#allocation2 + $0xd9] sm:$0xff]
        %v4680 = vld [vmem:[#allocation2 + $0xe1] sm:$0xff]
        %v4681 = vld [vmem:[#allocation2 + $0xe9] sm:$0xff]
        %v4682 = vld [vmem:[#allocation2 + $0xf1] sm:$0xff]
        %v4683 = vld [vmem:[#allocation2 + $0xf9] sm:$0xff]
        %v4684 = vld [vmem:[#allocation2 + $0x101] sm:$0xff]
        %v4685 = vld [vmem:[#allocation2 + $0x109] sm:$0xff]
        %v4686 = vld [vmem:[#allocation2 + $0x111] sm:$0xff]
        %v4687 = vld [vmem:[#allocation2 + $0x119] sm:$0xff]
        %v4688 = vld [vmem:[#allocation2 + $0x121] sm:$0xff]
        %v4689 = vmul.f32 %v4657, %v2184
        %v4690 = vmul.f32 %v4658, %v2189
        %v4691 = vmul.f32 %v4659, %v2194
        %v4692 = vmul.f32 %v4660, %v2199
        %v4693 = vmul.f32 %v4661, %v2204
        %v4694 = vmul.f32 %v4662, %v2209
        %v4695 = vmul.f32 %v4663, %v2214
        %v4696 = vmul.f32 %v4664, %v2219
        %v4697 = vmul.f32 %v4665, %v2224
        %v4698 = vmul.f32 %v4666, %v2229
        %v4699 = vmul.f32 %v4667, %v2234
        %v4700 = vmul.f32 %v4668, %v2239
        %v4701 = vmul.f32 %v4669, %v2244
        %v4702 = vmul.f32 %v4670, %v2249
        %v4703 = vmul.f32 %v4671, %v2254
        %v4704 = vmul.f32 %v4672, %v2259
        %v4705 = vmul.f32 %v4673, %v2264
        %v4706 = vmul.f32 %v4674, %v2269
        %v4707 = vmul.f32 %v4675, %v2274
        %v4708 = vmul.f32 %v4676, %v2279
        %v4709 = vmul.f32 %v4677, %v2284
        %v4710 = vmul.f32 %v4678, %v2289
        %v4711 = vmul.f32 %v4679, %v2294
        %v4712 = vmul.f32 %v4680, %v2299
        %v4713 = vmul.f32 %v4681, %v2304
        %v4714 = vmul.f32 %v4682, %v2309
        %v4715 = vmul.f32 %v4683, %v2314
        %v4716 = vmul.f32 %v4684, %v2319
        %v4717 = vmul.f32 %v4685, %v2324
        %v4718 = vmul.f32 %v4686, %v2329
        %v4719 = vmul.f32 %v4687, %v2334
        %v4720 = vmul.f32 %v4688, %v2339
        %v4721 = vld [vmem:[#allocation3] sm:$0xff]
        %v4722 = vld [vmem:[#allocation3 + $0x8] sm:$0xff]
        %v4723 = vld [vmem:[#allocation3 + $0x10] sm:$0xff]
        %v4724 = vld [vmem:[#allocation3 + $0x18] sm:$0xff]
        %v4725 = vld [vmem:[#allocation3 + $0x20] sm:$0xff]
        %v4726 = vld [vmem:[#allocation3 + $0x28] sm:$0xff]
        %v4727 = vld [vmem:[#allocation3 + $0x30] sm:$0xff]
        %v4728 = vld [vmem:[#allocation3 + $0x38] sm:$0xff]
        %v4729 = vld [vmem:[#allocation3 + $0x40] sm:$0xff]
        %v4730 = vld [vmem:[#allocation3 + $0x48] sm:$0xff]
        %v4731 = vld [vmem:[#allocation3 + $0x50] sm:$0xff]
        %v4732 = vld [vmem:[#allocation3 + $0x58] sm:$0xff]
        %v4733 = vld [vmem:[#allocation3 + $0x60] sm:$0xff]
        %v4734 = vld [vmem:[#allocation3 + $0x68] sm:$0xff]
        %v4735 = vld [vmem:[#allocation3 + $0x70] sm:$0xff]
        %v4736 = vld [vmem:[#allocation3 + $0x78] sm:$0xff]
        %v4737 = vld [vmem:[#allocation3 + $0x80] sm:$0xff]
        %v4738 = vld [vmem:[#allocation3 + $0x88] sm:$0xff]
        %v4739 = vld [vmem:[#allocation3 + $0x90] sm:$0xff]
        %v4740 = vld [vmem:[#allocation3 + $0x98] sm:$0xff]
        %v4741 = vld [vmem:[#allocation3 + $0xa0] sm:$0xff]
        %v4742 = vld [vmem:[#allocation3 + $0xa8] sm:$0xff]
        %v4743 = vld [vmem:[#allocation3 + $0xb0] sm:$0xff]
        %v4744 = vld [vmem:[#allocation3 + $0xb8] sm:$0xff]
        %v4745 = vld [vmem:[#allocation3 + $0xc0] sm:$0xff]
        %v4746 = vld [vmem:[#allocation3 + $0xc8] sm:$0xff]
        %v4747 = vld [vmem:[#allocation3 + $0xd0] sm:$0xff]
        %v4748 = vld [vmem:[#allocation3 + $0xd8] sm:$0xff]
        %v4749 = vld [vmem:[#allocation3 + $0xe0] sm:$0xff]
        %v4750 = vld [vmem:[#allocation3 + $0xe8] sm:$0xff]
        %v4751 = vld [vmem:[#allocation3 + $0xf0] sm:$0xff]
        %v4752 = vld [vmem:[#allocation3 + $0xf8] sm:$0xff]
        %v4753 = vpack.c.bf16 %v4690, %v4689
        %v4754 = vpack.c.bf16 %v4692, %v4691
        %v4755 = vpack.c.bf16 %v4694, %v4693
        %v4756 = vpack.c.bf16 %v4696, %v4695
        %v4757 = vpack.c.bf16 %v4698, %v4697
        %v4758 = vpack.c.bf16 %v4700, %v4699
        %v4759 = vpack.c.bf16 %v4702, %v4701
        %v4760 = vpack.c.bf16 %v4704, %v4703
        %v4761 = vpack.c.bf16 %v4706, %v4705
        %v4762 = vpack.c.bf16 %v4708, %v4707
        %v4763 = vpack.c.bf16 %v4710, %v4709
        %v4764 = vpack.c.bf16 %v4712, %v4711
        %v4765 = vpack.c.bf16 %v4714, %v4713
        %v4766 = vpack.c.bf16 %v4716, %v4715
        %v4767 = vpack.c.bf16 %v4718, %v4717
        %v4768 = vpack.c.bf16 %v4720, %v4719
        %s4769 = scalar_lea.vmem [#allocation12], 512
        %v4770 = vld [vmem:[%s4769] sm:$0xf]
        %v4771 = vld [vmem:[%s4769 + $0x4] sm:$0xf]
        %v4772 = vld [vmem:[%s4769 + $0x8] sm:$0xf]
        %v4773 = vld [vmem:[%s4769 + $0xc] sm:$0xf]
        %v4774 = vld [vmem:[%s4769 + $0x10] sm:$0xf]
        %v4775 = vld [vmem:[%s4769 + $0x14] sm:$0xf]
        %v4776 = vld [vmem:[%s4769 + $0x18] sm:$0xf]
        %v4777 = vld [vmem:[%s4769 + $0x1c] sm:$0xf]
        %v4778 = vld [vmem:[%s4769 + $0x20] sm:$0xf]
        %v4779 = vld [vmem:[%s4769 + $0x24] sm:$0xf]
        %v4780 = vld [vmem:[%s4769 + $0x28] sm:$0xf]
        %v4781 = vld [vmem:[%s4769 + $0x2c] sm:$0xf]
        %v4782 = vld [vmem:[%s4769 + $0x30] sm:$0xf]
        %v4783 = vld [vmem:[%s4769 + $0x34] sm:$0xf]
        %v4784 = vld [vmem:[%s4769 + $0x38] sm:$0xf]
        %v4785 = vld [vmem:[%s4769 + $0x3c] sm:$0xf]
        %v4802 = vunpack.c.l.b16 %v4770
        %v4803 = vunpack.c.l.b16 %v4771
        %v4804 = vunpack.c.l.b16 %v4772
        %v4805 = vunpack.c.l.b16 %v4773
        %v4806 = vunpack.c.l.b16 %v4774
        %v4807 = vunpack.c.l.b16 %v4775
        %v4808 = vunpack.c.l.b16 %v4776
        %v4809 = vunpack.c.l.b16 %v4777
        %v4810 = vunpack.c.l.b16 %v4778
        %v4811 = vunpack.c.l.b16 %v4779
        %v4812 = vunpack.c.l.b16 %v4780
        %v4813 = vunpack.c.l.b16 %v4781
        %v4814 = vunpack.c.l.b16 %v4782
        %v4815 = vunpack.c.l.b16 %v4783
        %v4816 = vunpack.c.l.b16 %v4784
        %v4817 = vunpack.c.l.b16 %v4785
        %v4818 = vpack.c.b16 %v4803, %v4802
        %v4819 = vpack.c.b16 %v4805, %v4804
        %v4820 = vpack.c.b16 %v4807, %v4806
        %v4821 = vpack.c.b16 %v4809, %v4808
        %v4822 = vpack.c.b16 %v4811, %v4810
        %v4823 = vpack.c.b16 %v4813, %v4812
        %v4824 = vpack.c.b16 %v4815, %v4814
        %v4825 = vpack.c.b16 %v4817, %v4816
        %4834 = vmatprep.subr.bf16.mxu0 0
        %4835 = vmatpush1.bf16.msra.mxu0 %v4818
        %4836 = vmatprep.subr.bf16.mxu0 0
        %4837 = vmatpush1.bf16.msra.mxu0 %v4819
        %4838 = vmatprep.subr.bf16.mxu0 0
        %4839 = vmatpush1.bf16.msra.mxu0 %v4820
        %4840 = vmatprep.subr.bf16.mxu0 0
        %4841 = vmatpush1.bf16.msra.mxu0 %v4821
        %4842 = vmatprep.subr.bf16.mxu0 0
        %4843 = vmatpush1.bf16.msra.mxu0 %v4822
        %4844 = vmatprep.subr.bf16.mxu0 0
        %4845 = vmatpush1.bf16.msra.mxu0 %v4823
        %4846 = vmatprep.subr.bf16.mxu0 0
        %4847 = vmatpush1.bf16.msra.mxu0 %v4824
        %4848 = vmatprep.subr.bf16.mxu0 0
        %4849 = vmatpush1.bf16.msra.mxu0 %v4825
        %4850 = vmatprep.subr.bf16.mxu0 0
        %4851 = vmatpush1.bf16.msra.mxu0 0
        %4852 = vmatprep.subr.bf16.mxu0 0
        %4853 = vmatpush1.bf16.msra.mxu0 0
        %4854 = vmatprep.subr.bf16.mxu0 0
        %4855 = vmatpush1.bf16.msra.mxu0 0
        %4856 = vmatprep.subr.bf16.mxu0 0
        %4857 = vmatpush1.bf16.msra.mxu0 0
        %4858 = vmatprep.subr.bf16.mxu0 0
        %4859 = vmatpush1.bf16.msra.mxu0 0
        %4860 = vmatprep.subr.bf16.mxu0 0
        %4861 = vmatpush1.bf16.msra.mxu0 0
        %4862 = vmatprep.subr.bf16.mxu0 0
        %4863 = vmatpush1.bf16.msra.mxu0 0
        %4864 = vmatprep.subr.bf16.mxu0 0
        %4865 = vmatpush1.bf16.msra.mxu0 0
        %4866 = vmatprep.mubr.bf16.mxu0 0
        %4867 = vmatmul.mubr.bf16.gmra.mrb[0].mxu0 %v4753
        %v4868 = vpop.f32.mrb[0].mxu0
        %v4869 = vadd.f32 0.0, %v4868
        %v4870 = vpop.f32.mrb[0].mxu0
        %v4871 = vpop.f32.mrb[0].mxu0
        %v4872 = vadd.f32 0.0, %v4871
        %v4873 = vpop.f32.mrb[0].mxu0
        %4874 = vmatprep.mubr.bf16.mxu0 0
        %4875 = vmatmul.mubr.bf16.gmra.mrb[0].mxu0 %v4754
        %v4876 = vpop.f32.mrb[0].mxu0
        %v4877 = vadd.f32 0.0, %v4876
        %v4878 = vpop.f32.mrb[0].mxu0
        %v4879 = vpop.f32.mrb[0].mxu0
        %v4880 = vadd.f32 0.0, %v4879
        %v4881 = vpop.f32.mrb[0].mxu0
        %4882 = vmatprep.mubr.bf16.mxu0 0
        %4883 = vmatmul.mubr.bf16.gmra.mrb[0].mxu0 %v4755
        %v4884 = vpop.f32.mrb[0].mxu0
        %v4885 = vadd.f32 0.0, %v4884
        %v4886 = vpop.f32.mrb[0].mxu0
        %v4887 = vpop.f32.mrb[0].mxu0
        %v4888 = vadd.f32 0.0, %v4887
        %v4889 = vpop.f32.mrb[0].mxu0
        %4890 = vmatprep.mubr.bf16.mxu0 0
        %4891 = vmatmul.mubr.bf16.gmra.mrb[0].mxu0 %v4756
        %v4892 = vpop.f32.mrb[0].mxu0
        %v4893 = vadd.f32 0.0, %v4892
        %v4894 = vpop.f32.mrb[0].mxu0
        %v4895 = vpop.f32.mrb[0].mxu0
        %v4896 = vadd.f32 0.0, %v4895
        %v4897 = vpop.f32.mrb[0].mxu0
        %4898 = vmatprep.mubr.bf16.mxu0 0
        %4899 = vmatmul.mubr.bf16.gmra.mrb[0].mxu0 %v4757
        %v4900 = vpop.f32.mrb[0].mxu0
        %v4901 = vadd.f32 0.0, %v4900
        %v4902 = vpop.f32.mrb[0].mxu0
        %v4903 = vpop.f32.mrb[0].mxu0
        %v4904 = vadd.f32 0.0, %v4903
        %v4905 = vpop.f32.mrb[0].mxu0
        %4906 = vmatprep.mubr.bf16.mxu0 0
        %4907 = vmatmul.mubr.bf16.gmra.mrb[0].mxu0 %v4758
        %v4908 = vpop.f32.mrb[0].mxu0
        %v4909 = vadd.f32 0.0, %v4908
        %v4910 = vpop.f32.mrb[0].mxu0
        %v4911 = vpop.f32.mrb[0].mxu0
        %v4912 = vadd.f32 0.0, %v4911
        %v4913 = vpop.f32.mrb[0].mxu0
        %4914 = vmatprep.mubr.bf16.mxu0 0
        %4915 = vmatmul.mubr.bf16.gmra.mrb[0].mxu0 %v4759
        %v4916 = vpop.f32.mrb[0].mxu0
        %v4917 = vadd.f32 0.0, %v4916
        %v4918 = vpop.f32.mrb[0].mxu0
        %v4919 = vpop.f32.mrb[0].mxu0
        %v4920 = vadd.f32 0.0, %v4919
        %v4921 = vpop.f32.mrb[0].mxu0
        %4922 = vmatprep.mubr.bf16.mxu0 0
        %4923 = vmatmul.mubr.bf16.gmra.mrb[0].mxu0 %v4760
        %v4924 = vpop.f32.mrb[0].mxu0
        %v4925 = vadd.f32 0.0, %v4924
        %v4926 = vpop.f32.mrb[0].mxu0
        %v4927 = vpop.f32.mrb[0].mxu0
        %v4928 = vadd.f32 0.0, %v4927
        %v4929 = vpop.f32.mrb[0].mxu0
        %4930 = vmatprep.mubr.bf16.mxu0 0
        %4931 = vmatmul.mubr.bf16.gmra.mrb[0].mxu0 %v4761
        %v4932 = vpop.f32.mrb[0].mxu0
        %v4933 = vadd.f32 0.0, %v4932
        %v4934 = vpop.f32.mrb[0].mxu0
        %v4935 = vpop.f32.mrb[0].mxu0
        %v4936 = vadd.f32 0.0, %v4935
        %v4937 = vpop.f32.mrb[0].mxu0
        %4938 = vmatprep.mubr.bf16.mxu0 0
        %4939 = vmatmul.mubr.bf16.gmra.mrb[0].mxu0 %v4762
        %v4940 = vpop.f32.mrb[0].mxu0
        %v4941 = vadd.f32 0.0, %v4940
        %v4942 = vpop.f32.mrb[0].mxu0
        %v4943 = vpop.f32.mrb[0].mxu0
        %v4944 = vadd.f32 0.0, %v4943
        %v4945 = vpop.f32.mrb[0].mxu0
        %4946 = vmatprep.mubr.bf16.mxu0 0
        %4947 = vmatmul.mubr.bf16.gmra.mrb[0].mxu0 %v4763
        %v4948 = vpop.f32.mrb[0].mxu0
        %v4949 = vadd.f32 0.0, %v4948
        %v4950 = vpop.f32.mrb[0].mxu0
        %v4951 = vpop.f32.mrb[0].mxu0
        %v4952 = vadd.f32 0.0, %v4951
        %v4953 = vpop.f32.mrb[0].mxu0
        %4954 = vmatprep.mubr.bf16.mxu0 0
        %4955 = vmatmul.mubr.bf16.gmra.mrb[0].mxu0 %v4764
        %v4956 = vpop.f32.mrb[0].mxu0
        %v4957 = vadd.f32 0.0, %v4956
        %v4958 = vpop.f32.mrb[0].mxu0
        %v4959 = vpop.f32.mrb[0].mxu0
        %v4960 = vadd.f32 0.0, %v4959
        %v4961 = vpop.f32.mrb[0].mxu0
        %4962 = vmatprep.mubr.bf16.mxu0 0
        %4963 = vmatmul.mubr.bf16.gmra.mrb[0].mxu0 %v4765
        %v4964 = vpop.f32.mrb[0].mxu0
        %v4965 = vadd.f32 0.0, %v4964
        %v4966 = vpop.f32.mrb[0].mxu0
        %v4967 = vpop.f32.mrb[0].mxu0
        %v4968 = vadd.f32 0.0, %v4967
        %v4969 = vpop.f32.mrb[0].mxu0
        %4970 = vmatprep.mubr.bf16.mxu0 0
        %4971 = vmatmul.mubr.bf16.gmra.mrb[0].mxu0 %v4766
        %v4972 = vpop.f32.mrb[0].mxu0
        %v4973 = vadd.f32 0.0, %v4972
        %v4974 = vpop.f32.mrb[0].mxu0
        %v4975 = vpop.f32.mrb[0].mxu0
        %v4976 = vadd.f32 0.0, %v4975
        %v4977 = vpop.f32.mrb[0].mxu0
        %4978 = vmatprep.mubr.bf16.mxu0 0
        %4979 = vmatmul.mubr.bf16.gmra.mrb[0].mxu0 %v4767
        %v4980 = vpop.f32.mrb[0].mxu0
        %v4981 = vadd.f32 0.0, %v4980
        %v4982 = vpop.f32.mrb[0].mxu0
        %v4983 = vpop.f32.mrb[0].mxu0
        %v4984 = vadd.f32 0.0, %v4983
        %v4985 = vpop.f32.mrb[0].mxu0
        %4986 = vmatprep.mubr.bf16.mxu0 0
        %4987 = vmatmul.mubr.bf16.gmra.mrb[0].mxu0 %v4768
        %v4988 = vpop.f32.mrb[0].mxu0
        %v4989 = vadd.f32 0.0, %v4988
        %v4990 = vpop.f32.mrb[0].mxu0
        %v4991 = vpop.f32.mrb[0].mxu0
        %v4992 = vadd.f32 0.0, %v4991
        %v4993 = vpop.f32.mrb[0].mxu0
        %4994 = vdwg.mxu0
        %v4995 = vadd.f32 %v4721, %v4869
        %v4996 = vadd.f32 %v4722, %v4872
        %v4997 = vadd.f32 %v4723, %v4877
        %v4998 = vadd.f32 %v4724, %v4880
        %v4999 = vadd.f32 %v4725, %v4885
        %v5000 = vadd.f32 %v4726, %v4888
        %v5001 = vadd.f32 %v4727, %v4893
        %v5002 = vadd.f32 %v4728, %v4896
        %v5003 = vadd.f32 %v4729, %v4901
        %v5004 = vadd.f32 %v4730, %v4904
        %v5005 = vadd.f32 %v4731, %v4909
        %v5006 = vadd.f32 %v4732, %v4912
        %v5007 = vadd.f32 %v4733, %v4917
        %v5008 = vadd.f32 %v4734, %v4920
        %v5009 = vadd.f32 %v4735, %v4925
        %v5010 = vadd.f32 %v4736, %v4928
        %v5011 = vadd.f32 %v4737, %v4933
        %v5012 = vadd.f32 %v4738, %v4936
        %v5013 = vadd.f32 %v4739, %v4941
        %v5014 = vadd.f32 %v4740, %v4944
        %v5015 = vadd.f32 %v4741, %v4949
        %v5016 = vadd.f32 %v4742, %v4952
        %v5017 = vadd.f32 %v4743, %v4957
        %v5018 = vadd.f32 %v4744, %v4960
        %v5019 = vadd.f32 %v4745, %v4965
        %v5020 = vadd.f32 %v4746, %v4968
        %v5021 = vadd.f32 %v4747, %v4973
        %v5022 = vadd.f32 %v4748, %v4976
        %v5023 = vadd.f32 %v4749, %v4981
        %v5024 = vadd.f32 %v4750, %v4984
        %v5025 = vadd.f32 %v4751, %v4989
        %v5026 = vadd.f32 %v4752, %v4992
        %5027 = vst [vmem:[#allocation3] sm:$0xff] %v4995
        %5028 = vst [vmem:[#allocation3 + $0x8] sm:$0xff] %v4996
        %5029 = vst [vmem:[#allocation3 + $0x10] sm:$0xff] %v4997
        %5030 = vst [vmem:[#allocation3 + $0x18] sm:$0xff] %v4998
        %5031 = vst [vmem:[#allocation3 + $0x20] sm:$0xff] %v4999
        %5032 = vst [vmem:[#allocation3 + $0x28] sm:$0xff] %v5000
        %5033 = vst [vmem:[#allocation3 + $0x30] sm:$0xff] %v5001
        %5034 = vst [vmem:[#allocation3 + $0x38] sm:$0xff] %v5002
        %5035 = vst [vmem:[#allocation3 + $0x40] sm:$0xff] %v5003
        %5036 = vst [vmem:[#allocation3 + $0x48] sm:$0xff] %v5004
        %5037 = vst [vmem:[#allocation3 + $0x50] sm:$0xff] %v5005
        %5038 = vst [vmem:[#allocation3 + $0x58] sm:$0xff] %v5006
        %5039 = vst [vmem:[#allocation3 + $0x60] sm:$0xff] %v5007
        %5040 = vst [vmem:[#allocation3 + $0x68] sm:$0xff] %v5008
        %5041 = vst [vmem:[#allocation3 + $0x70] sm:$0xff] %v5009
        %5042 = vst [vmem:[#allocation3 + $0x78] sm:$0xff] %v5010
        %5043 = vst [vmem:[#allocation3 + $0x80] sm:$0xff] %v5011
        %5044 = vst [vmem:[#allocation3 + $0x88] sm:$0xff] %v5012
        %5045 = vst [vmem:[#allocation3 + $0x90] sm:$0xff] %v5013
        %5046 = vst [vmem:[#allocation3 + $0x98] sm:$0xff] %v5014
        %5047 = vst [vmem:[#allocation3 + $0xa0] sm:$0xff] %v5015
        %5048 = vst [vmem:[#allocation3 + $0xa8] sm:$0xff] %v5016
        %5049 = vst [vmem:[#allocation3 + $0xb0] sm:$0xff] %v5017
        %5050 = vst [vmem:[#allocation3 + $0xb8] sm:$0xff] %v5018
        %5051 = vst [vmem:[#allocation3 + $0xc0] sm:$0xff] %v5019
        %5052 = vst [vmem:[#allocation3 + $0xc8] sm:$0xff] %v5020
        %5053 = vst [vmem:[#allocation3 + $0xd0] sm:$0xff] %v5021
        %5054 = vst [vmem:[#allocation3 + $0xd8] sm:$0xff] %v5022
        %5055 = vst [vmem:[#allocation3 + $0xe0] sm:$0xff] %v5023
        %5056 = vst [vmem:[#allocation3 + $0xe8] sm:$0xff] %v5024
        %5057 = vst [vmem:[#allocation3 + $0xf0] sm:$0xff] %v5025
        %5058 = vst [vmem:[#allocation3 + $0xf8] sm:$0xff] %v5026
        %v5059 = vld [vmem:[#allocation3] sm:$0xff]
        %v5060 = vld [vmem:[#allocation3 + $0x8] sm:$0xff]
        %v5061 = vld [vmem:[#allocation3 + $0x10] sm:$0xff]
        %v5062 = vld [vmem:[#allocation3 + $0x18] sm:$0xff]
        %v5063 = vld [vmem:[#allocation3 + $0x20] sm:$0xff]
        %v5064 = vld [vmem:[#allocation3 + $0x28] sm:$0xff]
        %v5065 = vld [vmem:[#allocation3 + $0x30] sm:$0xff]
        %v5066 = vld [vmem:[#allocation3 + $0x38] sm:$0xff]
        %v5067 = vld [vmem:[#allocation3 + $0x40] sm:$0xff]
        %v5068 = vld [vmem:[#allocation3 + $0x48] sm:$0xff]
        %v5069 = vld [vmem:[#allocation3 + $0x50] sm:$0xff]
        %v5070 = vld [vmem:[#allocation3 + $0x58] sm:$0xff]
        %v5071 = vld [vmem:[#allocation3 + $0x60] sm:$0xff]
        %v5072 = vld [vmem:[#allocation3 + $0x68] sm:$0xff]
        %v5073 = vld [vmem:[#allocation3 + $0x70] sm:$0xff]
        %v5074 = vld [vmem:[#allocation3 + $0x78] sm:$0xff]
        %v5075 = vld [vmem:[#allocation3 + $0x80] sm:$0xff]
        %v5076 = vld [vmem:[#allocation3 + $0x88] sm:$0xff]
        %v5077 = vld [vmem:[#allocation3 + $0x90] sm:$0xff]
        %v5078 = vld [vmem:[#allocation3 + $0x98] sm:$0xff]
        %v5079 = vld [vmem:[#allocation3 + $0xa0] sm:$0xff]
        %v5080 = vld [vmem:[#allocation3 + $0xa8] sm:$0xff]
        %v5081 = vld [vmem:[#allocation3 + $0xb0] sm:$0xff]
        %v5082 = vld [vmem:[#allocation3 + $0xb8] sm:$0xff]
        %v5083 = vld [vmem:[#allocation3 + $0xc0] sm:$0xff]
        %v5084 = vld [vmem:[#allocation3 + $0xc8] sm:$0xff]
        %v5085 = vld [vmem:[#allocation3 + $0xd0] sm:$0xff]
        %v5086 = vld [vmem:[#allocation3 + $0xd8] sm:$0xff]
        %v5087 = vld [vmem:[#allocation3 + $0xe0] sm:$0xff]
        %v5088 = vld [vmem:[#allocation3 + $0xe8] sm:$0xff]
        %v5089 = vld [vmem:[#allocation3 + $0xf0] sm:$0xff]
        %v5090 = vld [vmem:[#allocation3 + $0xf8] sm:$0xff]
        %v5091 = vld [vmem:[#allocation13] sm:$0x1]
        %v5093 = vlaneseq
        %v5094 = vshrl.u32 %v5093, 7
        %v5095 = vsub.s32 0, %v5094
        %v5096 = vrot.slane %v5091, %v5095
        %v5098 = vmul.f32 %v5059, %v5096
        %v5099 = vmul.f32 %v5060, %v5096
        %v5100 = vmul.f32 %v5061, %v5096
        %v5101 = vmul.f32 %v5062, %v5096
        %v5102 = vmul.f32 %v5063, %v5096
        %v5103 = vmul.f32 %v5064, %v5096
        %v5104 = vmul.f32 %v5065, %v5096
        %v5105 = vmul.f32 %v5066, %v5096
        %v5106 = vmul.f32 %v5067, %v5096
        %v5107 = vmul.f32 %v5068, %v5096
        %v5108 = vmul.f32 %v5069, %v5096
        %v5109 = vmul.f32 %v5070, %v5096
        %v5110 = vmul.f32 %v5071, %v5096
        %v5111 = vmul.f32 %v5072, %v5096
        %v5112 = vmul.f32 %v5073, %v5096
        %v5113 = vmul.f32 %v5074, %v5096
        %v5114 = vmul.f32 %v5075, %v5096
        %v5115 = vmul.f32 %v5076, %v5096
        %v5116 = vmul.f32 %v5077, %v5096
        %v5117 = vmul.f32 %v5078, %v5096
        %v5118 = vmul.f32 %v5079, %v5096
        %v5119 = vmul.f32 %v5080, %v5096
        %v5120 = vmul.f32 %v5081, %v5096
        %v5121 = vmul.f32 %v5082, %v5096
        %v5122 = vmul.f32 %v5083, %v5096
        %v5123 = vmul.f32 %v5084, %v5096
        %v5124 = vmul.f32 %v5085, %v5096
        %v5125 = vmul.f32 %v5086, %v5096
        %v5126 = vmul.f32 %v5087, %v5096
        %v5127 = vmul.f32 %v5088, %v5096
        %v5128 = vmul.f32 %v5089, %v5096
        %v5129 = vmul.f32 %v5090, %v5096
        %v5130 = vld [vmem:[#allocation15] sm:$0x1]
        %v5132 = vlaneseq
        %v5133 = vshrl.u32 %v5132, 7
        %v5134 = vsub.s32 0, %v5133
        %v5135 = vrot.slane %v5130, %v5134
        %v5137 = vadd.f32 %v5098, %v5135
        %v5138 = vadd.f32 %v5099, %v5135
        %v5139 = vadd.f32 %v5100, %v5135
        %v5140 = vadd.f32 %v5101, %v5135
        %v5141 = vadd.f32 %v5102, %v5135
        %v5142 = vadd.f32 %v5103, %v5135
        %v5143 = vadd.f32 %v5104, %v5135
        %v5144 = vadd.f32 %v5105, %v5135
        %v5145 = vadd.f32 %v5106, %v5135
        %v5146 = vadd.f32 %v5107, %v5135
        %v5147 = vadd.f32 %v5108, %v5135
        %v5148 = vadd.f32 %v5109, %v5135
        %v5149 = vadd.f32 %v5110, %v5135
        %v5150 = vadd.f32 %v5111, %v5135
        %v5151 = vadd.f32 %v5112, %v5135
        %v5152 = vadd.f32 %v5113, %v5135
        %v5153 = vadd.f32 %v5114, %v5135
        %v5154 = vadd.f32 %v5115, %v5135
        %v5155 = vadd.f32 %v5116, %v5135
        %v5156 = vadd.f32 %v5117, %v5135
        %v5157 = vadd.f32 %v5118, %v5135
        %v5158 = vadd.f32 %v5119, %v5135
        %v5159 = vadd.f32 %v5120, %v5135
        %v5160 = vadd.f32 %v5121, %v5135
        %v5161 = vadd.f32 %v5122, %v5135
        %v5162 = vadd.f32 %v5123, %v5135
        %v5163 = vadd.f32 %v5124, %v5135
        %v5164 = vadd.f32 %v5125, %v5135
        %v5165 = vadd.f32 %v5126, %v5135
        %v5166 = vadd.f32 %v5127, %v5135
        %v5167 = vadd.f32 %v5128, %v5135
        %v5168 = vadd.f32 %v5129, %v5135
        %v5169 = vmax.f32 %v5137, 0.0
        %v5170 = vmax.f32 %v5138, 0.0
        %v5171 = vmax.f32 %v5139, 0.0
        %v5172 = vmax.f32 %v5140, 0.0
        %v5173 = vmax.f32 %v5141, 0.0
        %v5174 = vmax.f32 %v5142, 0.0
        %v5175 = vmax.f32 %v5143, 0.0
        %v5176 = vmax.f32 %v5144, 0.0
        %v5177 = vmax.f32 %v5145, 0.0
        %v5178 = vmax.f32 %v5146, 0.0
        %v5179 = vmax.f32 %v5147, 0.0
        %v5180 = vmax.f32 %v5148, 0.0
        %v5181 = vmax.f32 %v5149, 0.0
        %v5182 = vmax.f32 %v5150, 0.0
        %v5183 = vmax.f32 %v5151, 0.0
        %v5184 = vmax.f32 %v5152, 0.0
        %v5185 = vmax.f32 %v5153, 0.0
        %v5186 = vmax.f32 %v5154, 0.0
        %v5187 = vmax.f32 %v5155, 0.0
        %v5188 = vmax.f32 %v5156, 0.0
        %v5189 = vmax.f32 %v5157, 0.0
        %v5190 = vmax.f32 %v5158, 0.0
        %v5191 = vmax.f32 %v5159, 0.0
        %v5192 = vmax.f32 %v5160, 0.0
        %v5193 = vmax.f32 %v5161, 0.0
        %v5194 = vmax.f32 %v5162, 0.0
        %v5195 = vmax.f32 %v5163, 0.0
        %v5196 = vmax.f32 %v5164, 0.0
        %v5197 = vmax.f32 %v5165, 0.0
        %v5198 = vmax.f32 %v5166, 0.0
        %v5199 = vmax.f32 %v5167, 0.0
        %v5200 = vmax.f32 %v5168, 0.0
        %5201 = vst [vmem:[#allocation3] sm:$0xff] %v5169
        %5202 = vst [vmem:[#allocation3 + $0x8] sm:$0xff] %v5170
        %5203 = vst [vmem:[#allocation3 + $0x10] sm:$0xff] %v5171
        %5204 = vst [vmem:[#allocation3 + $0x18] sm:$0xff] %v5172
        %5205 = vst [vmem:[#allocation3 + $0x20] sm:$0xff] %v5173
        %5206 = vst [vmem:[#allocation3 + $0x28] sm:$0xff] %v5174
        %5207 = vst [vmem:[#allocation3 + $0x30] sm:$0xff] %v5175
        %5208 = vst [vmem:[#allocation3 + $0x38] sm:$0xff] %v5176
        %5209 = vst [vmem:[#allocation3 + $0x40] sm:$0xff] %v5177
        %5210 = vst [vmem:[#allocation3 + $0x48] sm:$0xff] %v5178
        %5211 = vst [vmem:[#allocation3 + $0x50] sm:$0xff] %v5179
        %5212 = vst [vmem:[#allocation3 + $0x58] sm:$0xff] %v5180
        %5213 = vst [vmem:[#allocation3 + $0x60] sm:$0xff] %v5181
        %5214 = vst [vmem:[#allocation3 + $0x68] sm:$0xff] %v5182
        %5215 = vst [vmem:[#allocation3 + $0x70] sm:$0xff] %v5183
        %5216 = vst [vmem:[#allocation3 + $0x78] sm:$0xff] %v5184
        %5217 = vst [vmem:[#allocation3 + $0x80] sm:$0xff] %v5185
        %5218 = vst [vmem:[#allocation3 + $0x88] sm:$0xff] %v5186
        %5219 = vst [vmem:[#allocation3 + $0x90] sm:$0xff] %v5187
        %5220 = vst [vmem:[#allocation3 + $0x98] sm:$0xff] %v5188
        %5221 = vst [vmem:[#allocation3 + $0xa0] sm:$0xff] %v5189
        %5222 = vst [vmem:[#allocation3 + $0xa8] sm:$0xff] %v5190
        %5223 = vst [vmem:[#allocation3 + $0xb0] sm:$0xff] %v5191
        %5224 = vst [vmem:[#allocation3 + $0xb8] sm:$0xff] %v5192
        %5225 = vst [vmem:[#allocation3 + $0xc0] sm:$0xff] %v5193
        %5226 = vst [vmem:[#allocation3 + $0xc8] sm:$0xff] %v5194
        %5227 = vst [vmem:[#allocation3 + $0xd0] sm:$0xff] %v5195
        %5228 = vst [vmem:[#allocation3 + $0xd8] sm:$0xff] %v5196
        %5229 = vst [vmem:[#allocation3 + $0xe0] sm:$0xff] %v5197
        %5230 = vst [vmem:[#allocation3 + $0xe8] sm:$0xff] %v5198
        %5231 = vst [vmem:[#allocation3 + $0xf0] sm:$0xff] %v5199
        %5232 = vst [vmem:[#allocation3 + $0xf8] sm:$0xff] %v5200
        %v5233 = vld [vmem:[#allocation3] ss:$2 sm:$0xff]
        %s5234 = scalar_lea.vmem [#allocation3], 16
        %v5235 = vld [vmem:[%s5234] ss:$2 sm:$0xff]
        %s5236 = scalar_lea.vmem [#allocation3], 32
        %v5237 = vld [vmem:[%s5236] ss:$2 sm:$0xff]
        %s5238 = scalar_lea.vmem [#allocation3], 48
        %v5239 = vld [vmem:[%s5238] ss:$2 sm:$0xff]
        %s5240 = scalar_lea.vmem [#allocation3], 64
        %v5241 = vld [vmem:[%s5240] ss:$2 sm:$0xff]
        %s5242 = scalar_lea.vmem [#allocation3], 80
        %v5243 = vld [vmem:[%s5242] ss:$2 sm:$0xff]
        %s5244 = scalar_lea.vmem [#allocation3], 96
        %v5245 = vld [vmem:[%s5244] ss:$2 sm:$0xff]
        %s5246 = scalar_lea.vmem [#allocation3], 112
        %v5247 = vld [vmem:[%s5246] ss:$2 sm:$0xff]
        %s5248 = scalar_lea.vmem [#allocation3], 128
        %v5249 = vld [vmem:[%s5248] ss:$2 sm:$0xff]
        %s5250 = scalar_lea.vmem [#allocation3], 144
        %v5251 = vld [vmem:[%s5250] ss:$2 sm:$0xff]
        %s5252 = scalar_lea.vmem [#allocation3], 160
        %v5253 = vld [vmem:[%s5252] ss:$2 sm:$0xff]
        %s5254 = scalar_lea.vmem [#allocation3], 176
        %v5255 = vld [vmem:[%s5254] ss:$2 sm:$0xff]
        %s5256 = scalar_lea.vmem [#allocation3], 192
        %v5257 = vld [vmem:[%s5256] ss:$2 sm:$0xff]
        %s5258 = scalar_lea.vmem [#allocation3], 208
        %v5259 = vld [vmem:[%s5258] ss:$2 sm:$0xff]
        %s5260 = scalar_lea.vmem [#allocation3], 224
        %v5261 = vld [vmem:[%s5260] ss:$2 sm:$0xff]
        %s5262 = scalar_lea.vmem [#allocation3], 240
        %v5263 = vld [vmem:[%s5262] ss:$2 sm:$0xff]
        %s5264 = scalar_lea.vmem [#allocation3], 1
        %v5265 = vld [vmem:[%s5264] ss:$2 sm:$0xff]
        %s5266 = scalar_lea.vmem [#allocation3], 17
        %v5267 = vld [vmem:[%s5266] ss:$2 sm:$0xff]
        %s5268 = scalar_lea.vmem [#allocation3], 33
        %v5269 = vld [vmem:[%s5268] ss:$2 sm:$0xff]
        %s5270 = scalar_lea.vmem [#allocation3], 49
        %v5271 = vld [vmem:[%s5270] ss:$2 sm:$0xff]
        %s5272 = scalar_lea.vmem [#allocation3], 65
        %v5273 = vld [vmem:[%s5272] ss:$2 sm:$0xff]
        %s5274 = scalar_lea.vmem [#allocation3], 81
        %v5275 = vld [vmem:[%s5274] ss:$2 sm:$0xff]
        %s5276 = scalar_lea.vmem [#allocation3], 97
        %v5277 = vld [vmem:[%s5276] ss:$2 sm:$0xff]
        %s5278 = scalar_lea.vmem [#allocation3], 113
        %v5279 = vld [vmem:[%s5278] ss:$2 sm:$0xff]
        %s5280 = scalar_lea.vmem [#allocation3], 129
        %v5281 = vld [vmem:[%s5280] ss:$2 sm:$0xff]
        %s5282 = scalar_lea.vmem [#allocation3], 145
        %v5283 = vld [vmem:[%s5282] ss:$2 sm:$0xff]
        %s5284 = scalar_lea.vmem [#allocation3], 161
        %v5285 = vld [vmem:[%s5284] ss:$2 sm:$0xff]
        %s5286 = scalar_lea.vmem [#allocation3], 177
        %v5287 = vld [vmem:[%s5286] ss:$2 sm:$0xff]
        %s5288 = scalar_lea.vmem [#allocation3], 193
        %v5289 = vld [vmem:[%s5288] ss:$2 sm:$0xff]
        %s5290 = scalar_lea.vmem [#allocation3], 209
        %v5291 = vld [vmem:[%s5290] ss:$2 sm:$0xff]
        %s5292 = scalar_lea.vmem [#allocation3], 225
        %v5293 = vld [vmem:[%s5292] ss:$2 sm:$0xff]
        %s5294 = scalar_lea.vmem [#allocation3], 241
        %v5295 = vld [vmem:[%s5294] ss:$2 sm:$0xff]
        %v5296 = vadd.f32 %v5233, %v5265
        %v5297 = vadd.f32 %v5235, %v5267
        %v5298 = vadd.f32 %v5237, %v5269
        %v5299 = vadd.f32 %v5239, %v5271
        %v5300 = vadd.f32 %v5241, %v5273
        %v5301 = vadd.f32 %v5243, %v5275
        %v5302 = vadd.f32 %v5245, %v5277
        %v5303 = vadd.f32 %v5247, %v5279
        %v5304 = vadd.f32 %v5249, %v5281
        %v5305 = vadd.f32 %v5251, %v5283
        %v5306 = vadd.f32 %v5253, %v5285
        %v5307 = vadd.f32 %v5255, %v5287
        %v5308 = vadd.f32 %v5257, %v5289
        %v5309 = vadd.f32 %v5259, %v5291
        %v5310 = vadd.f32 %v5261, %v5293
        %v5311 = vadd.f32 %v5263, %v5295
        %v5312 = vadd.f32 %v5296, %v5297
        %v5313 = vadd.f32 %v5298, %v5299
        %v5314 = vadd.f32 %v5300, %v5301
        %v5315 = vadd.f32 %v5302, %v5303
        %v5316 = vadd.f32 %v5304, %v5305
        %v5317 = vadd.f32 %v5306, %v5307
        %v5318 = vadd.f32 %v5308, %v5309
        %v5319 = vadd.f32 %v5310, %v5311
        %v5320 = vmul.f32 %v5312, 0.25
        %v5321 = vmul.f32 %v5313, 0.25
        %v5322 = vmul.f32 %v5314, 0.25
        %v5323 = vmul.f32 %v5315, 0.25
        %v5324 = vmul.f32 %v5316, 0.25
        %v5325 = vmul.f32 %v5317, 0.25
        %v5326 = vmul.f32 %v5318, 0.25
        %v5327 = vmul.f32 %v5319, 0.25
        %v5328 = vpack.c.bf16 %v5321, %v5320
        %v5329 = vpack.c.bf16 %v5323, %v5322
        %v5330 = vpack.c.bf16 %v5325, %v5324
        %v5331 = vpack.c.bf16 %v5327, %v5326
        %v5332 = vld [vmem:[#allocation19] sm:$0xf]
        %v5333 = vld [vmem:[#allocation19 + $0x4] sm:$0xf]
        %v5334 = vld [vmem:[#allocation19 + $0x8] sm:$0xf]
        %v5335 = vld [vmem:[#allocation19 + $0xc] sm:$0xf]
        %v5336 = vld [vmem:[#allocation19 + $0x10] sm:$0xf]
        %v5337 = vld [vmem:[#allocation19 + $0x14] sm:$0xf]
        %v5338 = vld [vmem:[#allocation19 + $0x18] sm:$0xf]
        %v5339 = vld [vmem:[#allocation19 + $0x1c] sm:$0xf]
        %v5340 = vld [vmem:[#allocation19 + $0x20] sm:$0xf]
        %v5341 = vld [vmem:[#allocation19 + $0x24] sm:$0xf]
        %v5342 = vld [vmem:[#allocation19 + $0x28] sm:$0xf]
        %v5343 = vld [vmem:[#allocation19 + $0x2c] sm:$0xf]
        %v5344 = vld [vmem:[#allocation19 + $0x30] sm:$0xf]
        %v5345 = vld [vmem:[#allocation19 + $0x34] sm:$0xf]
        %v5346 = vld [vmem:[#allocation19 + $0x38] sm:$0xf]
        %v5347 = vld [vmem:[#allocation19 + $0x3c] sm:$0xf]
        %v5364 = vunpack.c.l.b16 %v5332
        %v5365 = vunpack.c.l.b16 %v5333
        %v5366 = vunpack.c.l.b16 %v5334
        %v5367 = vunpack.c.l.b16 %v5335
        %v5368 = vunpack.c.l.b16 %v5336
        %v5369 = vunpack.c.l.b16 %v5337
        %v5370 = vunpack.c.l.b16 %v5338
        %v5371 = vunpack.c.l.b16 %v5339
        %v5372 = vunpack.c.l.b16 %v5340
        %v5373 = vunpack.c.l.b16 %v5341
        %v5374 = vunpack.c.l.b16 %v5342
        %v5375 = vunpack.c.l.b16 %v5343
        %v5376 = vunpack.c.l.b16 %v5344
        %v5377 = vunpack.c.l.b16 %v5345
        %v5378 = vunpack.c.l.b16 %v5346
        %v5379 = vunpack.c.l.b16 %v5347
        %v5380 = vpack.c.b16 %v5365, %v5364
        %v5381 = vpack.c.b16 %v5367, %v5366
        %v5382 = vpack.c.b16 %v5369, %v5368
        %v5383 = vpack.c.b16 %v5371, %v5370
        %v5384 = vpack.c.b16 %v5373, %v5372
        %v5385 = vpack.c.b16 %v5375, %v5374
        %v5386 = vpack.c.b16 %v5377, %v5376
        %v5387 = vpack.c.b16 %v5379, %v5378
        %5396 = vmatprep.subr.bf16.mxu0 0
        %5397 = vmatpush1.bf16.msra.mxu0 %v5380
        %5398 = vmatprep.subr.bf16.mxu0 0
        %5399 = vmatpush1.bf16.msra.mxu0 %v5381
        %5400 = vmatprep.subr.bf16.mxu0 0
        %5401 = vmatpush1.bf16.msra.mxu0 %v5382
        %5402 = vmatprep.subr.bf16.mxu0 0
        %5403 = vmatpush1.bf16.msra.mxu0 %v5383
        %5404 = vmatprep.subr.bf16.mxu0 0
        %5405 = vmatpush1.bf16.msra.mxu0 %v5384
        %5406 = vmatprep.subr.bf16.mxu0 0
        %5407 = vmatpush1.bf16.msra.mxu0 %v5385
        %5408 = vmatprep.subr.bf16.mxu0 0
        %5409 = vmatpush1.bf16.msra.mxu0 %v5386
        %5410 = vmatprep.subr.bf16.mxu0 0
        %5411 = vmatpush1.bf16.msra.mxu0 %v5387
        %5412 = vmatprep.subr.bf16.mxu0 0
        %5413 = vmatpush1.bf16.msra.mxu0 0
        %5414 = vmatprep.subr.bf16.mxu0 0
        %5415 = vmatpush1.bf16.msra.mxu0 0
        %5416 = vmatprep.subr.bf16.mxu0 0
        %5417 = vmatpush1.bf16.msra.mxu0 0
        %5418 = vmatprep.subr.bf16.mxu0 0
        %5419 = vmatpush1.bf16.msra.mxu0 0
        %5420 = vmatprep.subr.bf16.mxu0 0
        %5421 = vmatpush1.bf16.msra.mxu0 0
        %5422 = vmatprep.subr.bf16.mxu0 0
        %5423 = vmatpush1.bf16.msra.mxu0 0
        %5424 = vmatprep.subr.bf16.mxu0 0
        %5425 = vmatpush1.bf16.msra.mxu0 0
        %5426 = vmatprep.subr.bf16.mxu0 0
        %5427 = vmatpush1.bf16.msra.mxu0 0
        %5428 = vmatprep.mubr.bf16.mxu0 0
        %5429 = vmatmul.mubr.bf16.gmra.mrb[0].mxu0 %v5328
        %v5430 = vpop.f32.mrb[0].mxu0
        %v5431 = vadd.f32 0.0, %v5430
        %v5432 = vpop.f32.mrb[0].mxu0
        %v5433 = vpop.f32.mrb[0].mxu0
        %v5434 = vadd.f32 0.0, %v5433
        %v5435 = vpop.f32.mrb[0].mxu0
        %5436 = vmatprep.mubr.bf16.mxu0 0
        %5437 = vmatmul.mubr.bf16.gmra.mrb[0].mxu0 %v5329
        %v5438 = vpop.f32.mrb[0].mxu0
        %v5439 = vadd.f32 0.0, %v5438
        %v5440 = vpop.f32.mrb[0].mxu0
        %v5441 = vpop.f32.mrb[0].mxu0
        %v5442 = vadd.f32 0.0, %v5441
        %v5443 = vpop.f32.mrb[0].mxu0
        %5444 = vmatprep.mubr.bf16.mxu0 0
        %5445 = vmatmul.mubr.bf16.gmra.mrb[0].mxu0 %v5330
        %v5446 = vpop.f32.mrb[0].mxu0
        %v5447 = vadd.f32 0.0, %v5446
        %v5448 = vpop.f32.mrb[0].mxu0
        %v5449 = vpop.f32.mrb[0].mxu0
        %v5450 = vadd.f32 0.0, %v5449
        %v5451 = vpop.f32.mrb[0].mxu0
        %5452 = vmatprep.mubr.bf16.mxu0 0
        %5453 = vmatmul.mubr.bf16.gmra.mrb[0].mxu0 %v5331
        %v5454 = vpop.f32.mrb[0].mxu0
        %v5455 = vadd.f32 0.0, %v5454
        %v5456 = vpop.f32.mrb[0].mxu0
        %v5457 = vpop.f32.mrb[0].mxu0
        %v5458 = vadd.f32 0.0, %v5457
        %v5459 = vpop.f32.mrb[0].mxu0
        %5460 = vdwg.mxu0
        %v5461 = vld [vmem:[#allocation21] sm:$0x1]
        %v5463 = vlaneseq
        %v5464 = vshrl.u32 %v5463, 7
        %v5465 = vsub.s32 0, %v5464
        %v5466 = vrot.slane %v5461, %v5465
        %v5468 = vmul.f32 %v5431, %v5466
        %v5469 = vmul.f32 %v5434, %v5466
        %v5470 = vmul.f32 %v5439, %v5466
        %v5471 = vmul.f32 %v5442, %v5466
        %v5472 = vmul.f32 %v5447, %v5466
        %v5473 = vmul.f32 %v5450, %v5466
        %v5474 = vmul.f32 %v5455, %v5466
        %v5475 = vmul.f32 %v5458, %v5466
        %v5476 = vld [vmem:[#allocation22] sm:$0x1]
        %v5478 = vlaneseq
        %v5479 = vshrl.u32 %v5478, 7
        %v5480 = vsub.s32 0, %v5479
        %v5481 = vrot.slane %v5476, %v5480
        %v5483 = vadd.f32 %v5468, %v5481
        %v5484 = vadd.f32 %v5469, %v5481
        %v5485 = vadd.f32 %v5470, %v5481
        %v5486 = vadd.f32 %v5471, %v5481
        %v5487 = vadd.f32 %v5472, %v5481
        %v5488 = vadd.f32 %v5473, %v5481
        %v5489 = vadd.f32 %v5474, %v5481
        %v5490 = vadd.f32 %v5475, %v5481
        %v5491 = vld [vmem:[%s597] ss:$2 sm:$0xff]
        %s5492 = scalar_lea.vmem %s597, 16 [#allocation4]
        %v5493 = vld [vmem:[%s5492] ss:$2 sm:$0xff]
        %s5494 = scalar_lea.vmem %s597, 32 [#allocation4]
        %v5495 = vld [vmem:[%s5494] ss:$2 sm:$0xff]
        %s5496 = scalar_lea.vmem %s597, 48 [#allocation4]
        %v5497 = vld [vmem:[%s5496] ss:$2 sm:$0xff]
        %s5498 = scalar_lea.vmem %s597, 64 [#allocation4]
        %v5499 = vld [vmem:[%s5498] ss:$2 sm:$0xff]
        %s5500 = scalar_lea.vmem %s597, 80 [#allocation4]
        %v5501 = vld [vmem:[%s5500] ss:$2 sm:$0xff]
        %s5502 = scalar_lea.vmem %s597, 96 [#allocation4]
        %v5503 = vld [vmem:[%s5502] ss:$2 sm:$0xff]
        %s5504 = scalar_lea.vmem %s597, 112 [#allocation4]
        %v5505 = vld [vmem:[%s5504] ss:$2 sm:$0xff]
        %s5506 = scalar_lea.vmem %s597, 128 [#allocation4]
        %v5507 = vld [vmem:[%s5506] ss:$2 sm:$0xff]
        %s5508 = scalar_lea.vmem %s597, 144 [#allocation4]
        %v5509 = vld [vmem:[%s5508] ss:$2 sm:$0xff]
        %s5510 = scalar_lea.vmem %s597, 160 [#allocation4]
        %v5511 = vld [vmem:[%s5510] ss:$2 sm:$0xff]
        %s5512 = scalar_lea.vmem %s597, 176 [#allocation4]
        %v5513 = vld [vmem:[%s5512] ss:$2 sm:$0xff]
        %s5514 = scalar_lea.vmem %s597, 192 [#allocation4]
        %v5515 = vld [vmem:[%s5514] ss:$2 sm:$0xff]
        %s5516 = scalar_lea.vmem %s597, 208 [#allocation4]
        %v5517 = vld [vmem:[%s5516] ss:$2 sm:$0xff]
        %s5518 = scalar_lea.vmem %s597, 224 [#allocation4]
        %v5519 = vld [vmem:[%s5518] ss:$2 sm:$0xff]
        %s5520 = scalar_lea.vmem %s597, 240 [#allocation4]
        %v5521 = vld [vmem:[%s5520] ss:$2 sm:$0xff]
        %s5522 = scalar_lea.vmem %s597, 1 [#allocation4]
        %v5523 = vld [vmem:[%s5522] ss:$2 sm:$0xff]
        %s5524 = scalar_lea.vmem %s597, 17 [#allocation4]
        %v5525 = vld [vmem:[%s5524] ss:$2 sm:$0xff]
        %s5526 = scalar_lea.vmem %s597, 33 [#allocation4]
        %v5527 = vld [vmem:[%s5526] ss:$2 sm:$0xff]
        %s5528 = scalar_lea.vmem %s597, 49 [#allocation4]
        %v5529 = vld [vmem:[%s5528] ss:$2 sm:$0xff]
        %s5530 = scalar_lea.vmem %s597, 65 [#allocation4]
        %v5531 = vld [vmem:[%s5530] ss:$2 sm:$0xff]
        %s5532 = scalar_lea.vmem %s597, 81 [#allocation4]
        %v5533 = vld [vmem:[%s5532] ss:$2 sm:$0xff]
        %s5534 = scalar_lea.vmem %s597, 97 [#allocation4]
        %v5535 = vld [vmem:[%s5534] ss:$2 sm:$0xff]
        %s5536 = scalar_lea.vmem %s597, 113 [#allocation4]
        %v5537 = vld [vmem:[%s5536] ss:$2 sm:$0xff]
        %s5538 = scalar_lea.vmem %s597, 129 [#allocation4]
        %v5539 = vld [vmem:[%s5538] ss:$2 sm:$0xff]
        %s5540 = scalar_lea.vmem %s597, 145 [#allocation4]
        %v5541 = vld [vmem:[%s5540] ss:$2 sm:$0xff]
        %s5542 = scalar_lea.vmem %s597, 161 [#allocation4]
        %v5543 = vld [vmem:[%s5542] ss:$2 sm:$0xff]
        %s5544 = scalar_lea.vmem %s597, 177 [#allocation4]
        %v5545 = vld [vmem:[%s5544] ss:$2 sm:$0xff]
        %s5546 = scalar_lea.vmem %s597, 193 [#allocation4]
        %v5547 = vld [vmem:[%s5546] ss:$2 sm:$0xff]
        %s5548 = scalar_lea.vmem %s597, 209 [#allocation4]
        %v5549 = vld [vmem:[%s5548] ss:$2 sm:$0xff]
        %s5550 = scalar_lea.vmem %s597, 225 [#allocation4]
        %v5551 = vld [vmem:[%s5550] ss:$2 sm:$0xff]
        %s5552 = scalar_lea.vmem %s597, 241 [#allocation4]
        %v5553 = vld [vmem:[%s5552] ss:$2 sm:$0xff]
        %v5554 = vadd.f32 %v5491, %v5523
        %v5555 = vadd.f32 %v5493, %v5525
        %v5556 = vadd.f32 %v5495, %v5527
        %v5557 = vadd.f32 %v5497, %v5529
        %v5558 = vadd.f32 %v5499, %v5531
        %v5559 = vadd.f32 %v5501, %v5533
        %v5560 = vadd.f32 %v5503, %v5535
        %v5561 = vadd.f32 %v5505, %v5537
        %v5562 = vadd.f32 %v5507, %v5539
        %v5563 = vadd.f32 %v5509, %v5541
        %v5564 = vadd.f32 %v5511, %v5543
        %v5565 = vadd.f32 %v5513, %v5545
        %v5566 = vadd.f32 %v5515, %v5547
        %v5567 = vadd.f32 %v5517, %v5549
        %v5568 = vadd.f32 %v5519, %v5551
        %v5569 = vadd.f32 %v5521, %v5553
        %v5570 = vadd.f32 %v5554, %v5555
        %v5571 = vadd.f32 %v5556, %v5557
        %v5572 = vadd.f32 %v5558, %v5559
        %v5573 = vadd.f32 %v5560, %v5561
        %v5574 = vadd.f32 %v5562, %v5563
        %v5575 = vadd.f32 %v5564, %v5565
        %v5576 = vadd.f32 %v5566, %v5567
        %v5577 = vadd.f32 %v5568, %v5569
        %v5578 = vmul.f32 %v5570, 0.25
        %v5579 = vmul.f32 %v5571, 0.25
        %v5580 = vmul.f32 %v5572, 0.25
        %v5581 = vmul.f32 %v5573, 0.25
        %v5582 = vmul.f32 %v5574, 0.25
        %v5583 = vmul.f32 %v5575, 0.25
        %v5584 = vmul.f32 %v5576, 0.25
        %v5585 = vmul.f32 %v5577, 0.25
        %v5586 = vpack.c.bf16 %v5579, %v5578
        %v5587 = vpack.c.bf16 %v5581, %v5580
        %v5588 = vpack.c.bf16 %v5583, %v5582
        %v5589 = vpack.c.bf16 %v5585, %v5584
        %v5590 = vld [vmem:[#allocation24] sm:$0xf]
        %v5591 = vld [vmem:[#allocation24 + $0x4] sm:$0xf]
        %v5592 = vld [vmem:[#allocation24 + $0x8] sm:$0xf]
        %v5593 = vld [vmem:[#allocation24 + $0xc] sm:$0xf]
        %v5594 = vld [vmem:[#allocation24 + $0x10] sm:$0xf]
        %v5595 = vld [vmem:[#allocation24 + $0x14] sm:$0xf]
        %v5596 = vld [vmem:[#allocation24 + $0x18] sm:$0xf]
        %v5597 = vld [vmem:[#allocation24 + $0x1c] sm:$0xf]
        %v5598 = vld [vmem:[#allocation24 + $0x20] sm:$0xf]
        %v5599 = vld [vmem:[#allocation24 + $0x24] sm:$0xf]
        %v5600 = vld [vmem:[#allocation24 + $0x28] sm:$0xf]
        %v5601 = vld [vmem:[#allocation24 + $0x2c] sm:$0xf]
        %v5602 = vld [vmem:[#allocation24 + $0x30] sm:$0xf]
        %v5603 = vld [vmem:[#allocation24 + $0x34] sm:$0xf]
        %v5604 = vld [vmem:[#allocation24 + $0x38] sm:$0xf]
        %v5605 = vld [vmem:[#allocation24 + $0x3c] sm:$0xf]
        %v5622 = vunpack.c.l.b16 %v5590
        %v5623 = vunpack.c.l.b16 %v5591
        %v5624 = vunpack.c.l.b16 %v5592
        %v5625 = vunpack.c.l.b16 %v5593
        %v5626 = vunpack.c.l.b16 %v5594
        %v5627 = vunpack.c.l.b16 %v5595
        %v5628 = vunpack.c.l.b16 %v5596
        %v5629 = vunpack.c.l.b16 %v5597
        %v5630 = vunpack.c.l.b16 %v5598
        %v5631 = vunpack.c.l.b16 %v5599
        %v5632 = vunpack.c.l.b16 %v5600
        %v5633 = vunpack.c.l.b16 %v5601
        %v5634 = vunpack.c.l.b16 %v5602
        %v5635 = vunpack.c.l.b16 %v5603
        %v5636 = vunpack.c.l.b16 %v5604
        %v5637 = vunpack.c.l.b16 %v5605
        %v5638 = vpack.c.b16 %v5623, %v5622
        %v5639 = vpack.c.b16 %v5625, %v5624
        %v5640 = vpack.c.b16 %v5627, %v5626
        %v5641 = vpack.c.b16 %v5629, %v5628
        %v5642 = vpack.c.b16 %v5631, %v5630
        %v5643 = vpack.c.b16 %v5633, %v5632
        %v5644 = vpack.c.b16 %v5635, %v5634
        %v5645 = vpack.c.b16 %v5637, %v5636
        %5654 = vmatprep.subr.bf16.mxu0 0
        %5655 = vmatpush1.bf16.msra.mxu0 %v5638
        %5656 = vmatprep.subr.bf16.mxu0 0
        %5657 = vmatpush1.bf16.msra.mxu0 %v5639
        %5658 = vmatprep.subr.bf16.mxu0 0
        %5659 = vmatpush1.bf16.msra.mxu0 %v5640
        %5660 = vmatprep.subr.bf16.mxu0 0
        %5661 = vmatpush1.bf16.msra.mxu0 %v5641
        %5662 = vmatprep.subr.bf16.mxu0 0
        %5663 = vmatpush1.bf16.msra.mxu0 %v5642
        %5664 = vmatprep.subr.bf16.mxu0 0
        %5665 = vmatpush1.bf16.msra.mxu0 %v5643
        %5666 = vmatprep.subr.bf16.mxu0 0
        %5667 = vmatpush1.bf16.msra.mxu0 %v5644
        %5668 = vmatprep.subr.bf16.mxu0 0
        %5669 = vmatpush1.bf16.msra.mxu0 %v5645
        %5670 = vmatprep.subr.bf16.mxu0 0
        %5671 = vmatpush1.bf16.msra.mxu0 0
        %5672 = vmatprep.subr.bf16.mxu0 0
        %5673 = vmatpush1.bf16.msra.mxu0 0
        %5674 = vmatprep.subr.bf16.mxu0 0
        %5675 = vmatpush1.bf16.msra.mxu0 0
        %5676 = vmatprep.subr.bf16.mxu0 0
        %5677 = vmatpush1.bf16.msra.mxu0 0
        %5678 = vmatprep.subr.bf16.mxu0 0
        %5679 = vmatpush1.bf16.msra.mxu0 0
        %5680 = vmatprep.subr.bf16.mxu0 0
        %5681 = vmatpush1.bf16.msra.mxu0 0
        %5682 = vmatprep.subr.bf16.mxu0 0
        %5683 = vmatpush1.bf16.msra.mxu0 0
        %5684 = vmatprep.subr.bf16.mxu0 0
        %5685 = vmatpush1.bf16.msra.mxu0 0
        %5686 = vmatprep.mubr.bf16.mxu0 0
        %5687 = vmatmul.mubr.bf16.gmra.mrb[0].mxu0 %v5586
        %v5688 = vpop.f32.mrb[0].mxu0
        %v5689 = vadd.f32 0.0, %v5688
        %v5690 = vpop.f32.mrb[0].mxu0
        %v5691 = vpop.f32.mrb[0].mxu0
        %v5692 = vadd.f32 0.0, %v5691
        %v5693 = vpop.f32.mrb[0].mxu0
        %5694 = vmatprep.mubr.bf16.mxu0 0
        %5695 = vmatmul.mubr.bf16.gmra.mrb[0].mxu0 %v5587
        %v5696 = vpop.f32.mrb[0].mxu0
        %v5697 = vadd.f32 0.0, %v5696
        %v5698 = vpop.f32.mrb[0].mxu0
        %v5699 = vpop.f32.mrb[0].mxu0
        %v5700 = vadd.f32 0.0, %v5699
        %v5701 = vpop.f32.mrb[0].mxu0
        %5702 = vmatprep.mubr.bf16.mxu0 0
        %5703 = vmatmul.mubr.bf16.gmra.mrb[0].mxu0 %v5588
        %v5704 = vpop.f32.mrb[0].mxu0
        %v5705 = vadd.f32 0.0, %v5704
        %v5706 = vpop.f32.mrb[0].mxu0
        %v5707 = vpop.f32.mrb[0].mxu0
        %v5708 = vadd.f32 0.0, %v5707
        %v5709 = vpop.f32.mrb[0].mxu0
        %5710 = vmatprep.mubr.bf16.mxu0 0
        %5711 = vmatmul.mubr.bf16.gmra.mrb[0].mxu0 %v5589
        %v5712 = vpop.f32.mrb[0].mxu0
        %v5713 = vadd.f32 0.0, %v5712
        %v5714 = vpop.f32.mrb[0].mxu0
        %v5715 = vpop.f32.mrb[0].mxu0
        %v5716 = vadd.f32 0.0, %v5715
        %v5717 = vpop.f32.mrb[0].mxu0
        %5718 = vdwg.mxu0
        %v5719 = vld [vmem:[#allocation25] sm:$0x1]
        %v5721 = vlaneseq
        %v5722 = vshrl.u32 %v5721, 7
        %v5723 = vsub.s32 0, %v5722
        %v5724 = vrot.slane %v5719, %v5723
        %v5726 = vmul.f32 %v5689, %v5724
        %v5727 = vmul.f32 %v5692, %v5724
        %v5728 = vmul.f32 %v5697, %v5724
        %v5729 = vmul.f32 %v5700, %v5724
        %v5730 = vmul.f32 %v5705, %v5724
        %v5731 = vmul.f32 %v5708, %v5724
        %v5732 = vmul.f32 %v5713, %v5724
        %v5733 = vmul.f32 %v5716, %v5724
        %v5734 = vld [vmem:[#allocation27] sm:$0x1]
        %v5736 = vlaneseq
        %v5737 = vshrl.u32 %v5736, 7
        %v5738 = vsub.s32 0, %v5737
        %v5739 = vrot.slane %v5734, %v5738
        %v5741 = vadd.f32 %v5726, %v5739
        %v5742 = vadd.f32 %v5727, %v5739
        %v5743 = vadd.f32 %v5728, %v5739
        %v5744 = vadd.f32 %v5729, %v5739
        %v5745 = vadd.f32 %v5730, %v5739
        %v5746 = vadd.f32 %v5731, %v5739
        %v5747 = vadd.f32 %v5732, %v5739
        %v5748 = vadd.f32 %v5733, %v5739
        %v5749 = vadd.f32 %v5483, %v5741
        %v5750 = vadd.f32 %v5484, %v5742
        %v5751 = vadd.f32 %v5485, %v5743
        %v5752 = vadd.f32 %v5486, %v5744
        %v5753 = vadd.f32 %v5487, %v5745
        %v5754 = vadd.f32 %v5488, %v5746
        %v5755 = vadd.f32 %v5489, %v5747
        %v5756 = vadd.f32 %v5490, %v5748
        %v5757 = vmax.f32 %v5749, 0.0
        %v5758 = vmax.f32 %v5750, 0.0
        %v5759 = vmax.f32 %v5751, 0.0
        %v5760 = vmax.f32 %v5752, 0.0
        %v5761 = vmax.f32 %v5753, 0.0
        %v5762 = vmax.f32 %v5754, 0.0
        %v5763 = vmax.f32 %v5755, 0.0
        %v5764 = vmax.f32 %v5756, 0.0
        %5765 = vst [vmem:[%s699] sm:$0xff] %v5757
        %5766 = vst [vmem:[%s699 + $0x8] sm:$0xff] %v5758
        %5767 = vst [vmem:[%s699 + $0x10] sm:$0xff] %v5759
        %5768 = vst [vmem:[%s699 + $0x18] sm:$0xff] %v5760
        %5769 = vst [vmem:[%s699 + $0x20] sm:$0xff] %v5761
        %5770 = vst [vmem:[%s699 + $0x28] sm:$0xff] %v5762
        %5771 = vst [vmem:[%s699 + $0x30] sm:$0xff] %v5763
        %5772 = vst [vmem:[%s699 + $0x38] sm:$0xff] %v5764
        %s5773 = sand.u32 %s367, 1
        %s5774 = scalar_lea.sflag [#allocation6], %s5773
        %s5775 = sand.u32 %s367, 1
        %s5776 = smul.addr %s5775, 64
        %s5777 = scalar_lea.vmem [#allocation28], %s5776
        // Predicated region
        $region141: #{tpu_custom_call.1} parent=79 // pred_check
          %p5778 = pneg %p377
        $region142: #{tpu_custom_call.1} parent=79 // pred_check_branch
          %5780 = sbr.rel (%p5778) target = $region144
        $region143: #{tpu_custom_call.1} parent=79 // pred_region
          %s5782 = ssub.s32 1024, 1024
          %5783 = vsyncadd %s5774, %s5782
          %s5784 = smul.addr %s39, 8
          %s5785 = smul.addr %s5784, 128
          %s5786 = scalar_lea.hbm %s15, %s5785
          %s5787 = sshll.u32 %s5777, 4
          %s5788 = int_to_ptr.vmem [resolvable:$true] %s5787
          %5793 = dma.vmem_to_hbm [thread:$0]  %s5788, 1024, %s5786, %s5774, 128, 128, 8
        $region144: #{tpu_custom_call.1} parent=79 // pred_fallthru
          _
      $region80: #{tpu_custom_call.1} parent=5 // pred_fallthru
        _
      %p5794 = scmp.le.s32.totalorder 2, %s34
      // Predicated region
      $region145: #{tpu_custom_call.1} parent=5 // pred_check
        %p5795 = pneg %p5794
      $region146: #{tpu_custom_call.1} parent=5 // pred_check_branch
        %5797 = sbr.rel (%p5795) target = $region148
      $region147: #{tpu_custom_call.1} parent=5 // pred_region
        %s5798 = ssub.s32 %s34, 2
        // Predicated region
        $region149: #{tpu_custom_call.1} parent=147 // pred_check
          %p5799 = pneg %p383
        $region150: #{tpu_custom_call.1} parent=147 // pred_check_branch
          %5801 = sbr.rel (%p5799) target = $region152
        $region151: #{tpu_custom_call.1} parent=147 // pred_region
          %s5802 = sand.u32 %s368, 1
          %s5803 = scalar_lea.sflag [#allocation6], %s5802
          %s5804 = sand.u32 %s368, 1
          %s5805 = smul.addr %s5804, 64
          %s5806 = scalar_lea.vmem [#allocation28], %s5805
          %5807 = dma.done %s5803, 1024
        $region152: #{tpu_custom_call.1} parent=147 // pred_fallthru
          _
      $region148: #{tpu_custom_call.1} parent=5 // pred_fallthru
        _
    $region6: #{tpu_custom_call.1} parent=1 // loop_footer
      %s38 = sadd.s32 1, %s34
    $region7: #{tpu_custom_call.1} parent=1 // loop_footer_branch
      %33 = sbr.rel target = $region3
    $region8: #{tpu_custom_call.1} parent=1 // loop_exit
      _
    %5808 = vsyncpa [#allocation5], 1
    %s5809 = scalar_lea.sflag [#allocation5], 1
    %5810 = vsyncpa %s5809, 1
    %5811 = vsyncpa [#allocation8], 1
    %5812 = vsyncpa [#allocation11], 1
    %5813 = vsyncpa [#allocation14], 1
    %5814 = vsyncpa [#allocation17], 1
    %5815 = vsyncpa [#allocation20], 1
    %5816 = vsyncpa [#allocation23], 1
    %5817 = vsyncpa [#allocation26], 1
    %5818 = vsyncpa [#allocation6], 1
    %s5819 = scalar_lea.sflag [#allocation6], 1
    %5820 = vsyncpa %s5819, 1

</llo_original>
